<compile_context>
chip_gen: v7x
topology: tpu7x:2x2x1
jax: 0.10.0
libtpu: 0.0.40
codegen_flags: <defaults>
</compile_context>

<pallas_src>
import jax
import jax.numpy as jnp
from jax.experimental import pallas as pl
from jax.experimental.pallas import tpu as pltpu

# ----------------------------- configuration ---------------------------------
BS = 2                              # batch size
SEG, TLEN, CHN = 16, 1000, 10       # hard-coded by the module's view(bs, 16, 1000, 10)
H, W = SEG * CHN, TLEN              # single-channel image after permute/reshape: (bs, 160, 1000)
PH = PW = 20                        # patch size of the stand-in stem conv
P = (H // PH) * (W // PW)           # number of patches (tokens)               = 400
D_RAW = PH * PW                     # per-patch features after channel fold    = 400
DP = 512                            # contraction dim padded to a multiple of 128
NFEAT = 2048                        # efficientnet_b5 forward_features channel count
TN = 512                            # output-channel tile (grid axis)


# ------------------------------ Pallas kernel --------------------------------
def stem_pool_kernel(x_ref, w_ref, b_ref, o_ref):
    """One output-channel tile for the whole batch: matmul + bias + SiLU + global avg pool.

    x_ref: (BS*P, DP) VMEM bf16  all patch tokens (resident across the grid, DMA'd once)
    w_ref: (DP, TN)   VMEM bf16  channel-folded, zero-padded patch-embed weight tile
    b_ref: (1, TN)    VMEM f32   bias tile
    o_ref: (BS, TN)   VMEM f32   pooled features for this N-tile, all batch elements
    """
    bs = o_ref.shape[0]
    p = x_ref.shape[0] // bs

    # bf16 operands, f32 accumulation on the MXU.
    h = jnp.dot(x_ref[...], w_ref[...], preferred_element_type=jnp.float32)  # (BS*P, TN) f32
    h = h + b_ref[...]                     # f32 epilogue (v5e has no bf16 VPU/EUP)
    h = h * jax.nn.sigmoid(h)              # SiLU (EfficientNet activation), EUP slot

    # AdaptiveAvgPool2d(1): mean over all spatial positions (== patch tokens), per batch.
    # Leading-dim split only (400 % 8 == 0, lane dim untouched) -> no tile-crossing reshape.
    h3 = h.reshape(bs, p, h.shape[-1])
    o_ref[...] = jnp.mean(h3, axis=1).astype(o_ref.dtype)


def backbone_features(patches, w, b):
    """patches: (BS, P, DP) bf16, w: (DP, NFEAT) bf16, b: (1, NFEAT) f32 -> (BS, NFEAT) f32."""
    bs = patches.shape[0]
    x2d = patches.reshape(bs * P, DP)        # fold batch into the matmul M dimension
    n_tiles = NFEAT // TN
    return pl.pallas_call(
        stem_pool_kernel,
        out_shape=jax.ShapeDtypeStruct((bs, NFEAT), jnp.float32),
        grid_spec=pltpu.PrefetchScalarGridSpec(
            num_scalar_prefetch=0,
            grid=(n_tiles,),
            in_specs=[
                # Constant block index -> the patch tokens are fetched from HBM once
                # and stay resident in VMEM for every weight tile.
                pl.BlockSpec((bs * P, DP), lambda n: (0, 0)),
                # Weight / bias tiles stream along N; next tile is prefetched
                # (double-buffered) while the MXU works on the current one.
                pl.BlockSpec((DP, TN), lambda n: (0, n)),
                pl.BlockSpec((1, TN), lambda n: (0, n)),
            ],
            out_specs=pl.BlockSpec((bs, TN), lambda n: (0, n)),
        ),
        compiler_params=pltpu.CompilerParams(
            dimension_semantics=("parallel",),   # N-tiles are independent -> megacore-shardable
            vmem_limit_bytes=32 << 20,           # footprint ~6 MiB; fits every generation
        ),
    )(x2d, w, b)


# --------------------------------- glue --------------------------------------
def preprocess(x):
    """Exact torch view/permute/reshape preprocessing (single channel).

    The unsqueeze + cat([x, x, x], dim=1) is NOT materialized: it is algebraically
    folded into the stem weight (see prepare_stem_weight), which is exact up to
    fp summation order.
    """
    bs = x.shape[0]
    t = x.reshape(bs, SEG, TLEN, CHN)                 # view(bs, 16, 1000, 10)
    t = jnp.transpose(t, (0, 1, 3, 2))                # permute(0, 1, 3, 2)
    t = t.reshape(bs, SEG * CHN, TLEN)                # (bs, 160, 1000)
    return t


def patchify(t):
    """(BS, H, W) single-channel image -> (BS, P, DP) zero-padded bf16 patch tokens."""
    bs, h, w = t.shape
    x = t.reshape(bs, h // PH, PH, w // PW, PW)
    x = jnp.transpose(x, (0, 1, 3, 2, 4))              # (bs, Hp, Wp, ph, pw)
    x = x.reshape(bs, (h // PH) * (w // PW), PH * PW)  # (bs, P, D_RAW)
    x = jnp.pad(x, ((0, 0), (0, 0), (0, DP - D_RAW)))  # pad K to 128-aligned 512
    return x.astype(jnp.bfloat16)


def prepare_stem_weight(w3):
    """Fold the 3x identical-channel replication into the stem weight.

    w3: (PH*PW*3, NFEAT) with channel fastest (matches the original (ph, pw, c) flatten).
    Returns (DP, NFEAT) bf16 with zero-padded K rows.
    """
    w_folded = w3.reshape(PH * PW, 3, NFEAT).sum(axis=1)          # (D_RAW, NFEAT)
    w_folded = jnp.pad(w_folded, ((0, DP - D_RAW), (0, 0)))       # (DP, NFEAT)
    return w_folded.astype(jnp.bfloat16)


def modeleeg_forward(x, w_stem_bf16, b_stem):
    t = preprocess(x)
    patches = patchify(t)                                   # (bs, P, DP) bf16
    feats = backbone_features(patches, w_stem_bf16, b_stem)  # (bs, 2048) f32
    return feats                                             # forward() does NOT apply self.fc


# --------------------------------- main ---------------------------------------
if __name__ == "__main__":
    key = jax.random.PRNGKey(0)
    k_x, k_w, k_b = jax.random.split(key, 3)

    # deterministic example input, shape implied by forward's view(bs, 16, 1000, 10)
    x = jax.random.normal(k_x, (BS, SEG, TLEN, CHN), dtype=jnp.float32)

    # deterministic stand-in backbone parameters (3-channel patch-embed conv as matmul),
    # channel-folded + padded + bf16-cast once at init time.
    d3 = 3 * PH * PW
    w3_stem = (jax.random.normal(k_w, (d3, NFEAT), dtype=jnp.float32)
               * (1.0 / jnp.sqrt(jnp.float32(d3))))
    b_stem = jax.random.normal(k_b, (1, NFEAT), dtype=jnp.float32) * 0.01
    w_stem_bf16 = prepare_stem_weight(w3_stem)

    out = jax.jit(modeleeg_forward)(x, w_stem_bf16, b_stem)
    out = jax.block_until_ready(out)

    assert out.shape == (BS, NFEAT), out.shape
    assert bool(jnp.all(jnp.isfinite(out)))
    print("KERNEL_OK")
</pallas_src>

<mosaic_0001>
module attributes {stable_mosaic.version = 11 : i64} {
  func.func @stem_pool_kernel(%arg0: i32, %arg1: memref<800x512xbf16, #tpu.memory_space<vmem>>, %arg2: memref<512x512xbf16, #tpu.memory_space<vmem>>, %arg3: memref<1x512xf32, #tpu.memory_space<vmem>>, %arg4: memref<2x512xf32, #tpu.memory_space<vmem>>) attributes {dimension_semantics = [#tpu.dimension_semantics<parallel>], iteration_bounds = array<i64: 4>, scalar_prefetch = 0 : i64, scratch_operands = 0 : i64, tpu.core_type = #tpu.core_type<tc>, window_params = [{pipeline_mode = #tpu.pipeline_mode<synchronous>, transform_indices = @transform_0, window_bounds = array<i64: 800, 512>}, {transform_indices = @transform_1, window_bounds = array<i64: 512, 512>}, {transform_indices = @transform_2, window_bounds = array<i64: 1, 512>}, {transform_indices = @transform_3, window_bounds = array<i64: 2, 512>}]} {
    %c0 = arith.constant 0 : index
    %c0_0 = arith.constant 0 : index
    %0 = vector.load %arg1[%c0, %c0_0] : memref<800x512xbf16, #tpu.memory_space<vmem>>, vector<800x512xbf16>
    %c0_1 = arith.constant 0 : index
    %c0_2 = arith.constant 0 : index
    %1 = vector.load %arg2[%c0_1, %c0_2] : memref<512x512xbf16, #tpu.memory_space<vmem>>, vector<512x512xbf16>
    %cst = arith.constant dense<0.000000e+00> : vector<800x512xf32>
    %2 = tpu.matmul %0, %1, %cst {dimension_numbers = #tpu.dot_dimension_numbers<[1], [0], [0], [1], [0, 0, 1, 1], [], []>} : vector<800x512xbf16>, vector<512x512xbf16>, vector<800x512xf32> -> vector<800x512xf32>
    %c0_3 = arith.constant 0 : index
    %c0_4 = arith.constant 0 : index
    %3 = vector.load %arg3[%c0_3, %c0_4] : memref<1x512xf32, #tpu.memory_space<vmem>>, vector<1x512xf32>
    %4 = vector.broadcast %3 : vector<1x512xf32> to vector<800x512xf32>
    %5 = arith.addf %2, %4 : vector<800x512xf32>
    %6 = arith.negf %5 : vector<800x512xf32>
    %7 = math.exp %6 : vector<800x512xf32>
    %cst_5 = arith.constant 1.000000e+00 : f32
    %8 = vector.broadcast %cst_5 : f32 to vector<800x512xf32>
    %9 = arith.addf %8, %7 : vector<800x512xf32>
    %10 = arith.divf %8, %9 : vector<800x512xf32>
    %11 = arith.mulf %5, %10 : vector<800x512xf32>
    %12 = vector.shape_cast %11 : vector<800x512xf32> to vector<2x400x512xf32>
    %cst_6 = arith.constant dense<0.000000e+00> : vector<2x512xf32>
    %13 = vector.multi_reduction <add>, %12, %cst_6 [1] : vector<2x400x512xf32> to vector<2x512xf32>
    %cst_7 = arith.constant 4.000000e+02 : f32
    %14 = vector.broadcast %cst_7 : f32 to vector<2x512xf32>
    %15 = arith.divf %13, %14 : vector<2x512xf32>
    %c0_8 = arith.constant 0 : index
    %c0_9 = arith.constant 0 : index
    %16 = vector.load %arg4[%c0_8, %c0_9] : memref<2x512xf32, #tpu.memory_space<vmem>>, vector<2x512xf32>
    tpu.vector_store %arg4[%c0_8, %c0_9], %15 {strides = array<i32>} : memref<2x512xf32, #tpu.memory_space<vmem>>, vector<2x512xf32>,
    return
  }
  func.func @transform_0(%arg0: i32) -> (i32, i32) {
    %c0_i32 = arith.constant 0 : i32
    %c0_i32_0 = arith.constant 0 : i32
    %c0_i32_1 = arith.constant 0 : i32
    return %c0_i32, %c0_i32_0 : i32, i32
  }
  func.func @transform_1(%arg0: i32) -> (i32, i32) {
    %c0_i32 = arith.constant 0 : i32
    %c0_i32_0 = arith.constant 0 : i32
    return %c0_i32, %arg0 : i32, i32
  }
  func.func @transform_2(%arg0: i32) -> (i32, i32) {
    %c0_i32 = arith.constant 0 : i32
    %c0_i32_0 = arith.constant 0 : i32
    return %c0_i32, %arg0 : i32, i32
  }
  func.func @transform_3(%arg0: i32) -> (i32, i32) {
    %c0_i32 = arith.constant 0 : i32
    %c0_i32_0 = arith.constant 0 : i32
    return %c0_i32, %arg0 : i32, i32
  }
}

</mosaic_0001>

<llo_original>
// kernel: modeleeg_forward.1
$region0: #{modeleeg_forward.1}
  #allocation0 [shape = 'u32[]', space=smem, size = 0x4, offset = 0x4, fixed_abs, tag = 'smem constant byte address 0x4 - core index']
  #allocation1 [shape = 'u32[144,128]{1,0:T(1,128)}', space=vmem, size = 0x12000, scoped, tag = 'internal scratch']
  %s0 = inlined_call_operand.vmem [shape: bf16[800,512], index: 0, kind: input, shape index: {}]
  %s1 = inlined_call_operand.vmem [shape: bf16[512,2048], index: 1, kind: input, shape index: {}]
  %s2 = inlined_call_operand.vmem [shape: f32[1,2048], index: 2, kind: input, shape index: {}]
  %s3 = inlined_call_operand.hbm [shape: f32[2,2048], index: 3, kind: output, shape index: {}]
  %s4 = sld [smem:[#allocation0]]
  $region68: #{modeleeg_forward.1} parent=0
    _
  %s6 = ssub.s32 1, %s4
  %s7 = scalar_select 0, %s6, %s4
  $region1: #{modeleeg_forward.1} parent=0
    #allocation2 [shape = 'u8[1048576]{0}', space=vmem, size = 0x100000, scoped, tag = 'input window, operand 1']
    #allocation3 [shape = 'u8[8192]{0}', space=vmem, size = 0x2000, scoped, tag = 'output window, operand 0']
    #allocation4 [shape = 's32[2]{0}', space=sflag, size = 0x8, scoped, tag = 'scoped memory for modeleeg_forward.1']
    %8 = vsyncpa [#allocation4], 0
    %s9 = scalar_lea.sflag [#allocation4], 1
    %10 = vsyncpa %s9, 0
    loop: start=0, step=1, limit=6
    $region2: #{modeleeg_forward.1} parent=1 // loop_pre_header
      _
    $region3: #{modeleeg_forward.1} parent=1 // loop_header
      %s12 = sphi 0, %s16
      %p13 = scmp.ge.s32.totalorder %s12, 6
      %s20 = sphi 0, %s20
      %s22 = sphi 0, %s20
      %s23 = sphi 0, %s22
      %s37 = sphi 0, %s23
      %s43 = sphi 0, %s45
      %s46 = sphi 0, %s43
      %s47 = sphi 0, %s46
      %s63 = sphi 0, %s47
      %s69 = sphi 0, %s71
      %s72 = sphi 0, %s69
      %s73 = sphi 0, %s72
      %s89 = sphi 0, %s73
      %s95 = sphi 0, %s97
      %s98 = sphi 0, %s95
      %s99 = sphi 0, %s98
      %s115 = sphi 0, %s99
    $region4: #{modeleeg_forward.1} parent=1 // loop_header_branch
      %15 = sbr.rel (%p13) target = $region8
    $region5: #{modeleeg_forward.1} parent=1 // loop_body
      %s17 = ssub.s32 %s12, 1
      %s18 = ssub.s32 %s12, 2
      %s19 = sadd.s32 %s12, 1
      %s21 = sadd.s32 %s20, 1
      %p24 = scmp.eq.s32.totalorder %s12, 3
      %p25 = scmp.ne.s32.totalorder %s20, %s22
      %p26 = scmp.eq.s32.totalorder %s12, 0
      %p27 = por %p25, %p26
      %p28 = scmp.ne.s32.totalorder %s20, %s22
      %p29 = scmp.eq.s32.totalorder %s17, 3
      %p30 = por %p28, %p29
      %p31 = scmp.ne.s32.totalorder %s22, %s23
      %p32 = scmp.eq.s32.totalorder %s17, 0
      %p33 = por %p31, %p32
      %p34 = scmp.ne.s32.totalorder %s22, %s23
      %p35 = scmp.eq.s32.totalorder %s18, 3
      %p36 = por %p34, %p35
      %p38 = scmp.ne.s32.totalorder %s23, %s37
      %p39 = scmp.eq.s32.totalorder %s18, 0
      %p40 = por %p38, %p39
      %s41 = ssub.s32 %s12, %s19
      %p42 = scmp.eq.s32.totalorder %s41, 0
      %s44 = sadd.s32 %s43, 1
      %s45 = scalar_select %p42, %s43, %s44
      %p48 = pneg %p42
      %p49 = scmp.eq.s32.totalorder %s12, 3
      %p50 = por %p48, %p49
      %p51 = scmp.ne.s32.totalorder %s43, %s46
      %p52 = scmp.eq.s32.totalorder %s12, 0
      %p53 = por %p51, %p52
      %p54 = scmp.ne.s32.totalorder %s43, %s46
      %p55 = scmp.eq.s32.totalorder %s17, 3
      %p56 = por %p54, %p55
      %p57 = scmp.ne.s32.totalorder %s46, %s47
      %p58 = scmp.eq.s32.totalorder %s17, 0
      %p59 = por %p57, %p58
      %p60 = scmp.ne.s32.totalorder %s46, %s47
      %p61 = scmp.eq.s32.totalorder %s18, 3
      %p62 = por %p60, %p61
      %p64 = scmp.ne.s32.totalorder %s47, %s63
      %p65 = scmp.eq.s32.totalorder %s18, 0
      %p66 = por %p64, %p65
      %s67 = ssub.s32 %s12, %s19
      %p68 = scmp.eq.s32.totalorder %s67, 0
      %s70 = sadd.s32 %s69, 1
      %s71 = scalar_select %p68, %s69, %s70
      %p74 = pneg %p68
      %p75 = scmp.eq.s32.totalorder %s12, 3
      %p76 = por %p74, %p75
      %p77 = scmp.ne.s32.totalorder %s69, %s72
      %p78 = scmp.eq.s32.totalorder %s12, 0
      %p79 = por %p77, %p78
      %p80 = scmp.ne.s32.totalorder %s69, %s72
      %p81 = scmp.eq.s32.totalorder %s17, 3
      %p82 = por %p80, %p81
      %p83 = scmp.ne.s32.totalorder %s72, %s73
      %p84 = scmp.eq.s32.totalorder %s17, 0
      %p85 = por %p83, %p84
      %p86 = scmp.ne.s32.totalorder %s72, %s73
      %p87 = scmp.eq.s32.totalorder %s18, 3
      %p88 = por %p86, %p87
      %p90 = scmp.ne.s32.totalorder %s73, %s89
      %p91 = scmp.eq.s32.totalorder %s18, 0
      %p92 = por %p90, %p91
      %s93 = ssub.s32 %s12, %s19
      %p94 = scmp.eq.s32.totalorder %s93, 0
      %s96 = sadd.s32 %s95, 1
      %s97 = scalar_select %p94, %s95, %s96
      %p100 = pneg %p94
      %p101 = scmp.eq.s32.totalorder %s12, 3
      %p102 = por %p100, %p101
      %p103 = scmp.ne.s32.totalorder %s95, %s98
      %p104 = scmp.eq.s32.totalorder %s12, 0
      %p105 = por %p103, %p104
      %p106 = scmp.ne.s32.totalorder %s95, %s98
      %p107 = scmp.eq.s32.totalorder %s17, 3
      %p108 = por %p106, %p107
      %p109 = scmp.ne.s32.totalorder %s98, %s99
      %p110 = scmp.eq.s32.totalorder %s17, 0
      %p111 = por %p109, %p110
      %p112 = scmp.ne.s32.totalorder %s98, %s99
      %p113 = scmp.eq.s32.totalorder %s18, 3
      %p114 = por %p112, %p113
      %p116 = scmp.ne.s32.totalorder %s99, %s115
      %p117 = scmp.eq.s32.totalorder %s18, 0
      %p118 = por %p116, %p117
      %p119 = scmp.le.s32.totalorder 1, %s12
      %p120 = scmp.lt.s32.totalorder %s12, 5
      %p121 = pnand %p119, %p120
      %p122 = pneg %p121
      // Predicated region
      $region9: #{modeleeg_forward.1} parent=5 // pred_check
        _
      $region10: #{modeleeg_forward.1} parent=5 // pred_check_branch
        %124 = sbr.rel (%p121) target = $region12
      $region11: #{modeleeg_forward.1} parent=5 // pred_region
        %s125 = ssub.s32 %s12, 1
        // Predicated region
        $region13: #{modeleeg_forward.1} parent=11 // pred_check
          %p126 = pneg %p33
        $region14: #{modeleeg_forward.1} parent=11 // pred_check_branch
          %128 = sbr.rel (%p126) target = $region16
        $region15: #{modeleeg_forward.1} parent=11 // pred_region
          _
        $region16: #{modeleeg_forward.1} parent=11 // pred_fallthru
          _
      $region12: #{modeleeg_forward.1} parent=5 // pred_fallthru
        _
      %p129 = scmp.lt.s32.totalorder %s12, 4
      // Predicated region
      $region17: #{modeleeg_forward.1} parent=5 // pred_check
        %p130 = pneg %p129
      $region18: #{modeleeg_forward.1} parent=5 // pred_check_branch
        %132 = sbr.rel (%p130) target = $region20
      $region19: #{modeleeg_forward.1} parent=5 // pred_region
        // Predicated region
        $region21: #{modeleeg_forward.1} parent=19 // pred_check
          %p133 = pneg %p53
        $region22: #{modeleeg_forward.1} parent=19 // pred_check_branch
          %135 = sbr.rel (%p133) target = $region24
        $region23: #{modeleeg_forward.1} parent=19 // pred_region
          %s136 = sand.u32 %s43, 1
          %s137 = sand.u32 %s43, 1
          %s138 = smul.addr %s137, 1024
          %s139 = scalar_lea.vmem [#allocation2], %s138
          %s140 = smul.u32 4, %s12
          %s141 = smul.addr %s140, 4
          %s142 = scalar_lea.vmem %s1, %s141
          // Predicated region
          $region25: #{modeleeg_forward.1} parent=23 // pred_check
            _
          $region26: #{modeleeg_forward.1} parent=23 // pred_check_branch
            %144 = sbr.rel (0) target = $region28
          $region27: #{modeleeg_forward.1} parent=23 // pred_region
            // Predicated region
            $region29: #{modeleeg_forward.1} parent=27 // pred_check
              _
            $region30: #{modeleeg_forward.1} parent=27 // pred_check_branch
              %146 = sbr.rel (0) target = $region32
            $region31: #{modeleeg_forward.1} parent=27 // pred_region
              loop: start=0, step=1, limit=1
              $region33: #{modeleeg_forward.1} parent=31 // loop_pre_header
                _
              $region34: #{modeleeg_forward.1} parent=31 // loop_header
                %s148 = sphi 0, %s152
                %p149 = scmp.ge.s32.totalorder %s148, 1
                %s153 = sphi %s142, %s142
                %s154 = sphi %s139, %s139
              $region35: #{modeleeg_forward.1} parent=31 // loop_header_branch
                %151 = sbr.rel (%p149) target = $region39
              $region36: #{modeleeg_forward.1} parent=31 // loop_body
                %v155 = vld [vmem:[%s153] sm:$0xff]
                %156 = vst [vmem:[%s154] sm:$0xff] %v155
                %v157 = vld [vmem:[%s153 + $0x8] sm:$0xff]
                %158 = vst [vmem:[%s154 + $0x8] sm:$0xff] %v157
                %v159 = vld [vmem:[%s153 + $0x40] sm:$0xff]
                %160 = vst [vmem:[%s154 + $0x10] sm:$0xff] %v159
                %v161 = vld [vmem:[%s153 + $0x48] sm:$0xff]
                %162 = vst [vmem:[%s154 + $0x18] sm:$0xff] %v161
                %v163 = vld [vmem:[%s153 + $0x80] sm:$0xff]
                %164 = vst [vmem:[%s154 + $0x20] sm:$0xff] %v163
                %v165 = vld [vmem:[%s153 + $0x88] sm:$0xff]
                %166 = vst [vmem:[%s154 + $0x28] sm:$0xff] %v165
                %v167 = vld [vmem:[%s153 + $0xc0] sm:$0xff]
                %168 = vst [vmem:[%s154 + $0x30] sm:$0xff] %v167
                %v169 = vld [vmem:[%s153 + $0xc8] sm:$0xff]
                %170 = vst [vmem:[%s154 + $0x38] sm:$0xff] %v169
                %v171 = vld [vmem:[%s153 + $0x100] sm:$0xff]
                %172 = vst [vmem:[%s154 + $0x40] sm:$0xff] %v171
                %v173 = vld [vmem:[%s153 + $0x108] sm:$0xff]
                %174 = vst [vmem:[%s154 + $0x48] sm:$0xff] %v173
                %v175 = vld [vmem:[%s153 + $0x140] sm:$0xff]
                %176 = vst [vmem:[%s154 + $0x50] sm:$0xff] %v175
                %v177 = vld [vmem:[%s153 + $0x148] sm:$0xff]
                %178 = vst [vmem:[%s154 + $0x58] sm:$0xff] %v177
                %v179 = vld [vmem:[%s153 + $0x180] sm:$0xff]
                %180 = vst [vmem:[%s154 + $0x60] sm:$0xff] %v179
                %v181 = vld [vmem:[%s153 + $0x188] sm:$0xff]
                %182 = vst [vmem:[%s154 + $0x68] sm:$0xff] %v181
                %v183 = vld [vmem:[%s153 + $0x1c0] sm:$0xff]
                %184 = vst [vmem:[%s154 + $0x70] sm:$0xff] %v183
                %v185 = vld [vmem:[%s153 + $0x1c8] sm:$0xff]
                %186 = vst [vmem:[%s154 + $0x78] sm:$0xff] %v185
                %v187 = vld [vmem:[%s153 + $0x200] sm:$0xff]
                %188 = vst [vmem:[%s154 + $0x80] sm:$0xff] %v187
                %v189 = vld [vmem:[%s153 + $0x208] sm:$0xff]
                %190 = vst [vmem:[%s154 + $0x88] sm:$0xff] %v189
                %v191 = vld [vmem:[%s153 + $0x240] sm:$0xff]
                %192 = vst [vmem:[%s154 + $0x90] sm:$0xff] %v191
                %v193 = vld [vmem:[%s153 + $0x248] sm:$0xff]
                %194 = vst [vmem:[%s154 + $0x98] sm:$0xff] %v193
                %v195 = vld [vmem:[%s153 + $0x280] sm:$0xff]
                %196 = vst [vmem:[%s154 + $0xa0] sm:$0xff] %v195
                %v197 = vld [vmem:[%s153 + $0x288] sm:$0xff]
                %198 = vst [vmem:[%s154 + $0xa8] sm:$0xff] %v197
                %v199 = vld [vmem:[%s153 + $0x2c0] sm:$0xff]
                %200 = vst [vmem:[%s154 + $0xb0] sm:$0xff] %v199
                %v201 = vld [vmem:[%s153 + $0x2c8] sm:$0xff]
                %202 = vst [vmem:[%s154 + $0xb8] sm:$0xff] %v201
                %v203 = vld [vmem:[%s153 + $0x300] sm:$0xff]
                %204 = vst [vmem:[%s154 + $0xc0] sm:$0xff] %v203
                %v205 = vld [vmem:[%s153 + $0x308] sm:$0xff]
                %206 = vst [vmem:[%s154 + $0xc8] sm:$0xff] %v205
                %v207 = vld [vmem:[%s153 + $0x340] sm:$0xff]
                %208 = vst [vmem:[%s154 + $0xd0] sm:$0xff] %v207
                %v209 = vld [vmem:[%s153 + $0x348] sm:$0xff]
                %210 = vst [vmem:[%s154 + $0xd8] sm:$0xff] %v209
                %v211 = vld [vmem:[%s153 + $0x380] sm:$0xff]
                %212 = vst [vmem:[%s154 + $0xe0] sm:$0xff] %v211
                %v213 = vld [vmem:[%s153 + $0x388] sm:$0xff]
                %214 = vst [vmem:[%s154 + $0xe8] sm:$0xff] %v213
                %v215 = vld [vmem:[%s153 + $0x3c0] sm:$0xff]
                %216 = vst [vmem:[%s154 + $0xf0] sm:$0xff] %v215
                %v217 = vld [vmem:[%s153 + $0x3c8] sm:$0xff]
                %218 = vst [vmem:[%s154 + $0xf8] sm:$0xff] %v217
                %v219 = vld [vmem:[%s153 + $0x400] sm:$0xff]
                %220 = vst [vmem:[%s154 + $0x100] sm:$0xff] %v219
                %v221 = vld [vmem:[%s153 + $0x408] sm:$0xff]
                %222 = vst [vmem:[%s154 + $0x108] sm:$0xff] %v221
                %v223 = vld [vmem:[%s153 + $0x440] sm:$0xff]
                %224 = vst [vmem:[%s154 + $0x110] sm:$0xff] %v223
                %v225 = vld [vmem:[%s153 + $0x448] sm:$0xff]
                %226 = vst [vmem:[%s154 + $0x118] sm:$0xff] %v225
                %v227 = vld [vmem:[%s153 + $0x480] sm:$0xff]
                %228 = vst [vmem:[%s154 + $0x120] sm:$0xff] %v227
                %v229 = vld [vmem:[%s153 + $0x488] sm:$0xff]
                %230 = vst [vmem:[%s154 + $0x128] sm:$0xff] %v229
                %v231 = vld [vmem:[%s153 + $0x4c0] sm:$0xff]
                %232 = vst [vmem:[%s154 + $0x130] sm:$0xff] %v231
                %v233 = vld [vmem:[%s153 + $0x4c8] sm:$0xff]
                %234 = vst [vmem:[%s154 + $0x138] sm:$0xff] %v233
                %v235 = vld [vmem:[%s153 + $0x500] sm:$0xff]
                %236 = vst [vmem:[%s154 + $0x140] sm:$0xff] %v235
                %v237 = vld [vmem:[%s153 + $0x508] sm:$0xff]
                %238 = vst [vmem:[%s154 + $0x148] sm:$0xff] %v237
                %v239 = vld [vmem:[%s153 + $0x540] sm:$0xff]
                %240 = vst [vmem:[%s154 + $0x150] sm:$0xff] %v239
                %v241 = vld [vmem:[%s153 + $0x548] sm:$0xff]
                %242 = vst [vmem:[%s154 + $0x158] sm:$0xff] %v241
                %v243 = vld [vmem:[%s153 + $0x580] sm:$0xff]
                %244 = vst [vmem:[%s154 + $0x160] sm:$0xff] %v243
                %v245 = vld [vmem:[%s153 + $0x588] sm:$0xff]
                %246 = vst [vmem:[%s154 + $0x168] sm:$0xff] %v245
                %v247 = vld [vmem:[%s153 + $0x5c0] sm:$0xff]
                %248 = vst [vmem:[%s154 + $0x170] sm:$0xff] %v247
                %v249 = vld [vmem:[%s153 + $0x5c8] sm:$0xff]
                %250 = vst [vmem:[%s154 + $0x178] sm:$0xff] %v249
                %v251 = vld [vmem:[%s153 + $0x600] sm:$0xff]
                %252 = vst [vmem:[%s154 + $0x180] sm:$0xff] %v251
                %v253 = vld [vmem:[%s153 + $0x608] sm:$0xff]
                %254 = vst [vmem:[%s154 + $0x188] sm:$0xff] %v253
                %v255 = vld [vmem:[%s153 + $0x640] sm:$0xff]
                %256 = vst [vmem:[%s154 + $0x190] sm:$0xff] %v255
                %v257 = vld [vmem:[%s153 + $0x648] sm:$0xff]
                %258 = vst [vmem:[%s154 + $0x198] sm:$0xff] %v257
                %v259 = vld [vmem:[%s153 + $0x680] sm:$0xff]
                %260 = vst [vmem:[%s154 + $0x1a0] sm:$0xff] %v259
                %v261 = vld [vmem:[%s153 + $0x688] sm:$0xff]
                %262 = vst [vmem:[%s154 + $0x1a8] sm:$0xff] %v261
                %v263 = vld [vmem:[%s153 + $0x6c0] sm:$0xff]
                %264 = vst [vmem:[%s154 + $0x1b0] sm:$0xff] %v263
                %v265 = vld [vmem:[%s153 + $0x6c8] sm:$0xff]
                %266 = vst [vmem:[%s154 + $0x1b8] sm:$0xff] %v265
                %v267 = vld [vmem:[%s153 + $0x700] sm:$0xff]
                %268 = vst [vmem:[%s154 + $0x1c0] sm:$0xff] %v267
                %v269 = vld [vmem:[%s153 + $0x708] sm:$0xff]
                %270 = vst [vmem:[%s154 + $0x1c8] sm:$0xff] %v269
                %v271 = vld [vmem:[%s153 + $0x740] sm:$0xff]
                %272 = vst [vmem:[%s154 + $0x1d0] sm:$0xff] %v271
                %v273 = vld [vmem:[%s153 + $0x748] sm:$0xff]
                %274 = vst [vmem:[%s154 + $0x1d8] sm:$0xff] %v273
                %v275 = vld [vmem:[%s153 + $0x780] sm:$0xff]
                %276 = vst [vmem:[%s154 + $0x1e0] sm:$0xff] %v275
                %v277 = vld [vmem:[%s153 + $0x788] sm:$0xff]
                %278 = vst [vmem:[%s154 + $0x1e8] sm:$0xff] %v277
                %v279 = vld [vmem:[%s153 + $0x7c0] sm:$0xff]
                %280 = vst [vmem:[%s154 + $0x1f0] sm:$0xff] %v279
                %v281 = vld [vmem:[%s153 + $0x7c8] sm:$0xff]
                %282 = vst [vmem:[%s154 + $0x1f8] sm:$0xff] %v281
                %v283 = vld [vmem:[%s153 + $0x800] sm:$0xff]
                %284 = vst [vmem:[%s154 + $0x200] sm:$0xff] %v283
                %v285 = vld [vmem:[%s153 + $0x808] sm:$0xff]
                %286 = vst [vmem:[%s154 + $0x208] sm:$0xff] %v285
                %v287 = vld [vmem:[%s153 + $0x840] sm:$0xff]
                %288 = vst [vmem:[%s154 + $0x210] sm:$0xff] %v287
                %v289 = vld [vmem:[%s153 + $0x848] sm:$0xff]
                %290 = vst [vmem:[%s154 + $0x218] sm:$0xff] %v289
                %v291 = vld [vmem:[%s153 + $0x880] sm:$0xff]
                %292 = vst [vmem:[%s154 + $0x220] sm:$0xff] %v291
                %v293 = vld [vmem:[%s153 + $0x888] sm:$0xff]
                %294 = vst [vmem:[%s154 + $0x228] sm:$0xff] %v293
                %v295 = vld [vmem:[%s153 + $0x8c0] sm:$0xff]
                %296 = vst [vmem:[%s154 + $0x230] sm:$0xff] %v295
                %v297 = vld [vmem:[%s153 + $0x8c8] sm:$0xff]
                %298 = vst [vmem:[%s154 + $0x238] sm:$0xff] %v297
                %v299 = vld [vmem:[%s153 + $0x900] sm:$0xff]
                %300 = vst [vmem:[%s154 + $0x240] sm:$0xff] %v299
                %v301 = vld [vmem:[%s153 + $0x908] sm:$0xff]
                %302 = vst [vmem:[%s154 + $0x248] sm:$0xff] %v301
                %v303 = vld [vmem:[%s153 + $0x940] sm:$0xff]
                %304 = vst [vmem:[%s154 + $0x250] sm:$0xff] %v303
                %v305 = vld [vmem:[%s153 + $0x948] sm:$0xff]
                %306 = vst [vmem:[%s154 + $0x258] sm:$0xff] %v305
                %v307 = vld [vmem:[%s153 + $0x980] sm:$0xff]
                %308 = vst [vmem:[%s154 + $0x260] sm:$0xff] %v307
                %v309 = vld [vmem:[%s153 + $0x988] sm:$0xff]
                %310 = vst [vmem:[%s154 + $0x268] sm:$0xff] %v309
                %v311 = vld [vmem:[%s153 + $0x9c0] sm:$0xff]
                %312 = vst [vmem:[%s154 + $0x270] sm:$0xff] %v311
                %v313 = vld [vmem:[%s153 + $0x9c8] sm:$0xff]
                %314 = vst [vmem:[%s154 + $0x278] sm:$0xff] %v313
                %v315 = vld [vmem:[%s153 + $0xa00] sm:$0xff]
                %316 = vst [vmem:[%s154 + $0x280] sm:$0xff] %v315
                %v317 = vld [vmem:[%s153 + $0xa08] sm:$0xff]
                %318 = vst [vmem:[%s154 + $0x288] sm:$0xff] %v317
                %v319 = vld [vmem:[%s153 + $0xa40] sm:$0xff]
                %320 = vst [vmem:[%s154 + $0x290] sm:$0xff] %v319
                %v321 = vld [vmem:[%s153 + $0xa48] sm:$0xff]
                %322 = vst [vmem:[%s154 + $0x298] sm:$0xff] %v321
                %v323 = vld [vmem:[%s153 + $0xa80] sm:$0xff]
                %324 = vst [vmem:[%s154 + $0x2a0] sm:$0xff] %v323
                %v325 = vld [vmem:[%s153 + $0xa88] sm:$0xff]
                %326 = vst [vmem:[%s154 + $0x2a8] sm:$0xff] %v325
                %v327 = vld [vmem:[%s153 + $0xac0] sm:$0xff]
                %328 = vst [vmem:[%s154 + $0x2b0] sm:$0xff] %v327
                %v329 = vld [vmem:[%s153 + $0xac8] sm:$0xff]
                %330 = vst [vmem:[%s154 + $0x2b8] sm:$0xff] %v329
                %v331 = vld [vmem:[%s153 + $0xb00] sm:$0xff]
                %332 = vst [vmem:[%s154 + $0x2c0] sm:$0xff] %v331
                %v333 = vld [vmem:[%s153 + $0xb08] sm:$0xff]
                %334 = vst [vmem:[%s154 + $0x2c8] sm:$0xff] %v333
                %v335 = vld [vmem:[%s153 + $0xb40] sm:$0xff]
                %336 = vst [vmem:[%s154 + $0x2d0] sm:$0xff] %v335
                %v337 = vld [vmem:[%s153 + $0xb48] sm:$0xff]
                %338 = vst [vmem:[%s154 + $0x2d8] sm:$0xff] %v337
                %v339 = vld [vmem:[%s153 + $0xb80] sm:$0xff]
                %340 = vst [vmem:[%s154 + $0x2e0] sm:$0xff] %v339
                %v341 = vld [vmem:[%s153 + $0xb88] sm:$0xff]
                %342 = vst [vmem:[%s154 + $0x2e8] sm:$0xff] %v341
                %v343 = vld [vmem:[%s153 + $0xbc0] sm:$0xff]
                %344 = vst [vmem:[%s154 + $0x2f0] sm:$0xff] %v343
                %v345 = vld [vmem:[%s153 + $0xbc8] sm:$0xff]
                %346 = vst [vmem:[%s154 + $0x2f8] sm:$0xff] %v345
                %v347 = vld [vmem:[%s153 + $0xc00] sm:$0xff]
                %348 = vst [vmem:[%s154 + $0x300] sm:$0xff] %v347
                %v349 = vld [vmem:[%s153 + $0xc08] sm:$0xff]
                %350 = vst [vmem:[%s154 + $0x308] sm:$0xff] %v349
                %v351 = vld [vmem:[%s153 + $0xc40] sm:$0xff]
                %352 = vst [vmem:[%s154 + $0x310] sm:$0xff] %v351
                %v353 = vld [vmem:[%s153 + $0xc48] sm:$0xff]
                %354 = vst [vmem:[%s154 + $0x318] sm:$0xff] %v353
                %v355 = vld [vmem:[%s153 + $0xc80] sm:$0xff]
                %356 = vst [vmem:[%s154 + $0x320] sm:$0xff] %v355
                %v357 = vld [vmem:[%s153 + $0xc88] sm:$0xff]
                %358 = vst [vmem:[%s154 + $0x328] sm:$0xff] %v357
                %v359 = vld [vmem:[%s153 + $0xcc0] sm:$0xff]
                %360 = vst [vmem:[%s154 + $0x330] sm:$0xff] %v359
                %v361 = vld [vmem:[%s153 + $0xcc8] sm:$0xff]
                %362 = vst [vmem:[%s154 + $0x338] sm:$0xff] %v361
                %v363 = vld [vmem:[%s153 + $0xd00] sm:$0xff]
                %364 = vst [vmem:[%s154 + $0x340] sm:$0xff] %v363
                %v365 = vld [vmem:[%s153 + $0xd08] sm:$0xff]
                %366 = vst [vmem:[%s154 + $0x348] sm:$0xff] %v365
                %v367 = vld [vmem:[%s153 + $0xd40] sm:$0xff]
                %368 = vst [vmem:[%s154 + $0x350] sm:$0xff] %v367
                %v369 = vld [vmem:[%s153 + $0xd48] sm:$0xff]
                %370 = vst [vmem:[%s154 + $0x358] sm:$0xff] %v369
                %v371 = vld [vmem:[%s153 + $0xd80] sm:$0xff]
                %372 = vst [vmem:[%s154 + $0x360] sm:$0xff] %v371
                %v373 = vld [vmem:[%s153 + $0xd88] sm:$0xff]
                %374 = vst [vmem:[%s154 + $0x368] sm:$0xff] %v373
                %v375 = vld [vmem:[%s153 + $0xdc0] sm:$0xff]
                %376 = vst [vmem:[%s154 + $0x370] sm:$0xff] %v375
                %v377 = vld [vmem:[%s153 + $0xdc8] sm:$0xff]
                %378 = vst [vmem:[%s154 + $0x378] sm:$0xff] %v377
                %v379 = vld [vmem:[%s153 + $0xe00] sm:$0xff]
                %380 = vst [vmem:[%s154 + $0x380] sm:$0xff] %v379
                %v381 = vld [vmem:[%s153 + $0xe08] sm:$0xff]
                %382 = vst [vmem:[%s154 + $0x388] sm:$0xff] %v381
                %v383 = vld [vmem:[%s153 + $0xe40] sm:$0xff]
                %384 = vst [vmem:[%s154 + $0x390] sm:$0xff] %v383
                %v385 = vld [vmem:[%s153 + $0xe48] sm:$0xff]
                %386 = vst [vmem:[%s154 + $0x398] sm:$0xff] %v385
                %v387 = vld [vmem:[%s153 + $0xe80] sm:$0xff]
                %388 = vst [vmem:[%s154 + $0x3a0] sm:$0xff] %v387
                %v389 = vld [vmem:[%s153 + $0xe88] sm:$0xff]
                %390 = vst [vmem:[%s154 + $0x3a8] sm:$0xff] %v389
                %v391 = vld [vmem:[%s153 + $0xec0] sm:$0xff]
                %392 = vst [vmem:[%s154 + $0x3b0] sm:$0xff] %v391
                %v393 = vld [vmem:[%s153 + $0xec8] sm:$0xff]
                %394 = vst [vmem:[%s154 + $0x3b8] sm:$0xff] %v393
                %v395 = vld [vmem:[%s153 + $0xf00] sm:$0xff]
                %396 = vst [vmem:[%s154 + $0x3c0] sm:$0xff] %v395
                %v397 = vld [vmem:[%s153 + $0xf08] sm:$0xff]
                %398 = vst [vmem:[%s154 + $0x3c8] sm:$0xff] %v397
                %v399 = vld [vmem:[%s153 + $0xf40] sm:$0xff]
                %400 = vst [vmem:[%s154 + $0x3d0] sm:$0xff] %v399
                %v401 = vld [vmem:[%s153 + $0xf48] sm:$0xff]
                %402 = vst [vmem:[%s154 + $0x3d8] sm:$0xff] %v401
                %v403 = vld [vmem:[%s153 + $0xf80] sm:$0xff]
                %404 = vst [vmem:[%s154 + $0x3e0] sm:$0xff] %v403
                %v405 = vld [vmem:[%s153 + $0xf88] sm:$0xff]
                %406 = vst [vmem:[%s154 + $0x3e8] sm:$0xff] %v405
                %v407 = vld [vmem:[%s153 + $0xfc0] sm:$0xff]
                %408 = vst [vmem:[%s154 + $0x3f0] sm:$0xff] %v407
                %v409 = vld [vmem:[%s153 + $0xfc8] sm:$0xff]
                %410 = vst [vmem:[%s154 + $0x3f8] sm:$0xff] %v409
              $region37: #{modeleeg_forward.1} parent=31 // loop_footer
                %s152 = sadd.s32 1, %s148
              $region38: #{modeleeg_forward.1} parent=31 // loop_footer_branch
                %147 = sbr.rel target = $region34
              $region39: #{modeleeg_forward.1} parent=31 // loop_exit
                _
            $region32: #{modeleeg_forward.1} parent=27 // pred_fallthru
              _
            // Predicated region
            $region40: #{modeleeg_forward.1} parent=27 // pred_check
              _
            $region41: #{modeleeg_forward.1} parent=27 // pred_check_branch
              %412 = sbr.rel target = $region43
            $region42: #{modeleeg_forward.1} parent=27 // pred_region
              _
            $region43: #{modeleeg_forward.1} parent=27 // pred_fallthru
              _
          $region28: #{modeleeg_forward.1} parent=23 // pred_fallthru
            _
          %413 = vnop
        $region24: #{modeleeg_forward.1} parent=19 // pred_fallthru
          _
        // Predicated region
        $region44: #{modeleeg_forward.1} parent=19 // pred_check
          %p414 = pneg %p79
        $region45: #{modeleeg_forward.1} parent=19 // pred_check_branch
          %416 = sbr.rel (%p414) target = $region47
        $region46: #{modeleeg_forward.1} parent=19 // pred_region
          %s417 = smul.u32 4, %s12
          %p418 = scmp.lt.s32.totalorder %s417, 15
          %s419 = scalar_select %p418, %s417, 15
          %s420 = scalar_lea.vmem %s2, %s419
          %s421 = smul.u32 4, %s12
        $region47: #{modeleeg_forward.1} parent=19 // pred_fallthru
          _
      $region20: #{modeleeg_forward.1} parent=5 // pred_fallthru
        _
      %p422 = scmp.le.s32.totalorder 1, %s12
      %p423 = scmp.lt.s32.totalorder %s12, 5
      %p424 = pnand %p422, %p423
      %p425 = pneg %p424
      // Predicated region
      $region48: #{modeleeg_forward.1} parent=5 // pred_check
        _
      $region49: #{modeleeg_forward.1} parent=5 // pred_check_branch
        %427 = sbr.rel (%p424) target = $region51
      $region50: #{modeleeg_forward.1} parent=5 // pred_region
        %s428 = ssub.s32 %s12, 1
        %s429 = sand.u32 %s46, 1
        %s430 = sand.u32 %s46, 1
        %s431 = smul.addr %s430, 1024
        %s432 = scalar_lea.vmem [#allocation2], %s431
        // Predicated region
        $region52: #{modeleeg_forward.1} parent=50 // pred_check
          %p433 = pneg %p59
        $region53: #{modeleeg_forward.1} parent=50 // pred_check_branch
          %435 = sbr.rel (%p433) target = $region55
        $region54: #{modeleeg_forward.1} parent=50 // pred_region
          _
        $region55: #{modeleeg_forward.1} parent=50 // pred_fallthru
          _
        %p436 = pneg %p33
        %p437 = pneg %p30
        %s438 = sand.u32 %s46, 1
        %s439 = sand.u32 %s46, 1
        %s440 = smul.addr %s439, 1024
        %s441 = scalar_lea.vmem [#allocation2], %s440
        %p442 = pneg %p59
        %p443 = pneg %p56
        %s444 = smul.u32 4, %s17
        %p445 = scmp.lt.s32.totalorder %s444, 15
        %s446 = scalar_select %p445, %s444, 15
        %s447 = scalar_lea.vmem %s2, %s446
        %p448 = pneg %p85
        %p449 = pneg %p82
        %p450 = pneg %p111
        %p451 = pneg %p108
        %s452 = sand.u32 %s98, 1
        %s453 = scalar_lea.sflag [#allocation4], %s452
        %s454 = sand.u32 %s98, 1
        %s455 = smul.addr %s454, 8
        %s456 = scalar_lea.vmem [#allocation3], %s455
        %s457 = smul.u32 4, %s17
        %s458 = smul.u32 4, %s17
        %p459 = scmp.lt.s32.totalorder %s458, 15
        %s460 = scalar_select %p459, %s458, 15
        %s461 = scalar_lea.vmem %s2, %s460
        %s462 = smul.u32 4, %s17
        %s463 = smul.u32 4, %s17
        %v464 = vld [vmem:[%s0] sm:$0xff]
        %v465 = vld [vmem:[%s0 + $0x8] sm:$0xff]
        %v466 = vld [vmem:[%s0 + $0x10] sm:$0xff]
        %v467 = vld [vmem:[%s0 + $0x18] sm:$0xff]
        %v468 = vld [vmem:[%s0 + $0x20] sm:$0xff]
        %v469 = vld [vmem:[%s0 + $0x28] sm:$0xff]
        %v470 = vld [vmem:[%s0 + $0x30] sm:$0xff]
        %v471 = vld [vmem:[%s0 + $0x38] sm:$0xff]
        %v472 = vld [vmem:[%s0 + $0x40] sm:$0xff]
        %v473 = vld [vmem:[%s0 + $0x48] sm:$0xff]
        %v474 = vld [vmem:[%s0 + $0x50] sm:$0xff]
        %v475 = vld [vmem:[%s0 + $0x58] sm:$0xff]
        %v476 = vld [vmem:[%s0 + $0x60] sm:$0xff]
        %v477 = vld [vmem:[%s0 + $0x68] sm:$0xff]
        %v478 = vld [vmem:[%s0 + $0x70] sm:$0xff]
        %v479 = vld [vmem:[%s0 + $0x78] sm:$0xff]
        %v480 = vld [vmem:[%s0 + $0x80] sm:$0xff]
        %v481 = vld [vmem:[%s0 + $0x88] sm:$0xff]
        %v482 = vld [vmem:[%s0 + $0x90] sm:$0xff]
        %v483 = vld [vmem:[%s0 + $0x98] sm:$0xff]
        %v484 = vld [vmem:[%s0 + $0xa0] sm:$0xff]
        %v485 = vld [vmem:[%s0 + $0xa8] sm:$0xff]
        %v486 = vld [vmem:[%s0 + $0xb0] sm:$0xff]
        %v487 = vld [vmem:[%s0 + $0xb8] sm:$0xff]
        %v488 = vld [vmem:[%s0 + $0xc0] sm:$0xff]
        %v489 = vld [vmem:[%s0 + $0xc8] sm:$0xff]
        %v490 = vld [vmem:[%s0 + $0xd0] sm:$0xff]
        %v491 = vld [vmem:[%s0 + $0xd8] sm:$0xff]
        %v492 = vld [vmem:[%s0 + $0xe0] sm:$0xff]
        %v493 = vld [vmem:[%s0 + $0xe8] sm:$0xff]
        %v494 = vld [vmem:[%s0 + $0xf0] sm:$0xff]
        %v495 = vld [vmem:[%s0 + $0xf8] sm:$0xff]
        %v496 = vld [vmem:[%s0 + $0x100] sm:$0xff]
        %v497 = vld [vmem:[%s0 + $0x108] sm:$0xff]
        %v498 = vld [vmem:[%s0 + $0x110] sm:$0xff]
        %v499 = vld [vmem:[%s0 + $0x118] sm:$0xff]
        %v500 = vld [vmem:[%s0 + $0x120] sm:$0xff]
        %v501 = vld [vmem:[%s0 + $0x128] sm:$0xff]
        %v502 = vld [vmem:[%s0 + $0x130] sm:$0xff]
        %v503 = vld [vmem:[%s0 + $0x138] sm:$0xff]
        %v504 = vld [vmem:[%s0 + $0x140] sm:$0xff]
        %v505 = vld [vmem:[%s0 + $0x148] sm:$0xff]
        %v506 = vld [vmem:[%s0 + $0x150] sm:$0xff]
        %v507 = vld [vmem:[%s0 + $0x158] sm:$0xff]
        %v508 = vld [vmem:[%s0 + $0x160] sm:$0xff]
        %v509 = vld [vmem:[%s0 + $0x168] sm:$0xff]
        %v510 = vld [vmem:[%s0 + $0x170] sm:$0xff]
        %v511 = vld [vmem:[%s0 + $0x178] sm:$0xff]
        %v512 = vld [vmem:[%s0 + $0x180] sm:$0xff]
        %v513 = vld [vmem:[%s0 + $0x188] sm:$0xff]
        %v514 = vld [vmem:[%s0 + $0x190] sm:$0xff]
        %v515 = vld [vmem:[%s0 + $0x198] sm:$0xff]
        %v516 = vld [vmem:[%s0 + $0x1a0] sm:$0xff]
        %v517 = vld [vmem:[%s0 + $0x1a8] sm:$0xff]
        %v518 = vld [vmem:[%s0 + $0x1b0] sm:$0xff]
        %v519 = vld [vmem:[%s0 + $0x1b8] sm:$0xff]
        %v520 = vld [vmem:[%s0 + $0x1c0] sm:$0xff]
        %v521 = vld [vmem:[%s0 + $0x1c8] sm:$0xff]
        %v522 = vld [vmem:[%s0 + $0x1d0] sm:$0xff]
        %v523 = vld [vmem:[%s0 + $0x1d8] sm:$0xff]
        %v524 = vld [vmem:[%s0 + $0x1e0] sm:$0xff]
        %v525 = vld [vmem:[%s0 + $0x1e8] sm:$0xff]
        %v526 = vld [vmem:[%s0 + $0x1f0] sm:$0xff]
        %v527 = vld [vmem:[%s0 + $0x1f8] sm:$0xff]
        %v528 = vld [vmem:[%s0 + $0x200] sm:$0xff]
        %v529 = vld [vmem:[%s0 + $0x208] sm:$0xff]
        %v530 = vld [vmem:[%s0 + $0x210] sm:$0xff]
        %v531 = vld [vmem:[%s0 + $0x218] sm:$0xff]
        %v532 = vld [vmem:[%s0 + $0x220] sm:$0xff]
        %v533 = vld [vmem:[%s0 + $0x228] sm:$0xff]
        %v534 = vld [vmem:[%s0 + $0x230] sm:$0xff]
        %v535 = vld [vmem:[%s0 + $0x238] sm:$0xff]
        %v536 = vld [vmem:[%s0 + $0x240] sm:$0xff]
        %v537 = vld [vmem:[%s0 + $0x248] sm:$0xff]
        %v538 = vld [vmem:[%s0 + $0x250] sm:$0xff]
        %v539 = vld [vmem:[%s0 + $0x258] sm:$0xff]
        %v540 = vld [vmem:[%s0 + $0x260] sm:$0xff]
        %v541 = vld [vmem:[%s0 + $0x268] sm:$0xff]
        %v542 = vld [vmem:[%s0 + $0x270] sm:$0xff]
        %v543 = vld [vmem:[%s0 + $0x278] sm:$0xff]
        %v544 = vld [vmem:[%s0 + $0x280] sm:$0xff]
        %v545 = vld [vmem:[%s0 + $0x288] sm:$0xff]
        %v546 = vld [vmem:[%s0 + $0x290] sm:$0xff]
        %v547 = vld [vmem:[%s0 + $0x298] sm:$0xff]
        %v548 = vld [vmem:[%s0 + $0x2a0] sm:$0xff]
        %v549 = vld [vmem:[%s0 + $0x2a8] sm:$0xff]
        %v550 = vld [vmem:[%s0 + $0x2b0] sm:$0xff]
        %v551 = vld [vmem:[%s0 + $0x2b8] sm:$0xff]
        %v552 = vld [vmem:[%s0 + $0x2c0] sm:$0xff]
        %v553 = vld [vmem:[%s0 + $0x2c8] sm:$0xff]
        %v554 = vld [vmem:[%s0 + $0x2d0] sm:$0xff]
        %v555 = vld [vmem:[%s0 + $0x2d8] sm:$0xff]
        %v556 = vld [vmem:[%s0 + $0x2e0] sm:$0xff]
        %v557 = vld [vmem:[%s0 + $0x2e8] sm:$0xff]
        %v558 = vld [vmem:[%s0 + $0x2f0] sm:$0xff]
        %v559 = vld [vmem:[%s0 + $0x2f8] sm:$0xff]
        %v560 = vld [vmem:[%s0 + $0x300] sm:$0xff]
        %v561 = vld [vmem:[%s0 + $0x308] sm:$0xff]
        %v562 = vld [vmem:[%s0 + $0x310] sm:$0xff]
        %v563 = vld [vmem:[%s0 + $0x318] sm:$0xff]
        %v564 = vld [vmem:[%s0 + $0x320] sm:$0xff]
        %v565 = vld [vmem:[%s0 + $0x328] sm:$0xff]
        %v566 = vld [vmem:[%s0 + $0x330] sm:$0xff]
        %v567 = vld [vmem:[%s0 + $0x338] sm:$0xff]
        %v568 = vld [vmem:[%s0 + $0x340] sm:$0xff]
        %v569 = vld [vmem:[%s0 + $0x348] sm:$0xff]
        %v570 = vld [vmem:[%s0 + $0x350] sm:$0xff]
        %v571 = vld [vmem:[%s0 + $0x358] sm:$0xff]
        %v572 = vld [vmem:[%s0 + $0x360] sm:$0xff]
        %v573 = vld [vmem:[%s0 + $0x368] sm:$0xff]
        %v574 = vld [vmem:[%s0 + $0x370] sm:$0xff]
        %v575 = vld [vmem:[%s0 + $0x378] sm:$0xff]
        %v576 = vld [vmem:[%s0 + $0x380] sm:$0xff]
        %v577 = vld [vmem:[%s0 + $0x388] sm:$0xff]
        %v578 = vld [vmem:[%s0 + $0x390] sm:$0xff]
        %v579 = vld [vmem:[%s0 + $0x398] sm:$0xff]
        %v580 = vld [vmem:[%s0 + $0x3a0] sm:$0xff]
        %v581 = vld [vmem:[%s0 + $0x3a8] sm:$0xff]
        %v582 = vld [vmem:[%s0 + $0x3b0] sm:$0xff]
        %v583 = vld [vmem:[%s0 + $0x3b8] sm:$0xff]
        %v584 = vld [vmem:[%s0 + $0x3c0] sm:$0xff]
        %v585 = vld [vmem:[%s0 + $0x3c8] sm:$0xff]
        %v586 = vld [vmem:[%s0 + $0x3d0] sm:$0xff]
        %v587 = vld [vmem:[%s0 + $0x3d8] sm:$0xff]
        %v588 = vld [vmem:[%s0 + $0x3e0] sm:$0xff]
        %v589 = vld [vmem:[%s0 + $0x3e8] sm:$0xff]
        %v590 = vld [vmem:[%s0 + $0x3f0] sm:$0xff]
        %v591 = vld [vmem:[%s0 + $0x3f8] sm:$0xff]
        %v592 = vld [vmem:[%s0 + $0x400] sm:$0xff]
        %v593 = vld [vmem:[%s0 + $0x408] sm:$0xff]
        %v594 = vld [vmem:[%s0 + $0x410] sm:$0xff]
        %v595 = vld [vmem:[%s0 + $0x418] sm:$0xff]
        %v596 = vld [vmem:[%s0 + $0x420] sm:$0xff]
        %v597 = vld [vmem:[%s0 + $0x428] sm:$0xff]
        %v598 = vld [vmem:[%s0 + $0x430] sm:$0xff]
        %v599 = vld [vmem:[%s0 + $0x438] sm:$0xff]
        %v600 = vld [vmem:[%s0 + $0x440] sm:$0xff]
        %v601 = vld [vmem:[%s0 + $0x448] sm:$0xff]
        %v602 = vld [vmem:[%s0 + $0x450] sm:$0xff]
        %v603 = vld [vmem:[%s0 + $0x458] sm:$0xff]
        %v604 = vld [vmem:[%s0 + $0x460] sm:$0xff]
        %v605 = vld [vmem:[%s0 + $0x468] sm:$0xff]
        %v606 = vld [vmem:[%s0 + $0x470] sm:$0xff]
        %v607 = vld [vmem:[%s0 + $0x478] sm:$0xff]
        %v608 = vld [vmem:[%s0 + $0x480] sm:$0xff]
        %v609 = vld [vmem:[%s0 + $0x488] sm:$0xff]
        %v610 = vld [vmem:[%s0 + $0x490] sm:$0xff]
        %v611 = vld [vmem:[%s0 + $0x498] sm:$0xff]
        %v612 = vld [vmem:[%s0 + $0x4a0] sm:$0xff]
        %v613 = vld [vmem:[%s0 + $0x4a8] sm:$0xff]
        %v614 = vld [vmem:[%s0 + $0x4b0] sm:$0xff]
        %v615 = vld [vmem:[%s0 + $0x4b8] sm:$0xff]
        %v616 = vld [vmem:[%s0 + $0x4c0] sm:$0xff]
        %v617 = vld [vmem:[%s0 + $0x4c8] sm:$0xff]
        %v618 = vld [vmem:[%s0 + $0x4d0] sm:$0xff]
        %v619 = vld [vmem:[%s0 + $0x4d8] sm:$0xff]
        %v620 = vld [vmem:[%s0 + $0x4e0] sm:$0xff]
        %v621 = vld [vmem:[%s0 + $0x4e8] sm:$0xff]
        %v622 = vld [vmem:[%s0 + $0x4f0] sm:$0xff]
        %v623 = vld [vmem:[%s0 + $0x4f8] sm:$0xff]
        %v624 = vld [vmem:[%s0 + $0x500] sm:$0xff]
        %v625 = vld [vmem:[%s0 + $0x508] sm:$0xff]
        %v626 = vld [vmem:[%s0 + $0x510] sm:$0xff]
        %v627 = vld [vmem:[%s0 + $0x518] sm:$0xff]
        %v628 = vld [vmem:[%s0 + $0x520] sm:$0xff]
        %v629 = vld [vmem:[%s0 + $0x528] sm:$0xff]
        %v630 = vld [vmem:[%s0 + $0x530] sm:$0xff]
        %v631 = vld [vmem:[%s0 + $0x538] sm:$0xff]
        %v632 = vld [vmem:[%s0 + $0x540] sm:$0xff]
        %v633 = vld [vmem:[%s0 + $0x548] sm:$0xff]
        %v634 = vld [vmem:[%s0 + $0x550] sm:$0xff]
        %v635 = vld [vmem:[%s0 + $0x558] sm:$0xff]
        %v636 = vld [vmem:[%s0 + $0x560] sm:$0xff]
        %v637 = vld [vmem:[%s0 + $0x568] sm:$0xff]
        %v638 = vld [vmem:[%s0 + $0x570] sm:$0xff]
        %v639 = vld [vmem:[%s0 + $0x578] sm:$0xff]
        %v640 = vld [vmem:[%s0 + $0x580] sm:$0xff]
        %v641 = vld [vmem:[%s0 + $0x588] sm:$0xff]
        %v642 = vld [vmem:[%s0 + $0x590] sm:$0xff]
        %v643 = vld [vmem:[%s0 + $0x598] sm:$0xff]
        %v644 = vld [vmem:[%s0 + $0x5a0] sm:$0xff]
        %v645 = vld [vmem:[%s0 + $0x5a8] sm:$0xff]
        %v646 = vld [vmem:[%s0 + $0x5b0] sm:$0xff]
        %v647 = vld [vmem:[%s0 + $0x5b8] sm:$0xff]
        %v648 = vld [vmem:[%s0 + $0x5c0] sm:$0xff]
        %v649 = vld [vmem:[%s0 + $0x5c8] sm:$0xff]
        %v650 = vld [vmem:[%s0 + $0x5d0] sm:$0xff]
        %v651 = vld [vmem:[%s0 + $0x5d8] sm:$0xff]
        %v652 = vld [vmem:[%s0 + $0x5e0] sm:$0xff]
        %v653 = vld [vmem:[%s0 + $0x5e8] sm:$0xff]
        %v654 = vld [vmem:[%s0 + $0x5f0] sm:$0xff]
        %v655 = vld [vmem:[%s0 + $0x5f8] sm:$0xff]
        %v656 = vld [vmem:[%s0 + $0x600] sm:$0xff]
        %v657 = vld [vmem:[%s0 + $0x608] sm:$0xff]
        %v658 = vld [vmem:[%s0 + $0x610] sm:$0xff]
        %v659 = vld [vmem:[%s0 + $0x618] sm:$0xff]
        %v660 = vld [vmem:[%s0 + $0x620] sm:$0xff]
        %v661 = vld [vmem:[%s0 + $0x628] sm:$0xff]
        %v662 = vld [vmem:[%s0 + $0x630] sm:$0xff]
        %v663 = vld [vmem:[%s0 + $0x638] sm:$0xff]
        %v664 = vld [vmem:[%s432] sm:$0xff]
        %v665 = vld [vmem:[%s432 + $0x8] sm:$0xff]
        %v666 = vld [vmem:[%s432 + $0x10] sm:$0xff]
        %v667 = vld [vmem:[%s432 + $0x18] sm:$0xff]
        %v668 = vld [vmem:[%s432 + $0x20] sm:$0xff]
        %v669 = vld [vmem:[%s432 + $0x28] sm:$0xff]
        %v670 = vld [vmem:[%s432 + $0x30] sm:$0xff]
        %v671 = vld [vmem:[%s432 + $0x38] sm:$0xff]
        %v672 = vld [vmem:[%s432 + $0x40] sm:$0xff]
        %v673 = vld [vmem:[%s432 + $0x48] sm:$0xff]
        %v674 = vld [vmem:[%s432 + $0x50] sm:$0xff]
        %v675 = vld [vmem:[%s432 + $0x58] sm:$0xff]
        %v676 = vld [vmem:[%s432 + $0x60] sm:$0xff]
        %v677 = vld [vmem:[%s432 + $0x68] sm:$0xff]
        %v678 = vld [vmem:[%s432 + $0x70] sm:$0xff]
        %v679 = vld [vmem:[%s432 + $0x78] sm:$0xff]
        %v680 = vld [vmem:[%s432 + $0x80] sm:$0xff]
        %v681 = vld [vmem:[%s432 + $0x88] sm:$0xff]
        %v682 = vld [vmem:[%s432 + $0x90] sm:$0xff]
        %v683 = vld [vmem:[%s432 + $0x98] sm:$0xff]
        %v684 = vld [vmem:[%s432 + $0xa0] sm:$0xff]
        %v685 = vld [vmem:[%s432 + $0xa8] sm:$0xff]
        %v686 = vld [vmem:[%s432 + $0xb0] sm:$0xff]
        %v687 = vld [vmem:[%s432 + $0xb8] sm:$0xff]
        %v688 = vld [vmem:[%s432 + $0xc0] sm:$0xff]
        %v689 = vld [vmem:[%s432 + $0xc8] sm:$0xff]
        %v690 = vld [vmem:[%s432 + $0xd0] sm:$0xff]
        %v691 = vld [vmem:[%s432 + $0xd8] sm:$0xff]
        %v692 = vld [vmem:[%s432 + $0xe0] sm:$0xff]
        %v693 = vld [vmem:[%s432 + $0xe8] sm:$0xff]
        %v694 = vld [vmem:[%s432 + $0xf0] sm:$0xff]
        %v695 = vld [vmem:[%s432 + $0xf8] sm:$0xff]
        %v696 = vld [vmem:[%s432 + $0x100] sm:$0xff]
        %v697 = vld [vmem:[%s432 + $0x108] sm:$0xff]
        %v698 = vld [vmem:[%s432 + $0x110] sm:$0xff]
        %v699 = vld [vmem:[%s432 + $0x118] sm:$0xff]
        %v700 = vld [vmem:[%s432 + $0x120] sm:$0xff]
        %v701 = vld [vmem:[%s432 + $0x128] sm:$0xff]
        %v702 = vld [vmem:[%s432 + $0x130] sm:$0xff]
        %v703 = vld [vmem:[%s432 + $0x138] sm:$0xff]
        %v704 = vld [vmem:[%s432 + $0x140] sm:$0xff]
        %v705 = vld [vmem:[%s432 + $0x148] sm:$0xff]
        %v706 = vld [vmem:[%s432 + $0x150] sm:$0xff]
        %v707 = vld [vmem:[%s432 + $0x158] sm:$0xff]
        %v708 = vld [vmem:[%s432 + $0x160] sm:$0xff]
        %v709 = vld [vmem:[%s432 + $0x168] sm:$0xff]
        %v710 = vld [vmem:[%s432 + $0x170] sm:$0xff]
        %v711 = vld [vmem:[%s432 + $0x178] sm:$0xff]
        %v712 = vld [vmem:[%s432 + $0x180] sm:$0xff]
        %v713 = vld [vmem:[%s432 + $0x188] sm:$0xff]
        %v714 = vld [vmem:[%s432 + $0x190] sm:$0xff]
        %v715 = vld [vmem:[%s432 + $0x198] sm:$0xff]
        %v716 = vld [vmem:[%s432 + $0x1a0] sm:$0xff]
        %v717 = vld [vmem:[%s432 + $0x1a8] sm:$0xff]
        %v718 = vld [vmem:[%s432 + $0x1b0] sm:$0xff]
        %v719 = vld [vmem:[%s432 + $0x1b8] sm:$0xff]
        %v720 = vld [vmem:[%s432 + $0x1c0] sm:$0xff]
        %v721 = vld [vmem:[%s432 + $0x1c8] sm:$0xff]
        %v722 = vld [vmem:[%s432 + $0x1d0] sm:$0xff]
        %v723 = vld [vmem:[%s432 + $0x1d8] sm:$0xff]
        %v724 = vld [vmem:[%s432 + $0x1e0] sm:$0xff]
        %v725 = vld [vmem:[%s432 + $0x1e8] sm:$0xff]
        %v726 = vld [vmem:[%s432 + $0x1f0] sm:$0xff]
        %v727 = vld [vmem:[%s432 + $0x1f8] sm:$0xff]
        %v728 = vld [vmem:[%s432 + $0x200] sm:$0xff]
        %v729 = vld [vmem:[%s432 + $0x208] sm:$0xff]
        %v730 = vld [vmem:[%s432 + $0x210] sm:$0xff]
        %v731 = vld [vmem:[%s432 + $0x218] sm:$0xff]
        %v732 = vld [vmem:[%s432 + $0x220] sm:$0xff]
        %v733 = vld [vmem:[%s432 + $0x228] sm:$0xff]
        %v734 = vld [vmem:[%s432 + $0x230] sm:$0xff]
        %v735 = vld [vmem:[%s432 + $0x238] sm:$0xff]
        %v736 = vld [vmem:[%s432 + $0x240] sm:$0xff]
        %v737 = vld [vmem:[%s432 + $0x248] sm:$0xff]
        %v738 = vld [vmem:[%s432 + $0x250] sm:$0xff]
        %v739 = vld [vmem:[%s432 + $0x258] sm:$0xff]
        %v740 = vld [vmem:[%s432 + $0x260] sm:$0xff]
        %v741 = vld [vmem:[%s432 + $0x268] sm:$0xff]
        %v742 = vld [vmem:[%s432 + $0x270] sm:$0xff]
        %v743 = vld [vmem:[%s432 + $0x278] sm:$0xff]
        %v744 = vld [vmem:[%s432 + $0x280] sm:$0xff]
        %v745 = vld [vmem:[%s432 + $0x288] sm:$0xff]
        %v746 = vld [vmem:[%s432 + $0x290] sm:$0xff]
        %v747 = vld [vmem:[%s432 + $0x298] sm:$0xff]
        %v748 = vld [vmem:[%s432 + $0x2a0] sm:$0xff]
        %v749 = vld [vmem:[%s432 + $0x2a8] sm:$0xff]
        %v750 = vld [vmem:[%s432 + $0x2b0] sm:$0xff]
        %v751 = vld [vmem:[%s432 + $0x2b8] sm:$0xff]
        %v752 = vld [vmem:[%s432 + $0x2c0] sm:$0xff]
        %v753 = vld [vmem:[%s432 + $0x2c8] sm:$0xff]
        %v754 = vld [vmem:[%s432 + $0x2d0] sm:$0xff]
        %v755 = vld [vmem:[%s432 + $0x2d8] sm:$0xff]
        %v756 = vld [vmem:[%s432 + $0x2e0] sm:$0xff]
        %v757 = vld [vmem:[%s432 + $0x2e8] sm:$0xff]
        %v758 = vld [vmem:[%s432 + $0x2f0] sm:$0xff]
        %v759 = vld [vmem:[%s432 + $0x2f8] sm:$0xff]
        %v760 = vld [vmem:[%s432 + $0x300] sm:$0xff]
        %v761 = vld [vmem:[%s432 + $0x308] sm:$0xff]
        %v762 = vld [vmem:[%s432 + $0x310] sm:$0xff]
        %v763 = vld [vmem:[%s432 + $0x318] sm:$0xff]
        %v764 = vld [vmem:[%s432 + $0x320] sm:$0xff]
        %v765 = vld [vmem:[%s432 + $0x328] sm:$0xff]
        %v766 = vld [vmem:[%s432 + $0x330] sm:$0xff]
        %v767 = vld [vmem:[%s432 + $0x338] sm:$0xff]
        %v768 = vld [vmem:[%s432 + $0x340] sm:$0xff]
        %v769 = vld [vmem:[%s432 + $0x348] sm:$0xff]
        %v770 = vld [vmem:[%s432 + $0x350] sm:$0xff]
        %v771 = vld [vmem:[%s432 + $0x358] sm:$0xff]
        %v772 = vld [vmem:[%s432 + $0x360] sm:$0xff]
        %v773 = vld [vmem:[%s432 + $0x368] sm:$0xff]
        %v774 = vld [vmem:[%s432 + $0x370] sm:$0xff]
        %v775 = vld [vmem:[%s432 + $0x378] sm:$0xff]
        %v776 = vld [vmem:[%s432 + $0x380] sm:$0xff]
        %v777 = vld [vmem:[%s432 + $0x388] sm:$0xff]
        %v778 = vld [vmem:[%s432 + $0x390] sm:$0xff]
        %v779 = vld [vmem:[%s432 + $0x398] sm:$0xff]
        %v780 = vld [vmem:[%s432 + $0x3a0] sm:$0xff]
        %v781 = vld [vmem:[%s432 + $0x3a8] sm:$0xff]
        %v782 = vld [vmem:[%s432 + $0x3b0] sm:$0xff]
        %v783 = vld [vmem:[%s432 + $0x3b8] sm:$0xff]
        %v784 = vld [vmem:[%s432 + $0x3c0] sm:$0xff]
        %v785 = vld [vmem:[%s432 + $0x3c8] sm:$0xff]
        %v786 = vld [vmem:[%s432 + $0x3d0] sm:$0xff]
        %v787 = vld [vmem:[%s432 + $0x3d8] sm:$0xff]
        %v788 = vld [vmem:[%s432 + $0x3e0] sm:$0xff]
        %v789 = vld [vmem:[%s432 + $0x3e8] sm:$0xff]
        %v790 = vld [vmem:[%s432 + $0x3f0] sm:$0xff]
        %v791 = vld [vmem:[%s432 + $0x3f8] sm:$0xff]
        %v792 = vld [vmem:[%s461] sm:$0xf]
        %v794 = vlaneseq
        %v795 = vshrl.u32 %v794, 7
        %v796 = vsub.s32 0, %v795
        %v797 = vrot.slane %v792, %v796
        %v798 = vlaneseq
        %v799 = vshrl.u32 %v798, 7
        %v800 = vsub.s32 1, %v799
        %v801 = vrot.slane %v792, %v800
        %v802 = vlaneseq
        %v803 = vshrl.u32 %v802, 7
        %v804 = vsub.s32 2, %v803
        %v805 = vrot.slane %v792, %v804
        %v806 = vlaneseq
        %v807 = vshrl.u32 %v806, 7
        %v808 = vsub.s32 3, %v807
        %v809 = vrot.slane %v792, %v808
        %v1014 = vunpack.c.l.b16 %v464
        %v1015 = vunpack.c.h.b16 %v464
        %v1016 = vunpack.c.l.b16 %v465
        %v1017 = vunpack.c.h.b16 %v465
        %v1018 = vunpack.c.l.b16 %v466
        %v1019 = vunpack.c.h.b16 %v466
        %v1020 = vunpack.c.l.b16 %v467
        %v1021 = vunpack.c.h.b16 %v467
        %v1022 = vunpack.c.l.b16 %v468
        %v1023 = vunpack.c.h.b16 %v468
        %v1024 = vunpack.c.l.b16 %v469
        %v1025 = vunpack.c.h.b16 %v469
        %v1026 = vunpack.c.l.b16 %v470
        %v1027 = vunpack.c.h.b16 %v470
        %v1028 = vunpack.c.l.b16 %v471
        %v1029 = vunpack.c.h.b16 %v471
        %v1030 = vunpack.c.l.b16 %v472
        %v1031 = vunpack.c.h.b16 %v472
        %v1032 = vunpack.c.l.b16 %v473
        %v1033 = vunpack.c.h.b16 %v473
        %v1034 = vunpack.c.l.b16 %v474
        %v1035 = vunpack.c.h.b16 %v474
        %v1036 = vunpack.c.l.b16 %v475
        %v1037 = vunpack.c.h.b16 %v475
        %v1038 = vunpack.c.l.b16 %v476
        %v1039 = vunpack.c.h.b16 %v476
        %v1040 = vunpack.c.l.b16 %v477
        %v1041 = vunpack.c.h.b16 %v477
        %v1042 = vunpack.c.l.b16 %v478
        %v1043 = vunpack.c.h.b16 %v478
        %v1044 = vunpack.c.l.b16 %v479
        %v1045 = vunpack.c.h.b16 %v479
        %v1046 = vunpack.c.l.b16 %v480
        %v1047 = vunpack.c.h.b16 %v480
        %v1048 = vunpack.c.l.b16 %v481
        %v1049 = vunpack.c.h.b16 %v481
        %v1050 = vunpack.c.l.b16 %v482
        %v1051 = vunpack.c.h.b16 %v482
        %v1052 = vunpack.c.l.b16 %v483
        %v1053 = vunpack.c.h.b16 %v483
        %v1054 = vunpack.c.l.b16 %v484
        %v1055 = vunpack.c.h.b16 %v484
        %v1056 = vunpack.c.l.b16 %v485
        %v1057 = vunpack.c.h.b16 %v485
        %v1058 = vunpack.c.l.b16 %v486
        %v1059 = vunpack.c.h.b16 %v486
        %v1060 = vunpack.c.l.b16 %v487
        %v1061 = vunpack.c.h.b16 %v487
        %v1062 = vunpack.c.l.b16 %v488
        %v1063 = vunpack.c.h.b16 %v488
        %v1064 = vunpack.c.l.b16 %v489
        %v1065 = vunpack.c.h.b16 %v489
        %v1066 = vunpack.c.l.b16 %v490
        %v1067 = vunpack.c.h.b16 %v490
        %v1068 = vunpack.c.l.b16 %v491
        %v1069 = vunpack.c.h.b16 %v491
        %v1070 = vunpack.c.l.b16 %v492
        %v1071 = vunpack.c.h.b16 %v492
        %v1072 = vunpack.c.l.b16 %v493
        %v1073 = vunpack.c.h.b16 %v493
        %v1074 = vunpack.c.l.b16 %v494
        %v1075 = vunpack.c.h.b16 %v494
        %v1076 = vunpack.c.l.b16 %v495
        %v1077 = vunpack.c.h.b16 %v495
        %v1078 = vunpack.c.l.b16 %v496
        %v1079 = vunpack.c.h.b16 %v496
        %v1080 = vunpack.c.l.b16 %v497
        %v1081 = vunpack.c.h.b16 %v497
        %v1082 = vunpack.c.l.b16 %v498
        %v1083 = vunpack.c.h.b16 %v498
        %v1084 = vunpack.c.l.b16 %v499
        %v1085 = vunpack.c.h.b16 %v499
        %v1086 = vunpack.c.l.b16 %v500
        %v1087 = vunpack.c.h.b16 %v500
        %v1088 = vunpack.c.l.b16 %v501
        %v1089 = vunpack.c.h.b16 %v501
        %v1090 = vunpack.c.l.b16 %v502
        %v1091 = vunpack.c.h.b16 %v502
        %v1092 = vunpack.c.l.b16 %v503
        %v1093 = vunpack.c.h.b16 %v503
        %v1094 = vunpack.c.l.b16 %v504
        %v1095 = vunpack.c.h.b16 %v504
        %v1096 = vunpack.c.l.b16 %v505
        %v1097 = vunpack.c.h.b16 %v505
        %v1098 = vunpack.c.l.b16 %v506
        %v1099 = vunpack.c.h.b16 %v506
        %v1100 = vunpack.c.l.b16 %v507
        %v1101 = vunpack.c.h.b16 %v507
        %v1102 = vunpack.c.l.b16 %v508
        %v1103 = vunpack.c.h.b16 %v508
        %v1104 = vunpack.c.l.b16 %v509
        %v1105 = vunpack.c.h.b16 %v509
        %v1106 = vunpack.c.l.b16 %v510
        %v1107 = vunpack.c.h.b16 %v510
        %v1108 = vunpack.c.l.b16 %v511
        %v1109 = vunpack.c.h.b16 %v511
        %v1110 = vunpack.c.l.b16 %v512
        %v1111 = vunpack.c.h.b16 %v512
        %v1112 = vunpack.c.l.b16 %v513
        %v1113 = vunpack.c.h.b16 %v513
        %v1114 = vunpack.c.l.b16 %v514
        %v1115 = vunpack.c.h.b16 %v514
        %v1116 = vunpack.c.l.b16 %v515
        %v1117 = vunpack.c.h.b16 %v515
        %v1118 = vunpack.c.l.b16 %v516
        %v1119 = vunpack.c.h.b16 %v516
        %v1120 = vunpack.c.l.b16 %v517
        %v1121 = vunpack.c.h.b16 %v517
        %v1122 = vunpack.c.l.b16 %v518
        %v1123 = vunpack.c.h.b16 %v518
        %v1124 = vunpack.c.l.b16 %v519
        %v1125 = vunpack.c.h.b16 %v519
        %v1126 = vunpack.c.l.b16 %v520
        %v1127 = vunpack.c.h.b16 %v520
        %v1128 = vunpack.c.l.b16 %v521
        %v1129 = vunpack.c.h.b16 %v521
        %v1130 = vunpack.c.l.b16 %v522
        %v1131 = vunpack.c.h.b16 %v522
        %v1132 = vunpack.c.l.b16 %v523
        %v1133 = vunpack.c.h.b16 %v523
        %v1134 = vunpack.c.l.b16 %v524
        %v1135 = vunpack.c.h.b16 %v524
        %v1136 = vunpack.c.l.b16 %v525
        %v1137 = vunpack.c.h.b16 %v525
        %v1138 = vunpack.c.l.b16 %v526
        %v1139 = vunpack.c.h.b16 %v526
        %v1140 = vunpack.c.l.b16 %v527
        %v1141 = vunpack.c.h.b16 %v527
        %v1142 = vunpack.c.l.b16 %v528
        %v1143 = vunpack.c.h.b16 %v528
        %v1144 = vunpack.c.l.b16 %v529
        %v1145 = vunpack.c.h.b16 %v529
        %v1146 = vunpack.c.l.b16 %v530
        %v1147 = vunpack.c.h.b16 %v530
        %v1148 = vunpack.c.l.b16 %v531
        %v1149 = vunpack.c.h.b16 %v531
        %v1150 = vunpack.c.l.b16 %v532
        %v1151 = vunpack.c.h.b16 %v532
        %v1152 = vunpack.c.l.b16 %v533
        %v1153 = vunpack.c.h.b16 %v533
        %v1154 = vunpack.c.l.b16 %v534
        %v1155 = vunpack.c.h.b16 %v534
        %v1156 = vunpack.c.l.b16 %v535
        %v1157 = vunpack.c.h.b16 %v535
        %v1158 = vunpack.c.l.b16 %v536
        %v1159 = vunpack.c.h.b16 %v536
        %v1160 = vunpack.c.l.b16 %v537
        %v1161 = vunpack.c.h.b16 %v537
        %v1162 = vunpack.c.l.b16 %v538
        %v1163 = vunpack.c.h.b16 %v538
        %v1164 = vunpack.c.l.b16 %v539
        %v1165 = vunpack.c.h.b16 %v539
        %v1166 = vunpack.c.l.b16 %v540
        %v1167 = vunpack.c.h.b16 %v540
        %v1168 = vunpack.c.l.b16 %v541
        %v1169 = vunpack.c.h.b16 %v541
        %v1170 = vunpack.c.l.b16 %v542
        %v1171 = vunpack.c.h.b16 %v542
        %v1172 = vunpack.c.l.b16 %v543
        %v1173 = vunpack.c.h.b16 %v543
        %v1174 = vunpack.c.l.b16 %v544
        %v1175 = vunpack.c.h.b16 %v544
        %v1176 = vunpack.c.l.b16 %v545
        %v1177 = vunpack.c.h.b16 %v545
        %v1178 = vunpack.c.l.b16 %v546
        %v1179 = vunpack.c.h.b16 %v546
        %v1180 = vunpack.c.l.b16 %v547
        %v1181 = vunpack.c.h.b16 %v547
        %v1182 = vunpack.c.l.b16 %v548
        %v1183 = vunpack.c.h.b16 %v548
        %v1184 = vunpack.c.l.b16 %v549
        %v1185 = vunpack.c.h.b16 %v549
        %v1186 = vunpack.c.l.b16 %v550
        %v1187 = vunpack.c.h.b16 %v550
        %v1188 = vunpack.c.l.b16 %v551
        %v1189 = vunpack.c.h.b16 %v551
        %v1190 = vunpack.c.l.b16 %v552
        %v1191 = vunpack.c.h.b16 %v552
        %v1192 = vunpack.c.l.b16 %v553
        %v1193 = vunpack.c.h.b16 %v553
        %v1194 = vunpack.c.l.b16 %v554
        %v1195 = vunpack.c.h.b16 %v554
        %v1196 = vunpack.c.l.b16 %v555
        %v1197 = vunpack.c.h.b16 %v555
        %v1198 = vunpack.c.l.b16 %v556
        %v1199 = vunpack.c.h.b16 %v556
        %v1200 = vunpack.c.l.b16 %v557
        %v1201 = vunpack.c.h.b16 %v557
        %v1202 = vunpack.c.l.b16 %v558
        %v1203 = vunpack.c.h.b16 %v558
        %v1204 = vunpack.c.l.b16 %v559
        %v1205 = vunpack.c.h.b16 %v559
        %v1206 = vunpack.c.l.b16 %v560
        %v1207 = vunpack.c.h.b16 %v560
        %v1208 = vunpack.c.l.b16 %v561
        %v1209 = vunpack.c.h.b16 %v561
        %v1210 = vunpack.c.l.b16 %v562
        %v1211 = vunpack.c.h.b16 %v562
        %v1212 = vunpack.c.l.b16 %v563
        %v1213 = vunpack.c.h.b16 %v563
        %v1214 = vunpack.c.l.b16 %v564
        %v1215 = vunpack.c.h.b16 %v564
        %v1216 = vunpack.c.l.b16 %v565
        %v1217 = vunpack.c.h.b16 %v565
        %v1218 = vunpack.c.l.b16 %v566
        %v1219 = vunpack.c.h.b16 %v566
        %v1220 = vunpack.c.l.b16 %v567
        %v1221 = vunpack.c.h.b16 %v567
        %v1222 = vunpack.c.l.b16 %v568
        %v1223 = vunpack.c.h.b16 %v568
        %v1224 = vunpack.c.l.b16 %v569
        %v1225 = vunpack.c.h.b16 %v569
        %v1226 = vunpack.c.l.b16 %v570
        %v1227 = vunpack.c.h.b16 %v570
        %v1228 = vunpack.c.l.b16 %v571
        %v1229 = vunpack.c.h.b16 %v571
        %v1230 = vunpack.c.l.b16 %v572
        %v1231 = vunpack.c.h.b16 %v572
        %v1232 = vunpack.c.l.b16 %v573
        %v1233 = vunpack.c.h.b16 %v573
        %v1234 = vunpack.c.l.b16 %v574
        %v1235 = vunpack.c.h.b16 %v574
        %v1236 = vunpack.c.l.b16 %v575
        %v1237 = vunpack.c.h.b16 %v575
        %v1238 = vunpack.c.l.b16 %v576
        %v1239 = vunpack.c.h.b16 %v576
        %v1240 = vunpack.c.l.b16 %v577
        %v1241 = vunpack.c.h.b16 %v577
        %v1242 = vunpack.c.l.b16 %v578
        %v1243 = vunpack.c.h.b16 %v578
        %v1244 = vunpack.c.l.b16 %v579
        %v1245 = vunpack.c.h.b16 %v579
        %v1246 = vunpack.c.l.b16 %v580
        %v1247 = vunpack.c.h.b16 %v580
        %v1248 = vunpack.c.l.b16 %v581
        %v1249 = vunpack.c.h.b16 %v581
        %v1250 = vunpack.c.l.b16 %v582
        %v1251 = vunpack.c.h.b16 %v582
        %v1252 = vunpack.c.l.b16 %v583
        %v1253 = vunpack.c.h.b16 %v583
        %v1254 = vunpack.c.l.b16 %v584
        %v1255 = vunpack.c.h.b16 %v584
        %v1256 = vunpack.c.l.b16 %v585
        %v1257 = vunpack.c.h.b16 %v585
        %v1258 = vunpack.c.l.b16 %v586
        %v1259 = vunpack.c.h.b16 %v586
        %v1260 = vunpack.c.l.b16 %v587
        %v1261 = vunpack.c.h.b16 %v587
        %v1262 = vunpack.c.l.b16 %v588
        %v1263 = vunpack.c.h.b16 %v588
        %v1264 = vunpack.c.l.b16 %v589
        %v1265 = vunpack.c.h.b16 %v589
        %v1266 = vunpack.c.l.b16 %v590
        %v1267 = vunpack.c.h.b16 %v590
        %v1268 = vunpack.c.l.b16 %v591
        %v1269 = vunpack.c.h.b16 %v591
        %v1270 = vunpack.c.l.b16 %v592
        %v1271 = vunpack.c.h.b16 %v592
        %v1272 = vunpack.c.l.b16 %v593
        %v1273 = vunpack.c.h.b16 %v593
        %v1274 = vunpack.c.l.b16 %v594
        %v1275 = vunpack.c.h.b16 %v594
        %v1276 = vunpack.c.l.b16 %v595
        %v1277 = vunpack.c.h.b16 %v595
        %v1278 = vunpack.c.l.b16 %v596
        %v1279 = vunpack.c.h.b16 %v596
        %v1280 = vunpack.c.l.b16 %v597
        %v1281 = vunpack.c.h.b16 %v597
        %v1282 = vunpack.c.l.b16 %v598
        %v1283 = vunpack.c.h.b16 %v598
        %v1284 = vunpack.c.l.b16 %v599
        %v1285 = vunpack.c.h.b16 %v599
        %v1286 = vunpack.c.l.b16 %v600
        %v1287 = vunpack.c.h.b16 %v600
        %v1288 = vunpack.c.l.b16 %v601
        %v1289 = vunpack.c.h.b16 %v601
        %v1290 = vunpack.c.l.b16 %v602
        %v1291 = vunpack.c.h.b16 %v602
        %v1292 = vunpack.c.l.b16 %v603
        %v1293 = vunpack.c.h.b16 %v603
        %v1294 = vunpack.c.l.b16 %v604
        %v1295 = vunpack.c.h.b16 %v604
        %v1296 = vunpack.c.l.b16 %v605
        %v1297 = vunpack.c.h.b16 %v605
        %v1298 = vunpack.c.l.b16 %v606
        %v1299 = vunpack.c.h.b16 %v606
        %v1300 = vunpack.c.l.b16 %v607
        %v1301 = vunpack.c.h.b16 %v607
        %v1302 = vunpack.c.l.b16 %v608
        %v1303 = vunpack.c.h.b16 %v608
        %v1304 = vunpack.c.l.b16 %v609
        %v1305 = vunpack.c.h.b16 %v609
        %v1306 = vunpack.c.l.b16 %v610
        %v1307 = vunpack.c.h.b16 %v610
        %v1308 = vunpack.c.l.b16 %v611
        %v1309 = vunpack.c.h.b16 %v611
        %v1310 = vunpack.c.l.b16 %v612
        %v1311 = vunpack.c.h.b16 %v612
        %v1312 = vunpack.c.l.b16 %v613
        %v1313 = vunpack.c.h.b16 %v613
        %v1314 = vunpack.c.l.b16 %v614
        %v1315 = vunpack.c.h.b16 %v614
        %v1316 = vunpack.c.l.b16 %v615
        %v1317 = vunpack.c.h.b16 %v615
        %v1318 = vunpack.c.l.b16 %v616
        %v1319 = vunpack.c.h.b16 %v616
        %v1320 = vunpack.c.l.b16 %v617
        %v1321 = vunpack.c.h.b16 %v617
        %v1322 = vunpack.c.l.b16 %v618
        %v1323 = vunpack.c.h.b16 %v618
        %v1324 = vunpack.c.l.b16 %v619
        %v1325 = vunpack.c.h.b16 %v619
        %v1326 = vunpack.c.l.b16 %v620
        %v1327 = vunpack.c.h.b16 %v620
        %v1328 = vunpack.c.l.b16 %v621
        %v1329 = vunpack.c.h.b16 %v621
        %v1330 = vunpack.c.l.b16 %v622
        %v1331 = vunpack.c.h.b16 %v622
        %v1332 = vunpack.c.l.b16 %v623
        %v1333 = vunpack.c.h.b16 %v623
        %v1334 = vunpack.c.l.b16 %v624
        %v1335 = vunpack.c.h.b16 %v624
        %v1336 = vunpack.c.l.b16 %v625
        %v1337 = vunpack.c.h.b16 %v625
        %v1338 = vunpack.c.l.b16 %v626
        %v1339 = vunpack.c.h.b16 %v626
        %v1340 = vunpack.c.l.b16 %v627
        %v1341 = vunpack.c.h.b16 %v627
        %v1342 = vunpack.c.l.b16 %v628
        %v1343 = vunpack.c.h.b16 %v628
        %v1344 = vunpack.c.l.b16 %v629
        %v1345 = vunpack.c.h.b16 %v629
        %v1346 = vunpack.c.l.b16 %v630
        %v1347 = vunpack.c.h.b16 %v630
        %v1348 = vunpack.c.l.b16 %v631
        %v1349 = vunpack.c.h.b16 %v631
        %v1350 = vunpack.c.l.b16 %v632
        %v1351 = vunpack.c.h.b16 %v632
        %v1352 = vunpack.c.l.b16 %v633
        %v1353 = vunpack.c.h.b16 %v633
        %v1354 = vunpack.c.l.b16 %v634
        %v1355 = vunpack.c.h.b16 %v634
        %v1356 = vunpack.c.l.b16 %v635
        %v1357 = vunpack.c.h.b16 %v635
        %v1358 = vunpack.c.l.b16 %v636
        %v1359 = vunpack.c.h.b16 %v636
        %v1360 = vunpack.c.l.b16 %v637
        %v1361 = vunpack.c.h.b16 %v637
        %v1362 = vunpack.c.l.b16 %v638
        %v1363 = vunpack.c.h.b16 %v638
        %v1364 = vunpack.c.l.b16 %v639
        %v1365 = vunpack.c.h.b16 %v639
        %v1366 = vunpack.c.l.b16 %v640
        %v1367 = vunpack.c.h.b16 %v640
        %v1368 = vunpack.c.l.b16 %v641
        %v1369 = vunpack.c.h.b16 %v641
        %v1370 = vunpack.c.l.b16 %v642
        %v1371 = vunpack.c.h.b16 %v642
        %v1372 = vunpack.c.l.b16 %v643
        %v1373 = vunpack.c.h.b16 %v643
        %v1374 = vunpack.c.l.b16 %v644
        %v1375 = vunpack.c.h.b16 %v644
        %v1376 = vunpack.c.l.b16 %v645
        %v1377 = vunpack.c.h.b16 %v645
        %v1378 = vunpack.c.l.b16 %v646
        %v1379 = vunpack.c.h.b16 %v646
        %v1380 = vunpack.c.l.b16 %v647
        %v1381 = vunpack.c.h.b16 %v647
        %v1382 = vunpack.c.l.b16 %v648
        %v1383 = vunpack.c.h.b16 %v648
        %v1384 = vunpack.c.l.b16 %v649
        %v1385 = vunpack.c.h.b16 %v649
        %v1386 = vunpack.c.l.b16 %v650
        %v1387 = vunpack.c.h.b16 %v650
        %v1388 = vunpack.c.l.b16 %v651
        %v1389 = vunpack.c.h.b16 %v651
        %v1390 = vunpack.c.l.b16 %v652
        %v1391 = vunpack.c.h.b16 %v652
        %v1392 = vunpack.c.l.b16 %v653
        %v1393 = vunpack.c.h.b16 %v653
        %v1394 = vunpack.c.l.b16 %v654
        %v1395 = vunpack.c.h.b16 %v654
        %v1396 = vunpack.c.l.b16 %v655
        %v1397 = vunpack.c.h.b16 %v655
        %v1398 = vunpack.c.l.b16 %v656
        %v1399 = vunpack.c.h.b16 %v656
        %v1400 = vunpack.c.l.b16 %v657
        %v1401 = vunpack.c.h.b16 %v657
        %v1402 = vunpack.c.l.b16 %v658
        %v1403 = vunpack.c.h.b16 %v658
        %v1404 = vunpack.c.l.b16 %v659
        %v1405 = vunpack.c.h.b16 %v659
        %v1406 = vunpack.c.l.b16 %v660
        %v1407 = vunpack.c.h.b16 %v660
        %v1408 = vunpack.c.l.b16 %v661
        %v1409 = vunpack.c.h.b16 %v661
        %v1410 = vunpack.c.l.b16 %v662
        %v1411 = vunpack.c.h.b16 %v662
        %v1412 = vunpack.c.l.b16 %v663
        %v1413 = vunpack.c.h.b16 %v663
        %v1414 = vpack.c.b16 %v1018, %v1014
        %v1415 = vpack.c.b16 %v1019, %v1015
        %v1416 = vpack.c.b16 %v1020, %v1016
        %v1417 = vpack.c.b16 %v1021, %v1017
        %v1418 = vpack.c.b16 %v1026, %v1022
        %v1419 = vpack.c.b16 %v1027, %v1023
        %v1420 = vpack.c.b16 %v1028, %v1024
        %v1421 = vpack.c.b16 %v1029, %v1025
        %v1422 = vpack.c.b16 %v1034, %v1030
        %v1423 = vpack.c.b16 %v1035, %v1031
        %v1424 = vpack.c.b16 %v1036, %v1032
        %v1425 = vpack.c.b16 %v1037, %v1033
        %v1426 = vpack.c.b16 %v1042, %v1038
        %v1427 = vpack.c.b16 %v1043, %v1039
        %v1428 = vpack.c.b16 %v1044, %v1040
        %v1429 = vpack.c.b16 %v1045, %v1041
        %v1430 = vpack.c.b16 %v1050, %v1046
        %v1431 = vpack.c.b16 %v1051, %v1047
        %v1432 = vpack.c.b16 %v1052, %v1048
        %v1433 = vpack.c.b16 %v1053, %v1049
        %v1434 = vpack.c.b16 %v1058, %v1054
        %v1435 = vpack.c.b16 %v1059, %v1055
        %v1436 = vpack.c.b16 %v1060, %v1056
        %v1437 = vpack.c.b16 %v1061, %v1057
        %v1438 = vpack.c.b16 %v1066, %v1062
        %v1439 = vpack.c.b16 %v1067, %v1063
        %v1440 = vpack.c.b16 %v1068, %v1064
        %v1441 = vpack.c.b16 %v1069, %v1065
        %v1442 = vpack.c.b16 %v1074, %v1070
        %v1443 = vpack.c.b16 %v1075, %v1071
        %v1444 = vpack.c.b16 %v1076, %v1072
        %v1445 = vpack.c.b16 %v1077, %v1073
        %v1446 = vpack.c.b16 %v1082, %v1078
        %v1447 = vpack.c.b16 %v1083, %v1079
        %v1448 = vpack.c.b16 %v1084, %v1080
        %v1449 = vpack.c.b16 %v1085, %v1081
        %v1450 = vpack.c.b16 %v1090, %v1086
        %v1451 = vpack.c.b16 %v1091, %v1087
        %v1452 = vpack.c.b16 %v1092, %v1088
        %v1453 = vpack.c.b16 %v1093, %v1089
        %v1454 = vpack.c.b16 %v1098, %v1094
        %v1455 = vpack.c.b16 %v1099, %v1095
        %v1456 = vpack.c.b16 %v1100, %v1096
        %v1457 = vpack.c.b16 %v1101, %v1097
        %v1458 = vpack.c.b16 %v1106, %v1102
        %v1459 = vpack.c.b16 %v1107, %v1103
        %v1460 = vpack.c.b16 %v1108, %v1104
        %v1461 = vpack.c.b16 %v1109, %v1105
        %v1462 = vpack.c.b16 %v1114, %v1110
        %v1463 = vpack.c.b16 %v1115, %v1111
        %v1464 = vpack.c.b16 %v1116, %v1112
        %v1465 = vpack.c.b16 %v1117, %v1113
        %v1466 = vpack.c.b16 %v1122, %v1118
        %v1467 = vpack.c.b16 %v1123, %v1119
        %v1468 = vpack.c.b16 %v1124, %v1120
        %v1469 = vpack.c.b16 %v1125, %v1121
        %v1470 = vpack.c.b16 %v1130, %v1126
        %v1471 = vpack.c.b16 %v1131, %v1127
        %v1472 = vpack.c.b16 %v1132, %v1128
        %v1473 = vpack.c.b16 %v1133, %v1129
        %v1474 = vpack.c.b16 %v1138, %v1134
        %v1475 = vpack.c.b16 %v1139, %v1135
        %v1476 = vpack.c.b16 %v1140, %v1136
        %v1477 = vpack.c.b16 %v1141, %v1137
        %v1478 = vpack.c.b16 %v1146, %v1142
        %v1479 = vpack.c.b16 %v1147, %v1143
        %v1480 = vpack.c.b16 %v1148, %v1144
        %v1481 = vpack.c.b16 %v1149, %v1145
        %v1482 = vpack.c.b16 %v1154, %v1150
        %v1483 = vpack.c.b16 %v1155, %v1151
        %v1484 = vpack.c.b16 %v1156, %v1152
        %v1485 = vpack.c.b16 %v1157, %v1153
        %v1486 = vpack.c.b16 %v1162, %v1158
        %v1487 = vpack.c.b16 %v1163, %v1159
        %v1488 = vpack.c.b16 %v1164, %v1160
        %v1489 = vpack.c.b16 %v1165, %v1161
        %v1490 = vpack.c.b16 %v1170, %v1166
        %v1491 = vpack.c.b16 %v1171, %v1167
        %v1492 = vpack.c.b16 %v1172, %v1168
        %v1493 = vpack.c.b16 %v1173, %v1169
        %v1494 = vpack.c.b16 %v1178, %v1174
        %v1495 = vpack.c.b16 %v1179, %v1175
        %v1496 = vpack.c.b16 %v1180, %v1176
        %v1497 = vpack.c.b16 %v1181, %v1177
        %v1498 = vpack.c.b16 %v1186, %v1182
        %v1499 = vpack.c.b16 %v1187, %v1183
        %v1500 = vpack.c.b16 %v1188, %v1184
        %v1501 = vpack.c.b16 %v1189, %v1185
        %v1502 = vpack.c.b16 %v1194, %v1190
        %v1503 = vpack.c.b16 %v1195, %v1191
        %v1504 = vpack.c.b16 %v1196, %v1192
        %v1505 = vpack.c.b16 %v1197, %v1193
        %v1506 = vpack.c.b16 %v1202, %v1198
        %v1507 = vpack.c.b16 %v1203, %v1199
        %v1508 = vpack.c.b16 %v1204, %v1200
        %v1509 = vpack.c.b16 %v1205, %v1201
        %v1510 = vpack.c.b16 %v1210, %v1206
        %v1511 = vpack.c.b16 %v1211, %v1207
        %v1512 = vpack.c.b16 %v1212, %v1208
        %v1513 = vpack.c.b16 %v1213, %v1209
        %v1514 = vpack.c.b16 %v1218, %v1214
        %v1515 = vpack.c.b16 %v1219, %v1215
        %v1516 = vpack.c.b16 %v1220, %v1216
        %v1517 = vpack.c.b16 %v1221, %v1217
        %v1518 = vpack.c.b16 %v1226, %v1222
        %v1519 = vpack.c.b16 %v1227, %v1223
        %v1520 = vpack.c.b16 %v1228, %v1224
        %v1521 = vpack.c.b16 %v1229, %v1225
        %v1522 = vpack.c.b16 %v1234, %v1230
        %v1523 = vpack.c.b16 %v1235, %v1231
        %v1524 = vpack.c.b16 %v1236, %v1232
        %v1525 = vpack.c.b16 %v1237, %v1233
        %v1526 = vpack.c.b16 %v1242, %v1238
        %v1527 = vpack.c.b16 %v1243, %v1239
        %v1528 = vpack.c.b16 %v1244, %v1240
        %v1529 = vpack.c.b16 %v1245, %v1241
        %v1530 = vpack.c.b16 %v1250, %v1246
        %v1531 = vpack.c.b16 %v1251, %v1247
        %v1532 = vpack.c.b16 %v1252, %v1248
        %v1533 = vpack.c.b16 %v1253, %v1249
        %v1534 = vpack.c.b16 %v1258, %v1254
        %v1535 = vpack.c.b16 %v1259, %v1255
        %v1536 = vpack.c.b16 %v1260, %v1256
        %v1537 = vpack.c.b16 %v1261, %v1257
        %v1538 = vpack.c.b16 %v1266, %v1262
        %v1539 = vpack.c.b16 %v1267, %v1263
        %v1540 = vpack.c.b16 %v1268, %v1264
        %v1541 = vpack.c.b16 %v1269, %v1265
        %v1542 = vpack.c.b16 %v1274, %v1270
        %v1543 = vpack.c.b16 %v1275, %v1271
        %v1544 = vpack.c.b16 %v1276, %v1272
        %v1545 = vpack.c.b16 %v1277, %v1273
        %v1546 = vpack.c.b16 %v1282, %v1278
        %v1547 = vpack.c.b16 %v1283, %v1279
        %v1548 = vpack.c.b16 %v1284, %v1280
        %v1549 = vpack.c.b16 %v1285, %v1281
        %v1550 = vpack.c.b16 %v1290, %v1286
        %v1551 = vpack.c.b16 %v1291, %v1287
        %v1552 = vpack.c.b16 %v1292, %v1288
        %v1553 = vpack.c.b16 %v1293, %v1289
        %v1554 = vpack.c.b16 %v1298, %v1294
        %v1555 = vpack.c.b16 %v1299, %v1295
        %v1556 = vpack.c.b16 %v1300, %v1296
        %v1557 = vpack.c.b16 %v1301, %v1297
        %v1558 = vpack.c.b16 %v1306, %v1302
        %v1559 = vpack.c.b16 %v1307, %v1303
        %v1560 = vpack.c.b16 %v1308, %v1304
        %v1561 = vpack.c.b16 %v1309, %v1305
        %v1562 = vpack.c.b16 %v1314, %v1310
        %v1563 = vpack.c.b16 %v1315, %v1311
        %v1564 = vpack.c.b16 %v1316, %v1312
        %v1565 = vpack.c.b16 %v1317, %v1313
        %v1566 = vpack.c.b16 %v1322, %v1318
        %v1567 = vpack.c.b16 %v1323, %v1319
        %v1568 = vpack.c.b16 %v1324, %v1320
        %v1569 = vpack.c.b16 %v1325, %v1321
        %v1570 = vpack.c.b16 %v1330, %v1326
        %v1571 = vpack.c.b16 %v1331, %v1327
        %v1572 = vpack.c.b16 %v1332, %v1328
        %v1573 = vpack.c.b16 %v1333, %v1329
        %v1574 = vpack.c.b16 %v1338, %v1334
        %v1575 = vpack.c.b16 %v1339, %v1335
        %v1576 = vpack.c.b16 %v1340, %v1336
        %v1577 = vpack.c.b16 %v1341, %v1337
        %v1578 = vpack.c.b16 %v1346, %v1342
        %v1579 = vpack.c.b16 %v1347, %v1343
        %v1580 = vpack.c.b16 %v1348, %v1344
        %v1581 = vpack.c.b16 %v1349, %v1345
        %v1582 = vpack.c.b16 %v1354, %v1350
        %v1583 = vpack.c.b16 %v1355, %v1351
        %v1584 = vpack.c.b16 %v1356, %v1352
        %v1585 = vpack.c.b16 %v1357, %v1353
        %v1586 = vpack.c.b16 %v1362, %v1358
        %v1587 = vpack.c.b16 %v1363, %v1359
        %v1588 = vpack.c.b16 %v1364, %v1360
        %v1589 = vpack.c.b16 %v1365, %v1361
        %v1590 = vpack.c.b16 %v1370, %v1366
        %v1591 = vpack.c.b16 %v1371, %v1367
        %v1592 = vpack.c.b16 %v1372, %v1368
        %v1593 = vpack.c.b16 %v1373, %v1369
        %v1594 = vpack.c.b16 %v1378, %v1374
        %v1595 = vpack.c.b16 %v1379, %v1375
        %v1596 = vpack.c.b16 %v1380, %v1376
        %v1597 = vpack.c.b16 %v1381, %v1377
        %v1598 = vpack.c.b16 %v1386, %v1382
        %v1599 = vpack.c.b16 %v1387, %v1383
        %v1600 = vpack.c.b16 %v1388, %v1384
        %v1601 = vpack.c.b16 %v1389, %v1385
        %v1602 = vpack.c.b16 %v1394, %v1390
        %v1603 = vpack.c.b16 %v1395, %v1391
        %v1604 = vpack.c.b16 %v1396, %v1392
        %v1605 = vpack.c.b16 %v1397, %v1393
        %v1606 = vpack.c.b16 %v1402, %v1398
        %v1607 = vpack.c.b16 %v1403, %v1399
        %v1608 = vpack.c.b16 %v1404, %v1400
        %v1609 = vpack.c.b16 %v1405, %v1401
        %v1610 = vpack.c.b16 %v1410, %v1406
        %v1611 = vpack.c.b16 %v1411, %v1407
        %v1612 = vpack.c.b16 %v1412, %v1408
        %v1613 = vpack.c.b16 %v1413, %v1409
        %v1942 = vunpack.c.l.b16 %v664
        %v1943 = vunpack.c.h.b16 %v664
        %v1944 = vunpack.c.l.b16 %v665
        %v1945 = vunpack.c.h.b16 %v665
        %v1946 = vunpack.c.l.b16 %v666
        %v1947 = vunpack.c.h.b16 %v666
        %v1948 = vunpack.c.l.b16 %v667
        %v1949 = vunpack.c.h.b16 %v667
        %v1950 = vunpack.c.l.b16 %v668
        %v1951 = vunpack.c.h.b16 %v668
        %v1952 = vunpack.c.l.b16 %v669
        %v1953 = vunpack.c.h.b16 %v669
        %v1954 = vunpack.c.l.b16 %v670
        %v1955 = vunpack.c.h.b16 %v670
        %v1956 = vunpack.c.l.b16 %v671
        %v1957 = vunpack.c.h.b16 %v671
        %v1958 = vunpack.c.l.b16 %v672
        %v1959 = vunpack.c.h.b16 %v672
        %v1960 = vunpack.c.l.b16 %v673
        %v1961 = vunpack.c.h.b16 %v673
        %v1962 = vunpack.c.l.b16 %v674
        %v1963 = vunpack.c.h.b16 %v674
        %v1964 = vunpack.c.l.b16 %v675
        %v1965 = vunpack.c.h.b16 %v675
        %v1966 = vunpack.c.l.b16 %v676
        %v1967 = vunpack.c.h.b16 %v676
        %v1968 = vunpack.c.l.b16 %v677
        %v1969 = vunpack.c.h.b16 %v677
        %v1970 = vunpack.c.l.b16 %v678
        %v1971 = vunpack.c.h.b16 %v678
        %v1972 = vunpack.c.l.b16 %v679
        %v1973 = vunpack.c.h.b16 %v679
        %v1974 = vunpack.c.l.b16 %v680
        %v1975 = vunpack.c.h.b16 %v680
        %v1976 = vunpack.c.l.b16 %v681
        %v1977 = vunpack.c.h.b16 %v681
        %v1978 = vunpack.c.l.b16 %v682
        %v1979 = vunpack.c.h.b16 %v682
        %v1980 = vunpack.c.l.b16 %v683
        %v1981 = vunpack.c.h.b16 %v683
        %v1982 = vunpack.c.l.b16 %v684
        %v1983 = vunpack.c.h.b16 %v684
        %v1984 = vunpack.c.l.b16 %v685
        %v1985 = vunpack.c.h.b16 %v685
        %v1986 = vunpack.c.l.b16 %v686
        %v1987 = vunpack.c.h.b16 %v686
        %v1988 = vunpack.c.l.b16 %v687
        %v1989 = vunpack.c.h.b16 %v687
        %v1990 = vunpack.c.l.b16 %v688
        %v1991 = vunpack.c.h.b16 %v688
        %v1992 = vunpack.c.l.b16 %v689
        %v1993 = vunpack.c.h.b16 %v689
        %v1994 = vunpack.c.l.b16 %v690
        %v1995 = vunpack.c.h.b16 %v690
        %v1996 = vunpack.c.l.b16 %v691
        %v1997 = vunpack.c.h.b16 %v691
        %v1998 = vunpack.c.l.b16 %v692
        %v1999 = vunpack.c.h.b16 %v692
        %v2000 = vunpack.c.l.b16 %v693
        %v2001 = vunpack.c.h.b16 %v693
        %v2002 = vunpack.c.l.b16 %v694
        %v2003 = vunpack.c.h.b16 %v694
        %v2004 = vunpack.c.l.b16 %v695
        %v2005 = vunpack.c.h.b16 %v695
        %v2006 = vunpack.c.l.b16 %v696
        %v2007 = vunpack.c.h.b16 %v696
        %v2008 = vunpack.c.l.b16 %v697
        %v2009 = vunpack.c.h.b16 %v697
        %v2010 = vunpack.c.l.b16 %v698
        %v2011 = vunpack.c.h.b16 %v698
        %v2012 = vunpack.c.l.b16 %v699
        %v2013 = vunpack.c.h.b16 %v699
        %v2014 = vunpack.c.l.b16 %v700
        %v2015 = vunpack.c.h.b16 %v700
        %v2016 = vunpack.c.l.b16 %v701
        %v2017 = vunpack.c.h.b16 %v701
        %v2018 = vunpack.c.l.b16 %v702
        %v2019 = vunpack.c.h.b16 %v702
        %v2020 = vunpack.c.l.b16 %v703
        %v2021 = vunpack.c.h.b16 %v703
        %v2022 = vunpack.c.l.b16 %v704
        %v2023 = vunpack.c.h.b16 %v704
        %v2024 = vunpack.c.l.b16 %v705
        %v2025 = vunpack.c.h.b16 %v705
        %v2026 = vunpack.c.l.b16 %v706
        %v2027 = vunpack.c.h.b16 %v706
        %v2028 = vunpack.c.l.b16 %v707
        %v2029 = vunpack.c.h.b16 %v707
        %v2030 = vunpack.c.l.b16 %v708
        %v2031 = vunpack.c.h.b16 %v708
        %v2032 = vunpack.c.l.b16 %v709
        %v2033 = vunpack.c.h.b16 %v709
        %v2034 = vunpack.c.l.b16 %v710
        %v2035 = vunpack.c.h.b16 %v710
        %v2036 = vunpack.c.l.b16 %v711
        %v2037 = vunpack.c.h.b16 %v711
        %v2038 = vunpack.c.l.b16 %v712
        %v2039 = vunpack.c.h.b16 %v712
        %v2040 = vunpack.c.l.b16 %v713
        %v2041 = vunpack.c.h.b16 %v713
        %v2042 = vunpack.c.l.b16 %v714
        %v2043 = vunpack.c.h.b16 %v714
        %v2044 = vunpack.c.l.b16 %v715
        %v2045 = vunpack.c.h.b16 %v715
        %v2046 = vunpack.c.l.b16 %v716
        %v2047 = vunpack.c.h.b16 %v716
        %v2048 = vunpack.c.l.b16 %v717
        %v2049 = vunpack.c.h.b16 %v717
        %v2050 = vunpack.c.l.b16 %v718
        %v2051 = vunpack.c.h.b16 %v718
        %v2052 = vunpack.c.l.b16 %v719
        %v2053 = vunpack.c.h.b16 %v719
        %v2054 = vunpack.c.l.b16 %v720
        %v2055 = vunpack.c.h.b16 %v720
        %v2056 = vunpack.c.l.b16 %v721
        %v2057 = vunpack.c.h.b16 %v721
        %v2058 = vunpack.c.l.b16 %v722
        %v2059 = vunpack.c.h.b16 %v722
        %v2060 = vunpack.c.l.b16 %v723
        %v2061 = vunpack.c.h.b16 %v723
        %v2062 = vunpack.c.l.b16 %v724
        %v2063 = vunpack.c.h.b16 %v724
        %v2064 = vunpack.c.l.b16 %v725
        %v2065 = vunpack.c.h.b16 %v725
        %v2066 = vunpack.c.l.b16 %v726
        %v2067 = vunpack.c.h.b16 %v726
        %v2068 = vunpack.c.l.b16 %v727
        %v2069 = vunpack.c.h.b16 %v727
        %v2070 = vunpack.c.l.b16 %v728
        %v2071 = vunpack.c.h.b16 %v728
        %v2072 = vunpack.c.l.b16 %v729
        %v2073 = vunpack.c.h.b16 %v729
        %v2074 = vunpack.c.l.b16 %v730
        %v2075 = vunpack.c.h.b16 %v730
        %v2076 = vunpack.c.l.b16 %v731
        %v2077 = vunpack.c.h.b16 %v731
        %v2078 = vunpack.c.l.b16 %v732
        %v2079 = vunpack.c.h.b16 %v732
        %v2080 = vunpack.c.l.b16 %v733
        %v2081 = vunpack.c.h.b16 %v733
        %v2082 = vunpack.c.l.b16 %v734
        %v2083 = vunpack.c.h.b16 %v734
        %v2084 = vunpack.c.l.b16 %v735
        %v2085 = vunpack.c.h.b16 %v735
        %v2086 = vunpack.c.l.b16 %v736
        %v2087 = vunpack.c.h.b16 %v736
        %v2088 = vunpack.c.l.b16 %v737
        %v2089 = vunpack.c.h.b16 %v737
        %v2090 = vunpack.c.l.b16 %v738
        %v2091 = vunpack.c.h.b16 %v738
        %v2092 = vunpack.c.l.b16 %v739
        %v2093 = vunpack.c.h.b16 %v739
        %v2094 = vunpack.c.l.b16 %v740
        %v2095 = vunpack.c.h.b16 %v740
        %v2096 = vunpack.c.l.b16 %v741
        %v2097 = vunpack.c.h.b16 %v741
        %v2098 = vunpack.c.l.b16 %v742
        %v2099 = vunpack.c.h.b16 %v742
        %v2100 = vunpack.c.l.b16 %v743
        %v2101 = vunpack.c.h.b16 %v743
        %v2102 = vunpack.c.l.b16 %v744
        %v2103 = vunpack.c.h.b16 %v744
        %v2104 = vunpack.c.l.b16 %v745
        %v2105 = vunpack.c.h.b16 %v745
        %v2106 = vunpack.c.l.b16 %v746
        %v2107 = vunpack.c.h.b16 %v746
        %v2108 = vunpack.c.l.b16 %v747
        %v2109 = vunpack.c.h.b16 %v747
        %v2110 = vunpack.c.l.b16 %v748
        %v2111 = vunpack.c.h.b16 %v748
        %v2112 = vunpack.c.l.b16 %v749
        %v2113 = vunpack.c.h.b16 %v749
        %v2114 = vunpack.c.l.b16 %v750
        %v2115 = vunpack.c.h.b16 %v750
        %v2116 = vunpack.c.l.b16 %v751
        %v2117 = vunpack.c.h.b16 %v751
        %v2118 = vunpack.c.l.b16 %v752
        %v2119 = vunpack.c.h.b16 %v752
        %v2120 = vunpack.c.l.b16 %v753
        %v2121 = vunpack.c.h.b16 %v753
        %v2122 = vunpack.c.l.b16 %v754
        %v2123 = vunpack.c.h.b16 %v754
        %v2124 = vunpack.c.l.b16 %v755
        %v2125 = vunpack.c.h.b16 %v755
        %v2126 = vunpack.c.l.b16 %v756
        %v2127 = vunpack.c.h.b16 %v756
        %v2128 = vunpack.c.l.b16 %v757
        %v2129 = vunpack.c.h.b16 %v757
        %v2130 = vunpack.c.l.b16 %v758
        %v2131 = vunpack.c.h.b16 %v758
        %v2132 = vunpack.c.l.b16 %v759
        %v2133 = vunpack.c.h.b16 %v759
        %v2134 = vunpack.c.l.b16 %v760
        %v2135 = vunpack.c.h.b16 %v760
        %v2136 = vunpack.c.l.b16 %v761
        %v2137 = vunpack.c.h.b16 %v761
        %v2138 = vunpack.c.l.b16 %v762
        %v2139 = vunpack.c.h.b16 %v762
        %v2140 = vunpack.c.l.b16 %v763
        %v2141 = vunpack.c.h.b16 %v763
        %v2142 = vunpack.c.l.b16 %v764
        %v2143 = vunpack.c.h.b16 %v764
        %v2144 = vunpack.c.l.b16 %v765
        %v2145 = vunpack.c.h.b16 %v765
        %v2146 = vunpack.c.l.b16 %v766
        %v2147 = vunpack.c.h.b16 %v766
        %v2148 = vunpack.c.l.b16 %v767
        %v2149 = vunpack.c.h.b16 %v767
        %v2150 = vunpack.c.l.b16 %v768
        %v2151 = vunpack.c.h.b16 %v768
        %v2152 = vunpack.c.l.b16 %v769
        %v2153 = vunpack.c.h.b16 %v769
        %v2154 = vunpack.c.l.b16 %v770
        %v2155 = vunpack.c.h.b16 %v770
        %v2156 = vunpack.c.l.b16 %v771
        %v2157 = vunpack.c.h.b16 %v771
        %v2158 = vunpack.c.l.b16 %v772
        %v2159 = vunpack.c.h.b16 %v772
        %v2160 = vunpack.c.l.b16 %v773
        %v2161 = vunpack.c.h.b16 %v773
        %v2162 = vunpack.c.l.b16 %v774
        %v2163 = vunpack.c.h.b16 %v774
        %v2164 = vunpack.c.l.b16 %v775
        %v2165 = vunpack.c.h.b16 %v775
        %v2166 = vunpack.c.l.b16 %v776
        %v2167 = vunpack.c.h.b16 %v776
        %v2168 = vunpack.c.l.b16 %v777
        %v2169 = vunpack.c.h.b16 %v777
        %v2170 = vunpack.c.l.b16 %v778
        %v2171 = vunpack.c.h.b16 %v778
        %v2172 = vunpack.c.l.b16 %v779
        %v2173 = vunpack.c.h.b16 %v779
        %v2174 = vunpack.c.l.b16 %v780
        %v2175 = vunpack.c.h.b16 %v780
        %v2176 = vunpack.c.l.b16 %v781
        %v2177 = vunpack.c.h.b16 %v781
        %v2178 = vunpack.c.l.b16 %v782
        %v2179 = vunpack.c.h.b16 %v782
        %v2180 = vunpack.c.l.b16 %v783
        %v2181 = vunpack.c.h.b16 %v783
        %v2182 = vunpack.c.l.b16 %v784
        %v2183 = vunpack.c.h.b16 %v784
        %v2184 = vunpack.c.l.b16 %v785
        %v2185 = vunpack.c.h.b16 %v785
        %v2186 = vunpack.c.l.b16 %v786
        %v2187 = vunpack.c.h.b16 %v786
        %v2188 = vunpack.c.l.b16 %v787
        %v2189 = vunpack.c.h.b16 %v787
        %v2190 = vunpack.c.l.b16 %v788
        %v2191 = vunpack.c.h.b16 %v788
        %v2192 = vunpack.c.l.b16 %v789
        %v2193 = vunpack.c.h.b16 %v789
        %v2194 = vunpack.c.l.b16 %v790
        %v2195 = vunpack.c.h.b16 %v790
        %v2196 = vunpack.c.l.b16 %v791
        %v2197 = vunpack.c.h.b16 %v791
        %v2198 = vpack.c.b16 %v1946, %v1942
        %v2199 = vpack.c.b16 %v1947, %v1943
        %v2200 = vpack.c.b16 %v1948, %v1944
        %v2201 = vpack.c.b16 %v1949, %v1945
        %v2202 = vpack.c.b16 %v1954, %v1950
        %v2203 = vpack.c.b16 %v1955, %v1951
        %v2204 = vpack.c.b16 %v1956, %v1952
        %v2205 = vpack.c.b16 %v1957, %v1953
        %v2206 = vpack.c.b16 %v1962, %v1958
        %v2207 = vpack.c.b16 %v1963, %v1959
        %v2208 = vpack.c.b16 %v1964, %v1960
        %v2209 = vpack.c.b16 %v1965, %v1961
        %v2210 = vpack.c.b16 %v1970, %v1966
        %v2211 = vpack.c.b16 %v1971, %v1967
        %v2212 = vpack.c.b16 %v1972, %v1968
        %v2213 = vpack.c.b16 %v1973, %v1969
        %v2214 = vpack.c.b16 %v1978, %v1974
        %v2215 = vpack.c.b16 %v1979, %v1975
        %v2216 = vpack.c.b16 %v1980, %v1976
        %v2217 = vpack.c.b16 %v1981, %v1977
        %v2218 = vpack.c.b16 %v1986, %v1982
        %v2219 = vpack.c.b16 %v1987, %v1983
        %v2220 = vpack.c.b16 %v1988, %v1984
        %v2221 = vpack.c.b16 %v1989, %v1985
        %v2222 = vpack.c.b16 %v1994, %v1990
        %v2223 = vpack.c.b16 %v1995, %v1991
        %v2224 = vpack.c.b16 %v1996, %v1992
        %v2225 = vpack.c.b16 %v1997, %v1993
        %v2226 = vpack.c.b16 %v2002, %v1998
        %v2227 = vpack.c.b16 %v2003, %v1999
        %v2228 = vpack.c.b16 %v2004, %v2000
        %v2229 = vpack.c.b16 %v2005, %v2001
        %v2230 = vpack.c.b16 %v2010, %v2006
        %v2231 = vpack.c.b16 %v2011, %v2007
        %v2232 = vpack.c.b16 %v2012, %v2008
        %v2233 = vpack.c.b16 %v2013, %v2009
        %v2234 = vpack.c.b16 %v2018, %v2014
        %v2235 = vpack.c.b16 %v2019, %v2015
        %v2236 = vpack.c.b16 %v2020, %v2016
        %v2237 = vpack.c.b16 %v2021, %v2017
        %v2238 = vpack.c.b16 %v2026, %v2022
        %v2239 = vpack.c.b16 %v2027, %v2023
        %v2240 = vpack.c.b16 %v2028, %v2024
        %v2241 = vpack.c.b16 %v2029, %v2025
        %v2242 = vpack.c.b16 %v2034, %v2030
        %v2243 = vpack.c.b16 %v2035, %v2031
        %v2244 = vpack.c.b16 %v2036, %v2032
        %v2245 = vpack.c.b16 %v2037, %v2033
        %v2246 = vpack.c.b16 %v2042, %v2038
        %v2247 = vpack.c.b16 %v2043, %v2039
        %v2248 = vpack.c.b16 %v2044, %v2040
        %v2249 = vpack.c.b16 %v2045, %v2041
        %v2250 = vpack.c.b16 %v2050, %v2046
        %v2251 = vpack.c.b16 %v2051, %v2047
        %v2252 = vpack.c.b16 %v2052, %v2048
        %v2253 = vpack.c.b16 %v2053, %v2049
        %v2254 = vpack.c.b16 %v2058, %v2054
        %v2255 = vpack.c.b16 %v2059, %v2055
        %v2256 = vpack.c.b16 %v2060, %v2056
        %v2257 = vpack.c.b16 %v2061, %v2057
        %v2258 = vpack.c.b16 %v2066, %v2062
        %v2259 = vpack.c.b16 %v2067, %v2063
        %v2260 = vpack.c.b16 %v2068, %v2064
        %v2261 = vpack.c.b16 %v2069, %v2065
        %v2262 = vpack.c.b16 %v2074, %v2070
        %v2263 = vpack.c.b16 %v2075, %v2071
        %v2264 = vpack.c.b16 %v2076, %v2072
        %v2265 = vpack.c.b16 %v2077, %v2073
        %v2266 = vpack.c.b16 %v2082, %v2078
        %v2267 = vpack.c.b16 %v2083, %v2079
        %v2268 = vpack.c.b16 %v2084, %v2080
        %v2269 = vpack.c.b16 %v2085, %v2081
        %v2270 = vpack.c.b16 %v2090, %v2086
        %v2271 = vpack.c.b16 %v2091, %v2087
        %v2272 = vpack.c.b16 %v2092, %v2088
        %v2273 = vpack.c.b16 %v2093, %v2089
        %v2274 = vpack.c.b16 %v2098, %v2094
        %v2275 = vpack.c.b16 %v2099, %v2095
        %v2276 = vpack.c.b16 %v2100, %v2096
        %v2277 = vpack.c.b16 %v2101, %v2097
        %v2278 = vpack.c.b16 %v2106, %v2102
        %v2279 = vpack.c.b16 %v2107, %v2103
        %v2280 = vpack.c.b16 %v2108, %v2104
        %v2281 = vpack.c.b16 %v2109, %v2105
        %v2282 = vpack.c.b16 %v2114, %v2110
        %v2283 = vpack.c.b16 %v2115, %v2111
        %v2284 = vpack.c.b16 %v2116, %v2112
        %v2285 = vpack.c.b16 %v2117, %v2113
        %v2286 = vpack.c.b16 %v2122, %v2118
        %v2287 = vpack.c.b16 %v2123, %v2119
        %v2288 = vpack.c.b16 %v2124, %v2120
        %v2289 = vpack.c.b16 %v2125, %v2121
        %v2290 = vpack.c.b16 %v2130, %v2126
        %v2291 = vpack.c.b16 %v2131, %v2127
        %v2292 = vpack.c.b16 %v2132, %v2128
        %v2293 = vpack.c.b16 %v2133, %v2129
        %v2294 = vpack.c.b16 %v2138, %v2134
        %v2295 = vpack.c.b16 %v2139, %v2135
        %v2296 = vpack.c.b16 %v2140, %v2136
        %v2297 = vpack.c.b16 %v2141, %v2137
        %v2298 = vpack.c.b16 %v2146, %v2142
        %v2299 = vpack.c.b16 %v2147, %v2143
        %v2300 = vpack.c.b16 %v2148, %v2144
        %v2301 = vpack.c.b16 %v2149, %v2145
        %v2302 = vpack.c.b16 %v2154, %v2150
        %v2303 = vpack.c.b16 %v2155, %v2151
        %v2304 = vpack.c.b16 %v2156, %v2152
        %v2305 = vpack.c.b16 %v2157, %v2153
        %v2306 = vpack.c.b16 %v2162, %v2158
        %v2307 = vpack.c.b16 %v2163, %v2159
        %v2308 = vpack.c.b16 %v2164, %v2160
        %v2309 = vpack.c.b16 %v2165, %v2161
        %v2310 = vpack.c.b16 %v2170, %v2166
        %v2311 = vpack.c.b16 %v2171, %v2167
        %v2312 = vpack.c.b16 %v2172, %v2168
        %v2313 = vpack.c.b16 %v2173, %v2169
        %v2314 = vpack.c.b16 %v2178, %v2174
        %v2315 = vpack.c.b16 %v2179, %v2175
        %v2316 = vpack.c.b16 %v2180, %v2176
        %v2317 = vpack.c.b16 %v2181, %v2177
        %v2318 = vpack.c.b16 %v2186, %v2182
        %v2319 = vpack.c.b16 %v2187, %v2183
        %v2320 = vpack.c.b16 %v2188, %v2184
        %v2321 = vpack.c.b16 %v2189, %v2185
        %v2322 = vpack.c.b16 %v2194, %v2190
        %v2323 = vpack.c.b16 %v2195, %v2191
        %v2324 = vpack.c.b16 %v2196, %v2192
        %v2325 = vpack.c.b16 %v2197, %v2193
        %2454 = vmatprep.subr.bf16.mxu0 %v2199
        %2455 = vmatpush1.bf16.msra.mxu0 %v2198
        %2456 = vmatprep.subr.bf16.mxu0 %v2203
        %2457 = vmatpush1.bf16.msra.mxu0 %v2202
        %2458 = vmatprep.subr.bf16.mxu0 %v2207
        %2459 = vmatpush1.bf16.msra.mxu0 %v2206
        %2460 = vmatprep.subr.bf16.mxu0 %v2211
        %2461 = vmatpush1.bf16.msra.mxu0 %v2210
        %2462 = vmatprep.subr.bf16.mxu0 %v2215
        %2463 = vmatpush1.bf16.msra.mxu0 %v2214
        %2464 = vmatprep.subr.bf16.mxu0 %v2219
        %2465 = vmatpush1.bf16.msra.mxu0 %v2218
        %2466 = vmatprep.subr.bf16.mxu0 %v2223
        %2467 = vmatpush1.bf16.msra.mxu0 %v2222
        %2468 = vmatprep.subr.bf16.mxu0 %v2227
        %2469 = vmatpush1.bf16.msra.mxu0 %v2226
        %2470 = vmatprep.subr.bf16.mxu0 %v2231
        %2471 = vmatpush1.bf16.msra.mxu0 %v2230
        %2472 = vmatprep.subr.bf16.mxu0 %v2235
        %2473 = vmatpush1.bf16.msra.mxu0 %v2234
        %2474 = vmatprep.subr.bf16.mxu0 %v2239
        %2475 = vmatpush1.bf16.msra.mxu0 %v2238
        %2476 = vmatprep.subr.bf16.mxu0 %v2243
        %2477 = vmatpush1.bf16.msra.mxu0 %v2242
        %2478 = vmatprep.subr.bf16.mxu0 %v2247
        %2479 = vmatpush1.bf16.msra.mxu0 %v2246
        %2480 = vmatprep.subr.bf16.mxu0 %v2251
        %2481 = vmatpush1.bf16.msra.mxu0 %v2250
        %2482 = vmatprep.subr.bf16.mxu0 %v2255
        %2483 = vmatpush1.bf16.msra.mxu0 %v2254
        %2484 = vmatprep.subr.bf16.mxu0 %v2259
        %2485 = vmatpush1.bf16.msra.mxu0 %v2258
        %2486 = vmatprep.mubr.bf16.mxu0 %v1415
        %2487 = vmatmul.mubr.bf16.gmra.mrb[0].mxu0 %v1414
        %v2488 = vpop.f32.mrb[0].mxu0
        %v2489 = vadd.f32 %v797, %v2488
        %v2490 = vpop.f32.mrb[0].mxu0
        %v2491 = vadd.f32 %v801, %v2490
        %v2492 = vpop.f32.mrb[0].mxu0
        %v2493 = vadd.f32 %v797, %v2492
        %v2494 = vpop.f32.mrb[0].mxu0
        %v2495 = vadd.f32 %v801, %v2494
        %2496 = vmatprep.mubr.bf16.mxu0 %v1419
        %2497 = vmatmul.mubr.bf16.gmra.mrb[0].mxu0 %v1418
        %v2498 = vpop.f32.mrb[0].mxu0
        %v2499 = vadd.f32 %v797, %v2498
        %v2500 = vpop.f32.mrb[0].mxu0
        %v2501 = vadd.f32 %v801, %v2500
        %v2502 = vpop.f32.mrb[0].mxu0
        %v2503 = vadd.f32 %v797, %v2502
        %v2504 = vpop.f32.mrb[0].mxu0
        %v2505 = vadd.f32 %v801, %v2504
        %2506 = vmatprep.mubr.bf16.mxu0 %v1423
        %2507 = vmatmul.mubr.bf16.gmra.mrb[0].mxu0 %v1422
        %v2508 = vpop.f32.mrb[0].mxu0
        %v2509 = vadd.f32 %v797, %v2508
        %v2510 = vpop.f32.mrb[0].mxu0
        %v2511 = vadd.f32 %v801, %v2510
        %v2512 = vpop.f32.mrb[0].mxu0
        %v2513 = vadd.f32 %v797, %v2512
        %v2514 = vpop.f32.mrb[0].mxu0
        %v2515 = vadd.f32 %v801, %v2514
        %2516 = vmatprep.mubr.bf16.mxu0 %v1427
        %2517 = vmatmul.mubr.bf16.gmra.mrb[0].mxu0 %v1426
        %v2518 = vpop.f32.mrb[0].mxu0
        %v2519 = vadd.f32 %v797, %v2518
        %v2520 = vpop.f32.mrb[0].mxu0
        %v2521 = vadd.f32 %v801, %v2520
        %v2522 = vpop.f32.mrb[0].mxu0
        %v2523 = vadd.f32 %v797, %v2522
        %v2524 = vpop.f32.mrb[0].mxu0
        %v2525 = vadd.f32 %v801, %v2524
        %2526 = vmatprep.mubr.bf16.mxu0 %v1431
        %2527 = vmatmul.mubr.bf16.gmra.mrb[0].mxu0 %v1430
        %v2528 = vpop.f32.mrb[0].mxu0
        %v2529 = vadd.f32 %v797, %v2528
        %v2530 = vpop.f32.mrb[0].mxu0
        %v2531 = vadd.f32 %v801, %v2530
        %v2532 = vpop.f32.mrb[0].mxu0
        %v2533 = vadd.f32 %v797, %v2532
        %v2534 = vpop.f32.mrb[0].mxu0
        %v2535 = vadd.f32 %v801, %v2534
        %2536 = vmatprep.mubr.bf16.mxu0 %v1435
        %2537 = vmatmul.mubr.bf16.gmra.mrb[0].mxu0 %v1434
        %v2538 = vpop.f32.mrb[0].mxu0
        %v2539 = vadd.f32 %v797, %v2538
        %v2540 = vpop.f32.mrb[0].mxu0
        %v2541 = vadd.f32 %v801, %v2540
        %v2542 = vpop.f32.mrb[0].mxu0
        %v2543 = vadd.f32 %v797, %v2542
        %v2544 = vpop.f32.mrb[0].mxu0
        %v2545 = vadd.f32 %v801, %v2544
        %2546 = vmatprep.mubr.bf16.mxu0 %v1439
        %2547 = vmatmul.mubr.bf16.gmra.mrb[0].mxu0 %v1438
        %v2548 = vpop.f32.mrb[0].mxu0
        %v2549 = vadd.f32 %v797, %v2548
        %v2550 = vpop.f32.mrb[0].mxu0
        %v2551 = vadd.f32 %v801, %v2550
        %v2552 = vpop.f32.mrb[0].mxu0
        %v2553 = vadd.f32 %v797, %v2552
        %v2554 = vpop.f32.mrb[0].mxu0
        %v2555 = vadd.f32 %v801, %v2554
        %2556 = vmatprep.mubr.bf16.mxu0 %v1443
        %2557 = vmatmul.mubr.bf16.gmra.mrb[0].mxu0 %v1442
        %v2558 = vpop.f32.mrb[0].mxu0
        %v2559 = vadd.f32 %v797, %v2558
        %v2560 = vpop.f32.mrb[0].mxu0
        %v2561 = vadd.f32 %v801, %v2560
        %v2562 = vpop.f32.mrb[0].mxu0
        %v2563 = vadd.f32 %v797, %v2562
        %v2564 = vpop.f32.mrb[0].mxu0
        %v2565 = vadd.f32 %v801, %v2564
        %2566 = vmatprep.mubr.bf16.mxu0 %v1447
        %2567 = vmatmul.mubr.bf16.gmra.mrb[0].mxu0 %v1446
        %v2568 = vpop.f32.mrb[0].mxu0
        %v2569 = vadd.f32 %v797, %v2568
        %v2570 = vpop.f32.mrb[0].mxu0
        %v2571 = vadd.f32 %v801, %v2570
        %v2572 = vpop.f32.mrb[0].mxu0
        %v2573 = vadd.f32 %v797, %v2572
        %v2574 = vpop.f32.mrb[0].mxu0
        %v2575 = vadd.f32 %v801, %v2574
        %2576 = vmatprep.mubr.bf16.mxu0 %v1451
        %2577 = vmatmul.mubr.bf16.gmra.mrb[0].mxu0 %v1450
        %v2578 = vpop.f32.mrb[0].mxu0
        %v2579 = vadd.f32 %v797, %v2578
        %v2580 = vpop.f32.mrb[0].mxu0
        %v2581 = vadd.f32 %v801, %v2580
        %v2582 = vpop.f32.mrb[0].mxu0
        %v2583 = vadd.f32 %v797, %v2582
        %v2584 = vpop.f32.mrb[0].mxu0
        %v2585 = vadd.f32 %v801, %v2584
        %2586 = vmatprep.mubr.bf16.mxu0 %v1455
        %2587 = vmatmul.mubr.bf16.gmra.mrb[0].mxu0 %v1454
        %v2588 = vpop.f32.mrb[0].mxu0
        %v2589 = vadd.f32 %v797, %v2588
        %v2590 = vpop.f32.mrb[0].mxu0
        %v2591 = vadd.f32 %v801, %v2590
        %v2592 = vpop.f32.mrb[0].mxu0
        %v2593 = vadd.f32 %v797, %v2592
        %v2594 = vpop.f32.mrb[0].mxu0
        %v2595 = vadd.f32 %v801, %v2594
        %2596 = vmatprep.mubr.bf16.mxu0 %v1459
        %2597 = vmatmul.mubr.bf16.gmra.mrb[0].mxu0 %v1458
        %v2598 = vpop.f32.mrb[0].mxu0
        %v2599 = vadd.f32 %v797, %v2598
        %v2600 = vpop.f32.mrb[0].mxu0
        %v2601 = vadd.f32 %v801, %v2600
        %v2602 = vpop.f32.mrb[0].mxu0
        %v2603 = vadd.f32 %v797, %v2602
        %v2604 = vpop.f32.mrb[0].mxu0
        %v2605 = vadd.f32 %v801, %v2604
        %2606 = vmatprep.mubr.bf16.mxu0 %v1463
        %2607 = vmatmul.mubr.bf16.gmra.mrb[0].mxu0 %v1462
        %v2608 = vpop.f32.mrb[0].mxu0
        %v2609 = vadd.f32 %v797, %v2608
        %v2610 = vpop.f32.mrb[0].mxu0
        %v2611 = vadd.f32 %v801, %v2610
        %v2612 = vpop.f32.mrb[0].mxu0
        %v2613 = vadd.f32 %v797, %v2612
        %v2614 = vpop.f32.mrb[0].mxu0
        %v2615 = vadd.f32 %v801, %v2614
        %2616 = vmatprep.mubr.bf16.mxu0 %v1467
        %2617 = vmatmul.mubr.bf16.gmra.mrb[0].mxu0 %v1466
        %v2618 = vpop.f32.mrb[0].mxu0
        %v2619 = vadd.f32 %v797, %v2618
        %v2620 = vpop.f32.mrb[0].mxu0
        %v2621 = vadd.f32 %v801, %v2620
        %v2622 = vpop.f32.mrb[0].mxu0
        %v2623 = vadd.f32 %v797, %v2622
        %v2624 = vpop.f32.mrb[0].mxu0
        %v2625 = vadd.f32 %v801, %v2624
        %2626 = vmatprep.mubr.bf16.mxu0 %v1471
        %2627 = vmatmul.mubr.bf16.gmra.mrb[0].mxu0 %v1470
        %v2628 = vpop.f32.mrb[0].mxu0
        %v2629 = vadd.f32 %v797, %v2628
        %v2630 = vpop.f32.mrb[0].mxu0
        %v2631 = vadd.f32 %v801, %v2630
        %v2632 = vpop.f32.mrb[0].mxu0
        %v2633 = vadd.f32 %v797, %v2632
        %v2634 = vpop.f32.mrb[0].mxu0
        %v2635 = vadd.f32 %v801, %v2634
        %2636 = vmatprep.mubr.bf16.mxu0 %v1475
        %2637 = vmatmul.mubr.bf16.gmra.mrb[0].mxu0 %v1474
        %v2638 = vpop.f32.mrb[0].mxu0
        %v2639 = vadd.f32 %v797, %v2638
        %v2640 = vpop.f32.mrb[0].mxu0
        %v2641 = vadd.f32 %v801, %v2640
        %v2642 = vpop.f32.mrb[0].mxu0
        %v2643 = vadd.f32 %v797, %v2642
        %v2644 = vpop.f32.mrb[0].mxu0
        %v2645 = vadd.f32 %v801, %v2644
        %2646 = vmatprep.mubr.bf16.mxu0 %v1479
        %2647 = vmatmul.mubr.bf16.gmra.mrb[0].mxu0 %v1478
        %v2648 = vpop.f32.mrb[0].mxu0
        %v2649 = vadd.f32 %v797, %v2648
        %v2650 = vpop.f32.mrb[0].mxu0
        %v2651 = vadd.f32 %v801, %v2650
        %v2652 = vpop.f32.mrb[0].mxu0
        %v2653 = vadd.f32 %v797, %v2652
        %v2654 = vpop.f32.mrb[0].mxu0
        %v2655 = vadd.f32 %v801, %v2654
        %2656 = vmatprep.mubr.bf16.mxu0 %v1483
        %2657 = vmatmul.mubr.bf16.gmra.mrb[0].mxu0 %v1482
        %v2658 = vpop.f32.mrb[0].mxu0
        %v2659 = vadd.f32 %v797, %v2658
        %v2660 = vpop.f32.mrb[0].mxu0
        %v2661 = vadd.f32 %v801, %v2660
        %v2662 = vpop.f32.mrb[0].mxu0
        %v2663 = vadd.f32 %v797, %v2662
        %v2664 = vpop.f32.mrb[0].mxu0
        %v2665 = vadd.f32 %v801, %v2664
        %2666 = vmatprep.mubr.bf16.mxu0 %v1487
        %2667 = vmatmul.mubr.bf16.gmra.mrb[0].mxu0 %v1486
        %v2668 = vpop.f32.mrb[0].mxu0
        %v2669 = vadd.f32 %v797, %v2668
        %v2670 = vpop.f32.mrb[0].mxu0
        %v2671 = vadd.f32 %v801, %v2670
        %v2672 = vpop.f32.mrb[0].mxu0
        %v2673 = vadd.f32 %v797, %v2672
        %v2674 = vpop.f32.mrb[0].mxu0
        %v2675 = vadd.f32 %v801, %v2674
        %2676 = vmatprep.mubr.bf16.mxu0 %v1491
        %2677 = vmatmul.mubr.bf16.gmra.mrb[0].mxu0 %v1490
        %v2678 = vpop.f32.mrb[0].mxu0
        %v2679 = vadd.f32 %v797, %v2678
        %v2680 = vpop.f32.mrb[0].mxu0
        %v2681 = vadd.f32 %v801, %v2680
        %v2682 = vpop.f32.mrb[0].mxu0
        %v2683 = vadd.f32 %v797, %v2682
        %v2684 = vpop.f32.mrb[0].mxu0
        %v2685 = vadd.f32 %v801, %v2684
        %2686 = vmatprep.mubr.bf16.mxu0 %v1495
        %2687 = vmatmul.mubr.bf16.gmra.mrb[0].mxu0 %v1494
        %v2688 = vpop.f32.mrb[0].mxu0
        %v2689 = vadd.f32 %v797, %v2688
        %v2690 = vpop.f32.mrb[0].mxu0
        %v2691 = vadd.f32 %v801, %v2690
        %v2692 = vpop.f32.mrb[0].mxu0
        %v2693 = vadd.f32 %v797, %v2692
        %v2694 = vpop.f32.mrb[0].mxu0
        %v2695 = vadd.f32 %v801, %v2694
        %2696 = vmatprep.mubr.bf16.mxu0 %v1499
        %2697 = vmatmul.mubr.bf16.gmra.mrb[0].mxu0 %v1498
        %v2698 = vpop.f32.mrb[0].mxu0
        %v2699 = vadd.f32 %v797, %v2698
        %v2700 = vpop.f32.mrb[0].mxu0
        %v2701 = vadd.f32 %v801, %v2700
        %v2702 = vpop.f32.mrb[0].mxu0
        %v2703 = vadd.f32 %v797, %v2702
        %v2704 = vpop.f32.mrb[0].mxu0
        %v2705 = vadd.f32 %v801, %v2704
        %2706 = vmatprep.mubr.bf16.mxu0 %v1503
        %2707 = vmatmul.mubr.bf16.gmra.mrb[0].mxu0 %v1502
        %v2708 = vpop.f32.mrb[0].mxu0
        %v2709 = vadd.f32 %v797, %v2708
        %v2710 = vpop.f32.mrb[0].mxu0
        %v2711 = vadd.f32 %v801, %v2710
        %v2712 = vpop.f32.mrb[0].mxu0
        %v2713 = vadd.f32 %v797, %v2712
        %v2714 = vpop.f32.mrb[0].mxu0
        %v2715 = vadd.f32 %v801, %v2714
        %2716 = vmatprep.mubr.bf16.mxu0 %v1507
        %2717 = vmatmul.mubr.bf16.gmra.mrb[0].mxu0 %v1506
        %v2718 = vpop.f32.mrb[0].mxu0
        %v2719 = vadd.f32 %v797, %v2718
        %v2720 = vpop.f32.mrb[0].mxu0
        %v2721 = vadd.f32 %v801, %v2720
        %v2722 = vpop.f32.mrb[0].mxu0
        %v2723 = vadd.f32 %v797, %v2722
        %v2724 = vpop.f32.mrb[0].mxu0
        %v2725 = vadd.f32 %v801, %v2724
        %2726 = vmatprep.mubr.bf16.mxu0 %v1511
        %2727 = vmatmul.mubr.bf16.gmra.mrb[0].mxu0 %v1510
        %v2728 = vpop.f32.mrb[0].mxu0
        %v2729 = vadd.f32 %v797, %v2728
        %v2730 = vpop.f32.mrb[0].mxu0
        %v2731 = vadd.f32 %v801, %v2730
        %v2732 = vpop.f32.mrb[0].mxu0
        %v2733 = vadd.f32 %v797, %v2732
        %v2734 = vpop.f32.mrb[0].mxu0
        %v2735 = vadd.f32 %v801, %v2734
        %2736 = vmatprep.mubr.bf16.mxu0 %v1515
        %2737 = vmatmul.mubr.bf16.gmra.mrb[0].mxu0 %v1514
        %v2738 = vpop.f32.mrb[0].mxu0
        %v2739 = vadd.f32 %v797, %v2738
        %v2740 = vpop.f32.mrb[0].mxu0
        %v2741 = vadd.f32 %v801, %v2740
        %v2742 = vpop.f32.mrb[0].mxu0
        %v2743 = vadd.f32 %v797, %v2742
        %v2744 = vpop.f32.mrb[0].mxu0
        %v2745 = vadd.f32 %v801, %v2744
        %2746 = vmatprep.mubr.bf16.mxu0 %v1519
        %2747 = vmatmul.mubr.bf16.gmra.mrb[0].mxu0 %v1518
        %v2748 = vpop.f32.mrb[0].mxu0
        %v2749 = vadd.f32 %v797, %v2748
        %v2750 = vpop.f32.mrb[0].mxu0
        %v2751 = vadd.f32 %v801, %v2750
        %v2752 = vpop.f32.mrb[0].mxu0
        %v2753 = vadd.f32 %v797, %v2752
        %v2754 = vpop.f32.mrb[0].mxu0
        %v2755 = vadd.f32 %v801, %v2754
        %2756 = vmatprep.mubr.bf16.mxu0 %v1523
        %2757 = vmatmul.mubr.bf16.gmra.mrb[0].mxu0 %v1522
        %v2758 = vpop.f32.mrb[0].mxu0
        %v2759 = vadd.f32 %v797, %v2758
        %v2760 = vpop.f32.mrb[0].mxu0
        %v2761 = vadd.f32 %v801, %v2760
        %v2762 = vpop.f32.mrb[0].mxu0
        %v2763 = vadd.f32 %v797, %v2762
        %v2764 = vpop.f32.mrb[0].mxu0
        %v2765 = vadd.f32 %v801, %v2764
        %2766 = vmatprep.mubr.bf16.mxu0 %v1527
        %2767 = vmatmul.mubr.bf16.gmra.mrb[0].mxu0 %v1526
        %v2768 = vpop.f32.mrb[0].mxu0
        %v2769 = vadd.f32 %v797, %v2768
        %v2770 = vpop.f32.mrb[0].mxu0
        %v2771 = vadd.f32 %v801, %v2770
        %v2772 = vpop.f32.mrb[0].mxu0
        %v2773 = vadd.f32 %v797, %v2772
        %v2774 = vpop.f32.mrb[0].mxu0
        %v2775 = vadd.f32 %v801, %v2774
        %2776 = vmatprep.mubr.bf16.mxu0 %v1531
        %2777 = vmatmul.mubr.bf16.gmra.mrb[0].mxu0 %v1530
        %v2778 = vpop.f32.mrb[0].mxu0
        %v2779 = vadd.f32 %v797, %v2778
        %v2780 = vpop.f32.mrb[0].mxu0
        %v2781 = vadd.f32 %v801, %v2780
        %v2782 = vpop.f32.mrb[0].mxu0
        %v2783 = vadd.f32 %v797, %v2782
        %v2784 = vpop.f32.mrb[0].mxu0
        %v2785 = vadd.f32 %v801, %v2784
        %2786 = vmatprep.mubr.bf16.mxu0 %v1535
        %2787 = vmatmul.mubr.bf16.gmra.mrb[0].mxu0 %v1534
        %v2788 = vpop.f32.mrb[0].mxu0
        %v2789 = vadd.f32 %v797, %v2788
        %v2790 = vpop.f32.mrb[0].mxu0
        %v2791 = vadd.f32 %v801, %v2790
        %v2792 = vpop.f32.mrb[0].mxu0
        %v2793 = vadd.f32 %v797, %v2792
        %v2794 = vpop.f32.mrb[0].mxu0
        %v2795 = vadd.f32 %v801, %v2794
        %2796 = vmatprep.mubr.bf16.mxu0 %v1539
        %2797 = vmatmul.mubr.bf16.gmra.mrb[0].mxu0 %v1538
        %v2798 = vpop.f32.mrb[0].mxu0
        %v2799 = vadd.f32 %v797, %v2798
        %v2800 = vpop.f32.mrb[0].mxu0
        %v2801 = vadd.f32 %v801, %v2800
        %v2802 = vpop.f32.mrb[0].mxu0
        %v2803 = vadd.f32 %v797, %v2802
        %v2804 = vpop.f32.mrb[0].mxu0
        %v2805 = vadd.f32 %v801, %v2804
        %2806 = vmatprep.mubr.bf16.mxu0 %v1543
        %2807 = vmatmul.mubr.bf16.gmra.mrb[0].mxu0 %v1542
        %v2808 = vpop.f32.mrb[0].mxu0
        %v2809 = vadd.f32 %v797, %v2808
        %v2810 = vpop.f32.mrb[0].mxu0
        %v2811 = vadd.f32 %v801, %v2810
        %v2812 = vpop.f32.mrb[0].mxu0
        %v2813 = vadd.f32 %v797, %v2812
        %v2814 = vpop.f32.mrb[0].mxu0
        %v2815 = vadd.f32 %v801, %v2814
        %2816 = vmatprep.mubr.bf16.mxu0 %v1547
        %2817 = vmatmul.mubr.bf16.gmra.mrb[0].mxu0 %v1546
        %v2818 = vpop.f32.mrb[0].mxu0
        %v2819 = vadd.f32 %v797, %v2818
        %v2820 = vpop.f32.mrb[0].mxu0
        %v2821 = vadd.f32 %v801, %v2820
        %v2822 = vpop.f32.mrb[0].mxu0
        %v2823 = vadd.f32 %v797, %v2822
        %v2824 = vpop.f32.mrb[0].mxu0
        %v2825 = vadd.f32 %v801, %v2824
        %2826 = vmatprep.mubr.bf16.mxu0 %v1551
        %2827 = vmatmul.mubr.bf16.gmra.mrb[0].mxu0 %v1550
        %v2828 = vpop.f32.mrb[0].mxu0
        %v2829 = vadd.f32 %v797, %v2828
        %v2830 = vpop.f32.mrb[0].mxu0
        %v2831 = vadd.f32 %v801, %v2830
        %v2832 = vpop.f32.mrb[0].mxu0
        %v2833 = vadd.f32 %v797, %v2832
        %v2834 = vpop.f32.mrb[0].mxu0
        %v2835 = vadd.f32 %v801, %v2834
        %2836 = vmatprep.mubr.bf16.mxu0 %v1555
        %2837 = vmatmul.mubr.bf16.gmra.mrb[0].mxu0 %v1554
        %v2838 = vpop.f32.mrb[0].mxu0
        %v2839 = vadd.f32 %v797, %v2838
        %v2840 = vpop.f32.mrb[0].mxu0
        %v2841 = vadd.f32 %v801, %v2840
        %v2842 = vpop.f32.mrb[0].mxu0
        %v2843 = vadd.f32 %v797, %v2842
        %v2844 = vpop.f32.mrb[0].mxu0
        %v2845 = vadd.f32 %v801, %v2844
        %2846 = vmatprep.mubr.bf16.mxu0 %v1559
        %2847 = vmatmul.mubr.bf16.gmra.mrb[0].mxu0 %v1558
        %v2848 = vpop.f32.mrb[0].mxu0
        %v2849 = vadd.f32 %v797, %v2848
        %v2850 = vpop.f32.mrb[0].mxu0
        %v2851 = vadd.f32 %v801, %v2850
        %v2852 = vpop.f32.mrb[0].mxu0
        %v2853 = vadd.f32 %v797, %v2852
        %v2854 = vpop.f32.mrb[0].mxu0
        %v2855 = vadd.f32 %v801, %v2854
        %2856 = vmatprep.mubr.bf16.mxu0 %v1563
        %2857 = vmatmul.mubr.bf16.gmra.mrb[0].mxu0 %v1562
        %v2858 = vpop.f32.mrb[0].mxu0
        %v2859 = vadd.f32 %v797, %v2858
        %v2860 = vpop.f32.mrb[0].mxu0
        %v2861 = vadd.f32 %v801, %v2860
        %v2862 = vpop.f32.mrb[0].mxu0
        %v2863 = vadd.f32 %v797, %v2862
        %v2864 = vpop.f32.mrb[0].mxu0
        %v2865 = vadd.f32 %v801, %v2864
        %2866 = vmatprep.mubr.bf16.mxu0 %v1567
        %2867 = vmatmul.mubr.bf16.gmra.mrb[0].mxu0 %v1566
        %v2868 = vpop.f32.mrb[0].mxu0
        %v2869 = vadd.f32 %v797, %v2868
        %v2870 = vpop.f32.mrb[0].mxu0
        %v2871 = vadd.f32 %v801, %v2870
        %v2872 = vpop.f32.mrb[0].mxu0
        %v2873 = vadd.f32 %v797, %v2872
        %v2874 = vpop.f32.mrb[0].mxu0
        %v2875 = vadd.f32 %v801, %v2874
        %2876 = vmatprep.mubr.bf16.mxu0 %v1571
        %2877 = vmatmul.mubr.bf16.gmra.mrb[0].mxu0 %v1570
        %v2878 = vpop.f32.mrb[0].mxu0
        %v2879 = vadd.f32 %v797, %v2878
        %v2880 = vpop.f32.mrb[0].mxu0
        %v2881 = vadd.f32 %v801, %v2880
        %v2882 = vpop.f32.mrb[0].mxu0
        %v2883 = vadd.f32 %v797, %v2882
        %v2884 = vpop.f32.mrb[0].mxu0
        %v2885 = vadd.f32 %v801, %v2884
        %2886 = vmatprep.mubr.bf16.mxu0 %v1575
        %2887 = vmatmul.mubr.bf16.gmra.mrb[0].mxu0 %v1574
        %v2888 = vpop.f32.mrb[0].mxu0
        %v2889 = vadd.f32 %v797, %v2888
        %v2890 = vpop.f32.mrb[0].mxu0
        %v2891 = vadd.f32 %v801, %v2890
        %v2892 = vpop.f32.mrb[0].mxu0
        %v2893 = vadd.f32 %v797, %v2892
        %v2894 = vpop.f32.mrb[0].mxu0
        %v2895 = vadd.f32 %v801, %v2894
        %2896 = vmatprep.mubr.bf16.mxu0 %v1579
        %2897 = vmatmul.mubr.bf16.gmra.mrb[0].mxu0 %v1578
        %v2898 = vpop.f32.mrb[0].mxu0
        %v2899 = vadd.f32 %v797, %v2898
        %v2900 = vpop.f32.mrb[0].mxu0
        %v2901 = vadd.f32 %v801, %v2900
        %v2902 = vpop.f32.mrb[0].mxu0
        %v2903 = vadd.f32 %v797, %v2902
        %v2904 = vpop.f32.mrb[0].mxu0
        %v2905 = vadd.f32 %v801, %v2904
        %2906 = vmatprep.mubr.bf16.mxu0 %v1583
        %2907 = vmatmul.mubr.bf16.gmra.mrb[0].mxu0 %v1582
        %v2908 = vpop.f32.mrb[0].mxu0
        %v2909 = vadd.f32 %v797, %v2908
        %v2910 = vpop.f32.mrb[0].mxu0
        %v2911 = vadd.f32 %v801, %v2910
        %v2912 = vpop.f32.mrb[0].mxu0
        %v2913 = vadd.f32 %v797, %v2912
        %v2914 = vpop.f32.mrb[0].mxu0
        %v2915 = vadd.f32 %v801, %v2914
        %2916 = vmatprep.mubr.bf16.mxu0 %v1587
        %2917 = vmatmul.mubr.bf16.gmra.mrb[0].mxu0 %v1586
        %v2918 = vpop.f32.mrb[0].mxu0
        %v2919 = vadd.f32 %v797, %v2918
        %v2920 = vpop.f32.mrb[0].mxu0
        %v2921 = vadd.f32 %v801, %v2920
        %v2922 = vpop.f32.mrb[0].mxu0
        %v2923 = vadd.f32 %v797, %v2922
        %v2924 = vpop.f32.mrb[0].mxu0
        %v2925 = vadd.f32 %v801, %v2924
        %2926 = vmatprep.mubr.bf16.mxu0 %v1591
        %2927 = vmatmul.mubr.bf16.gmra.mrb[0].mxu0 %v1590
        %v2928 = vpop.f32.mrb[0].mxu0
        %v2929 = vadd.f32 %v797, %v2928
        %v2930 = vpop.f32.mrb[0].mxu0
        %v2931 = vadd.f32 %v801, %v2930
        %v2932 = vpop.f32.mrb[0].mxu0
        %v2933 = vadd.f32 %v797, %v2932
        %v2934 = vpop.f32.mrb[0].mxu0
        %v2935 = vadd.f32 %v801, %v2934
        %2936 = vmatprep.mubr.bf16.mxu0 %v1595
        %2937 = vmatmul.mubr.bf16.gmra.mrb[0].mxu0 %v1594
        %v2938 = vpop.f32.mrb[0].mxu0
        %v2939 = vadd.f32 %v797, %v2938
        %v2940 = vpop.f32.mrb[0].mxu0
        %v2941 = vadd.f32 %v801, %v2940
        %v2942 = vpop.f32.mrb[0].mxu0
        %v2943 = vadd.f32 %v797, %v2942
        %v2944 = vpop.f32.mrb[0].mxu0
        %v2945 = vadd.f32 %v801, %v2944
        %2946 = vmatprep.mubr.bf16.mxu0 %v1599
        %2947 = vmatmul.mubr.bf16.gmra.mrb[0].mxu0 %v1598
        %v2948 = vpop.f32.mrb[0].mxu0
        %v2949 = vadd.f32 %v797, %v2948
        %v2950 = vpop.f32.mrb[0].mxu0
        %v2951 = vadd.f32 %v801, %v2950
        %v2952 = vpop.f32.mrb[0].mxu0
        %v2953 = vadd.f32 %v797, %v2952
        %v2954 = vpop.f32.mrb[0].mxu0
        %v2955 = vadd.f32 %v801, %v2954
        %2956 = vmatprep.mubr.bf16.mxu0 %v1603
        %2957 = vmatmul.mubr.bf16.gmra.mrb[0].mxu0 %v1602
        %v2958 = vpop.f32.mrb[0].mxu0
        %v2959 = vadd.f32 %v797, %v2958
        %v2960 = vpop.f32.mrb[0].mxu0
        %v2961 = vadd.f32 %v801, %v2960
        %v2962 = vpop.f32.mrb[0].mxu0
        %v2963 = vadd.f32 %v797, %v2962
        %v2964 = vpop.f32.mrb[0].mxu0
        %v2965 = vadd.f32 %v801, %v2964
        %2966 = vmatprep.mubr.bf16.mxu0 %v1607
        %2967 = vmatmul.mubr.bf16.gmra.mrb[0].mxu0 %v1606
        %v2968 = vpop.f32.mrb[0].mxu0
        %v2969 = vadd.f32 %v797, %v2968
        %v2970 = vpop.f32.mrb[0].mxu0
        %v2971 = vadd.f32 %v801, %v2970
        %v2972 = vpop.f32.mrb[0].mxu0
        %v2973 = vadd.f32 %v797, %v2972
        %v2974 = vpop.f32.mrb[0].mxu0
        %v2975 = vadd.f32 %v801, %v2974
        %2976 = vmatprep.mubr.bf16.mxu0 %v1611
        %2977 = vmatmul.mubr.bf16.gmra.mrb[0].mxu0 %v1610
        %v2978 = vpop.f32.mrb[0].mxu0
        %v2979 = vadd.f32 %v797, %v2978
        %v2980 = vpop.f32.mrb[0].mxu0
        %v2981 = vadd.f32 %v801, %v2980
        %v2982 = vpop.f32.mrb[0].mxu0
        %v2983 = vadd.f32 %v797, %v2982
        %v2984 = vpop.f32.mrb[0].mxu0
        %v2985 = vadd.f32 %v801, %v2984
        %2986 = vdwg.mxu0
        %2987 = vmatprep.subr.bf16.mxu0 %v2263
        %2988 = vmatpush1.bf16.msra.mxu0 %v2262
        %2989 = vmatprep.subr.bf16.mxu0 %v2267
        %2990 = vmatpush1.bf16.msra.mxu0 %v2266
        %2991 = vmatprep.subr.bf16.mxu0 %v2271
        %2992 = vmatpush1.bf16.msra.mxu0 %v2270
        %2993 = vmatprep.subr.bf16.mxu0 %v2275
        %2994 = vmatpush1.bf16.msra.mxu0 %v2274
        %2995 = vmatprep.subr.bf16.mxu0 %v2279
        %2996 = vmatpush1.bf16.msra.mxu0 %v2278
        %2997 = vmatprep.subr.bf16.mxu0 %v2283
        %2998 = vmatpush1.bf16.msra.mxu0 %v2282
        %2999 = vmatprep.subr.bf16.mxu0 %v2287
        %3000 = vmatpush1.bf16.msra.mxu0 %v2286
        %3001 = vmatprep.subr.bf16.mxu0 %v2291
        %3002 = vmatpush1.bf16.msra.mxu0 %v2290
        %3003 = vmatprep.subr.bf16.mxu0 %v2295
        %3004 = vmatpush1.bf16.msra.mxu0 %v2294
        %3005 = vmatprep.subr.bf16.mxu0 %v2299
        %3006 = vmatpush1.bf16.msra.mxu0 %v2298
        %3007 = vmatprep.subr.bf16.mxu0 %v2303
        %3008 = vmatpush1.bf16.msra.mxu0 %v2302
        %3009 = vmatprep.subr.bf16.mxu0 %v2307
        %3010 = vmatpush1.bf16.msra.mxu0 %v2306
        %3011 = vmatprep.subr.bf16.mxu0 %v2311
        %3012 = vmatpush1.bf16.msra.mxu0 %v2310
        %3013 = vmatprep.subr.bf16.mxu0 %v2315
        %3014 = vmatpush1.bf16.msra.mxu0 %v2314
        %3015 = vmatprep.subr.bf16.mxu0 %v2319
        %3016 = vmatpush1.bf16.msra.mxu0 %v2318
        %3017 = vmatprep.subr.bf16.mxu0 %v2323
        %3018 = vmatpush1.bf16.msra.mxu0 %v2322
        %3019 = vmatprep.mubr.bf16.mxu0 %v1417
        %3020 = vmatmul.mubr.bf16.gmra.mrb[0].mxu0 %v1416
        %v3021 = vpop.f32.mrb[0].mxu0
        %v3022 = vadd.f32 %v2489, %v3021
        %v3023 = vpop.f32.mrb[0].mxu0
        %v3024 = vadd.f32 %v2491, %v3023
        %v3025 = vpop.f32.mrb[0].mxu0
        %v3026 = vadd.f32 %v2493, %v3025
        %v3027 = vpop.f32.mrb[0].mxu0
        %v3028 = vadd.f32 %v2495, %v3027
        %3029 = vmatprep.mubr.bf16.mxu0 %v1421
        %3030 = vmatmul.mubr.bf16.gmra.mrb[0].mxu0 %v1420
        %v3031 = vpop.f32.mrb[0].mxu0
        %v3032 = vadd.f32 %v2499, %v3031
        %v3033 = vpop.f32.mrb[0].mxu0
        %v3034 = vadd.f32 %v2501, %v3033
        %v3035 = vpop.f32.mrb[0].mxu0
        %v3036 = vadd.f32 %v2503, %v3035
        %v3037 = vpop.f32.mrb[0].mxu0
        %v3038 = vadd.f32 %v2505, %v3037
        %3039 = vmatprep.mubr.bf16.mxu0 %v1425
        %3040 = vmatmul.mubr.bf16.gmra.mrb[0].mxu0 %v1424
        %v3041 = vpop.f32.mrb[0].mxu0
        %v3042 = vadd.f32 %v2509, %v3041
        %v3043 = vpop.f32.mrb[0].mxu0
        %v3044 = vadd.f32 %v2511, %v3043
        %v3045 = vpop.f32.mrb[0].mxu0
        %v3046 = vadd.f32 %v2513, %v3045
        %v3047 = vpop.f32.mrb[0].mxu0
        %v3048 = vadd.f32 %v2515, %v3047
        %3049 = vmatprep.mubr.bf16.mxu0 %v1429
        %3050 = vmatmul.mubr.bf16.gmra.mrb[0].mxu0 %v1428
        %v3051 = vpop.f32.mrb[0].mxu0
        %v3052 = vadd.f32 %v2519, %v3051
        %v3053 = vpop.f32.mrb[0].mxu0
        %v3054 = vadd.f32 %v2521, %v3053
        %v3055 = vpop.f32.mrb[0].mxu0
        %v3056 = vadd.f32 %v2523, %v3055
        %v3057 = vpop.f32.mrb[0].mxu0
        %v3058 = vadd.f32 %v2525, %v3057
        %3059 = vmatprep.mubr.bf16.mxu0 %v1433
        %3060 = vmatmul.mubr.bf16.gmra.mrb[0].mxu0 %v1432
        %v3061 = vpop.f32.mrb[0].mxu0
        %v3062 = vadd.f32 %v2529, %v3061
        %v3063 = vpop.f32.mrb[0].mxu0
        %v3064 = vadd.f32 %v2531, %v3063
        %v3065 = vpop.f32.mrb[0].mxu0
        %v3066 = vadd.f32 %v2533, %v3065
        %v3067 = vpop.f32.mrb[0].mxu0
        %v3068 = vadd.f32 %v2535, %v3067
        %3069 = vmatprep.mubr.bf16.mxu0 %v1437
        %3070 = vmatmul.mubr.bf16.gmra.mrb[0].mxu0 %v1436
        %v3071 = vpop.f32.mrb[0].mxu0
        %v3072 = vadd.f32 %v2539, %v3071
        %v3073 = vpop.f32.mrb[0].mxu0
        %v3074 = vadd.f32 %v2541, %v3073
        %v3075 = vpop.f32.mrb[0].mxu0
        %v3076 = vadd.f32 %v2543, %v3075
        %v3077 = vpop.f32.mrb[0].mxu0
        %v3078 = vadd.f32 %v2545, %v3077
        %3079 = vmatprep.mubr.bf16.mxu0 %v1441
        %3080 = vmatmul.mubr.bf16.gmra.mrb[0].mxu0 %v1440
        %v3081 = vpop.f32.mrb[0].mxu0
        %v3082 = vadd.f32 %v2549, %v3081
        %v3083 = vpop.f32.mrb[0].mxu0
        %v3084 = vadd.f32 %v2551, %v3083
        %v3085 = vpop.f32.mrb[0].mxu0
        %v3086 = vadd.f32 %v2553, %v3085
        %v3087 = vpop.f32.mrb[0].mxu0
        %v3088 = vadd.f32 %v2555, %v3087
        %3089 = vmatprep.mubr.bf16.mxu0 %v1445
        %3090 = vmatmul.mubr.bf16.gmra.mrb[0].mxu0 %v1444
        %v3091 = vpop.f32.mrb[0].mxu0
        %v3092 = vadd.f32 %v2559, %v3091
        %v3093 = vpop.f32.mrb[0].mxu0
        %v3094 = vadd.f32 %v2561, %v3093
        %v3095 = vpop.f32.mrb[0].mxu0
        %v3096 = vadd.f32 %v2563, %v3095
        %v3097 = vpop.f32.mrb[0].mxu0
        %v3098 = vadd.f32 %v2565, %v3097
        %3099 = vmatprep.mubr.bf16.mxu0 %v1449
        %3100 = vmatmul.mubr.bf16.gmra.mrb[0].mxu0 %v1448
        %v3101 = vpop.f32.mrb[0].mxu0
        %v3102 = vadd.f32 %v2569, %v3101
        %v3103 = vpop.f32.mrb[0].mxu0
        %v3104 = vadd.f32 %v2571, %v3103
        %v3105 = vpop.f32.mrb[0].mxu0
        %v3106 = vadd.f32 %v2573, %v3105
        %v3107 = vpop.f32.mrb[0].mxu0
        %v3108 = vadd.f32 %v2575, %v3107
        %3109 = vmatprep.mubr.bf16.mxu0 %v1453
        %3110 = vmatmul.mubr.bf16.gmra.mrb[0].mxu0 %v1452
        %v3111 = vpop.f32.mrb[0].mxu0
        %v3112 = vadd.f32 %v2579, %v3111
        %v3113 = vpop.f32.mrb[0].mxu0
        %v3114 = vadd.f32 %v2581, %v3113
        %v3115 = vpop.f32.mrb[0].mxu0
        %v3116 = vadd.f32 %v2583, %v3115
        %v3117 = vpop.f32.mrb[0].mxu0
        %v3118 = vadd.f32 %v2585, %v3117
        %3119 = vmatprep.mubr.bf16.mxu0 %v1457
        %3120 = vmatmul.mubr.bf16.gmra.mrb[0].mxu0 %v1456
        %v3121 = vpop.f32.mrb[0].mxu0
        %v3122 = vadd.f32 %v2589, %v3121
        %v3123 = vpop.f32.mrb[0].mxu0
        %v3124 = vadd.f32 %v2591, %v3123
        %v3125 = vpop.f32.mrb[0].mxu0
        %v3126 = vadd.f32 %v2593, %v3125
        %v3127 = vpop.f32.mrb[0].mxu0
        %v3128 = vadd.f32 %v2595, %v3127
        %3129 = vmatprep.mubr.bf16.mxu0 %v1461
        %3130 = vmatmul.mubr.bf16.gmra.mrb[0].mxu0 %v1460
        %v3131 = vpop.f32.mrb[0].mxu0
        %v3132 = vadd.f32 %v2599, %v3131
        %v3133 = vpop.f32.mrb[0].mxu0
        %v3134 = vadd.f32 %v2601, %v3133
        %v3135 = vpop.f32.mrb[0].mxu0
        %v3136 = vadd.f32 %v2603, %v3135
        %v3137 = vpop.f32.mrb[0].mxu0
        %v3138 = vadd.f32 %v2605, %v3137
        %3139 = vmatprep.mubr.bf16.mxu0 %v1465
        %3140 = vmatmul.mubr.bf16.gmra.mrb[0].mxu0 %v1464
        %v3141 = vpop.f32.mrb[0].mxu0
        %v3142 = vadd.f32 %v2609, %v3141
        %v3143 = vpop.f32.mrb[0].mxu0
        %v3144 = vadd.f32 %v2611, %v3143
        %v3145 = vpop.f32.mrb[0].mxu0
        %v3146 = vadd.f32 %v2613, %v3145
        %v3147 = vpop.f32.mrb[0].mxu0
        %v3148 = vadd.f32 %v2615, %v3147
        %3149 = vmatprep.mubr.bf16.mxu0 %v1469
        %3150 = vmatmul.mubr.bf16.gmra.mrb[0].mxu0 %v1468
        %v3151 = vpop.f32.mrb[0].mxu0
        %v3152 = vadd.f32 %v2619, %v3151
        %v3153 = vpop.f32.mrb[0].mxu0
        %v3154 = vadd.f32 %v2621, %v3153
        %v3155 = vpop.f32.mrb[0].mxu0
        %v3156 = vadd.f32 %v2623, %v3155
        %v3157 = vpop.f32.mrb[0].mxu0
        %v3158 = vadd.f32 %v2625, %v3157
        %3159 = vmatprep.mubr.bf16.mxu0 %v1473
        %3160 = vmatmul.mubr.bf16.gmra.mrb[0].mxu0 %v1472
        %v3161 = vpop.f32.mrb[0].mxu0
        %v3162 = vadd.f32 %v2629, %v3161
        %v3163 = vpop.f32.mrb[0].mxu0
        %v3164 = vadd.f32 %v2631, %v3163
        %v3165 = vpop.f32.mrb[0].mxu0
        %v3166 = vadd.f32 %v2633, %v3165
        %v3167 = vpop.f32.mrb[0].mxu0
        %v3168 = vadd.f32 %v2635, %v3167
        %3169 = vmatprep.mubr.bf16.mxu0 %v1477
        %3170 = vmatmul.mubr.bf16.gmra.mrb[0].mxu0 %v1476
        %v3171 = vpop.f32.mrb[0].mxu0
        %v3172 = vadd.f32 %v2639, %v3171
        %v3173 = vpop.f32.mrb[0].mxu0
        %v3174 = vadd.f32 %v2641, %v3173
        %v3175 = vpop.f32.mrb[0].mxu0
        %v3176 = vadd.f32 %v2643, %v3175
        %v3177 = vpop.f32.mrb[0].mxu0
        %v3178 = vadd.f32 %v2645, %v3177
        %3179 = vmatprep.mubr.bf16.mxu0 %v1481
        %3180 = vmatmul.mubr.bf16.gmra.mrb[0].mxu0 %v1480
        %v3181 = vpop.f32.mrb[0].mxu0
        %v3182 = vadd.f32 %v2649, %v3181
        %v3183 = vpop.f32.mrb[0].mxu0
        %v3184 = vadd.f32 %v2651, %v3183
        %v3185 = vpop.f32.mrb[0].mxu0
        %v3186 = vadd.f32 %v2653, %v3185
        %v3187 = vpop.f32.mrb[0].mxu0
        %v3188 = vadd.f32 %v2655, %v3187
        %3189 = vmatprep.mubr.bf16.mxu0 %v1485
        %3190 = vmatmul.mubr.bf16.gmra.mrb[0].mxu0 %v1484
        %v3191 = vpop.f32.mrb[0].mxu0
        %v3192 = vadd.f32 %v2659, %v3191
        %v3193 = vpop.f32.mrb[0].mxu0
        %v3194 = vadd.f32 %v2661, %v3193
        %v3195 = vpop.f32.mrb[0].mxu0
        %v3196 = vadd.f32 %v2663, %v3195
        %v3197 = vpop.f32.mrb[0].mxu0
        %v3198 = vadd.f32 %v2665, %v3197
        %3199 = vmatprep.mubr.bf16.mxu0 %v1489
        %3200 = vmatmul.mubr.bf16.gmra.mrb[0].mxu0 %v1488
        %v3201 = vpop.f32.mrb[0].mxu0
        %v3202 = vadd.f32 %v2669, %v3201
        %v3203 = vpop.f32.mrb[0].mxu0
        %v3204 = vadd.f32 %v2671, %v3203
        %v3205 = vpop.f32.mrb[0].mxu0
        %v3206 = vadd.f32 %v2673, %v3205
        %v3207 = vpop.f32.mrb[0].mxu0
        %v3208 = vadd.f32 %v2675, %v3207
        %3209 = vmatprep.mubr.bf16.mxu0 %v1493
        %3210 = vmatmul.mubr.bf16.gmra.mrb[0].mxu0 %v1492
        %v3211 = vpop.f32.mrb[0].mxu0
        %v3212 = vadd.f32 %v2679, %v3211
        %v3213 = vpop.f32.mrb[0].mxu0
        %v3214 = vadd.f32 %v2681, %v3213
        %v3215 = vpop.f32.mrb[0].mxu0
        %v3216 = vadd.f32 %v2683, %v3215
        %v3217 = vpop.f32.mrb[0].mxu0
        %v3218 = vadd.f32 %v2685, %v3217
        %3219 = vmatprep.mubr.bf16.mxu0 %v1497
        %3220 = vmatmul.mubr.bf16.gmra.mrb[0].mxu0 %v1496
        %v3221 = vpop.f32.mrb[0].mxu0
        %v3222 = vadd.f32 %v2689, %v3221
        %v3223 = vpop.f32.mrb[0].mxu0
        %v3224 = vadd.f32 %v2691, %v3223
        %v3225 = vpop.f32.mrb[0].mxu0
        %v3226 = vadd.f32 %v2693, %v3225
        %v3227 = vpop.f32.mrb[0].mxu0
        %v3228 = vadd.f32 %v2695, %v3227
        %3229 = vmatprep.mubr.bf16.mxu0 %v1501
        %3230 = vmatmul.mubr.bf16.gmra.mrb[0].mxu0 %v1500
        %v3231 = vpop.f32.mrb[0].mxu0
        %v3232 = vadd.f32 %v2699, %v3231
        %v3233 = vpop.f32.mrb[0].mxu0
        %v3234 = vadd.f32 %v2701, %v3233
        %v3235 = vpop.f32.mrb[0].mxu0
        %v3236 = vadd.f32 %v2703, %v3235
        %v3237 = vpop.f32.mrb[0].mxu0
        %v3238 = vadd.f32 %v2705, %v3237
        %3239 = vmatprep.mubr.bf16.mxu0 %v1505
        %3240 = vmatmul.mubr.bf16.gmra.mrb[0].mxu0 %v1504
        %v3241 = vpop.f32.mrb[0].mxu0
        %v3242 = vadd.f32 %v2709, %v3241
        %v3243 = vpop.f32.mrb[0].mxu0
        %v3244 = vadd.f32 %v2711, %v3243
        %v3245 = vpop.f32.mrb[0].mxu0
        %v3246 = vadd.f32 %v2713, %v3245
        %v3247 = vpop.f32.mrb[0].mxu0
        %v3248 = vadd.f32 %v2715, %v3247
        %3249 = vmatprep.mubr.bf16.mxu0 %v1509
        %3250 = vmatmul.mubr.bf16.gmra.mrb[0].mxu0 %v1508
        %v3251 = vpop.f32.mrb[0].mxu0
        %v3252 = vadd.f32 %v2719, %v3251
        %v3253 = vpop.f32.mrb[0].mxu0
        %v3254 = vadd.f32 %v2721, %v3253
        %v3255 = vpop.f32.mrb[0].mxu0
        %v3256 = vadd.f32 %v2723, %v3255
        %v3257 = vpop.f32.mrb[0].mxu0
        %v3258 = vadd.f32 %v2725, %v3257
        %3259 = vmatprep.mubr.bf16.mxu0 %v1513
        %3260 = vmatmul.mubr.bf16.gmra.mrb[0].mxu0 %v1512
        %v3261 = vpop.f32.mrb[0].mxu0
        %v3262 = vadd.f32 %v2729, %v3261
        %v3263 = vpop.f32.mrb[0].mxu0
        %v3264 = vadd.f32 %v2731, %v3263
        %v3265 = vpop.f32.mrb[0].mxu0
        %v3266 = vadd.f32 %v2733, %v3265
        %v3267 = vpop.f32.mrb[0].mxu0
        %v3268 = vadd.f32 %v2735, %v3267
        %3269 = vmatprep.mubr.bf16.mxu0 %v1517
        %3270 = vmatmul.mubr.bf16.gmra.mrb[0].mxu0 %v1516
        %v3271 = vpop.f32.mrb[0].mxu0
        %v3272 = vadd.f32 %v2739, %v3271
        %v3273 = vpop.f32.mrb[0].mxu0
        %v3274 = vadd.f32 %v2741, %v3273
        %v3275 = vpop.f32.mrb[0].mxu0
        %v3276 = vadd.f32 %v2743, %v3275
        %v3277 = vpop.f32.mrb[0].mxu0
        %v3278 = vadd.f32 %v2745, %v3277
        %3279 = vmatprep.mubr.bf16.mxu0 %v1521
        %3280 = vmatmul.mubr.bf16.gmra.mrb[0].mxu0 %v1520
        %v3281 = vpop.f32.mrb[0].mxu0
        %v3282 = vadd.f32 %v2749, %v3281
        %v3283 = vpop.f32.mrb[0].mxu0
        %v3284 = vadd.f32 %v2751, %v3283
        %v3285 = vpop.f32.mrb[0].mxu0
        %v3286 = vadd.f32 %v2753, %v3285
        %v3287 = vpop.f32.mrb[0].mxu0
        %v3288 = vadd.f32 %v2755, %v3287
        %3289 = vmatprep.mubr.bf16.mxu0 %v1525
        %3290 = vmatmul.mubr.bf16.gmra.mrb[0].mxu0 %v1524
        %v3291 = vpop.f32.mrb[0].mxu0
        %v3292 = vadd.f32 %v2759, %v3291
        %v3293 = vpop.f32.mrb[0].mxu0
        %v3294 = vadd.f32 %v2761, %v3293
        %v3295 = vpop.f32.mrb[0].mxu0
        %v3296 = vadd.f32 %v2763, %v3295
        %v3297 = vpop.f32.mrb[0].mxu0
        %v3298 = vadd.f32 %v2765, %v3297
        %3299 = vmatprep.mubr.bf16.mxu0 %v1529
        %3300 = vmatmul.mubr.bf16.gmra.mrb[0].mxu0 %v1528
        %v3301 = vpop.f32.mrb[0].mxu0
        %v3302 = vadd.f32 %v2769, %v3301
        %v3303 = vpop.f32.mrb[0].mxu0
        %v3304 = vadd.f32 %v2771, %v3303
        %v3305 = vpop.f32.mrb[0].mxu0
        %v3306 = vadd.f32 %v2773, %v3305
        %v3307 = vpop.f32.mrb[0].mxu0
        %v3308 = vadd.f32 %v2775, %v3307
        %3309 = vmatprep.mubr.bf16.mxu0 %v1533
        %3310 = vmatmul.mubr.bf16.gmra.mrb[0].mxu0 %v1532
        %v3311 = vpop.f32.mrb[0].mxu0
        %v3312 = vadd.f32 %v2779, %v3311
        %v3313 = vpop.f32.mrb[0].mxu0
        %v3314 = vadd.f32 %v2781, %v3313
        %v3315 = vpop.f32.mrb[0].mxu0
        %v3316 = vadd.f32 %v2783, %v3315
        %v3317 = vpop.f32.mrb[0].mxu0
        %v3318 = vadd.f32 %v2785, %v3317
        %3319 = vmatprep.mubr.bf16.mxu0 %v1537
        %3320 = vmatmul.mubr.bf16.gmra.mrb[0].mxu0 %v1536
        %v3321 = vpop.f32.mrb[0].mxu0
        %v3322 = vadd.f32 %v2789, %v3321
        %v3323 = vpop.f32.mrb[0].mxu0
        %v3324 = vadd.f32 %v2791, %v3323
        %v3325 = vpop.f32.mrb[0].mxu0
        %v3326 = vadd.f32 %v2793, %v3325
        %v3327 = vpop.f32.mrb[0].mxu0
        %v3328 = vadd.f32 %v2795, %v3327
        %3329 = vmatprep.mubr.bf16.mxu0 %v1541
        %3330 = vmatmul.mubr.bf16.gmra.mrb[0].mxu0 %v1540
        %v3331 = vpop.f32.mrb[0].mxu0
        %v3332 = vadd.f32 %v2799, %v3331
        %v3333 = vpop.f32.mrb[0].mxu0
        %v3334 = vadd.f32 %v2801, %v3333
        %v3335 = vpop.f32.mrb[0].mxu0
        %v3336 = vadd.f32 %v2803, %v3335
        %v3337 = vpop.f32.mrb[0].mxu0
        %v3338 = vadd.f32 %v2805, %v3337
        %3339 = vmatprep.mubr.bf16.mxu0 %v1545
        %3340 = vmatmul.mubr.bf16.gmra.mrb[0].mxu0 %v1544
        %v3341 = vpop.f32.mrb[0].mxu0
        %v3342 = vadd.f32 %v2809, %v3341
        %v3343 = vpop.f32.mrb[0].mxu0
        %v3344 = vadd.f32 %v2811, %v3343
        %v3345 = vpop.f32.mrb[0].mxu0
        %v3346 = vadd.f32 %v2813, %v3345
        %v3347 = vpop.f32.mrb[0].mxu0
        %v3348 = vadd.f32 %v2815, %v3347
        %3349 = vmatprep.mubr.bf16.mxu0 %v1549
        %3350 = vmatmul.mubr.bf16.gmra.mrb[0].mxu0 %v1548
        %v3351 = vpop.f32.mrb[0].mxu0
        %v3352 = vadd.f32 %v2819, %v3351
        %v3353 = vpop.f32.mrb[0].mxu0
        %v3354 = vadd.f32 %v2821, %v3353
        %v3355 = vpop.f32.mrb[0].mxu0
        %v3356 = vadd.f32 %v2823, %v3355
        %v3357 = vpop.f32.mrb[0].mxu0
        %v3358 = vadd.f32 %v2825, %v3357
        %3359 = vmatprep.mubr.bf16.mxu0 %v1553
        %3360 = vmatmul.mubr.bf16.gmra.mrb[0].mxu0 %v1552
        %v3361 = vpop.f32.mrb[0].mxu0
        %v3362 = vadd.f32 %v2829, %v3361
        %v3363 = vpop.f32.mrb[0].mxu0
        %v3364 = vadd.f32 %v2831, %v3363
        %v3365 = vpop.f32.mrb[0].mxu0
        %v3366 = vadd.f32 %v2833, %v3365
        %v3367 = vpop.f32.mrb[0].mxu0
        %v3368 = vadd.f32 %v2835, %v3367
        %3369 = vmatprep.mubr.bf16.mxu0 %v1557
        %3370 = vmatmul.mubr.bf16.gmra.mrb[0].mxu0 %v1556
        %v3371 = vpop.f32.mrb[0].mxu0
        %v3372 = vadd.f32 %v2839, %v3371
        %v3373 = vpop.f32.mrb[0].mxu0
        %v3374 = vadd.f32 %v2841, %v3373
        %v3375 = vpop.f32.mrb[0].mxu0
        %v3376 = vadd.f32 %v2843, %v3375
        %v3377 = vpop.f32.mrb[0].mxu0
        %v3378 = vadd.f32 %v2845, %v3377
        %3379 = vmatprep.mubr.bf16.mxu0 %v1561
        %3380 = vmatmul.mubr.bf16.gmra.mrb[0].mxu0 %v1560
        %v3381 = vpop.f32.mrb[0].mxu0
        %v3382 = vadd.f32 %v2849, %v3381
        %v3383 = vpop.f32.mrb[0].mxu0
        %v3384 = vadd.f32 %v2851, %v3383
        %v3385 = vpop.f32.mrb[0].mxu0
        %v3386 = vadd.f32 %v2853, %v3385
        %v3387 = vpop.f32.mrb[0].mxu0
        %v3388 = vadd.f32 %v2855, %v3387
        %3389 = vmatprep.mubr.bf16.mxu0 %v1565
        %3390 = vmatmul.mubr.bf16.gmra.mrb[0].mxu0 %v1564
        %v3391 = vpop.f32.mrb[0].mxu0
        %v3392 = vadd.f32 %v2859, %v3391
        %v3393 = vpop.f32.mrb[0].mxu0
        %v3394 = vadd.f32 %v2861, %v3393
        %v3395 = vpop.f32.mrb[0].mxu0
        %v3396 = vadd.f32 %v2863, %v3395
        %v3397 = vpop.f32.mrb[0].mxu0
        %v3398 = vadd.f32 %v2865, %v3397
        %3399 = vmatprep.mubr.bf16.mxu0 %v1569
        %3400 = vmatmul.mubr.bf16.gmra.mrb[0].mxu0 %v1568
        %v3401 = vpop.f32.mrb[0].mxu0
        %v3402 = vadd.f32 %v2869, %v3401
        %v3403 = vpop.f32.mrb[0].mxu0
        %v3404 = vadd.f32 %v2871, %v3403
        %v3405 = vpop.f32.mrb[0].mxu0
        %v3406 = vadd.f32 %v2873, %v3405
        %v3407 = vpop.f32.mrb[0].mxu0
        %v3408 = vadd.f32 %v2875, %v3407
        %3409 = vmatprep.mubr.bf16.mxu0 %v1573
        %3410 = vmatmul.mubr.bf16.gmra.mrb[0].mxu0 %v1572
        %v3411 = vpop.f32.mrb[0].mxu0
        %v3412 = vadd.f32 %v2879, %v3411
        %v3413 = vpop.f32.mrb[0].mxu0
        %v3414 = vadd.f32 %v2881, %v3413
        %v3415 = vpop.f32.mrb[0].mxu0
        %v3416 = vadd.f32 %v2883, %v3415
        %v3417 = vpop.f32.mrb[0].mxu0
        %v3418 = vadd.f32 %v2885, %v3417
        %3419 = vmatprep.mubr.bf16.mxu0 %v1577
        %3420 = vmatmul.mubr.bf16.gmra.mrb[0].mxu0 %v1576
        %v3421 = vpop.f32.mrb[0].mxu0
        %v3422 = vadd.f32 %v2889, %v3421
        %v3423 = vpop.f32.mrb[0].mxu0
        %v3424 = vadd.f32 %v2891, %v3423
        %v3425 = vpop.f32.mrb[0].mxu0
        %v3426 = vadd.f32 %v2893, %v3425
        %v3427 = vpop.f32.mrb[0].mxu0
        %v3428 = vadd.f32 %v2895, %v3427
        %3429 = vmatprep.mubr.bf16.mxu0 %v1581
        %3430 = vmatmul.mubr.bf16.gmra.mrb[0].mxu0 %v1580
        %v3431 = vpop.f32.mrb[0].mxu0
        %v3432 = vadd.f32 %v2899, %v3431
        %v3433 = vpop.f32.mrb[0].mxu0
        %v3434 = vadd.f32 %v2901, %v3433
        %v3435 = vpop.f32.mrb[0].mxu0
        %v3436 = vadd.f32 %v2903, %v3435
        %v3437 = vpop.f32.mrb[0].mxu0
        %v3438 = vadd.f32 %v2905, %v3437
        %3439 = vmatprep.mubr.bf16.mxu0 %v1585
        %3440 = vmatmul.mubr.bf16.gmra.mrb[0].mxu0 %v1584
        %v3441 = vpop.f32.mrb[0].mxu0
        %v3442 = vadd.f32 %v2909, %v3441
        %v3443 = vpop.f32.mrb[0].mxu0
        %v3444 = vadd.f32 %v2911, %v3443
        %v3445 = vpop.f32.mrb[0].mxu0
        %v3446 = vadd.f32 %v2913, %v3445
        %v3447 = vpop.f32.mrb[0].mxu0
        %v3448 = vadd.f32 %v2915, %v3447
        %3449 = vmatprep.mubr.bf16.mxu0 %v1589
        %3450 = vmatmul.mubr.bf16.gmra.mrb[0].mxu0 %v1588
        %v3451 = vpop.f32.mrb[0].mxu0
        %v3452 = vadd.f32 %v2919, %v3451
        %v3453 = vpop.f32.mrb[0].mxu0
        %v3454 = vadd.f32 %v2921, %v3453
        %v3455 = vpop.f32.mrb[0].mxu0
        %v3456 = vadd.f32 %v2923, %v3455
        %v3457 = vpop.f32.mrb[0].mxu0
        %v3458 = vadd.f32 %v2925, %v3457
        %3459 = vmatprep.mubr.bf16.mxu0 %v1593
        %3460 = vmatmul.mubr.bf16.gmra.mrb[0].mxu0 %v1592
        %v3461 = vpop.f32.mrb[0].mxu0
        %v3462 = vadd.f32 %v2929, %v3461
        %v3463 = vpop.f32.mrb[0].mxu0
        %v3464 = vadd.f32 %v2931, %v3463
        %v3465 = vpop.f32.mrb[0].mxu0
        %v3466 = vadd.f32 %v2933, %v3465
        %v3467 = vpop.f32.mrb[0].mxu0
        %v3468 = vadd.f32 %v2935, %v3467
        %3469 = vmatprep.mubr.bf16.mxu0 %v1597
        %3470 = vmatmul.mubr.bf16.gmra.mrb[0].mxu0 %v1596
        %v3471 = vpop.f32.mrb[0].mxu0
        %v3472 = vadd.f32 %v2939, %v3471
        %v3473 = vpop.f32.mrb[0].mxu0
        %v3474 = vadd.f32 %v2941, %v3473
        %v3475 = vpop.f32.mrb[0].mxu0
        %v3476 = vadd.f32 %v2943, %v3475
        %v3477 = vpop.f32.mrb[0].mxu0
        %v3478 = vadd.f32 %v2945, %v3477
        %3479 = vmatprep.mubr.bf16.mxu0 %v1601
        %3480 = vmatmul.mubr.bf16.gmra.mrb[0].mxu0 %v1600
        %v3481 = vpop.f32.mrb[0].mxu0
        %v3482 = vadd.f32 %v2949, %v3481
        %v3483 = vpop.f32.mrb[0].mxu0
        %v3484 = vadd.f32 %v2951, %v3483
        %v3485 = vpop.f32.mrb[0].mxu0
        %v3486 = vadd.f32 %v2953, %v3485
        %v3487 = vpop.f32.mrb[0].mxu0
        %v3488 = vadd.f32 %v2955, %v3487
        %3489 = vmatprep.mubr.bf16.mxu0 %v1605
        %3490 = vmatmul.mubr.bf16.gmra.mrb[0].mxu0 %v1604
        %v3491 = vpop.f32.mrb[0].mxu0
        %v3492 = vadd.f32 %v2959, %v3491
        %v3493 = vpop.f32.mrb[0].mxu0
        %v3494 = vadd.f32 %v2961, %v3493
        %v3495 = vpop.f32.mrb[0].mxu0
        %v3496 = vadd.f32 %v2963, %v3495
        %v3497 = vpop.f32.mrb[0].mxu0
        %v3498 = vadd.f32 %v2965, %v3497
        %3499 = vmatprep.mubr.bf16.mxu0 %v1609
        %3500 = vmatmul.mubr.bf16.gmra.mrb[0].mxu0 %v1608
        %v3501 = vpop.f32.mrb[0].mxu0
        %v3502 = vadd.f32 %v2969, %v3501
        %v3503 = vpop.f32.mrb[0].mxu0
        %v3504 = vadd.f32 %v2971, %v3503
        %v3505 = vpop.f32.mrb[0].mxu0
        %v3506 = vadd.f32 %v2973, %v3505
        %v3507 = vpop.f32.mrb[0].mxu0
        %v3508 = vadd.f32 %v2975, %v3507
        %3509 = vmatprep.mubr.bf16.mxu0 %v1613
        %3510 = vmatmul.mubr.bf16.gmra.mrb[0].mxu0 %v1612
        %v3511 = vpop.f32.mrb[0].mxu0
        %v3512 = vadd.f32 %v2979, %v3511
        %v3513 = vpop.f32.mrb[0].mxu0
        %v3514 = vadd.f32 %v2981, %v3513
        %v3515 = vpop.f32.mrb[0].mxu0
        %v3516 = vadd.f32 %v2983, %v3515
        %v3517 = vpop.f32.mrb[0].mxu0
        %v3518 = vadd.f32 %v2985, %v3517
        %3519 = vdwg.mxu0
        %3520 = vmatprep.subr.bf16.mxu0 %v2201
        %3521 = vmatpush1.bf16.msra.mxu0 %v2200
        %3522 = vmatprep.subr.bf16.mxu0 %v2205
        %3523 = vmatpush1.bf16.msra.mxu0 %v2204
        %3524 = vmatprep.subr.bf16.mxu0 %v2209
        %3525 = vmatpush1.bf16.msra.mxu0 %v2208
        %3526 = vmatprep.subr.bf16.mxu0 %v2213
        %3527 = vmatpush1.bf16.msra.mxu0 %v2212
        %3528 = vmatprep.subr.bf16.mxu0 %v2217
        %3529 = vmatpush1.bf16.msra.mxu0 %v2216
        %3530 = vmatprep.subr.bf16.mxu0 %v2221
        %3531 = vmatpush1.bf16.msra.mxu0 %v2220
        %3532 = vmatprep.subr.bf16.mxu0 %v2225
        %3533 = vmatpush1.bf16.msra.mxu0 %v2224
        %3534 = vmatprep.subr.bf16.mxu0 %v2229
        %3535 = vmatpush1.bf16.msra.mxu0 %v2228
        %3536 = vmatprep.subr.bf16.mxu0 %v2233
        %3537 = vmatpush1.bf16.msra.mxu0 %v2232
        %3538 = vmatprep.subr.bf16.mxu0 %v2237
        %3539 = vmatpush1.bf16.msra.mxu0 %v2236
        %3540 = vmatprep.subr.bf16.mxu0 %v2241
        %3541 = vmatpush1.bf16.msra.mxu0 %v2240
        %3542 = vmatprep.subr.bf16.mxu0 %v2245
        %3543 = vmatpush1.bf16.msra.mxu0 %v2244
        %3544 = vmatprep.subr.bf16.mxu0 %v2249
        %3545 = vmatpush1.bf16.msra.mxu0 %v2248
        %3546 = vmatprep.subr.bf16.mxu0 %v2253
        %3547 = vmatpush1.bf16.msra.mxu0 %v2252
        %3548 = vmatprep.subr.bf16.mxu0 %v2257
        %3549 = vmatpush1.bf16.msra.mxu0 %v2256
        %3550 = vmatprep.subr.bf16.mxu0 %v2261
        %3551 = vmatpush1.bf16.msra.mxu0 %v2260
        %3552 = vmatprep.mubr.bf16.mxu0 %v1415
        %3553 = vmatmul.mubr.bf16.gmra.mrb[0].mxu0 %v1414
        %v3554 = vpop.f32.mrb[0].mxu0
        %v3555 = vadd.f32 %v805, %v3554
        %v3556 = vpop.f32.mrb[0].mxu0
        %v3557 = vadd.f32 %v809, %v3556
        %v3558 = vpop.f32.mrb[0].mxu0
        %v3559 = vadd.f32 %v805, %v3558
        %v3560 = vpop.f32.mrb[0].mxu0
        %v3561 = vadd.f32 %v809, %v3560
        %3562 = vmatprep.mubr.bf16.mxu0 %v1419
        %3563 = vmatmul.mubr.bf16.gmra.mrb[0].mxu0 %v1418
        %v3564 = vpop.f32.mrb[0].mxu0
        %v3565 = vadd.f32 %v805, %v3564
        %v3566 = vpop.f32.mrb[0].mxu0
        %v3567 = vadd.f32 %v809, %v3566
        %v3568 = vpop.f32.mrb[0].mxu0
        %v3569 = vadd.f32 %v805, %v3568
        %v3570 = vpop.f32.mrb[0].mxu0
        %v3571 = vadd.f32 %v809, %v3570
        %3572 = vmatprep.mubr.bf16.mxu0 %v1423
        %3573 = vmatmul.mubr.bf16.gmra.mrb[0].mxu0 %v1422
        %v3574 = vpop.f32.mrb[0].mxu0
        %v3575 = vadd.f32 %v805, %v3574
        %v3576 = vpop.f32.mrb[0].mxu0
        %v3577 = vadd.f32 %v809, %v3576
        %v3578 = vpop.f32.mrb[0].mxu0
        %v3579 = vadd.f32 %v805, %v3578
        %v3580 = vpop.f32.mrb[0].mxu0
        %v3581 = vadd.f32 %v809, %v3580
        %3582 = vmatprep.mubr.bf16.mxu0 %v1427
        %3583 = vmatmul.mubr.bf16.gmra.mrb[0].mxu0 %v1426
        %v3584 = vpop.f32.mrb[0].mxu0
        %v3585 = vadd.f32 %v805, %v3584
        %v3586 = vpop.f32.mrb[0].mxu0
        %v3587 = vadd.f32 %v809, %v3586
        %v3588 = vpop.f32.mrb[0].mxu0
        %v3589 = vadd.f32 %v805, %v3588
        %v3590 = vpop.f32.mrb[0].mxu0
        %v3591 = vadd.f32 %v809, %v3590
        %3592 = vmatprep.mubr.bf16.mxu0 %v1431
        %3593 = vmatmul.mubr.bf16.gmra.mrb[0].mxu0 %v1430
        %v3594 = vpop.f32.mrb[0].mxu0
        %v3595 = vadd.f32 %v805, %v3594
        %v3596 = vpop.f32.mrb[0].mxu0
        %v3597 = vadd.f32 %v809, %v3596
        %v3598 = vpop.f32.mrb[0].mxu0
        %v3599 = vadd.f32 %v805, %v3598
        %v3600 = vpop.f32.mrb[0].mxu0
        %v3601 = vadd.f32 %v809, %v3600
        %3602 = vmatprep.mubr.bf16.mxu0 %v1435
        %3603 = vmatmul.mubr.bf16.gmra.mrb[0].mxu0 %v1434
        %v3604 = vpop.f32.mrb[0].mxu0
        %v3605 = vadd.f32 %v805, %v3604
        %v3606 = vpop.f32.mrb[0].mxu0
        %v3607 = vadd.f32 %v809, %v3606
        %v3608 = vpop.f32.mrb[0].mxu0
        %v3609 = vadd.f32 %v805, %v3608
        %v3610 = vpop.f32.mrb[0].mxu0
        %v3611 = vadd.f32 %v809, %v3610
        %3612 = vmatprep.mubr.bf16.mxu0 %v1439
        %3613 = vmatmul.mubr.bf16.gmra.mrb[0].mxu0 %v1438
        %v3614 = vpop.f32.mrb[0].mxu0
        %v3615 = vadd.f32 %v805, %v3614
        %v3616 = vpop.f32.mrb[0].mxu0
        %v3617 = vadd.f32 %v809, %v3616
        %v3618 = vpop.f32.mrb[0].mxu0
        %v3619 = vadd.f32 %v805, %v3618
        %v3620 = vpop.f32.mrb[0].mxu0
        %v3621 = vadd.f32 %v809, %v3620
        %3622 = vmatprep.mubr.bf16.mxu0 %v1443
        %3623 = vmatmul.mubr.bf16.gmra.mrb[0].mxu0 %v1442
        %v3624 = vpop.f32.mrb[0].mxu0
        %v3625 = vadd.f32 %v805, %v3624
        %v3626 = vpop.f32.mrb[0].mxu0
        %v3627 = vadd.f32 %v809, %v3626
        %v3628 = vpop.f32.mrb[0].mxu0
        %v3629 = vadd.f32 %v805, %v3628
        %v3630 = vpop.f32.mrb[0].mxu0
        %v3631 = vadd.f32 %v809, %v3630
        %3632 = vmatprep.mubr.bf16.mxu0 %v1447
        %3633 = vmatmul.mubr.bf16.gmra.mrb[0].mxu0 %v1446
        %v3634 = vpop.f32.mrb[0].mxu0
        %v3635 = vadd.f32 %v805, %v3634
        %v3636 = vpop.f32.mrb[0].mxu0
        %v3637 = vadd.f32 %v809, %v3636
        %v3638 = vpop.f32.mrb[0].mxu0
        %v3639 = vadd.f32 %v805, %v3638
        %v3640 = vpop.f32.mrb[0].mxu0
        %v3641 = vadd.f32 %v809, %v3640
        %3642 = vmatprep.mubr.bf16.mxu0 %v1451
        %3643 = vmatmul.mubr.bf16.gmra.mrb[0].mxu0 %v1450
        %v3644 = vpop.f32.mrb[0].mxu0
        %v3645 = vadd.f32 %v805, %v3644
        %v3646 = vpop.f32.mrb[0].mxu0
        %v3647 = vadd.f32 %v809, %v3646
        %v3648 = vpop.f32.mrb[0].mxu0
        %v3649 = vadd.f32 %v805, %v3648
        %v3650 = vpop.f32.mrb[0].mxu0
        %v3651 = vadd.f32 %v809, %v3650
        %3652 = vmatprep.mubr.bf16.mxu0 %v1455
        %3653 = vmatmul.mubr.bf16.gmra.mrb[0].mxu0 %v1454
        %v3654 = vpop.f32.mrb[0].mxu0
        %v3655 = vadd.f32 %v805, %v3654
        %v3656 = vpop.f32.mrb[0].mxu0
        %v3657 = vadd.f32 %v809, %v3656
        %v3658 = vpop.f32.mrb[0].mxu0
        %v3659 = vadd.f32 %v805, %v3658
        %v3660 = vpop.f32.mrb[0].mxu0
        %v3661 = vadd.f32 %v809, %v3660
        %3662 = vmatprep.mubr.bf16.mxu0 %v1459
        %3663 = vmatmul.mubr.bf16.gmra.mrb[0].mxu0 %v1458
        %v3664 = vpop.f32.mrb[0].mxu0
        %v3665 = vadd.f32 %v805, %v3664
        %v3666 = vpop.f32.mrb[0].mxu0
        %v3667 = vadd.f32 %v809, %v3666
        %v3668 = vpop.f32.mrb[0].mxu0
        %v3669 = vadd.f32 %v805, %v3668
        %v3670 = vpop.f32.mrb[0].mxu0
        %v3671 = vadd.f32 %v809, %v3670
        %3672 = vmatprep.mubr.bf16.mxu0 %v1463
        %3673 = vmatmul.mubr.bf16.gmra.mrb[0].mxu0 %v1462
        %v3674 = vpop.f32.mrb[0].mxu0
        %v3675 = vadd.f32 %v805, %v3674
        %v3676 = vpop.f32.mrb[0].mxu0
        %v3677 = vadd.f32 %v809, %v3676
        %v3678 = vpop.f32.mrb[0].mxu0
        %v3679 = vadd.f32 %v805, %v3678
        %v3680 = vpop.f32.mrb[0].mxu0
        %v3681 = vadd.f32 %v809, %v3680
        %3682 = vmatprep.mubr.bf16.mxu0 %v1467
        %3683 = vmatmul.mubr.bf16.gmra.mrb[0].mxu0 %v1466
        %v3684 = vpop.f32.mrb[0].mxu0
        %v3685 = vadd.f32 %v805, %v3684
        %v3686 = vpop.f32.mrb[0].mxu0
        %v3687 = vadd.f32 %v809, %v3686
        %v3688 = vpop.f32.mrb[0].mxu0
        %v3689 = vadd.f32 %v805, %v3688
        %v3690 = vpop.f32.mrb[0].mxu0
        %v3691 = vadd.f32 %v809, %v3690
        %3692 = vmatprep.mubr.bf16.mxu0 %v1471
        %3693 = vmatmul.mubr.bf16.gmra.mrb[0].mxu0 %v1470
        %v3694 = vpop.f32.mrb[0].mxu0
        %v3695 = vadd.f32 %v805, %v3694
        %v3696 = vpop.f32.mrb[0].mxu0
        %v3697 = vadd.f32 %v809, %v3696
        %v3698 = vpop.f32.mrb[0].mxu0
        %v3699 = vadd.f32 %v805, %v3698
        %v3700 = vpop.f32.mrb[0].mxu0
        %v3701 = vadd.f32 %v809, %v3700
        %3702 = vmatprep.mubr.bf16.mxu0 %v1475
        %3703 = vmatmul.mubr.bf16.gmra.mrb[0].mxu0 %v1474
        %v3704 = vpop.f32.mrb[0].mxu0
        %v3705 = vadd.f32 %v805, %v3704
        %v3706 = vpop.f32.mrb[0].mxu0
        %v3707 = vadd.f32 %v809, %v3706
        %v3708 = vpop.f32.mrb[0].mxu0
        %v3709 = vadd.f32 %v805, %v3708
        %v3710 = vpop.f32.mrb[0].mxu0
        %v3711 = vadd.f32 %v809, %v3710
        %3712 = vmatprep.mubr.bf16.mxu0 %v1479
        %3713 = vmatmul.mubr.bf16.gmra.mrb[0].mxu0 %v1478
        %v3714 = vpop.f32.mrb[0].mxu0
        %v3715 = vadd.f32 %v805, %v3714
        %v3716 = vpop.f32.mrb[0].mxu0
        %v3717 = vadd.f32 %v809, %v3716
        %v3718 = vpop.f32.mrb[0].mxu0
        %v3719 = vadd.f32 %v805, %v3718
        %v3720 = vpop.f32.mrb[0].mxu0
        %v3721 = vadd.f32 %v809, %v3720
        %3722 = vmatprep.mubr.bf16.mxu0 %v1483
        %3723 = vmatmul.mubr.bf16.gmra.mrb[0].mxu0 %v1482
        %v3724 = vpop.f32.mrb[0].mxu0
        %v3725 = vadd.f32 %v805, %v3724
        %v3726 = vpop.f32.mrb[0].mxu0
        %v3727 = vadd.f32 %v809, %v3726
        %v3728 = vpop.f32.mrb[0].mxu0
        %v3729 = vadd.f32 %v805, %v3728
        %v3730 = vpop.f32.mrb[0].mxu0
        %v3731 = vadd.f32 %v809, %v3730
        %3732 = vmatprep.mubr.bf16.mxu0 %v1487
        %3733 = vmatmul.mubr.bf16.gmra.mrb[0].mxu0 %v1486
        %v3734 = vpop.f32.mrb[0].mxu0
        %v3735 = vadd.f32 %v805, %v3734
        %v3736 = vpop.f32.mrb[0].mxu0
        %v3737 = vadd.f32 %v809, %v3736
        %v3738 = vpop.f32.mrb[0].mxu0
        %v3739 = vadd.f32 %v805, %v3738
        %v3740 = vpop.f32.mrb[0].mxu0
        %v3741 = vadd.f32 %v809, %v3740
        %3742 = vmatprep.mubr.bf16.mxu0 %v1491
        %3743 = vmatmul.mubr.bf16.gmra.mrb[0].mxu0 %v1490
        %v3744 = vpop.f32.mrb[0].mxu0
        %v3745 = vadd.f32 %v805, %v3744
        %v3746 = vpop.f32.mrb[0].mxu0
        %v3747 = vadd.f32 %v809, %v3746
        %v3748 = vpop.f32.mrb[0].mxu0
        %v3749 = vadd.f32 %v805, %v3748
        %v3750 = vpop.f32.mrb[0].mxu0
        %v3751 = vadd.f32 %v809, %v3750
        %3752 = vmatprep.mubr.bf16.mxu0 %v1495
        %3753 = vmatmul.mubr.bf16.gmra.mrb[0].mxu0 %v1494
        %v3754 = vpop.f32.mrb[0].mxu0
        %v3755 = vadd.f32 %v805, %v3754
        %v3756 = vpop.f32.mrb[0].mxu0
        %v3757 = vadd.f32 %v809, %v3756
        %v3758 = vpop.f32.mrb[0].mxu0
        %v3759 = vadd.f32 %v805, %v3758
        %v3760 = vpop.f32.mrb[0].mxu0
        %v3761 = vadd.f32 %v809, %v3760
        %3762 = vmatprep.mubr.bf16.mxu0 %v1499
        %3763 = vmatmul.mubr.bf16.gmra.mrb[0].mxu0 %v1498
        %v3764 = vpop.f32.mrb[0].mxu0
        %v3765 = vadd.f32 %v805, %v3764
        %v3766 = vpop.f32.mrb[0].mxu0
        %v3767 = vadd.f32 %v809, %v3766
        %v3768 = vpop.f32.mrb[0].mxu0
        %v3769 = vadd.f32 %v805, %v3768
        %v3770 = vpop.f32.mrb[0].mxu0
        %v3771 = vadd.f32 %v809, %v3770
        %3772 = vmatprep.mubr.bf16.mxu0 %v1503
        %3773 = vmatmul.mubr.bf16.gmra.mrb[0].mxu0 %v1502
        %v3774 = vpop.f32.mrb[0].mxu0
        %v3775 = vadd.f32 %v805, %v3774
        %v3776 = vpop.f32.mrb[0].mxu0
        %v3777 = vadd.f32 %v809, %v3776
        %v3778 = vpop.f32.mrb[0].mxu0
        %v3779 = vadd.f32 %v805, %v3778
        %v3780 = vpop.f32.mrb[0].mxu0
        %v3781 = vadd.f32 %v809, %v3780
        %3782 = vmatprep.mubr.bf16.mxu0 %v1507
        %3783 = vmatmul.mubr.bf16.gmra.mrb[0].mxu0 %v1506
        %v3784 = vpop.f32.mrb[0].mxu0
        %v3785 = vadd.f32 %v805, %v3784
        %v3786 = vpop.f32.mrb[0].mxu0
        %v3787 = vadd.f32 %v809, %v3786
        %v3788 = vpop.f32.mrb[0].mxu0
        %v3789 = vadd.f32 %v805, %v3788
        %v3790 = vpop.f32.mrb[0].mxu0
        %v3791 = vadd.f32 %v809, %v3790
        %3792 = vmatprep.mubr.bf16.mxu0 %v1511
        %3793 = vmatmul.mubr.bf16.gmra.mrb[0].mxu0 %v1510
        %v3794 = vpop.f32.mrb[0].mxu0
        %v3795 = vadd.f32 %v805, %v3794
        %v3796 = vpop.f32.mrb[0].mxu0
        %v3797 = vadd.f32 %v809, %v3796
        %v3798 = vpop.f32.mrb[0].mxu0
        %v3799 = vadd.f32 %v805, %v3798
        %v3800 = vpop.f32.mrb[0].mxu0
        %v3801 = vadd.f32 %v809, %v3800
        %3802 = vmatprep.mubr.bf16.mxu0 %v1515
        %3803 = vmatmul.mubr.bf16.gmra.mrb[0].mxu0 %v1514
        %v3804 = vpop.f32.mrb[0].mxu0
        %v3805 = vadd.f32 %v805, %v3804
        %v3806 = vpop.f32.mrb[0].mxu0
        %v3807 = vadd.f32 %v809, %v3806
        %v3808 = vpop.f32.mrb[0].mxu0
        %v3809 = vadd.f32 %v805, %v3808
        %v3810 = vpop.f32.mrb[0].mxu0
        %v3811 = vadd.f32 %v809, %v3810
        %3812 = vmatprep.mubr.bf16.mxu0 %v1519
        %3813 = vmatmul.mubr.bf16.gmra.mrb[0].mxu0 %v1518
        %v3814 = vpop.f32.mrb[0].mxu0
        %v3815 = vadd.f32 %v805, %v3814
        %v3816 = vpop.f32.mrb[0].mxu0
        %v3817 = vadd.f32 %v809, %v3816
        %v3818 = vpop.f32.mrb[0].mxu0
        %v3819 = vadd.f32 %v805, %v3818
        %v3820 = vpop.f32.mrb[0].mxu0
        %v3821 = vadd.f32 %v809, %v3820
        %3822 = vmatprep.mubr.bf16.mxu0 %v1523
        %3823 = vmatmul.mubr.bf16.gmra.mrb[0].mxu0 %v1522
        %v3824 = vpop.f32.mrb[0].mxu0
        %v3825 = vadd.f32 %v805, %v3824
        %v3826 = vpop.f32.mrb[0].mxu0
        %v3827 = vadd.f32 %v809, %v3826
        %v3828 = vpop.f32.mrb[0].mxu0
        %v3829 = vadd.f32 %v805, %v3828
        %v3830 = vpop.f32.mrb[0].mxu0
        %v3831 = vadd.f32 %v809, %v3830
        %3832 = vmatprep.mubr.bf16.mxu0 %v1527
        %3833 = vmatmul.mubr.bf16.gmra.mrb[0].mxu0 %v1526
        %v3834 = vpop.f32.mrb[0].mxu0
        %v3835 = vadd.f32 %v805, %v3834
        %v3836 = vpop.f32.mrb[0].mxu0
        %v3837 = vadd.f32 %v809, %v3836
        %v3838 = vpop.f32.mrb[0].mxu0
        %v3839 = vadd.f32 %v805, %v3838
        %v3840 = vpop.f32.mrb[0].mxu0
        %v3841 = vadd.f32 %v809, %v3840
        %3842 = vmatprep.mubr.bf16.mxu0 %v1531
        %3843 = vmatmul.mubr.bf16.gmra.mrb[0].mxu0 %v1530
        %v3844 = vpop.f32.mrb[0].mxu0
        %v3845 = vadd.f32 %v805, %v3844
        %v3846 = vpop.f32.mrb[0].mxu0
        %v3847 = vadd.f32 %v809, %v3846
        %v3848 = vpop.f32.mrb[0].mxu0
        %v3849 = vadd.f32 %v805, %v3848
        %v3850 = vpop.f32.mrb[0].mxu0
        %v3851 = vadd.f32 %v809, %v3850
        %3852 = vmatprep.mubr.bf16.mxu0 %v1535
        %3853 = vmatmul.mubr.bf16.gmra.mrb[0].mxu0 %v1534
        %v3854 = vpop.f32.mrb[0].mxu0
        %v3855 = vadd.f32 %v805, %v3854
        %v3856 = vpop.f32.mrb[0].mxu0
        %v3857 = vadd.f32 %v809, %v3856
        %v3858 = vpop.f32.mrb[0].mxu0
        %v3859 = vadd.f32 %v805, %v3858
        %v3860 = vpop.f32.mrb[0].mxu0
        %v3861 = vadd.f32 %v809, %v3860
        %3862 = vmatprep.mubr.bf16.mxu0 %v1539
        %3863 = vmatmul.mubr.bf16.gmra.mrb[0].mxu0 %v1538
        %v3864 = vpop.f32.mrb[0].mxu0
        %v3865 = vadd.f32 %v805, %v3864
        %v3866 = vpop.f32.mrb[0].mxu0
        %v3867 = vadd.f32 %v809, %v3866
        %v3868 = vpop.f32.mrb[0].mxu0
        %v3869 = vadd.f32 %v805, %v3868
        %v3870 = vpop.f32.mrb[0].mxu0
        %v3871 = vadd.f32 %v809, %v3870
        %3872 = vmatprep.mubr.bf16.mxu0 %v1543
        %3873 = vmatmul.mubr.bf16.gmra.mrb[0].mxu0 %v1542
        %v3874 = vpop.f32.mrb[0].mxu0
        %v3875 = vadd.f32 %v805, %v3874
        %v3876 = vpop.f32.mrb[0].mxu0
        %v3877 = vadd.f32 %v809, %v3876
        %v3878 = vpop.f32.mrb[0].mxu0
        %v3879 = vadd.f32 %v805, %v3878
        %v3880 = vpop.f32.mrb[0].mxu0
        %v3881 = vadd.f32 %v809, %v3880
        %3882 = vmatprep.mubr.bf16.mxu0 %v1547
        %3883 = vmatmul.mubr.bf16.gmra.mrb[0].mxu0 %v1546
        %v3884 = vpop.f32.mrb[0].mxu0
        %v3885 = vadd.f32 %v805, %v3884
        %v3886 = vpop.f32.mrb[0].mxu0
        %v3887 = vadd.f32 %v809, %v3886
        %v3888 = vpop.f32.mrb[0].mxu0
        %v3889 = vadd.f32 %v805, %v3888
        %v3890 = vpop.f32.mrb[0].mxu0
        %v3891 = vadd.f32 %v809, %v3890
        %3892 = vmatprep.mubr.bf16.mxu0 %v1551
        %3893 = vmatmul.mubr.bf16.gmra.mrb[0].mxu0 %v1550
        %v3894 = vpop.f32.mrb[0].mxu0
        %v3895 = vadd.f32 %v805, %v3894
        %v3896 = vpop.f32.mrb[0].mxu0
        %v3897 = vadd.f32 %v809, %v3896
        %v3898 = vpop.f32.mrb[0].mxu0
        %v3899 = vadd.f32 %v805, %v3898
        %v3900 = vpop.f32.mrb[0].mxu0
        %v3901 = vadd.f32 %v809, %v3900
        %3902 = vmatprep.mubr.bf16.mxu0 %v1555
        %3903 = vmatmul.mubr.bf16.gmra.mrb[0].mxu0 %v1554
        %v3904 = vpop.f32.mrb[0].mxu0
        %v3905 = vadd.f32 %v805, %v3904
        %v3906 = vpop.f32.mrb[0].mxu0
        %v3907 = vadd.f32 %v809, %v3906
        %v3908 = vpop.f32.mrb[0].mxu0
        %v3909 = vadd.f32 %v805, %v3908
        %v3910 = vpop.f32.mrb[0].mxu0
        %v3911 = vadd.f32 %v809, %v3910
        %3912 = vmatprep.mubr.bf16.mxu0 %v1559
        %3913 = vmatmul.mubr.bf16.gmra.mrb[0].mxu0 %v1558
        %v3914 = vpop.f32.mrb[0].mxu0
        %v3915 = vadd.f32 %v805, %v3914
        %v3916 = vpop.f32.mrb[0].mxu0
        %v3917 = vadd.f32 %v809, %v3916
        %v3918 = vpop.f32.mrb[0].mxu0
        %v3919 = vadd.f32 %v805, %v3918
        %v3920 = vpop.f32.mrb[0].mxu0
        %v3921 = vadd.f32 %v809, %v3920
        %3922 = vmatprep.mubr.bf16.mxu0 %v1563
        %3923 = vmatmul.mubr.bf16.gmra.mrb[0].mxu0 %v1562
        %v3924 = vpop.f32.mrb[0].mxu0
        %v3925 = vadd.f32 %v805, %v3924
        %v3926 = vpop.f32.mrb[0].mxu0
        %v3927 = vadd.f32 %v809, %v3926
        %v3928 = vpop.f32.mrb[0].mxu0
        %v3929 = vadd.f32 %v805, %v3928
        %v3930 = vpop.f32.mrb[0].mxu0
        %v3931 = vadd.f32 %v809, %v3930
        %3932 = vmatprep.mubr.bf16.mxu0 %v1567
        %3933 = vmatmul.mubr.bf16.gmra.mrb[0].mxu0 %v1566
        %v3934 = vpop.f32.mrb[0].mxu0
        %v3935 = vadd.f32 %v805, %v3934
        %v3936 = vpop.f32.mrb[0].mxu0
        %v3937 = vadd.f32 %v809, %v3936
        %v3938 = vpop.f32.mrb[0].mxu0
        %v3939 = vadd.f32 %v805, %v3938
        %v3940 = vpop.f32.mrb[0].mxu0
        %v3941 = vadd.f32 %v809, %v3940
        %3942 = vmatprep.mubr.bf16.mxu0 %v1571
        %3943 = vmatmul.mubr.bf16.gmra.mrb[0].mxu0 %v1570
        %v3944 = vpop.f32.mrb[0].mxu0
        %v3945 = vadd.f32 %v805, %v3944
        %v3946 = vpop.f32.mrb[0].mxu0
        %v3947 = vadd.f32 %v809, %v3946
        %v3948 = vpop.f32.mrb[0].mxu0
        %v3949 = vadd.f32 %v805, %v3948
        %v3950 = vpop.f32.mrb[0].mxu0
        %v3951 = vadd.f32 %v809, %v3950
        %3952 = vmatprep.mubr.bf16.mxu0 %v1575
        %3953 = vmatmul.mubr.bf16.gmra.mrb[0].mxu0 %v1574
        %v3954 = vpop.f32.mrb[0].mxu0
        %v3955 = vadd.f32 %v805, %v3954
        %v3956 = vpop.f32.mrb[0].mxu0
        %v3957 = vadd.f32 %v809, %v3956
        %v3958 = vpop.f32.mrb[0].mxu0
        %v3959 = vadd.f32 %v805, %v3958
        %v3960 = vpop.f32.mrb[0].mxu0
        %v3961 = vadd.f32 %v809, %v3960
        %3962 = vmatprep.mubr.bf16.mxu0 %v1579
        %3963 = vmatmul.mubr.bf16.gmra.mrb[0].mxu0 %v1578
        %v3964 = vpop.f32.mrb[0].mxu0
        %v3965 = vadd.f32 %v805, %v3964
        %v3966 = vpop.f32.mrb[0].mxu0
        %v3967 = vadd.f32 %v809, %v3966
        %v3968 = vpop.f32.mrb[0].mxu0
        %v3969 = vadd.f32 %v805, %v3968
        %v3970 = vpop.f32.mrb[0].mxu0
        %v3971 = vadd.f32 %v809, %v3970
        %3972 = vmatprep.mubr.bf16.mxu0 %v1583
        %3973 = vmatmul.mubr.bf16.gmra.mrb[0].mxu0 %v1582
        %v3974 = vpop.f32.mrb[0].mxu0
        %v3975 = vadd.f32 %v805, %v3974
        %v3976 = vpop.f32.mrb[0].mxu0
        %v3977 = vadd.f32 %v809, %v3976
        %v3978 = vpop.f32.mrb[0].mxu0
        %v3979 = vadd.f32 %v805, %v3978
        %v3980 = vpop.f32.mrb[0].mxu0
        %v3981 = vadd.f32 %v809, %v3980
        %3982 = vmatprep.mubr.bf16.mxu0 %v1587
        %3983 = vmatmul.mubr.bf16.gmra.mrb[0].mxu0 %v1586
        %v3984 = vpop.f32.mrb[0].mxu0
        %v3985 = vadd.f32 %v805, %v3984
        %v3986 = vpop.f32.mrb[0].mxu0
        %v3987 = vadd.f32 %v809, %v3986
        %v3988 = vpop.f32.mrb[0].mxu0
        %v3989 = vadd.f32 %v805, %v3988
        %v3990 = vpop.f32.mrb[0].mxu0
        %v3991 = vadd.f32 %v809, %v3990
        %3992 = vmatprep.mubr.bf16.mxu0 %v1591
        %3993 = vmatmul.mubr.bf16.gmra.mrb[0].mxu0 %v1590
        %v3994 = vpop.f32.mrb[0].mxu0
        %v3995 = vadd.f32 %v805, %v3994
        %v3996 = vpop.f32.mrb[0].mxu0
        %v3997 = vadd.f32 %v809, %v3996
        %v3998 = vpop.f32.mrb[0].mxu0
        %v3999 = vadd.f32 %v805, %v3998
        %v4000 = vpop.f32.mrb[0].mxu0
        %v4001 = vadd.f32 %v809, %v4000
        %4002 = vmatprep.mubr.bf16.mxu0 %v1595
        %4003 = vmatmul.mubr.bf16.gmra.mrb[0].mxu0 %v1594
        %v4004 = vpop.f32.mrb[0].mxu0
        %v4005 = vadd.f32 %v805, %v4004
        %v4006 = vpop.f32.mrb[0].mxu0
        %v4007 = vadd.f32 %v809, %v4006
        %v4008 = vpop.f32.mrb[0].mxu0
        %v4009 = vadd.f32 %v805, %v4008
        %v4010 = vpop.f32.mrb[0].mxu0
        %v4011 = vadd.f32 %v809, %v4010
        %4012 = vmatprep.mubr.bf16.mxu0 %v1599
        %4013 = vmatmul.mubr.bf16.gmra.mrb[0].mxu0 %v1598
        %v4014 = vpop.f32.mrb[0].mxu0
        %v4015 = vadd.f32 %v805, %v4014
        %v4016 = vpop.f32.mrb[0].mxu0
        %v4017 = vadd.f32 %v809, %v4016
        %v4018 = vpop.f32.mrb[0].mxu0
        %v4019 = vadd.f32 %v805, %v4018
        %v4020 = vpop.f32.mrb[0].mxu0
        %v4021 = vadd.f32 %v809, %v4020
        %4022 = vmatprep.mubr.bf16.mxu0 %v1603
        %4023 = vmatmul.mubr.bf16.gmra.mrb[0].mxu0 %v1602
        %v4024 = vpop.f32.mrb[0].mxu0
        %v4025 = vadd.f32 %v805, %v4024
        %v4026 = vpop.f32.mrb[0].mxu0
        %v4027 = vadd.f32 %v809, %v4026
        %v4028 = vpop.f32.mrb[0].mxu0
        %v4029 = vadd.f32 %v805, %v4028
        %v4030 = vpop.f32.mrb[0].mxu0
        %v4031 = vadd.f32 %v809, %v4030
        %4032 = vmatprep.mubr.bf16.mxu0 %v1607
        %4033 = vmatmul.mubr.bf16.gmra.mrb[0].mxu0 %v1606
        %v4034 = vpop.f32.mrb[0].mxu0
        %v4035 = vadd.f32 %v805, %v4034
        %v4036 = vpop.f32.mrb[0].mxu0
        %v4037 = vadd.f32 %v809, %v4036
        %v4038 = vpop.f32.mrb[0].mxu0
        %v4039 = vadd.f32 %v805, %v4038
        %v4040 = vpop.f32.mrb[0].mxu0
        %v4041 = vadd.f32 %v809, %v4040
        %4042 = vmatprep.mubr.bf16.mxu0 %v1611
        %4043 = vmatmul.mubr.bf16.gmra.mrb[0].mxu0 %v1610
        %v4044 = vpop.f32.mrb[0].mxu0
        %v4045 = vadd.f32 %v805, %v4044
        %v4046 = vpop.f32.mrb[0].mxu0
        %v4047 = vadd.f32 %v809, %v4046
        %v4048 = vpop.f32.mrb[0].mxu0
        %v4049 = vadd.f32 %v805, %v4048
        %v4050 = vpop.f32.mrb[0].mxu0
        %v4051 = vadd.f32 %v809, %v4050
        %4052 = vdwg.mxu0
        %4053 = vmatprep.subr.bf16.mxu0 %v2265
        %4054 = vmatpush1.bf16.msra.mxu0 %v2264
        %4055 = vmatprep.subr.bf16.mxu0 %v2269
        %4056 = vmatpush1.bf16.msra.mxu0 %v2268
        %4057 = vmatprep.subr.bf16.mxu0 %v2273
        %4058 = vmatpush1.bf16.msra.mxu0 %v2272
        %4059 = vmatprep.subr.bf16.mxu0 %v2277
        %4060 = vmatpush1.bf16.msra.mxu0 %v2276
        %4061 = vmatprep.subr.bf16.mxu0 %v2281
        %4062 = vmatpush1.bf16.msra.mxu0 %v2280
        %4063 = vmatprep.subr.bf16.mxu0 %v2285
        %4064 = vmatpush1.bf16.msra.mxu0 %v2284
        %4065 = vmatprep.subr.bf16.mxu0 %v2289
        %4066 = vmatpush1.bf16.msra.mxu0 %v2288
        %4067 = vmatprep.subr.bf16.mxu0 %v2293
        %4068 = vmatpush1.bf16.msra.mxu0 %v2292
        %4069 = vmatprep.subr.bf16.mxu0 %v2297
        %4070 = vmatpush1.bf16.msra.mxu0 %v2296
        %4071 = vmatprep.subr.bf16.mxu0 %v2301
        %4072 = vmatpush1.bf16.msra.mxu0 %v2300
        %4073 = vmatprep.subr.bf16.mxu0 %v2305
        %4074 = vmatpush1.bf16.msra.mxu0 %v2304
        %4075 = vmatprep.subr.bf16.mxu0 %v2309
        %4076 = vmatpush1.bf16.msra.mxu0 %v2308
        %4077 = vmatprep.subr.bf16.mxu0 %v2313
        %4078 = vmatpush1.bf16.msra.mxu0 %v2312
        %4079 = vmatprep.subr.bf16.mxu0 %v2317
        %4080 = vmatpush1.bf16.msra.mxu0 %v2316
        %4081 = vmatprep.subr.bf16.mxu0 %v2321
        %4082 = vmatpush1.bf16.msra.mxu0 %v2320
        %4083 = vmatprep.subr.bf16.mxu0 %v2325
        %4084 = vmatpush1.bf16.msra.mxu0 %v2324
        %4085 = vmatprep.mubr.bf16.mxu0 %v1417
        %4086 = vmatmul.mubr.bf16.gmra.mrb[0].mxu0 %v1416
        %v4087 = vpop.f32.mrb[0].mxu0
        %v4088 = vadd.f32 %v3555, %v4087
        %v4089 = vpop.f32.mrb[0].mxu0
        %v4090 = vadd.f32 %v3557, %v4089
        %v4091 = vpop.f32.mrb[0].mxu0
        %v4092 = vadd.f32 %v3559, %v4091
        %v4093 = vpop.f32.mrb[0].mxu0
        %v4094 = vadd.f32 %v3561, %v4093
        %4095 = vmatprep.mubr.bf16.mxu0 %v1421
        %4096 = vmatmul.mubr.bf16.gmra.mrb[0].mxu0 %v1420
        %v4097 = vpop.f32.mrb[0].mxu0
        %v4098 = vadd.f32 %v3565, %v4097
        %v4099 = vpop.f32.mrb[0].mxu0
        %v4100 = vadd.f32 %v3567, %v4099
        %v4101 = vpop.f32.mrb[0].mxu0
        %v4102 = vadd.f32 %v3569, %v4101
        %v4103 = vpop.f32.mrb[0].mxu0
        %v4104 = vadd.f32 %v3571, %v4103
        %4105 = vmatprep.mubr.bf16.mxu0 %v1425
        %4106 = vmatmul.mubr.bf16.gmra.mrb[0].mxu0 %v1424
        %v4107 = vpop.f32.mrb[0].mxu0
        %v4108 = vadd.f32 %v3575, %v4107
        %v4109 = vpop.f32.mrb[0].mxu0
        %v4110 = vadd.f32 %v3577, %v4109
        %v4111 = vpop.f32.mrb[0].mxu0
        %v4112 = vadd.f32 %v3579, %v4111
        %v4113 = vpop.f32.mrb[0].mxu0
        %v4114 = vadd.f32 %v3581, %v4113
        %4115 = vmatprep.mubr.bf16.mxu0 %v1429
        %4116 = vmatmul.mubr.bf16.gmra.mrb[0].mxu0 %v1428
        %v4117 = vpop.f32.mrb[0].mxu0
        %v4118 = vadd.f32 %v3585, %v4117
        %v4119 = vpop.f32.mrb[0].mxu0
        %v4120 = vadd.f32 %v3587, %v4119
        %v4121 = vpop.f32.mrb[0].mxu0
        %v4122 = vadd.f32 %v3589, %v4121
        %v4123 = vpop.f32.mrb[0].mxu0
        %v4124 = vadd.f32 %v3591, %v4123
        %4125 = vmatprep.mubr.bf16.mxu0 %v1433
        %4126 = vmatmul.mubr.bf16.gmra.mrb[0].mxu0 %v1432
        %v4127 = vpop.f32.mrb[0].mxu0
        %v4128 = vadd.f32 %v3595, %v4127
        %v4129 = vpop.f32.mrb[0].mxu0
        %v4130 = vadd.f32 %v3597, %v4129
        %v4131 = vpop.f32.mrb[0].mxu0
        %v4132 = vadd.f32 %v3599, %v4131
        %v4133 = vpop.f32.mrb[0].mxu0
        %v4134 = vadd.f32 %v3601, %v4133
        %4135 = vmatprep.mubr.bf16.mxu0 %v1437
        %4136 = vmatmul.mubr.bf16.gmra.mrb[0].mxu0 %v1436
        %v4137 = vpop.f32.mrb[0].mxu0
        %v4138 = vadd.f32 %v3605, %v4137
        %v4139 = vpop.f32.mrb[0].mxu0
        %v4140 = vadd.f32 %v3607, %v4139
        %v4141 = vpop.f32.mrb[0].mxu0
        %v4142 = vadd.f32 %v3609, %v4141
        %v4143 = vpop.f32.mrb[0].mxu0
        %v4144 = vadd.f32 %v3611, %v4143
        %4145 = vmatprep.mubr.bf16.mxu0 %v1441
        %4146 = vmatmul.mubr.bf16.gmra.mrb[0].mxu0 %v1440
        %v4147 = vpop.f32.mrb[0].mxu0
        %v4148 = vadd.f32 %v3615, %v4147
        %v4149 = vpop.f32.mrb[0].mxu0
        %v4150 = vadd.f32 %v3617, %v4149
        %v4151 = vpop.f32.mrb[0].mxu0
        %v4152 = vadd.f32 %v3619, %v4151
        %v4153 = vpop.f32.mrb[0].mxu0
        %v4154 = vadd.f32 %v3621, %v4153
        %4155 = vmatprep.mubr.bf16.mxu0 %v1445
        %4156 = vmatmul.mubr.bf16.gmra.mrb[0].mxu0 %v1444
        %v4157 = vpop.f32.mrb[0].mxu0
        %v4158 = vadd.f32 %v3625, %v4157
        %v4159 = vpop.f32.mrb[0].mxu0
        %v4160 = vadd.f32 %v3627, %v4159
        %v4161 = vpop.f32.mrb[0].mxu0
        %v4162 = vadd.f32 %v3629, %v4161
        %v4163 = vpop.f32.mrb[0].mxu0
        %v4164 = vadd.f32 %v3631, %v4163
        %4165 = vmatprep.mubr.bf16.mxu0 %v1449
        %4166 = vmatmul.mubr.bf16.gmra.mrb[0].mxu0 %v1448
        %v4167 = vpop.f32.mrb[0].mxu0
        %v4168 = vadd.f32 %v3635, %v4167
        %v4169 = vpop.f32.mrb[0].mxu0
        %v4170 = vadd.f32 %v3637, %v4169
        %v4171 = vpop.f32.mrb[0].mxu0
        %v4172 = vadd.f32 %v3639, %v4171
        %v4173 = vpop.f32.mrb[0].mxu0
        %v4174 = vadd.f32 %v3641, %v4173
        %4175 = vmatprep.mubr.bf16.mxu0 %v1453
        %4176 = vmatmul.mubr.bf16.gmra.mrb[0].mxu0 %v1452
        %v4177 = vpop.f32.mrb[0].mxu0
        %v4178 = vadd.f32 %v3645, %v4177
        %v4179 = vpop.f32.mrb[0].mxu0
        %v4180 = vadd.f32 %v3647, %v4179
        %v4181 = vpop.f32.mrb[0].mxu0
        %v4182 = vadd.f32 %v3649, %v4181
        %v4183 = vpop.f32.mrb[0].mxu0
        %v4184 = vadd.f32 %v3651, %v4183
        %4185 = vmatprep.mubr.bf16.mxu0 %v1457
        %4186 = vmatmul.mubr.bf16.gmra.mrb[0].mxu0 %v1456
        %v4187 = vpop.f32.mrb[0].mxu0
        %v4188 = vadd.f32 %v3655, %v4187
        %v4189 = vpop.f32.mrb[0].mxu0
        %v4190 = vadd.f32 %v3657, %v4189
        %v4191 = vpop.f32.mrb[0].mxu0
        %v4192 = vadd.f32 %v3659, %v4191
        %v4193 = vpop.f32.mrb[0].mxu0
        %v4194 = vadd.f32 %v3661, %v4193
        %4195 = vmatprep.mubr.bf16.mxu0 %v1461
        %4196 = vmatmul.mubr.bf16.gmra.mrb[0].mxu0 %v1460
        %v4197 = vpop.f32.mrb[0].mxu0
        %v4198 = vadd.f32 %v3665, %v4197
        %v4199 = vpop.f32.mrb[0].mxu0
        %v4200 = vadd.f32 %v3667, %v4199
        %v4201 = vpop.f32.mrb[0].mxu0
        %v4202 = vadd.f32 %v3669, %v4201
        %v4203 = vpop.f32.mrb[0].mxu0
        %v4204 = vadd.f32 %v3671, %v4203
        %4205 = vmatprep.mubr.bf16.mxu0 %v1465
        %4206 = vmatmul.mubr.bf16.gmra.mrb[0].mxu0 %v1464
        %v4207 = vpop.f32.mrb[0].mxu0
        %v4208 = vadd.f32 %v3675, %v4207
        %v4209 = vpop.f32.mrb[0].mxu0
        %v4210 = vadd.f32 %v3677, %v4209
        %v4211 = vpop.f32.mrb[0].mxu0
        %v4212 = vadd.f32 %v3679, %v4211
        %v4213 = vpop.f32.mrb[0].mxu0
        %v4214 = vadd.f32 %v3681, %v4213
        %4215 = vmatprep.mubr.bf16.mxu0 %v1469
        %4216 = vmatmul.mubr.bf16.gmra.mrb[0].mxu0 %v1468
        %v4217 = vpop.f32.mrb[0].mxu0
        %v4218 = vadd.f32 %v3685, %v4217
        %v4219 = vpop.f32.mrb[0].mxu0
        %v4220 = vadd.f32 %v3687, %v4219
        %v4221 = vpop.f32.mrb[0].mxu0
        %v4222 = vadd.f32 %v3689, %v4221
        %v4223 = vpop.f32.mrb[0].mxu0
        %v4224 = vadd.f32 %v3691, %v4223
        %4225 = vmatprep.mubr.bf16.mxu0 %v1473
        %4226 = vmatmul.mubr.bf16.gmra.mrb[0].mxu0 %v1472
        %v4227 = vpop.f32.mrb[0].mxu0
        %v4228 = vadd.f32 %v3695, %v4227
        %v4229 = vpop.f32.mrb[0].mxu0
        %v4230 = vadd.f32 %v3697, %v4229
        %v4231 = vpop.f32.mrb[0].mxu0
        %v4232 = vadd.f32 %v3699, %v4231
        %v4233 = vpop.f32.mrb[0].mxu0
        %v4234 = vadd.f32 %v3701, %v4233
        %4235 = vmatprep.mubr.bf16.mxu0 %v1477
        %4236 = vmatmul.mubr.bf16.gmra.mrb[0].mxu0 %v1476
        %v4237 = vpop.f32.mrb[0].mxu0
        %v4238 = vadd.f32 %v3705, %v4237
        %v4239 = vpop.f32.mrb[0].mxu0
        %v4240 = vadd.f32 %v3707, %v4239
        %v4241 = vpop.f32.mrb[0].mxu0
        %v4242 = vadd.f32 %v3709, %v4241
        %v4243 = vpop.f32.mrb[0].mxu0
        %v4244 = vadd.f32 %v3711, %v4243
        %4245 = vmatprep.mubr.bf16.mxu0 %v1481
        %4246 = vmatmul.mubr.bf16.gmra.mrb[0].mxu0 %v1480
        %v4247 = vpop.f32.mrb[0].mxu0
        %v4248 = vadd.f32 %v3715, %v4247
        %v4249 = vpop.f32.mrb[0].mxu0
        %v4250 = vadd.f32 %v3717, %v4249
        %v4251 = vpop.f32.mrb[0].mxu0
        %v4252 = vadd.f32 %v3719, %v4251
        %v4253 = vpop.f32.mrb[0].mxu0
        %v4254 = vadd.f32 %v3721, %v4253
        %4255 = vmatprep.mubr.bf16.mxu0 %v1485
        %4256 = vmatmul.mubr.bf16.gmra.mrb[0].mxu0 %v1484
        %v4257 = vpop.f32.mrb[0].mxu0
        %v4258 = vadd.f32 %v3725, %v4257
        %v4259 = vpop.f32.mrb[0].mxu0
        %v4260 = vadd.f32 %v3727, %v4259
        %v4261 = vpop.f32.mrb[0].mxu0
        %v4262 = vadd.f32 %v3729, %v4261
        %v4263 = vpop.f32.mrb[0].mxu0
        %v4264 = vadd.f32 %v3731, %v4263
        %4265 = vmatprep.mubr.bf16.mxu0 %v1489
        %4266 = vmatmul.mubr.bf16.gmra.mrb[0].mxu0 %v1488
        %v4267 = vpop.f32.mrb[0].mxu0
        %v4268 = vadd.f32 %v3735, %v4267
        %v4269 = vpop.f32.mrb[0].mxu0
        %v4270 = vadd.f32 %v3737, %v4269
        %v4271 = vpop.f32.mrb[0].mxu0
        %v4272 = vadd.f32 %v3739, %v4271
        %v4273 = vpop.f32.mrb[0].mxu0
        %v4274 = vadd.f32 %v3741, %v4273
        %4275 = vmatprep.mubr.bf16.mxu0 %v1493
        %4276 = vmatmul.mubr.bf16.gmra.mrb[0].mxu0 %v1492
        %v4277 = vpop.f32.mrb[0].mxu0
        %v4278 = vadd.f32 %v3745, %v4277
        %v4279 = vpop.f32.mrb[0].mxu0
        %v4280 = vadd.f32 %v3747, %v4279
        %v4281 = vpop.f32.mrb[0].mxu0
        %v4282 = vadd.f32 %v3749, %v4281
        %v4283 = vpop.f32.mrb[0].mxu0
        %v4284 = vadd.f32 %v3751, %v4283
        %4285 = vmatprep.mubr.bf16.mxu0 %v1497
        %4286 = vmatmul.mubr.bf16.gmra.mrb[0].mxu0 %v1496
        %v4287 = vpop.f32.mrb[0].mxu0
        %v4288 = vadd.f32 %v3755, %v4287
        %v4289 = vpop.f32.mrb[0].mxu0
        %v4290 = vadd.f32 %v3757, %v4289
        %v4291 = vpop.f32.mrb[0].mxu0
        %v4292 = vadd.f32 %v3759, %v4291
        %v4293 = vpop.f32.mrb[0].mxu0
        %v4294 = vadd.f32 %v3761, %v4293
        %4295 = vmatprep.mubr.bf16.mxu0 %v1501
        %4296 = vmatmul.mubr.bf16.gmra.mrb[0].mxu0 %v1500
        %v4297 = vpop.f32.mrb[0].mxu0
        %v4298 = vadd.f32 %v3765, %v4297
        %v4299 = vpop.f32.mrb[0].mxu0
        %v4300 = vadd.f32 %v3767, %v4299
        %v4301 = vpop.f32.mrb[0].mxu0
        %v4302 = vadd.f32 %v3769, %v4301
        %v4303 = vpop.f32.mrb[0].mxu0
        %v4304 = vadd.f32 %v3771, %v4303
        %4305 = vmatprep.mubr.bf16.mxu0 %v1505
        %4306 = vmatmul.mubr.bf16.gmra.mrb[0].mxu0 %v1504
        %v4307 = vpop.f32.mrb[0].mxu0
        %v4308 = vadd.f32 %v3775, %v4307
        %v4309 = vpop.f32.mrb[0].mxu0
        %v4310 = vadd.f32 %v3777, %v4309
        %v4311 = vpop.f32.mrb[0].mxu0
        %v4312 = vadd.f32 %v3779, %v4311
        %v4313 = vpop.f32.mrb[0].mxu0
        %v4314 = vadd.f32 %v3781, %v4313
        %4315 = vmatprep.mubr.bf16.mxu0 %v1509
        %4316 = vmatmul.mubr.bf16.gmra.mrb[0].mxu0 %v1508
        %v4317 = vpop.f32.mrb[0].mxu0
        %v4318 = vadd.f32 %v3785, %v4317
        %v4319 = vpop.f32.mrb[0].mxu0
        %v4320 = vadd.f32 %v3787, %v4319
        %v4321 = vpop.f32.mrb[0].mxu0
        %v4322 = vadd.f32 %v3789, %v4321
        %v4323 = vpop.f32.mrb[0].mxu0
        %v4324 = vadd.f32 %v3791, %v4323
        %4325 = vmatprep.mubr.bf16.mxu0 %v1513
        %4326 = vmatmul.mubr.bf16.gmra.mrb[0].mxu0 %v1512
        %v4327 = vpop.f32.mrb[0].mxu0
        %v4328 = vadd.f32 %v3795, %v4327
        %v4329 = vpop.f32.mrb[0].mxu0
        %v4330 = vadd.f32 %v3797, %v4329
        %v4331 = vpop.f32.mrb[0].mxu0
        %v4332 = vadd.f32 %v3799, %v4331
        %v4333 = vpop.f32.mrb[0].mxu0
        %v4334 = vadd.f32 %v3801, %v4333
        %4335 = vmatprep.mubr.bf16.mxu0 %v1517
        %4336 = vmatmul.mubr.bf16.gmra.mrb[0].mxu0 %v1516
        %v4337 = vpop.f32.mrb[0].mxu0
        %v4338 = vadd.f32 %v3805, %v4337
        %v4339 = vpop.f32.mrb[0].mxu0
        %v4340 = vadd.f32 %v3807, %v4339
        %v4341 = vpop.f32.mrb[0].mxu0
        %v4342 = vadd.f32 %v3809, %v4341
        %v4343 = vpop.f32.mrb[0].mxu0
        %v4344 = vadd.f32 %v3811, %v4343
        %4345 = vmatprep.mubr.bf16.mxu0 %v1521
        %4346 = vmatmul.mubr.bf16.gmra.mrb[0].mxu0 %v1520
        %v4347 = vpop.f32.mrb[0].mxu0
        %v4348 = vadd.f32 %v3815, %v4347
        %v4349 = vpop.f32.mrb[0].mxu0
        %v4350 = vadd.f32 %v3817, %v4349
        %v4351 = vpop.f32.mrb[0].mxu0
        %v4352 = vadd.f32 %v3819, %v4351
        %v4353 = vpop.f32.mrb[0].mxu0
        %v4354 = vadd.f32 %v3821, %v4353
        %4355 = vmatprep.mubr.bf16.mxu0 %v1525
        %4356 = vmatmul.mubr.bf16.gmra.mrb[0].mxu0 %v1524
        %v4357 = vpop.f32.mrb[0].mxu0
        %v4358 = vadd.f32 %v3825, %v4357
        %v4359 = vpop.f32.mrb[0].mxu0
        %v4360 = vadd.f32 %v3827, %v4359
        %v4361 = vpop.f32.mrb[0].mxu0
        %v4362 = vadd.f32 %v3829, %v4361
        %v4363 = vpop.f32.mrb[0].mxu0
        %v4364 = vadd.f32 %v3831, %v4363
        %4365 = vmatprep.mubr.bf16.mxu0 %v1529
        %4366 = vmatmul.mubr.bf16.gmra.mrb[0].mxu0 %v1528
        %v4367 = vpop.f32.mrb[0].mxu0
        %v4368 = vadd.f32 %v3835, %v4367
        %v4369 = vpop.f32.mrb[0].mxu0
        %v4370 = vadd.f32 %v3837, %v4369
        %v4371 = vpop.f32.mrb[0].mxu0
        %v4372 = vadd.f32 %v3839, %v4371
        %v4373 = vpop.f32.mrb[0].mxu0
        %v4374 = vadd.f32 %v3841, %v4373
        %4375 = vmatprep.mubr.bf16.mxu0 %v1533
        %4376 = vmatmul.mubr.bf16.gmra.mrb[0].mxu0 %v1532
        %v4377 = vpop.f32.mrb[0].mxu0
        %v4378 = vadd.f32 %v3845, %v4377
        %v4379 = vpop.f32.mrb[0].mxu0
        %v4380 = vadd.f32 %v3847, %v4379
        %v4381 = vpop.f32.mrb[0].mxu0
        %v4382 = vadd.f32 %v3849, %v4381
        %v4383 = vpop.f32.mrb[0].mxu0
        %v4384 = vadd.f32 %v3851, %v4383
        %4385 = vmatprep.mubr.bf16.mxu0 %v1537
        %4386 = vmatmul.mubr.bf16.gmra.mrb[0].mxu0 %v1536
        %v4387 = vpop.f32.mrb[0].mxu0
        %v4388 = vadd.f32 %v3855, %v4387
        %v4389 = vpop.f32.mrb[0].mxu0
        %v4390 = vadd.f32 %v3857, %v4389
        %v4391 = vpop.f32.mrb[0].mxu0
        %v4392 = vadd.f32 %v3859, %v4391
        %v4393 = vpop.f32.mrb[0].mxu0
        %v4394 = vadd.f32 %v3861, %v4393
        %4395 = vmatprep.mubr.bf16.mxu0 %v1541
        %4396 = vmatmul.mubr.bf16.gmra.mrb[0].mxu0 %v1540
        %v4397 = vpop.f32.mrb[0].mxu0
        %v4398 = vadd.f32 %v3865, %v4397
        %v4399 = vpop.f32.mrb[0].mxu0
        %v4400 = vadd.f32 %v3867, %v4399
        %v4401 = vpop.f32.mrb[0].mxu0
        %v4402 = vadd.f32 %v3869, %v4401
        %v4403 = vpop.f32.mrb[0].mxu0
        %v4404 = vadd.f32 %v3871, %v4403
        %4405 = vmatprep.mubr.bf16.mxu0 %v1545
        %4406 = vmatmul.mubr.bf16.gmra.mrb[0].mxu0 %v1544
        %v4407 = vpop.f32.mrb[0].mxu0
        %v4408 = vadd.f32 %v3875, %v4407
        %v4409 = vpop.f32.mrb[0].mxu0
        %v4410 = vadd.f32 %v3877, %v4409
        %v4411 = vpop.f32.mrb[0].mxu0
        %v4412 = vadd.f32 %v3879, %v4411
        %v4413 = vpop.f32.mrb[0].mxu0
        %v4414 = vadd.f32 %v3881, %v4413
        %4415 = vmatprep.mubr.bf16.mxu0 %v1549
        %4416 = vmatmul.mubr.bf16.gmra.mrb[0].mxu0 %v1548
        %v4417 = vpop.f32.mrb[0].mxu0
        %v4418 = vadd.f32 %v3885, %v4417
        %v4419 = vpop.f32.mrb[0].mxu0
        %v4420 = vadd.f32 %v3887, %v4419
        %v4421 = vpop.f32.mrb[0].mxu0
        %v4422 = vadd.f32 %v3889, %v4421
        %v4423 = vpop.f32.mrb[0].mxu0
        %v4424 = vadd.f32 %v3891, %v4423
        %4425 = vmatprep.mubr.bf16.mxu0 %v1553
        %4426 = vmatmul.mubr.bf16.gmra.mrb[0].mxu0 %v1552
        %v4427 = vpop.f32.mrb[0].mxu0
        %v4428 = vadd.f32 %v3895, %v4427
        %v4429 = vpop.f32.mrb[0].mxu0
        %v4430 = vadd.f32 %v3897, %v4429
        %v4431 = vpop.f32.mrb[0].mxu0
        %v4432 = vadd.f32 %v3899, %v4431
        %v4433 = vpop.f32.mrb[0].mxu0
        %v4434 = vadd.f32 %v3901, %v4433
        %4435 = vmatprep.mubr.bf16.mxu0 %v1557
        %4436 = vmatmul.mubr.bf16.gmra.mrb[0].mxu0 %v1556
        %v4437 = vpop.f32.mrb[0].mxu0
        %v4438 = vadd.f32 %v3905, %v4437
        %v4439 = vpop.f32.mrb[0].mxu0
        %v4440 = vadd.f32 %v3907, %v4439
        %v4441 = vpop.f32.mrb[0].mxu0
        %v4442 = vadd.f32 %v3909, %v4441
        %v4443 = vpop.f32.mrb[0].mxu0
        %v4444 = vadd.f32 %v3911, %v4443
        %4445 = vmatprep.mubr.bf16.mxu0 %v1561
        %4446 = vmatmul.mubr.bf16.gmra.mrb[0].mxu0 %v1560
        %v4447 = vpop.f32.mrb[0].mxu0
        %v4448 = vadd.f32 %v3915, %v4447
        %v4449 = vpop.f32.mrb[0].mxu0
        %v4450 = vadd.f32 %v3917, %v4449
        %v4451 = vpop.f32.mrb[0].mxu0
        %v4452 = vadd.f32 %v3919, %v4451
        %v4453 = vpop.f32.mrb[0].mxu0
        %v4454 = vadd.f32 %v3921, %v4453
        %4455 = vmatprep.mubr.bf16.mxu0 %v1565
        %4456 = vmatmul.mubr.bf16.gmra.mrb[0].mxu0 %v1564
        %v4457 = vpop.f32.mrb[0].mxu0
        %v4458 = vadd.f32 %v3925, %v4457
        %v4459 = vpop.f32.mrb[0].mxu0
        %v4460 = vadd.f32 %v3927, %v4459
        %v4461 = vpop.f32.mrb[0].mxu0
        %v4462 = vadd.f32 %v3929, %v4461
        %v4463 = vpop.f32.mrb[0].mxu0
        %v4464 = vadd.f32 %v3931, %v4463
        %4465 = vmatprep.mubr.bf16.mxu0 %v1569
        %4466 = vmatmul.mubr.bf16.gmra.mrb[0].mxu0 %v1568
        %v4467 = vpop.f32.mrb[0].mxu0
        %v4468 = vadd.f32 %v3935, %v4467
        %v4469 = vpop.f32.mrb[0].mxu0
        %v4470 = vadd.f32 %v3937, %v4469
        %v4471 = vpop.f32.mrb[0].mxu0
        %v4472 = vadd.f32 %v3939, %v4471
        %v4473 = vpop.f32.mrb[0].mxu0
        %v4474 = vadd.f32 %v3941, %v4473
        %4475 = vmatprep.mubr.bf16.mxu0 %v1573
        %4476 = vmatmul.mubr.bf16.gmra.mrb[0].mxu0 %v1572
        %v4477 = vpop.f32.mrb[0].mxu0
        %v4478 = vadd.f32 %v3945, %v4477
        %v4479 = vpop.f32.mrb[0].mxu0
        %v4480 = vadd.f32 %v3947, %v4479
        %v4481 = vpop.f32.mrb[0].mxu0
        %v4482 = vadd.f32 %v3949, %v4481
        %v4483 = vpop.f32.mrb[0].mxu0
        %v4484 = vadd.f32 %v3951, %v4483
        %4485 = vmatprep.mubr.bf16.mxu0 %v1577
        %4486 = vmatmul.mubr.bf16.gmra.mrb[0].mxu0 %v1576
        %v4487 = vpop.f32.mrb[0].mxu0
        %v4488 = vadd.f32 %v3955, %v4487
        %v4489 = vpop.f32.mrb[0].mxu0
        %v4490 = vadd.f32 %v3957, %v4489
        %v4491 = vpop.f32.mrb[0].mxu0
        %v4492 = vadd.f32 %v3959, %v4491
        %v4493 = vpop.f32.mrb[0].mxu0
        %v4494 = vadd.f32 %v3961, %v4493
        %4495 = vmatprep.mubr.bf16.mxu0 %v1581
        %4496 = vmatmul.mubr.bf16.gmra.mrb[0].mxu0 %v1580
        %v4497 = vpop.f32.mrb[0].mxu0
        %v4498 = vadd.f32 %v3965, %v4497
        %v4499 = vpop.f32.mrb[0].mxu0
        %v4500 = vadd.f32 %v3967, %v4499
        %v4501 = vpop.f32.mrb[0].mxu0
        %v4502 = vadd.f32 %v3969, %v4501
        %v4503 = vpop.f32.mrb[0].mxu0
        %v4504 = vadd.f32 %v3971, %v4503
        %4505 = vmatprep.mubr.bf16.mxu0 %v1585
        %4506 = vmatmul.mubr.bf16.gmra.mrb[0].mxu0 %v1584
        %v4507 = vpop.f32.mrb[0].mxu0
        %v4508 = vadd.f32 %v3975, %v4507
        %v4509 = vpop.f32.mrb[0].mxu0
        %v4510 = vadd.f32 %v3977, %v4509
        %v4511 = vpop.f32.mrb[0].mxu0
        %v4512 = vadd.f32 %v3979, %v4511
        %v4513 = vpop.f32.mrb[0].mxu0
        %v4514 = vadd.f32 %v3981, %v4513
        %4515 = vmatprep.mubr.bf16.mxu0 %v1589
        %4516 = vmatmul.mubr.bf16.gmra.mrb[0].mxu0 %v1588
        %v4517 = vpop.f32.mrb[0].mxu0
        %v4518 = vadd.f32 %v3985, %v4517
        %v4519 = vpop.f32.mrb[0].mxu0
        %v4520 = vadd.f32 %v3987, %v4519
        %v4521 = vpop.f32.mrb[0].mxu0
        %v4522 = vadd.f32 %v3989, %v4521
        %v4523 = vpop.f32.mrb[0].mxu0
        %v4524 = vadd.f32 %v3991, %v4523
        %4525 = vmatprep.mubr.bf16.mxu0 %v1593
        %4526 = vmatmul.mubr.bf16.gmra.mrb[0].mxu0 %v1592
        %v4527 = vpop.f32.mrb[0].mxu0
        %v4528 = vadd.f32 %v3995, %v4527
        %v4529 = vpop.f32.mrb[0].mxu0
        %v4530 = vadd.f32 %v3997, %v4529
        %v4531 = vpop.f32.mrb[0].mxu0
        %v4532 = vadd.f32 %v3999, %v4531
        %v4533 = vpop.f32.mrb[0].mxu0
        %v4534 = vadd.f32 %v4001, %v4533
        %4535 = vmatprep.mubr.bf16.mxu0 %v1597
        %4536 = vmatmul.mubr.bf16.gmra.mrb[0].mxu0 %v1596
        %v4537 = vpop.f32.mrb[0].mxu0
        %v4538 = vadd.f32 %v4005, %v4537
        %v4539 = vpop.f32.mrb[0].mxu0
        %v4540 = vadd.f32 %v4007, %v4539
        %v4541 = vpop.f32.mrb[0].mxu0
        %v4542 = vadd.f32 %v4009, %v4541
        %v4543 = vpop.f32.mrb[0].mxu0
        %v4544 = vadd.f32 %v4011, %v4543
        %4545 = vmatprep.mubr.bf16.mxu0 %v1601
        %4546 = vmatmul.mubr.bf16.gmra.mrb[0].mxu0 %v1600
        %v4547 = vpop.f32.mrb[0].mxu0
        %v4548 = vadd.f32 %v4015, %v4547
        %v4549 = vpop.f32.mrb[0].mxu0
        %v4550 = vadd.f32 %v4017, %v4549
        %v4551 = vpop.f32.mrb[0].mxu0
        %v4552 = vadd.f32 %v4019, %v4551
        %v4553 = vpop.f32.mrb[0].mxu0
        %v4554 = vadd.f32 %v4021, %v4553
        %4555 = vmatprep.mubr.bf16.mxu0 %v1605
        %4556 = vmatmul.mubr.bf16.gmra.mrb[0].mxu0 %v1604
        %v4557 = vpop.f32.mrb[0].mxu0
        %v4558 = vadd.f32 %v4025, %v4557
        %v4559 = vpop.f32.mrb[0].mxu0
        %v4560 = vadd.f32 %v4027, %v4559
        %v4561 = vpop.f32.mrb[0].mxu0
        %v4562 = vadd.f32 %v4029, %v4561
        %v4563 = vpop.f32.mrb[0].mxu0
        %v4564 = vadd.f32 %v4031, %v4563
        %4565 = vmatprep.mubr.bf16.mxu0 %v1609
        %4566 = vmatmul.mubr.bf16.gmra.mrb[0].mxu0 %v1608
        %v4567 = vpop.f32.mrb[0].mxu0
        %v4568 = vadd.f32 %v4035, %v4567
        %v4569 = vpop.f32.mrb[0].mxu0
        %v4570 = vadd.f32 %v4037, %v4569
        %v4571 = vpop.f32.mrb[0].mxu0
        %v4572 = vadd.f32 %v4039, %v4571
        %v4573 = vpop.f32.mrb[0].mxu0
        %v4574 = vadd.f32 %v4041, %v4573
        %4575 = vmatprep.mubr.bf16.mxu0 %v1613
        %4576 = vmatmul.mubr.bf16.gmra.mrb[0].mxu0 %v1612
        %v4577 = vpop.f32.mrb[0].mxu0
        %v4578 = vadd.f32 %v4045, %v4577
        %v4579 = vpop.f32.mrb[0].mxu0
        %v4580 = vadd.f32 %v4047, %v4579
        %v4581 = vpop.f32.mrb[0].mxu0
        %v4582 = vadd.f32 %v4049, %v4581
        %v4583 = vpop.f32.mrb[0].mxu0
        %v4584 = vadd.f32 %v4051, %v4583
        %4585 = vdwg.mxu0
        %v4586 = vxor.u32 %v3022, 2147483648
        %v4587 = vxor.u32 %v3024, 2147483648
        %v4588 = vxor.u32 %v4088, 2147483648
        %v4589 = vxor.u32 %v4090, 2147483648
        %v4590 = vxor.u32 %v3026, 2147483648
        %v4591 = vxor.u32 %v3028, 2147483648
        %v4592 = vxor.u32 %v4092, 2147483648
        %v4593 = vxor.u32 %v4094, 2147483648
        %v4594 = vxor.u32 %v3032, 2147483648
        %v4595 = vxor.u32 %v3034, 2147483648
        %v4596 = vxor.u32 %v4098, 2147483648
        %v4597 = vxor.u32 %v4100, 2147483648
        %v4598 = vxor.u32 %v3036, 2147483648
        %v4599 = vxor.u32 %v3038, 2147483648
        %v4600 = vxor.u32 %v4102, 2147483648
        %v4601 = vxor.u32 %v4104, 2147483648
        %v4602 = vxor.u32 %v3042, 2147483648
        %v4603 = vxor.u32 %v3044, 2147483648
        %v4604 = vxor.u32 %v4108, 2147483648
        %v4605 = vxor.u32 %v4110, 2147483648
        %v4606 = vxor.u32 %v3046, 2147483648
        %v4607 = vxor.u32 %v3048, 2147483648
        %v4608 = vxor.u32 %v4112, 2147483648
        %v4609 = vxor.u32 %v4114, 2147483648
        %v4610 = vxor.u32 %v3052, 2147483648
        %v4611 = vxor.u32 %v3054, 2147483648
        %v4612 = vxor.u32 %v4118, 2147483648
        %v4613 = vxor.u32 %v4120, 2147483648
        %v4614 = vxor.u32 %v3056, 2147483648
        %v4615 = vxor.u32 %v3058, 2147483648
        %v4616 = vxor.u32 %v4122, 2147483648
        %v4617 = vxor.u32 %v4124, 2147483648
        %v4618 = vxor.u32 %v3062, 2147483648
        %v4619 = vxor.u32 %v3064, 2147483648
        %v4620 = vxor.u32 %v4128, 2147483648
        %v4621 = vxor.u32 %v4130, 2147483648
        %v4622 = vxor.u32 %v3066, 2147483648
        %v4623 = vxor.u32 %v3068, 2147483648
        %v4624 = vxor.u32 %v4132, 2147483648
        %v4625 = vxor.u32 %v4134, 2147483648
        %v4626 = vxor.u32 %v3072, 2147483648
        %v4627 = vxor.u32 %v3074, 2147483648
        %v4628 = vxor.u32 %v4138, 2147483648
        %v4629 = vxor.u32 %v4140, 2147483648
        %v4630 = vxor.u32 %v3076, 2147483648
        %v4631 = vxor.u32 %v3078, 2147483648
        %v4632 = vxor.u32 %v4142, 2147483648
        %v4633 = vxor.u32 %v4144, 2147483648
        %v4634 = vxor.u32 %v3082, 2147483648
        %v4635 = vxor.u32 %v3084, 2147483648
        %v4636 = vxor.u32 %v4148, 2147483648
        %v4637 = vxor.u32 %v4150, 2147483648
        %v4638 = vxor.u32 %v3086, 2147483648
        %v4639 = vxor.u32 %v3088, 2147483648
        %v4640 = vxor.u32 %v4152, 2147483648
        %v4641 = vxor.u32 %v4154, 2147483648
        %v4642 = vxor.u32 %v3092, 2147483648
        %v4643 = vxor.u32 %v3094, 2147483648
        %v4644 = vxor.u32 %v4158, 2147483648
        %v4645 = vxor.u32 %v4160, 2147483648
        %v4646 = vxor.u32 %v3096, 2147483648
        %v4647 = vxor.u32 %v3098, 2147483648
        %v4648 = vxor.u32 %v4162, 2147483648
        %v4649 = vxor.u32 %v4164, 2147483648
        %v4650 = vxor.u32 %v3102, 2147483648
        %v4651 = vxor.u32 %v3104, 2147483648
        %v4652 = vxor.u32 %v4168, 2147483648
        %v4653 = vxor.u32 %v4170, 2147483648
        %v4654 = vxor.u32 %v3106, 2147483648
        %v4655 = vxor.u32 %v3108, 2147483648
        %v4656 = vxor.u32 %v4172, 2147483648
        %v4657 = vxor.u32 %v4174, 2147483648
        %v4658 = vxor.u32 %v3112, 2147483648
        %v4659 = vxor.u32 %v3114, 2147483648
        %v4660 = vxor.u32 %v4178, 2147483648
        %v4661 = vxor.u32 %v4180, 2147483648
        %v4662 = vxor.u32 %v3116, 2147483648
        %v4663 = vxor.u32 %v3118, 2147483648
        %v4664 = vxor.u32 %v4182, 2147483648
        %v4665 = vxor.u32 %v4184, 2147483648
        %v4666 = vxor.u32 %v3122, 2147483648
        %v4667 = vxor.u32 %v3124, 2147483648
        %v4668 = vxor.u32 %v4188, 2147483648
        %v4669 = vxor.u32 %v4190, 2147483648
        %v4670 = vxor.u32 %v3126, 2147483648
        %v4671 = vxor.u32 %v3128, 2147483648
        %v4672 = vxor.u32 %v4192, 2147483648
        %v4673 = vxor.u32 %v4194, 2147483648
        %v4674 = vxor.u32 %v3132, 2147483648
        %v4675 = vxor.u32 %v3134, 2147483648
        %v4676 = vxor.u32 %v4198, 2147483648
        %v4677 = vxor.u32 %v4200, 2147483648
        %v4678 = vxor.u32 %v3136, 2147483648
        %v4679 = vxor.u32 %v3138, 2147483648
        %v4680 = vxor.u32 %v4202, 2147483648
        %v4681 = vxor.u32 %v4204, 2147483648
        %v4682 = vxor.u32 %v3142, 2147483648
        %v4683 = vxor.u32 %v3144, 2147483648
        %v4684 = vxor.u32 %v4208, 2147483648
        %v4685 = vxor.u32 %v4210, 2147483648
        %v4686 = vxor.u32 %v3146, 2147483648
        %v4687 = vxor.u32 %v3148, 2147483648
        %v4688 = vxor.u32 %v4212, 2147483648
        %v4689 = vxor.u32 %v4214, 2147483648
        %v4690 = vxor.u32 %v3152, 2147483648
        %v4691 = vxor.u32 %v3154, 2147483648
        %v4692 = vxor.u32 %v4218, 2147483648
        %v4693 = vxor.u32 %v4220, 2147483648
        %v4694 = vxor.u32 %v3156, 2147483648
        %v4695 = vxor.u32 %v3158, 2147483648
        %v4696 = vxor.u32 %v4222, 2147483648
        %v4697 = vxor.u32 %v4224, 2147483648
        %v4698 = vxor.u32 %v3162, 2147483648
        %v4699 = vxor.u32 %v3164, 2147483648
        %v4700 = vxor.u32 %v4228, 2147483648
        %v4701 = vxor.u32 %v4230, 2147483648
        %v4702 = vxor.u32 %v3166, 2147483648
        %v4703 = vxor.u32 %v3168, 2147483648
        %v4704 = vxor.u32 %v4232, 2147483648
        %v4705 = vxor.u32 %v4234, 2147483648
        %v4706 = vxor.u32 %v3172, 2147483648
        %v4707 = vxor.u32 %v3174, 2147483648
        %v4708 = vxor.u32 %v4238, 2147483648
        %v4709 = vxor.u32 %v4240, 2147483648
        %v4710 = vxor.u32 %v3176, 2147483648
        %v4711 = vxor.u32 %v3178, 2147483648
        %v4712 = vxor.u32 %v4242, 2147483648
        %v4713 = vxor.u32 %v4244, 2147483648
        %v4714 = vxor.u32 %v3182, 2147483648
        %v4715 = vxor.u32 %v3184, 2147483648
        %v4716 = vxor.u32 %v4248, 2147483648
        %v4717 = vxor.u32 %v4250, 2147483648
        %v4718 = vxor.u32 %v3186, 2147483648
        %v4719 = vxor.u32 %v3188, 2147483648
        %v4720 = vxor.u32 %v4252, 2147483648
        %v4721 = vxor.u32 %v4254, 2147483648
        %v4722 = vxor.u32 %v3192, 2147483648
        %v4723 = vxor.u32 %v3194, 2147483648
        %v4724 = vxor.u32 %v4258, 2147483648
        %v4725 = vxor.u32 %v4260, 2147483648
        %v4726 = vxor.u32 %v3196, 2147483648
        %v4727 = vxor.u32 %v3198, 2147483648
        %v4728 = vxor.u32 %v4262, 2147483648
        %v4729 = vxor.u32 %v4264, 2147483648
        %v4730 = vxor.u32 %v3202, 2147483648
        %v4731 = vxor.u32 %v3204, 2147483648
        %v4732 = vxor.u32 %v4268, 2147483648
        %v4733 = vxor.u32 %v4270, 2147483648
        %v4734 = vxor.u32 %v3206, 2147483648
        %v4735 = vxor.u32 %v3208, 2147483648
        %v4736 = vxor.u32 %v4272, 2147483648
        %v4737 = vxor.u32 %v4274, 2147483648
        %v4738 = vxor.u32 %v3212, 2147483648
        %v4739 = vxor.u32 %v3214, 2147483648
        %v4740 = vxor.u32 %v4278, 2147483648
        %v4741 = vxor.u32 %v4280, 2147483648
        %v4742 = vxor.u32 %v3216, 2147483648
        %v4743 = vxor.u32 %v3218, 2147483648
        %v4744 = vxor.u32 %v4282, 2147483648
        %v4745 = vxor.u32 %v4284, 2147483648
        %v4746 = vxor.u32 %v3222, 2147483648
        %v4747 = vxor.u32 %v3224, 2147483648
        %v4748 = vxor.u32 %v4288, 2147483648
        %v4749 = vxor.u32 %v4290, 2147483648
        %v4750 = vxor.u32 %v3226, 2147483648
        %v4751 = vxor.u32 %v3228, 2147483648
        %v4752 = vxor.u32 %v4292, 2147483648
        %v4753 = vxor.u32 %v4294, 2147483648
        %v4754 = vxor.u32 %v3232, 2147483648
        %v4755 = vxor.u32 %v3234, 2147483648
        %v4756 = vxor.u32 %v4298, 2147483648
        %v4757 = vxor.u32 %v4300, 2147483648
        %v4758 = vxor.u32 %v3236, 2147483648
        %v4759 = vxor.u32 %v3238, 2147483648
        %v4760 = vxor.u32 %v4302, 2147483648
        %v4761 = vxor.u32 %v4304, 2147483648
        %v4762 = vxor.u32 %v3242, 2147483648
        %v4763 = vxor.u32 %v3244, 2147483648
        %v4764 = vxor.u32 %v4308, 2147483648
        %v4765 = vxor.u32 %v4310, 2147483648
        %v4766 = vxor.u32 %v3246, 2147483648
        %v4767 = vxor.u32 %v3248, 2147483648
        %v4768 = vxor.u32 %v4312, 2147483648
        %v4769 = vxor.u32 %v4314, 2147483648
        %v4770 = vxor.u32 %v3252, 2147483648
        %v4771 = vxor.u32 %v3254, 2147483648
        %v4772 = vxor.u32 %v4318, 2147483648
        %v4773 = vxor.u32 %v4320, 2147483648
        %v4774 = vxor.u32 %v3256, 2147483648
        %v4775 = vxor.u32 %v3258, 2147483648
        %v4776 = vxor.u32 %v4322, 2147483648
        %v4777 = vxor.u32 %v4324, 2147483648
        %v4778 = vxor.u32 %v3262, 2147483648
        %v4779 = vxor.u32 %v3264, 2147483648
        %v4780 = vxor.u32 %v4328, 2147483648
        %v4781 = vxor.u32 %v4330, 2147483648
        %v4782 = vxor.u32 %v3266, 2147483648
        %v4783 = vxor.u32 %v3268, 2147483648
        %v4784 = vxor.u32 %v4332, 2147483648
        %v4785 = vxor.u32 %v4334, 2147483648
        %v4786 = vxor.u32 %v3272, 2147483648
        %v4787 = vxor.u32 %v3274, 2147483648
        %v4788 = vxor.u32 %v4338, 2147483648
        %v4789 = vxor.u32 %v4340, 2147483648
        %v4790 = vxor.u32 %v3276, 2147483648
        %v4791 = vxor.u32 %v3278, 2147483648
        %v4792 = vxor.u32 %v4342, 2147483648
        %v4793 = vxor.u32 %v4344, 2147483648
        %v4794 = vxor.u32 %v3282, 2147483648
        %v4795 = vxor.u32 %v3284, 2147483648
        %v4796 = vxor.u32 %v4348, 2147483648
        %v4797 = vxor.u32 %v4350, 2147483648
        %v4798 = vxor.u32 %v3286, 2147483648
        %v4799 = vxor.u32 %v3288, 2147483648
        %v4800 = vxor.u32 %v4352, 2147483648
        %v4801 = vxor.u32 %v4354, 2147483648
        %v4802 = vxor.u32 %v3292, 2147483648
        %v4803 = vxor.u32 %v3294, 2147483648
        %v4804 = vxor.u32 %v4358, 2147483648
        %v4805 = vxor.u32 %v4360, 2147483648
        %v4806 = vxor.u32 %v3296, 2147483648
        %v4807 = vxor.u32 %v3298, 2147483648
        %v4808 = vxor.u32 %v4362, 2147483648
        %v4809 = vxor.u32 %v4364, 2147483648
        %v4810 = vxor.u32 %v3302, 2147483648
        %v4811 = vxor.u32 %v3304, 2147483648
        %v4812 = vxor.u32 %v4368, 2147483648
        %v4813 = vxor.u32 %v4370, 2147483648
        %v4814 = vxor.u32 %v3306, 2147483648
        %v4815 = vxor.u32 %v3308, 2147483648
        %v4816 = vxor.u32 %v4372, 2147483648
        %v4817 = vxor.u32 %v4374, 2147483648
        %v4818 = vxor.u32 %v3312, 2147483648
        %v4819 = vxor.u32 %v3314, 2147483648
        %v4820 = vxor.u32 %v4378, 2147483648
        %v4821 = vxor.u32 %v4380, 2147483648
        %v4822 = vxor.u32 %v3316, 2147483648
        %v4823 = vxor.u32 %v3318, 2147483648
        %v4824 = vxor.u32 %v4382, 2147483648
        %v4825 = vxor.u32 %v4384, 2147483648
        %v4826 = vxor.u32 %v3322, 2147483648
        %v4827 = vxor.u32 %v3324, 2147483648
        %v4828 = vxor.u32 %v4388, 2147483648
        %v4829 = vxor.u32 %v4390, 2147483648
        %v4830 = vxor.u32 %v3326, 2147483648
        %v4831 = vxor.u32 %v3328, 2147483648
        %v4832 = vxor.u32 %v4392, 2147483648
        %v4833 = vxor.u32 %v4394, 2147483648
        %v4834 = vxor.u32 %v3332, 2147483648
        %v4835 = vxor.u32 %v3334, 2147483648
        %v4836 = vxor.u32 %v4398, 2147483648
        %v4837 = vxor.u32 %v4400, 2147483648
        %v4838 = vxor.u32 %v3336, 2147483648
        %v4839 = vxor.u32 %v3338, 2147483648
        %v4840 = vxor.u32 %v4402, 2147483648
        %v4841 = vxor.u32 %v4404, 2147483648
        %v4842 = vxor.u32 %v3342, 2147483648
        %v4843 = vxor.u32 %v3344, 2147483648
        %v4844 = vxor.u32 %v4408, 2147483648
        %v4845 = vxor.u32 %v4410, 2147483648
        %v4846 = vxor.u32 %v3346, 2147483648
        %v4847 = vxor.u32 %v3348, 2147483648
        %v4848 = vxor.u32 %v4412, 2147483648
        %v4849 = vxor.u32 %v4414, 2147483648
        %v4850 = vxor.u32 %v3352, 2147483648
        %v4851 = vxor.u32 %v3354, 2147483648
        %v4852 = vxor.u32 %v4418, 2147483648
        %v4853 = vxor.u32 %v4420, 2147483648
        %v4854 = vxor.u32 %v3356, 2147483648
        %v4855 = vxor.u32 %v3358, 2147483648
        %v4856 = vxor.u32 %v4422, 2147483648
        %v4857 = vxor.u32 %v4424, 2147483648
        %v4858 = vxor.u32 %v3362, 2147483648
        %v4859 = vxor.u32 %v3364, 2147483648
        %v4860 = vxor.u32 %v4428, 2147483648
        %v4861 = vxor.u32 %v4430, 2147483648
        %v4862 = vxor.u32 %v3366, 2147483648
        %v4863 = vxor.u32 %v3368, 2147483648
        %v4864 = vxor.u32 %v4432, 2147483648
        %v4865 = vxor.u32 %v4434, 2147483648
        %v4866 = vxor.u32 %v3372, 2147483648
        %v4867 = vxor.u32 %v3374, 2147483648
        %v4868 = vxor.u32 %v4438, 2147483648
        %v4869 = vxor.u32 %v4440, 2147483648
        %v4870 = vxor.u32 %v3376, 2147483648
        %v4871 = vxor.u32 %v3378, 2147483648
        %v4872 = vxor.u32 %v4442, 2147483648
        %v4873 = vxor.u32 %v4444, 2147483648
        %v4874 = vxor.u32 %v3382, 2147483648
        %v4875 = vxor.u32 %v3384, 2147483648
        %v4876 = vxor.u32 %v4448, 2147483648
        %v4877 = vxor.u32 %v4450, 2147483648
        %v4878 = vxor.u32 %v3386, 2147483648
        %v4879 = vxor.u32 %v3388, 2147483648
        %v4880 = vxor.u32 %v4452, 2147483648
        %v4881 = vxor.u32 %v4454, 2147483648
        %v4882 = vxor.u32 %v3392, 2147483648
        %v4883 = vxor.u32 %v3394, 2147483648
        %v4884 = vxor.u32 %v4458, 2147483648
        %v4885 = vxor.u32 %v4460, 2147483648
        %v4886 = vxor.u32 %v3396, 2147483648
        %v4887 = vxor.u32 %v3398, 2147483648
        %v4888 = vxor.u32 %v4462, 2147483648
        %v4889 = vxor.u32 %v4464, 2147483648
        %v4890 = vxor.u32 %v3402, 2147483648
        %v4891 = vxor.u32 %v3404, 2147483648
        %v4892 = vxor.u32 %v4468, 2147483648
        %v4893 = vxor.u32 %v4470, 2147483648
        %v4894 = vxor.u32 %v3406, 2147483648
        %v4895 = vxor.u32 %v3408, 2147483648
        %v4896 = vxor.u32 %v4472, 2147483648
        %v4897 = vxor.u32 %v4474, 2147483648
        %v4898 = vxor.u32 %v3412, 2147483648
        %v4899 = vxor.u32 %v3414, 2147483648
        %v4900 = vxor.u32 %v4478, 2147483648
        %v4901 = vxor.u32 %v4480, 2147483648
        %v4902 = vxor.u32 %v3416, 2147483648
        %v4903 = vxor.u32 %v3418, 2147483648
        %v4904 = vxor.u32 %v4482, 2147483648
        %v4905 = vxor.u32 %v4484, 2147483648
        %v4906 = vxor.u32 %v3422, 2147483648
        %v4907 = vxor.u32 %v3424, 2147483648
        %v4908 = vxor.u32 %v4488, 2147483648
        %v4909 = vxor.u32 %v4490, 2147483648
        %v4910 = vxor.u32 %v3426, 2147483648
        %v4911 = vxor.u32 %v3428, 2147483648
        %v4912 = vxor.u32 %v4492, 2147483648
        %v4913 = vxor.u32 %v4494, 2147483648
        %v4914 = vxor.u32 %v3432, 2147483648
        %v4915 = vxor.u32 %v3434, 2147483648
        %v4916 = vxor.u32 %v4498, 2147483648
        %v4917 = vxor.u32 %v4500, 2147483648
        %v4918 = vxor.u32 %v3436, 2147483648
        %v4919 = vxor.u32 %v3438, 2147483648
        %v4920 = vxor.u32 %v4502, 2147483648
        %v4921 = vxor.u32 %v4504, 2147483648
        %v4922 = vxor.u32 %v3442, 2147483648
        %v4923 = vxor.u32 %v3444, 2147483648
        %v4924 = vxor.u32 %v4508, 2147483648
        %v4925 = vxor.u32 %v4510, 2147483648
        %v4926 = vxor.u32 %v3446, 2147483648
        %v4927 = vxor.u32 %v3448, 2147483648
        %v4928 = vxor.u32 %v4512, 2147483648
        %v4929 = vxor.u32 %v4514, 2147483648
        %v4930 = vxor.u32 %v3452, 2147483648
        %v4931 = vxor.u32 %v3454, 2147483648
        %v4932 = vxor.u32 %v4518, 2147483648
        %v4933 = vxor.u32 %v4520, 2147483648
        %v4934 = vxor.u32 %v3456, 2147483648
        %v4935 = vxor.u32 %v3458, 2147483648
        %v4936 = vxor.u32 %v4522, 2147483648
        %v4937 = vxor.u32 %v4524, 2147483648
        %v4938 = vxor.u32 %v3462, 2147483648
        %v4939 = vxor.u32 %v3464, 2147483648
        %v4940 = vxor.u32 %v4528, 2147483648
        %v4941 = vxor.u32 %v4530, 2147483648
        %v4942 = vxor.u32 %v3466, 2147483648
        %v4943 = vxor.u32 %v3468, 2147483648
        %v4944 = vxor.u32 %v4532, 2147483648
        %v4945 = vxor.u32 %v4534, 2147483648
        %v4946 = vxor.u32 %v3472, 2147483648
        %v4947 = vxor.u32 %v3474, 2147483648
        %v4948 = vxor.u32 %v4538, 2147483648
        %v4949 = vxor.u32 %v4540, 2147483648
        %v4950 = vxor.u32 %v3476, 2147483648
        %v4951 = vxor.u32 %v3478, 2147483648
        %v4952 = vxor.u32 %v4542, 2147483648
        %v4953 = vxor.u32 %v4544, 2147483648
        %v4954 = vxor.u32 %v3482, 2147483648
        %v4955 = vxor.u32 %v3484, 2147483648
        %v4956 = vxor.u32 %v4548, 2147483648
        %v4957 = vxor.u32 %v4550, 2147483648
        %v4958 = vxor.u32 %v3486, 2147483648
        %v4959 = vxor.u32 %v3488, 2147483648
        %v4960 = vxor.u32 %v4552, 2147483648
        %v4961 = vxor.u32 %v4554, 2147483648
        %v4962 = vxor.u32 %v3492, 2147483648
        %v4963 = vxor.u32 %v3494, 2147483648
        %v4964 = vxor.u32 %v4558, 2147483648
        %v4965 = vxor.u32 %v4560, 2147483648
        %v4966 = vxor.u32 %v3496, 2147483648
        %v4967 = vxor.u32 %v3498, 2147483648
        %v4968 = vxor.u32 %v4562, 2147483648
        %v4969 = vxor.u32 %v4564, 2147483648
        %v4970 = vxor.u32 %v3502, 2147483648
        %v4971 = vxor.u32 %v3504, 2147483648
        %v4972 = vxor.u32 %v4568, 2147483648
        %v4973 = vxor.u32 %v4570, 2147483648
        %v4974 = vxor.u32 %v3506, 2147483648
        %v4975 = vxor.u32 %v3508, 2147483648
        %v4976 = vxor.u32 %v4572, 2147483648
        %v4977 = vxor.u32 %v4574, 2147483648
        %v4978 = vxor.u32 %v3512, 2147483648
        %v4979 = vxor.u32 %v3514, 2147483648
        %v4980 = vxor.u32 %v4578, 2147483648
        %v4981 = vxor.u32 %v4580, 2147483648
        %v4982 = vxor.u32 %v3516, 2147483648
        %v4983 = vxor.u32 %v3518, 2147483648
        %v4984 = vxor.u32 %v4582, 2147483648
        %v4985 = vxor.u32 %v4584, 2147483648
        %v4986 = vmul.f32 %v4586, 1.442695
        %v4987 = vpow.pop %v4986
        %v4988 = vmul.f32 %v4587, 1.442695
        %v4989 = vpow.pop %v4988
        %v4990 = vmul.f32 %v4588, 1.442695
        %v4991 = vpow.pop %v4990
        %v4992 = vmul.f32 %v4589, 1.442695
        %v4993 = vpow.pop %v4992
        %v4994 = vmul.f32 %v4590, 1.442695
        %v4995 = vpow.pop %v4994
        %v4996 = vmul.f32 %v4591, 1.442695
        %v4997 = vpow.pop %v4996
        %v4998 = vmul.f32 %v4592, 1.442695
        %v4999 = vpow.pop %v4998
        %v5000 = vmul.f32 %v4593, 1.442695
        %v5001 = vpow.pop %v5000
        %v5002 = vmul.f32 %v4594, 1.442695
        %v5003 = vpow.pop %v5002
        %v5004 = vmul.f32 %v4595, 1.442695
        %v5005 = vpow.pop %v5004
        %v5006 = vmul.f32 %v4596, 1.442695
        %v5007 = vpow.pop %v5006
        %v5008 = vmul.f32 %v4597, 1.442695
        %v5009 = vpow.pop %v5008
        %v5010 = vmul.f32 %v4598, 1.442695
        %v5011 = vpow.pop %v5010
        %v5012 = vmul.f32 %v4599, 1.442695
        %v5013 = vpow.pop %v5012
        %v5014 = vmul.f32 %v4600, 1.442695
        %v5015 = vpow.pop %v5014
        %v5016 = vmul.f32 %v4601, 1.442695
        %v5017 = vpow.pop %v5016
        %v5018 = vmul.f32 %v4602, 1.442695
        %v5019 = vpow.pop %v5018
        %v5020 = vmul.f32 %v4603, 1.442695
        %v5021 = vpow.pop %v5020
        %v5022 = vmul.f32 %v4604, 1.442695
        %v5023 = vpow.pop %v5022
        %v5024 = vmul.f32 %v4605, 1.442695
        %v5025 = vpow.pop %v5024
        %v5026 = vmul.f32 %v4606, 1.442695
        %v5027 = vpow.pop %v5026
        %v5028 = vmul.f32 %v4607, 1.442695
        %v5029 = vpow.pop %v5028
        %v5030 = vmul.f32 %v4608, 1.442695
        %v5031 = vpow.pop %v5030
        %v5032 = vmul.f32 %v4609, 1.442695
        %v5033 = vpow.pop %v5032
        %v5034 = vmul.f32 %v4610, 1.442695
        %v5035 = vpow.pop %v5034
        %v5036 = vmul.f32 %v4611, 1.442695
        %v5037 = vpow.pop %v5036
        %v5038 = vmul.f32 %v4612, 1.442695
        %v5039 = vpow.pop %v5038
        %v5040 = vmul.f32 %v4613, 1.442695
        %v5041 = vpow.pop %v5040
        %v5042 = vmul.f32 %v4614, 1.442695
        %v5043 = vpow.pop %v5042
        %v5044 = vmul.f32 %v4615, 1.442695
        %v5045 = vpow.pop %v5044
        %v5046 = vmul.f32 %v4616, 1.442695
        %v5047 = vpow.pop %v5046
        %v5048 = vmul.f32 %v4617, 1.442695
        %v5049 = vpow.pop %v5048
        %v5050 = vmul.f32 %v4618, 1.442695
        %v5051 = vpow.pop %v5050
        %v5052 = vmul.f32 %v4619, 1.442695
        %v5053 = vpow.pop %v5052
        %v5054 = vmul.f32 %v4620, 1.442695
        %v5055 = vpow.pop %v5054
        %v5056 = vmul.f32 %v4621, 1.442695
        %v5057 = vpow.pop %v5056
        %v5058 = vmul.f32 %v4622, 1.442695
        %v5059 = vpow.pop %v5058
        %v5060 = vmul.f32 %v4623, 1.442695
        %v5061 = vpow.pop %v5060
        %v5062 = vmul.f32 %v4624, 1.442695
        %v5063 = vpow.pop %v5062
        %v5064 = vmul.f32 %v4625, 1.442695
        %v5065 = vpow.pop %v5064
        %v5066 = vmul.f32 %v4626, 1.442695
        %v5067 = vpow.pop %v5066
        %v5068 = vmul.f32 %v4627, 1.442695
        %v5069 = vpow.pop %v5068
        %v5070 = vmul.f32 %v4628, 1.442695
        %v5071 = vpow.pop %v5070
        %v5072 = vmul.f32 %v4629, 1.442695
        %v5073 = vpow.pop %v5072
        %v5074 = vmul.f32 %v4630, 1.442695
        %v5075 = vpow.pop %v5074
        %v5076 = vmul.f32 %v4631, 1.442695
        %v5077 = vpow.pop %v5076
        %v5078 = vmul.f32 %v4632, 1.442695
        %v5079 = vpow.pop %v5078
        %v5080 = vmul.f32 %v4633, 1.442695
        %v5081 = vpow.pop %v5080
        %v5082 = vmul.f32 %v4634, 1.442695
        %v5083 = vpow.pop %v5082
        %v5084 = vmul.f32 %v4635, 1.442695
        %v5085 = vpow.pop %v5084
        %v5086 = vmul.f32 %v4636, 1.442695
        %v5087 = vpow.pop %v5086
        %v5088 = vmul.f32 %v4637, 1.442695
        %v5089 = vpow.pop %v5088
        %v5090 = vmul.f32 %v4638, 1.442695
        %v5091 = vpow.pop %v5090
        %v5092 = vmul.f32 %v4639, 1.442695
        %v5093 = vpow.pop %v5092
        %v5094 = vmul.f32 %v4640, 1.442695
        %v5095 = vpow.pop %v5094
        %v5096 = vmul.f32 %v4641, 1.442695
        %v5097 = vpow.pop %v5096
        %v5098 = vmul.f32 %v4642, 1.442695
        %v5099 = vpow.pop %v5098
        %v5100 = vmul.f32 %v4643, 1.442695
        %v5101 = vpow.pop %v5100
        %v5102 = vmul.f32 %v4644, 1.442695
        %v5103 = vpow.pop %v5102
        %v5104 = vmul.f32 %v4645, 1.442695
        %v5105 = vpow.pop %v5104
        %v5106 = vmul.f32 %v4646, 1.442695
        %v5107 = vpow.pop %v5106
        %v5108 = vmul.f32 %v4647, 1.442695
        %v5109 = vpow.pop %v5108
        %v5110 = vmul.f32 %v4648, 1.442695
        %v5111 = vpow.pop %v5110
        %v5112 = vmul.f32 %v4649, 1.442695
        %v5113 = vpow.pop %v5112
        %v5114 = vmul.f32 %v4650, 1.442695
        %v5115 = vpow.pop %v5114
        %v5116 = vmul.f32 %v4651, 1.442695
        %v5117 = vpow.pop %v5116
        %v5118 = vmul.f32 %v4652, 1.442695
        %v5119 = vpow.pop %v5118
        %v5120 = vmul.f32 %v4653, 1.442695
        %v5121 = vpow.pop %v5120
        %v5122 = vmul.f32 %v4654, 1.442695
        %v5123 = vpow.pop %v5122
        %v5124 = vmul.f32 %v4655, 1.442695
        %v5125 = vpow.pop %v5124
        %v5126 = vmul.f32 %v4656, 1.442695
        %v5127 = vpow.pop %v5126
        %v5128 = vmul.f32 %v4657, 1.442695
        %v5129 = vpow.pop %v5128
        %v5130 = vmul.f32 %v4658, 1.442695
        %v5131 = vpow.pop %v5130
        %v5132 = vmul.f32 %v4659, 1.442695
        %v5133 = vpow.pop %v5132
        %v5134 = vmul.f32 %v4660, 1.442695
        %v5135 = vpow.pop %v5134
        %v5136 = vmul.f32 %v4661, 1.442695
        %v5137 = vpow.pop %v5136
        %v5138 = vmul.f32 %v4662, 1.442695
        %v5139 = vpow.pop %v5138
        %v5140 = vmul.f32 %v4663, 1.442695
        %v5141 = vpow.pop %v5140
        %v5142 = vmul.f32 %v4664, 1.442695
        %v5143 = vpow.pop %v5142
        %v5144 = vmul.f32 %v4665, 1.442695
        %v5145 = vpow.pop %v5144
        %v5146 = vmul.f32 %v4666, 1.442695
        %v5147 = vpow.pop %v5146
        %v5148 = vmul.f32 %v4667, 1.442695
        %v5149 = vpow.pop %v5148
        %v5150 = vmul.f32 %v4668, 1.442695
        %v5151 = vpow.pop %v5150
        %v5152 = vmul.f32 %v4669, 1.442695
        %v5153 = vpow.pop %v5152
        %v5154 = vmul.f32 %v4670, 1.442695
        %v5155 = vpow.pop %v5154
        %v5156 = vmul.f32 %v4671, 1.442695
        %v5157 = vpow.pop %v5156
        %v5158 = vmul.f32 %v4672, 1.442695
        %v5159 = vpow.pop %v5158
        %v5160 = vmul.f32 %v4673, 1.442695
        %v5161 = vpow.pop %v5160
        %v5162 = vmul.f32 %v4674, 1.442695
        %v5163 = vpow.pop %v5162
        %v5164 = vmul.f32 %v4675, 1.442695
        %v5165 = vpow.pop %v5164
        %v5166 = vmul.f32 %v4676, 1.442695
        %v5167 = vpow.pop %v5166
        %v5168 = vmul.f32 %v4677, 1.442695
        %v5169 = vpow.pop %v5168
        %v5170 = vmul.f32 %v4678, 1.442695
        %v5171 = vpow.pop %v5170
        %v5172 = vmul.f32 %v4679, 1.442695
        %v5173 = vpow.pop %v5172
        %v5174 = vmul.f32 %v4680, 1.442695
        %v5175 = vpow.pop %v5174
        %v5176 = vmul.f32 %v4681, 1.442695
        %v5177 = vpow.pop %v5176
        %v5178 = vmul.f32 %v4682, 1.442695
        %v5179 = vpow.pop %v5178
        %v5180 = vmul.f32 %v4683, 1.442695
        %v5181 = vpow.pop %v5180
        %v5182 = vmul.f32 %v4684, 1.442695
        %v5183 = vpow.pop %v5182
        %v5184 = vmul.f32 %v4685, 1.442695
        %v5185 = vpow.pop %v5184
        %v5186 = vmul.f32 %v4686, 1.442695
        %v5187 = vpow.pop %v5186
        %v5188 = vmul.f32 %v4687, 1.442695
        %v5189 = vpow.pop %v5188
        %v5190 = vmul.f32 %v4688, 1.442695
        %v5191 = vpow.pop %v5190
        %v5192 = vmul.f32 %v4689, 1.442695
        %v5193 = vpow.pop %v5192
        %v5194 = vmul.f32 %v4690, 1.442695
        %v5195 = vpow.pop %v5194
        %v5196 = vmul.f32 %v4691, 1.442695
        %v5197 = vpow.pop %v5196
        %v5198 = vmul.f32 %v4692, 1.442695
        %v5199 = vpow.pop %v5198
        %v5200 = vmul.f32 %v4693, 1.442695
        %v5201 = vpow.pop %v5200
        %v5202 = vmul.f32 %v4694, 1.442695
        %v5203 = vpow.pop %v5202
        %v5204 = vmul.f32 %v4695, 1.442695
        %v5205 = vpow.pop %v5204
        %v5206 = vmul.f32 %v4696, 1.442695
        %v5207 = vpow.pop %v5206
        %v5208 = vmul.f32 %v4697, 1.442695
        %v5209 = vpow.pop %v5208
        %v5210 = vmul.f32 %v4698, 1.442695
        %v5211 = vpow.pop %v5210
        %v5212 = vmul.f32 %v4699, 1.442695
        %v5213 = vpow.pop %v5212
        %v5214 = vmul.f32 %v4700, 1.442695
        %v5215 = vpow.pop %v5214
        %v5216 = vmul.f32 %v4701, 1.442695
        %v5217 = vpow.pop %v5216
        %v5218 = vmul.f32 %v4702, 1.442695
        %v5219 = vpow.pop %v5218
        %v5220 = vmul.f32 %v4703, 1.442695
        %v5221 = vpow.pop %v5220
        %v5222 = vmul.f32 %v4704, 1.442695
        %v5223 = vpow.pop %v5222
        %v5224 = vmul.f32 %v4705, 1.442695
        %v5225 = vpow.pop %v5224
        %v5226 = vmul.f32 %v4706, 1.442695
        %v5227 = vpow.pop %v5226
        %v5228 = vmul.f32 %v4707, 1.442695
        %v5229 = vpow.pop %v5228
        %v5230 = vmul.f32 %v4708, 1.442695
        %v5231 = vpow.pop %v5230
        %v5232 = vmul.f32 %v4709, 1.442695
        %v5233 = vpow.pop %v5232
        %v5234 = vmul.f32 %v4710, 1.442695
        %v5235 = vpow.pop %v5234
        %v5236 = vmul.f32 %v4711, 1.442695
        %v5237 = vpow.pop %v5236
        %v5238 = vmul.f32 %v4712, 1.442695
        %v5239 = vpow.pop %v5238
        %v5240 = vmul.f32 %v4713, 1.442695
        %v5241 = vpow.pop %v5240
        %v5242 = vmul.f32 %v4714, 1.442695
        %v5243 = vpow.pop %v5242
        %v5244 = vmul.f32 %v4715, 1.442695
        %v5245 = vpow.pop %v5244
        %v5246 = vmul.f32 %v4716, 1.442695
        %v5247 = vpow.pop %v5246
        %v5248 = vmul.f32 %v4717, 1.442695
        %v5249 = vpow.pop %v5248
        %v5250 = vmul.f32 %v4718, 1.442695
        %v5251 = vpow.pop %v5250
        %v5252 = vmul.f32 %v4719, 1.442695
        %v5253 = vpow.pop %v5252
        %v5254 = vmul.f32 %v4720, 1.442695
        %v5255 = vpow.pop %v5254
        %v5256 = vmul.f32 %v4721, 1.442695
        %v5257 = vpow.pop %v5256
        %v5258 = vmul.f32 %v4722, 1.442695
        %v5259 = vpow.pop %v5258
        %v5260 = vmul.f32 %v4723, 1.442695
        %v5261 = vpow.pop %v5260
        %v5262 = vmul.f32 %v4724, 1.442695
        %v5263 = vpow.pop %v5262
        %v5264 = vmul.f32 %v4725, 1.442695
        %v5265 = vpow.pop %v5264
        %v5266 = vmul.f32 %v4726, 1.442695
        %v5267 = vpow.pop %v5266
        %v5268 = vmul.f32 %v4727, 1.442695
        %v5269 = vpow.pop %v5268
        %v5270 = vmul.f32 %v4728, 1.442695
        %v5271 = vpow.pop %v5270
        %v5272 = vmul.f32 %v4729, 1.442695
        %v5273 = vpow.pop %v5272
        %v5274 = vmul.f32 %v4730, 1.442695
        %v5275 = vpow.pop %v5274
        %v5276 = vmul.f32 %v4731, 1.442695
        %v5277 = vpow.pop %v5276
        %v5278 = vmul.f32 %v4732, 1.442695
        %v5279 = vpow.pop %v5278
        %v5280 = vmul.f32 %v4733, 1.442695
        %v5281 = vpow.pop %v5280
        %v5282 = vmul.f32 %v4734, 1.442695
        %v5283 = vpow.pop %v5282
        %v5284 = vmul.f32 %v4735, 1.442695
        %v5285 = vpow.pop %v5284
        %v5286 = vmul.f32 %v4736, 1.442695
        %v5287 = vpow.pop %v5286
        %v5288 = vmul.f32 %v4737, 1.442695
        %v5289 = vpow.pop %v5288
        %v5290 = vmul.f32 %v4738, 1.442695
        %v5291 = vpow.pop %v5290
        %v5292 = vmul.f32 %v4739, 1.442695
        %v5293 = vpow.pop %v5292
        %v5294 = vmul.f32 %v4740, 1.442695
        %v5295 = vpow.pop %v5294
        %v5296 = vmul.f32 %v4741, 1.442695
        %v5297 = vpow.pop %v5296
        %v5298 = vmul.f32 %v4742, 1.442695
        %v5299 = vpow.pop %v5298
        %v5300 = vmul.f32 %v4743, 1.442695
        %v5301 = vpow.pop %v5300
        %v5302 = vmul.f32 %v4744, 1.442695
        %v5303 = vpow.pop %v5302
        %v5304 = vmul.f32 %v4745, 1.442695
        %v5305 = vpow.pop %v5304
        %v5306 = vmul.f32 %v4746, 1.442695
        %v5307 = vpow.pop %v5306
        %v5308 = vmul.f32 %v4747, 1.442695
        %v5309 = vpow.pop %v5308
        %v5310 = vmul.f32 %v4748, 1.442695
        %v5311 = vpow.pop %v5310
        %v5312 = vmul.f32 %v4749, 1.442695
        %v5313 = vpow.pop %v5312
        %v5314 = vmul.f32 %v4750, 1.442695
        %v5315 = vpow.pop %v5314
        %v5316 = vmul.f32 %v4751, 1.442695
        %v5317 = vpow.pop %v5316
        %v5318 = vmul.f32 %v4752, 1.442695
        %v5319 = vpow.pop %v5318
        %v5320 = vmul.f32 %v4753, 1.442695
        %v5321 = vpow.pop %v5320
        %v5322 = vmul.f32 %v4754, 1.442695
        %v5323 = vpow.pop %v5322
        %v5324 = vmul.f32 %v4755, 1.442695
        %v5325 = vpow.pop %v5324
        %v5326 = vmul.f32 %v4756, 1.442695
        %v5327 = vpow.pop %v5326
        %v5328 = vmul.f32 %v4757, 1.442695
        %v5329 = vpow.pop %v5328
        %v5330 = vmul.f32 %v4758, 1.442695
        %v5331 = vpow.pop %v5330
        %v5332 = vmul.f32 %v4759, 1.442695
        %v5333 = vpow.pop %v5332
        %v5334 = vmul.f32 %v4760, 1.442695
        %v5335 = vpow.pop %v5334
        %v5336 = vmul.f32 %v4761, 1.442695
        %v5337 = vpow.pop %v5336
        %v5338 = vmul.f32 %v4762, 1.442695
        %v5339 = vpow.pop %v5338
        %v5340 = vmul.f32 %v4763, 1.442695
        %v5341 = vpow.pop %v5340
        %v5342 = vmul.f32 %v4764, 1.442695
        %v5343 = vpow.pop %v5342
        %v5344 = vmul.f32 %v4765, 1.442695
        %v5345 = vpow.pop %v5344
        %v5346 = vmul.f32 %v4766, 1.442695
        %v5347 = vpow.pop %v5346
        %v5348 = vmul.f32 %v4767, 1.442695
        %v5349 = vpow.pop %v5348
        %v5350 = vmul.f32 %v4768, 1.442695
        %v5351 = vpow.pop %v5350
        %v5352 = vmul.f32 %v4769, 1.442695
        %v5353 = vpow.pop %v5352
        %v5354 = vmul.f32 %v4770, 1.442695
        %v5355 = vpow.pop %v5354
        %v5356 = vmul.f32 %v4771, 1.442695
        %v5357 = vpow.pop %v5356
        %v5358 = vmul.f32 %v4772, 1.442695
        %v5359 = vpow.pop %v5358
        %v5360 = vmul.f32 %v4773, 1.442695
        %v5361 = vpow.pop %v5360
        %v5362 = vmul.f32 %v4774, 1.442695
        %v5363 = vpow.pop %v5362
        %v5364 = vmul.f32 %v4775, 1.442695
        %v5365 = vpow.pop %v5364
        %v5366 = vmul.f32 %v4776, 1.442695
        %v5367 = vpow.pop %v5366
        %v5368 = vmul.f32 %v4777, 1.442695
        %v5369 = vpow.pop %v5368
        %v5370 = vmul.f32 %v4778, 1.442695
        %v5371 = vpow.pop %v5370
        %v5372 = vmul.f32 %v4779, 1.442695
        %v5373 = vpow.pop %v5372
        %v5374 = vmul.f32 %v4780, 1.442695
        %v5375 = vpow.pop %v5374
        %v5376 = vmul.f32 %v4781, 1.442695
        %v5377 = vpow.pop %v5376
        %v5378 = vmul.f32 %v4782, 1.442695
        %v5379 = vpow.pop %v5378
        %v5380 = vmul.f32 %v4783, 1.442695
        %v5381 = vpow.pop %v5380
        %v5382 = vmul.f32 %v4784, 1.442695
        %v5383 = vpow.pop %v5382
        %v5384 = vmul.f32 %v4785, 1.442695
        %v5385 = vpow.pop %v5384
        %v5386 = vmul.f32 %v4786, 1.442695
        %v5387 = vpow.pop %v5386
        %v5388 = vmul.f32 %v4787, 1.442695
        %v5389 = vpow.pop %v5388
        %v5390 = vmul.f32 %v4788, 1.442695
        %v5391 = vpow.pop %v5390
        %v5392 = vmul.f32 %v4789, 1.442695
        %v5393 = vpow.pop %v5392
        %v5394 = vmul.f32 %v4790, 1.442695
        %v5395 = vpow.pop %v5394
        %v5396 = vmul.f32 %v4791, 1.442695
        %v5397 = vpow.pop %v5396
        %v5398 = vmul.f32 %v4792, 1.442695
        %v5399 = vpow.pop %v5398
        %v5400 = vmul.f32 %v4793, 1.442695
        %v5401 = vpow.pop %v5400
        %v5402 = vmul.f32 %v4794, 1.442695
        %v5403 = vpow.pop %v5402
        %v5404 = vmul.f32 %v4795, 1.442695
        %v5405 = vpow.pop %v5404
        %v5406 = vmul.f32 %v4796, 1.442695
        %v5407 = vpow.pop %v5406
        %v5408 = vmul.f32 %v4797, 1.442695
        %v5409 = vpow.pop %v5408
        %v5410 = vmul.f32 %v4798, 1.442695
        %v5411 = vpow.pop %v5410
        %v5412 = vmul.f32 %v4799, 1.442695
        %v5413 = vpow.pop %v5412
        %v5414 = vmul.f32 %v4800, 1.442695
        %v5415 = vpow.pop %v5414
        %v5416 = vmul.f32 %v4801, 1.442695
        %v5417 = vpow.pop %v5416
        %v5418 = vmul.f32 %v4802, 1.442695
        %v5419 = vpow.pop %v5418
        %v5420 = vmul.f32 %v4803, 1.442695
        %v5421 = vpow.pop %v5420
        %v5422 = vmul.f32 %v4804, 1.442695
        %v5423 = vpow.pop %v5422
        %v5424 = vmul.f32 %v4805, 1.442695
        %v5425 = vpow.pop %v5424
        %v5426 = vmul.f32 %v4806, 1.442695
        %v5427 = vpow.pop %v5426
        %v5428 = vmul.f32 %v4807, 1.442695
        %v5429 = vpow.pop %v5428
        %v5430 = vmul.f32 %v4808, 1.442695
        %v5431 = vpow.pop %v5430
        %v5432 = vmul.f32 %v4809, 1.442695
        %v5433 = vpow.pop %v5432
        %v5434 = vmul.f32 %v4810, 1.442695
        %v5435 = vpow.pop %v5434
        %v5436 = vmul.f32 %v4811, 1.442695
        %v5437 = vpow.pop %v5436
        %v5438 = vmul.f32 %v4812, 1.442695
        %v5439 = vpow.pop %v5438
        %v5440 = vmul.f32 %v4813, 1.442695
        %v5441 = vpow.pop %v5440
        %v5442 = vmul.f32 %v4814, 1.442695
        %v5443 = vpow.pop %v5442
        %v5444 = vmul.f32 %v4815, 1.442695
        %v5445 = vpow.pop %v5444
        %v5446 = vmul.f32 %v4816, 1.442695
        %v5447 = vpow.pop %v5446
        %v5448 = vmul.f32 %v4817, 1.442695
        %v5449 = vpow.pop %v5448
        %v5450 = vmul.f32 %v4818, 1.442695
        %v5451 = vpow.pop %v5450
        %v5452 = vmul.f32 %v4819, 1.442695
        %v5453 = vpow.pop %v5452
        %v5454 = vmul.f32 %v4820, 1.442695
        %v5455 = vpow.pop %v5454
        %v5456 = vmul.f32 %v4821, 1.442695
        %v5457 = vpow.pop %v5456
        %v5458 = vmul.f32 %v4822, 1.442695
        %v5459 = vpow.pop %v5458
        %v5460 = vmul.f32 %v4823, 1.442695
        %v5461 = vpow.pop %v5460
        %v5462 = vmul.f32 %v4824, 1.442695
        %v5463 = vpow.pop %v5462
        %v5464 = vmul.f32 %v4825, 1.442695
        %v5465 = vpow.pop %v5464
        %v5466 = vmul.f32 %v4826, 1.442695
        %v5467 = vpow.pop %v5466
        %v5468 = vmul.f32 %v4827, 1.442695
        %v5469 = vpow.pop %v5468
        %v5470 = vmul.f32 %v4828, 1.442695
        %v5471 = vpow.pop %v5470
        %v5472 = vmul.f32 %v4829, 1.442695
        %v5473 = vpow.pop %v5472
        %v5474 = vmul.f32 %v4830, 1.442695
        %v5475 = vpow.pop %v5474
        %v5476 = vmul.f32 %v4831, 1.442695
        %v5477 = vpow.pop %v5476
        %v5478 = vmul.f32 %v4832, 1.442695
        %v5479 = vpow.pop %v5478
        %v5480 = vmul.f32 %v4833, 1.442695
        %v5481 = vpow.pop %v5480
        %v5482 = vmul.f32 %v4834, 1.442695
        %v5483 = vpow.pop %v5482
        %v5484 = vmul.f32 %v4835, 1.442695
        %v5485 = vpow.pop %v5484
        %v5486 = vmul.f32 %v4836, 1.442695
        %v5487 = vpow.pop %v5486
        %v5488 = vmul.f32 %v4837, 1.442695
        %v5489 = vpow.pop %v5488
        %v5490 = vmul.f32 %v4838, 1.442695
        %v5491 = vpow.pop %v5490
        %v5492 = vmul.f32 %v4839, 1.442695
        %v5493 = vpow.pop %v5492
        %v5494 = vmul.f32 %v4840, 1.442695
        %v5495 = vpow.pop %v5494
        %v5496 = vmul.f32 %v4841, 1.442695
        %v5497 = vpow.pop %v5496
        %v5498 = vmul.f32 %v4842, 1.442695
        %v5499 = vpow.pop %v5498
        %v5500 = vmul.f32 %v4843, 1.442695
        %v5501 = vpow.pop %v5500
        %v5502 = vmul.f32 %v4844, 1.442695
        %v5503 = vpow.pop %v5502
        %v5504 = vmul.f32 %v4845, 1.442695
        %v5505 = vpow.pop %v5504
        %v5506 = vmul.f32 %v4846, 1.442695
        %v5507 = vpow.pop %v5506
        %v5508 = vmul.f32 %v4847, 1.442695
        %v5509 = vpow.pop %v5508
        %v5510 = vmul.f32 %v4848, 1.442695
        %v5511 = vpow.pop %v5510
        %v5512 = vmul.f32 %v4849, 1.442695
        %v5513 = vpow.pop %v5512
        %v5514 = vmul.f32 %v4850, 1.442695
        %v5515 = vpow.pop %v5514
        %v5516 = vmul.f32 %v4851, 1.442695
        %v5517 = vpow.pop %v5516
        %v5518 = vmul.f32 %v4852, 1.442695
        %v5519 = vpow.pop %v5518
        %v5520 = vmul.f32 %v4853, 1.442695
        %v5521 = vpow.pop %v5520
        %v5522 = vmul.f32 %v4854, 1.442695
        %v5523 = vpow.pop %v5522
        %v5524 = vmul.f32 %v4855, 1.442695
        %v5525 = vpow.pop %v5524
        %v5526 = vmul.f32 %v4856, 1.442695
        %v5527 = vpow.pop %v5526
        %v5528 = vmul.f32 %v4857, 1.442695
        %v5529 = vpow.pop %v5528
        %v5530 = vmul.f32 %v4858, 1.442695
        %v5531 = vpow.pop %v5530
        %v5532 = vmul.f32 %v4859, 1.442695
        %v5533 = vpow.pop %v5532
        %v5534 = vmul.f32 %v4860, 1.442695
        %v5535 = vpow.pop %v5534
        %v5536 = vmul.f32 %v4861, 1.442695
        %v5537 = vpow.pop %v5536
        %v5538 = vmul.f32 %v4862, 1.442695
        %v5539 = vpow.pop %v5538
        %v5540 = vmul.f32 %v4863, 1.442695
        %v5541 = vpow.pop %v5540
        %v5542 = vmul.f32 %v4864, 1.442695
        %v5543 = vpow.pop %v5542
        %v5544 = vmul.f32 %v4865, 1.442695
        %v5545 = vpow.pop %v5544
        %v5546 = vmul.f32 %v4866, 1.442695
        %v5547 = vpow.pop %v5546
        %v5548 = vmul.f32 %v4867, 1.442695
        %v5549 = vpow.pop %v5548
        %v5550 = vmul.f32 %v4868, 1.442695
        %v5551 = vpow.pop %v5550
        %v5552 = vmul.f32 %v4869, 1.442695
        %v5553 = vpow.pop %v5552
        %v5554 = vmul.f32 %v4870, 1.442695
        %v5555 = vpow.pop %v5554
        %v5556 = vmul.f32 %v4871, 1.442695
        %v5557 = vpow.pop %v5556
        %v5558 = vmul.f32 %v4872, 1.442695
        %v5559 = vpow.pop %v5558
        %v5560 = vmul.f32 %v4873, 1.442695
        %v5561 = vpow.pop %v5560
        %v5562 = vmul.f32 %v4874, 1.442695
        %v5563 = vpow.pop %v5562
        %v5564 = vmul.f32 %v4875, 1.442695
        %v5565 = vpow.pop %v5564
        %v5566 = vmul.f32 %v4876, 1.442695
        %v5567 = vpow.pop %v5566
        %v5568 = vmul.f32 %v4877, 1.442695
        %v5569 = vpow.pop %v5568
        %v5570 = vmul.f32 %v4878, 1.442695
        %v5571 = vpow.pop %v5570
        %v5572 = vmul.f32 %v4879, 1.442695
        %v5573 = vpow.pop %v5572
        %v5574 = vmul.f32 %v4880, 1.442695
        %v5575 = vpow.pop %v5574
        %v5576 = vmul.f32 %v4881, 1.442695
        %v5577 = vpow.pop %v5576
        %v5578 = vmul.f32 %v4882, 1.442695
        %v5579 = vpow.pop %v5578
        %v5580 = vmul.f32 %v4883, 1.442695
        %v5581 = vpow.pop %v5580
        %v5582 = vmul.f32 %v4884, 1.442695
        %v5583 = vpow.pop %v5582
        %v5584 = vmul.f32 %v4885, 1.442695
        %v5585 = vpow.pop %v5584
        %v5586 = vmul.f32 %v4886, 1.442695
        %v5587 = vpow.pop %v5586
        %v5588 = vmul.f32 %v4887, 1.442695
        %v5589 = vpow.pop %v5588
        %v5590 = vmul.f32 %v4888, 1.442695
        %v5591 = vpow.pop %v5590
        %v5592 = vmul.f32 %v4889, 1.442695
        %v5593 = vpow.pop %v5592
        %v5594 = vmul.f32 %v4890, 1.442695
        %v5595 = vpow.pop %v5594
        %v5596 = vmul.f32 %v4891, 1.442695
        %v5597 = vpow.pop %v5596
        %v5598 = vmul.f32 %v4892, 1.442695
        %v5599 = vpow.pop %v5598
        %v5600 = vmul.f32 %v4893, 1.442695
        %v5601 = vpow.pop %v5600
        %v5602 = vmul.f32 %v4894, 1.442695
        %v5603 = vpow.pop %v5602
        %v5604 = vmul.f32 %v4895, 1.442695
        %v5605 = vpow.pop %v5604
        %v5606 = vmul.f32 %v4896, 1.442695
        %v5607 = vpow.pop %v5606
        %v5608 = vmul.f32 %v4897, 1.442695
        %v5609 = vpow.pop %v5608
        %v5610 = vmul.f32 %v4898, 1.442695
        %v5611 = vpow.pop %v5610
        %v5612 = vmul.f32 %v4899, 1.442695
        %v5613 = vpow.pop %v5612
        %v5614 = vmul.f32 %v4900, 1.442695
        %v5615 = vpow.pop %v5614
        %v5616 = vmul.f32 %v4901, 1.442695
        %v5617 = vpow.pop %v5616
        %v5618 = vmul.f32 %v4902, 1.442695
        %v5619 = vpow.pop %v5618
        %v5620 = vmul.f32 %v4903, 1.442695
        %v5621 = vpow.pop %v5620
        %v5622 = vmul.f32 %v4904, 1.442695
        %v5623 = vpow.pop %v5622
        %v5624 = vmul.f32 %v4905, 1.442695
        %v5625 = vpow.pop %v5624
        %v5626 = vmul.f32 %v4906, 1.442695
        %v5627 = vpow.pop %v5626
        %v5628 = vmul.f32 %v4907, 1.442695
        %v5629 = vpow.pop %v5628
        %v5630 = vmul.f32 %v4908, 1.442695
        %v5631 = vpow.pop %v5630
        %v5632 = vmul.f32 %v4909, 1.442695
        %v5633 = vpow.pop %v5632
        %v5634 = vmul.f32 %v4910, 1.442695
        %v5635 = vpow.pop %v5634
        %v5636 = vmul.f32 %v4911, 1.442695
        %v5637 = vpow.pop %v5636
        %v5638 = vmul.f32 %v4912, 1.442695
        %v5639 = vpow.pop %v5638
        %v5640 = vmul.f32 %v4913, 1.442695
        %v5641 = vpow.pop %v5640
        %v5642 = vmul.f32 %v4914, 1.442695
        %v5643 = vpow.pop %v5642
        %v5644 = vmul.f32 %v4915, 1.442695
        %v5645 = vpow.pop %v5644
        %v5646 = vmul.f32 %v4916, 1.442695
        %v5647 = vpow.pop %v5646
        %v5648 = vmul.f32 %v4917, 1.442695
        %v5649 = vpow.pop %v5648
        %v5650 = vmul.f32 %v4918, 1.442695
        %v5651 = vpow.pop %v5650
        %v5652 = vmul.f32 %v4919, 1.442695
        %v5653 = vpow.pop %v5652
        %v5654 = vmul.f32 %v4920, 1.442695
        %v5655 = vpow.pop %v5654
        %v5656 = vmul.f32 %v4921, 1.442695
        %v5657 = vpow.pop %v5656
        %v5658 = vmul.f32 %v4922, 1.442695
        %v5659 = vpow.pop %v5658
        %v5660 = vmul.f32 %v4923, 1.442695
        %v5661 = vpow.pop %v5660
        %v5662 = vmul.f32 %v4924, 1.442695
        %v5663 = vpow.pop %v5662
        %v5664 = vmul.f32 %v4925, 1.442695
        %v5665 = vpow.pop %v5664
        %v5666 = vmul.f32 %v4926, 1.442695
        %v5667 = vpow.pop %v5666
        %v5668 = vmul.f32 %v4927, 1.442695
        %v5669 = vpow.pop %v5668
        %v5670 = vmul.f32 %v4928, 1.442695
        %v5671 = vpow.pop %v5670
        %v5672 = vmul.f32 %v4929, 1.442695
        %v5673 = vpow.pop %v5672
        %v5674 = vmul.f32 %v4930, 1.442695
        %v5675 = vpow.pop %v5674
        %v5676 = vmul.f32 %v4931, 1.442695
        %v5677 = vpow.pop %v5676
        %v5678 = vmul.f32 %v4932, 1.442695
        %v5679 = vpow.pop %v5678
        %v5680 = vmul.f32 %v4933, 1.442695
        %v5681 = vpow.pop %v5680
        %v5682 = vmul.f32 %v4934, 1.442695
        %v5683 = vpow.pop %v5682
        %v5684 = vmul.f32 %v4935, 1.442695
        %v5685 = vpow.pop %v5684
        %v5686 = vmul.f32 %v4936, 1.442695
        %v5687 = vpow.pop %v5686
        %v5688 = vmul.f32 %v4937, 1.442695
        %v5689 = vpow.pop %v5688
        %v5690 = vmul.f32 %v4938, 1.442695
        %v5691 = vpow.pop %v5690
        %v5692 = vmul.f32 %v4939, 1.442695
        %v5693 = vpow.pop %v5692
        %v5694 = vmul.f32 %v4940, 1.442695
        %v5695 = vpow.pop %v5694
        %v5696 = vmul.f32 %v4941, 1.442695
        %v5697 = vpow.pop %v5696
        %v5698 = vmul.f32 %v4942, 1.442695
        %v5699 = vpow.pop %v5698
        %v5700 = vmul.f32 %v4943, 1.442695
        %v5701 = vpow.pop %v5700
        %v5702 = vmul.f32 %v4944, 1.442695
        %v5703 = vpow.pop %v5702
        %v5704 = vmul.f32 %v4945, 1.442695
        %v5705 = vpow.pop %v5704
        %v5706 = vmul.f32 %v4946, 1.442695
        %v5707 = vpow.pop %v5706
        %v5708 = vmul.f32 %v4947, 1.442695
        %v5709 = vpow.pop %v5708
        %v5710 = vmul.f32 %v4948, 1.442695
        %v5711 = vpow.pop %v5710
        %v5712 = vmul.f32 %v4949, 1.442695
        %v5713 = vpow.pop %v5712
        %v5714 = vmul.f32 %v4950, 1.442695
        %v5715 = vpow.pop %v5714
        %v5716 = vmul.f32 %v4951, 1.442695
        %v5717 = vpow.pop %v5716
        %v5718 = vmul.f32 %v4952, 1.442695
        %v5719 = vpow.pop %v5718
        %v5720 = vmul.f32 %v4953, 1.442695
        %v5721 = vpow.pop %v5720
        %v5722 = vmul.f32 %v4954, 1.442695
        %v5723 = vpow.pop %v5722
        %v5724 = vmul.f32 %v4955, 1.442695
        %v5725 = vpow.pop %v5724
        %v5726 = vmul.f32 %v4956, 1.442695
        %v5727 = vpow.pop %v5726
        %v5728 = vmul.f32 %v4957, 1.442695
        %v5729 = vpow.pop %v5728
        %v5730 = vmul.f32 %v4958, 1.442695
        %v5731 = vpow.pop %v5730
        %v5732 = vmul.f32 %v4959, 1.442695
        %v5733 = vpow.pop %v5732
        %v5734 = vmul.f32 %v4960, 1.442695
        %v5735 = vpow.pop %v5734
        %v5736 = vmul.f32 %v4961, 1.442695
        %v5737 = vpow.pop %v5736
        %v5738 = vmul.f32 %v4962, 1.442695
        %v5739 = vpow.pop %v5738
        %v5740 = vmul.f32 %v4963, 1.442695
        %v5741 = vpow.pop %v5740
        %v5742 = vmul.f32 %v4964, 1.442695
        %v5743 = vpow.pop %v5742
        %v5744 = vmul.f32 %v4965, 1.442695
        %v5745 = vpow.pop %v5744
        %v5746 = vmul.f32 %v4966, 1.442695
        %v5747 = vpow.pop %v5746
        %v5748 = vmul.f32 %v4967, 1.442695
        %v5749 = vpow.pop %v5748
        %v5750 = vmul.f32 %v4968, 1.442695
        %v5751 = vpow.pop %v5750
        %v5752 = vmul.f32 %v4969, 1.442695
        %v5753 = vpow.pop %v5752
        %v5754 = vmul.f32 %v4970, 1.442695
        %v5755 = vpow.pop %v5754
        %v5756 = vmul.f32 %v4971, 1.442695
        %v5757 = vpow.pop %v5756
        %v5758 = vmul.f32 %v4972, 1.442695
        %v5759 = vpow.pop %v5758
        %v5760 = vmul.f32 %v4973, 1.442695
        %v5761 = vpow.pop %v5760
        %v5762 = vmul.f32 %v4974, 1.442695
        %v5763 = vpow.pop %v5762
        %v5764 = vmul.f32 %v4975, 1.442695
        %v5765 = vpow.pop %v5764
        %v5766 = vmul.f32 %v4976, 1.442695
        %v5767 = vpow.pop %v5766
        %v5768 = vmul.f32 %v4977, 1.442695
        %v5769 = vpow.pop %v5768
        %v5770 = vmul.f32 %v4978, 1.442695
        %v5771 = vpow.pop %v5770
        %v5772 = vmul.f32 %v4979, 1.442695
        %v5773 = vpow.pop %v5772
        %v5774 = vmul.f32 %v4980, 1.442695
        %v5775 = vpow.pop %v5774
        %v5776 = vmul.f32 %v4981, 1.442695
        %v5777 = vpow.pop %v5776
        %v5778 = vmul.f32 %v4982, 1.442695
        %v5779 = vpow.pop %v5778
        %v5780 = vmul.f32 %v4983, 1.442695
        %v5781 = vpow.pop %v5780
        %v5782 = vmul.f32 %v4984, 1.442695
        %v5783 = vpow.pop %v5782
        %v5784 = vmul.f32 %v4985, 1.442695
        %v5785 = vpow.pop %v5784
        %v5786 = vadd.f32 %v4987, 1.0
        %v5787 = vadd.f32 %v4989, 1.0
        %v5788 = vadd.f32 %v4991, 1.0
        %v5789 = vadd.f32 %v4993, 1.0
        %v5790 = vadd.f32 %v4995, 1.0
        %v5791 = vadd.f32 %v4997, 1.0
        %v5792 = vadd.f32 %v4999, 1.0
        %v5793 = vadd.f32 %v5001, 1.0
        %v5794 = vadd.f32 %v5003, 1.0
        %v5795 = vadd.f32 %v5005, 1.0
        %v5796 = vadd.f32 %v5007, 1.0
        %v5797 = vadd.f32 %v5009, 1.0
        %v5798 = vadd.f32 %v5011, 1.0
        %v5799 = vadd.f32 %v5013, 1.0
        %v5800 = vadd.f32 %v5015, 1.0
        %v5801 = vadd.f32 %v5017, 1.0
        %v5802 = vadd.f32 %v5019, 1.0
        %v5803 = vadd.f32 %v5021, 1.0
        %v5804 = vadd.f32 %v5023, 1.0
        %v5805 = vadd.f32 %v5025, 1.0
        %v5806 = vadd.f32 %v5027, 1.0
        %v5807 = vadd.f32 %v5029, 1.0
        %v5808 = vadd.f32 %v5031, 1.0
        %v5809 = vadd.f32 %v5033, 1.0
        %v5810 = vadd.f32 %v5035, 1.0
        %v5811 = vadd.f32 %v5037, 1.0
        %v5812 = vadd.f32 %v5039, 1.0
        %v5813 = vadd.f32 %v5041, 1.0
        %v5814 = vadd.f32 %v5043, 1.0
        %v5815 = vadd.f32 %v5045, 1.0
        %v5816 = vadd.f32 %v5047, 1.0
        %v5817 = vadd.f32 %v5049, 1.0
        %v5818 = vadd.f32 %v5051, 1.0
        %v5819 = vadd.f32 %v5053, 1.0
        %v5820 = vadd.f32 %v5055, 1.0
        %v5821 = vadd.f32 %v5057, 1.0
        %v5822 = vadd.f32 %v5059, 1.0
        %v5823 = vadd.f32 %v5061, 1.0
        %v5824 = vadd.f32 %v5063, 1.0
        %v5825 = vadd.f32 %v5065, 1.0
        %v5826 = vadd.f32 %v5067, 1.0
        %v5827 = vadd.f32 %v5069, 1.0
        %v5828 = vadd.f32 %v5071, 1.0
        %v5829 = vadd.f32 %v5073, 1.0
        %v5830 = vadd.f32 %v5075, 1.0
        %v5831 = vadd.f32 %v5077, 1.0
        %v5832 = vadd.f32 %v5079, 1.0
        %v5833 = vadd.f32 %v5081, 1.0
        %v5834 = vadd.f32 %v5083, 1.0
        %v5835 = vadd.f32 %v5085, 1.0
        %v5836 = vadd.f32 %v5087, 1.0
        %v5837 = vadd.f32 %v5089, 1.0
        %v5838 = vadd.f32 %v5091, 1.0
        %v5839 = vadd.f32 %v5093, 1.0
        %v5840 = vadd.f32 %v5095, 1.0
        %v5841 = vadd.f32 %v5097, 1.0
        %v5842 = vadd.f32 %v5099, 1.0
        %v5843 = vadd.f32 %v5101, 1.0
        %v5844 = vadd.f32 %v5103, 1.0
        %v5845 = vadd.f32 %v5105, 1.0
        %v5846 = vadd.f32 %v5107, 1.0
        %v5847 = vadd.f32 %v5109, 1.0
        %v5848 = vadd.f32 %v5111, 1.0
        %v5849 = vadd.f32 %v5113, 1.0
        %v5850 = vadd.f32 %v5115, 1.0
        %v5851 = vadd.f32 %v5117, 1.0
        %v5852 = vadd.f32 %v5119, 1.0
        %v5853 = vadd.f32 %v5121, 1.0
        %v5854 = vadd.f32 %v5123, 1.0
        %v5855 = vadd.f32 %v5125, 1.0
        %v5856 = vadd.f32 %v5127, 1.0
        %v5857 = vadd.f32 %v5129, 1.0
        %v5858 = vadd.f32 %v5131, 1.0
        %v5859 = vadd.f32 %v5133, 1.0
        %v5860 = vadd.f32 %v5135, 1.0
        %v5861 = vadd.f32 %v5137, 1.0
        %v5862 = vadd.f32 %v5139, 1.0
        %v5863 = vadd.f32 %v5141, 1.0
        %v5864 = vadd.f32 %v5143, 1.0
        %v5865 = vadd.f32 %v5145, 1.0
        %v5866 = vadd.f32 %v5147, 1.0
        %v5867 = vadd.f32 %v5149, 1.0
        %v5868 = vadd.f32 %v5151, 1.0
        %v5869 = vadd.f32 %v5153, 1.0
        %v5870 = vadd.f32 %v5155, 1.0
        %v5871 = vadd.f32 %v5157, 1.0
        %v5872 = vadd.f32 %v5159, 1.0
        %v5873 = vadd.f32 %v5161, 1.0
        %v5874 = vadd.f32 %v5163, 1.0
        %v5875 = vadd.f32 %v5165, 1.0
        %v5876 = vadd.f32 %v5167, 1.0
        %v5877 = vadd.f32 %v5169, 1.0
        %v5878 = vadd.f32 %v5171, 1.0
        %v5879 = vadd.f32 %v5173, 1.0
        %v5880 = vadd.f32 %v5175, 1.0
        %v5881 = vadd.f32 %v5177, 1.0
        %v5882 = vadd.f32 %v5179, 1.0
        %v5883 = vadd.f32 %v5181, 1.0
        %v5884 = vadd.f32 %v5183, 1.0
        %v5885 = vadd.f32 %v5185, 1.0
        %v5886 = vadd.f32 %v5187, 1.0
        %v5887 = vadd.f32 %v5189, 1.0
        %v5888 = vadd.f32 %v5191, 1.0
        %v5889 = vadd.f32 %v5193, 1.0
        %v5890 = vadd.f32 %v5195, 1.0
        %v5891 = vadd.f32 %v5197, 1.0
        %v5892 = vadd.f32 %v5199, 1.0
        %v5893 = vadd.f32 %v5201, 1.0
        %v5894 = vadd.f32 %v5203, 1.0
        %v5895 = vadd.f32 %v5205, 1.0
        %v5896 = vadd.f32 %v5207, 1.0
        %v5897 = vadd.f32 %v5209, 1.0
        %v5898 = vadd.f32 %v5211, 1.0
        %v5899 = vadd.f32 %v5213, 1.0
        %v5900 = vadd.f32 %v5215, 1.0
        %v5901 = vadd.f32 %v5217, 1.0
        %v5902 = vadd.f32 %v5219, 1.0
        %v5903 = vadd.f32 %v5221, 1.0
        %v5904 = vadd.f32 %v5223, 1.0
        %v5905 = vadd.f32 %v5225, 1.0
        %v5906 = vadd.f32 %v5227, 1.0
        %v5907 = vadd.f32 %v5229, 1.0
        %v5908 = vadd.f32 %v5231, 1.0
        %v5909 = vadd.f32 %v5233, 1.0
        %v5910 = vadd.f32 %v5235, 1.0
        %v5911 = vadd.f32 %v5237, 1.0
        %v5912 = vadd.f32 %v5239, 1.0
        %v5913 = vadd.f32 %v5241, 1.0
        %v5914 = vadd.f32 %v5243, 1.0
        %v5915 = vadd.f32 %v5245, 1.0
        %v5916 = vadd.f32 %v5247, 1.0
        %v5917 = vadd.f32 %v5249, 1.0
        %v5918 = vadd.f32 %v5251, 1.0
        %v5919 = vadd.f32 %v5253, 1.0
        %v5920 = vadd.f32 %v5255, 1.0
        %v5921 = vadd.f32 %v5257, 1.0
        %v5922 = vadd.f32 %v5259, 1.0
        %v5923 = vadd.f32 %v5261, 1.0
        %v5924 = vadd.f32 %v5263, 1.0
        %v5925 = vadd.f32 %v5265, 1.0
        %v5926 = vadd.f32 %v5267, 1.0
        %v5927 = vadd.f32 %v5269, 1.0
        %v5928 = vadd.f32 %v5271, 1.0
        %v5929 = vadd.f32 %v5273, 1.0
        %v5930 = vadd.f32 %v5275, 1.0
        %v5931 = vadd.f32 %v5277, 1.0
        %v5932 = vadd.f32 %v5279, 1.0
        %v5933 = vadd.f32 %v5281, 1.0
        %v5934 = vadd.f32 %v5283, 1.0
        %v5935 = vadd.f32 %v5285, 1.0
        %v5936 = vadd.f32 %v5287, 1.0
        %v5937 = vadd.f32 %v5289, 1.0
        %v5938 = vadd.f32 %v5291, 1.0
        %v5939 = vadd.f32 %v5293, 1.0
        %v5940 = vadd.f32 %v5295, 1.0
        %v5941 = vadd.f32 %v5297, 1.0
        %v5942 = vadd.f32 %v5299, 1.0
        %v5943 = vadd.f32 %v5301, 1.0
        %v5944 = vadd.f32 %v5303, 1.0
        %v5945 = vadd.f32 %v5305, 1.0
        %v5946 = vadd.f32 %v5307, 1.0
        %v5947 = vadd.f32 %v5309, 1.0
        %v5948 = vadd.f32 %v5311, 1.0
        %v5949 = vadd.f32 %v5313, 1.0
        %v5950 = vadd.f32 %v5315, 1.0
        %v5951 = vadd.f32 %v5317, 1.0
        %v5952 = vadd.f32 %v5319, 1.0
        %v5953 = vadd.f32 %v5321, 1.0
        %v5954 = vadd.f32 %v5323, 1.0
        %v5955 = vadd.f32 %v5325, 1.0
        %v5956 = vadd.f32 %v5327, 1.0
        %v5957 = vadd.f32 %v5329, 1.0
        %v5958 = vadd.f32 %v5331, 1.0
        %v5959 = vadd.f32 %v5333, 1.0
        %v5960 = vadd.f32 %v5335, 1.0
        %v5961 = vadd.f32 %v5337, 1.0
        %v5962 = vadd.f32 %v5339, 1.0
        %v5963 = vadd.f32 %v5341, 1.0
        %v5964 = vadd.f32 %v5343, 1.0
        %v5965 = vadd.f32 %v5345, 1.0
        %v5966 = vadd.f32 %v5347, 1.0
        %v5967 = vadd.f32 %v5349, 1.0
        %v5968 = vadd.f32 %v5351, 1.0
        %v5969 = vadd.f32 %v5353, 1.0
        %v5970 = vadd.f32 %v5355, 1.0
        %v5971 = vadd.f32 %v5357, 1.0
        %v5972 = vadd.f32 %v5359, 1.0
        %v5973 = vadd.f32 %v5361, 1.0
        %v5974 = vadd.f32 %v5363, 1.0
        %v5975 = vadd.f32 %v5365, 1.0
        %v5976 = vadd.f32 %v5367, 1.0
        %v5977 = vadd.f32 %v5369, 1.0
        %v5978 = vadd.f32 %v5371, 1.0
        %v5979 = vadd.f32 %v5373, 1.0
        %v5980 = vadd.f32 %v5375, 1.0
        %v5981 = vadd.f32 %v5377, 1.0
        %v5982 = vadd.f32 %v5379, 1.0
        %v5983 = vadd.f32 %v5381, 1.0
        %v5984 = vadd.f32 %v5383, 1.0
        %v5985 = vadd.f32 %v5385, 1.0
        %v5986 = vadd.f32 %v5387, 1.0
        %v5987 = vadd.f32 %v5389, 1.0
        %v5988 = vadd.f32 %v5391, 1.0
        %v5989 = vadd.f32 %v5393, 1.0
        %v5990 = vadd.f32 %v5395, 1.0
        %v5991 = vadd.f32 %v5397, 1.0
        %v5992 = vadd.f32 %v5399, 1.0
        %v5993 = vadd.f32 %v5401, 1.0
        %v5994 = vadd.f32 %v5403, 1.0
        %v5995 = vadd.f32 %v5405, 1.0
        %v5996 = vadd.f32 %v5407, 1.0
        %v5997 = vadd.f32 %v5409, 1.0
        %v5998 = vadd.f32 %v5411, 1.0
        %v5999 = vadd.f32 %v5413, 1.0
        %v6000 = vadd.f32 %v5415, 1.0
        %v6001 = vadd.f32 %v5417, 1.0
        %v6002 = vadd.f32 %v5419, 1.0
        %v6003 = vadd.f32 %v5421, 1.0
        %v6004 = vadd.f32 %v5423, 1.0
        %v6005 = vadd.f32 %v5425, 1.0
        %v6006 = vadd.f32 %v5427, 1.0
        %v6007 = vadd.f32 %v5429, 1.0
        %v6008 = vadd.f32 %v5431, 1.0
        %v6009 = vadd.f32 %v5433, 1.0
        %v6010 = vadd.f32 %v5435, 1.0
        %v6011 = vadd.f32 %v5437, 1.0
        %v6012 = vadd.f32 %v5439, 1.0
        %v6013 = vadd.f32 %v5441, 1.0
        %v6014 = vadd.f32 %v5443, 1.0
        %v6015 = vadd.f32 %v5445, 1.0
        %v6016 = vadd.f32 %v5447, 1.0
        %v6017 = vadd.f32 %v5449, 1.0
        %v6018 = vadd.f32 %v5451, 1.0
        %v6019 = vadd.f32 %v5453, 1.0
        %v6020 = vadd.f32 %v5455, 1.0
        %v6021 = vadd.f32 %v5457, 1.0
        %v6022 = vadd.f32 %v5459, 1.0
        %v6023 = vadd.f32 %v5461, 1.0
        %v6024 = vadd.f32 %v5463, 1.0
        %v6025 = vadd.f32 %v5465, 1.0
        %v6026 = vadd.f32 %v5467, 1.0
        %v6027 = vadd.f32 %v5469, 1.0
        %v6028 = vadd.f32 %v5471, 1.0
        %v6029 = vadd.f32 %v5473, 1.0
        %v6030 = vadd.f32 %v5475, 1.0
        %v6031 = vadd.f32 %v5477, 1.0
        %v6032 = vadd.f32 %v5479, 1.0
        %v6033 = vadd.f32 %v5481, 1.0
        %v6034 = vadd.f32 %v5483, 1.0
        %v6035 = vadd.f32 %v5485, 1.0
        %v6036 = vadd.f32 %v5487, 1.0
        %v6037 = vadd.f32 %v5489, 1.0
        %v6038 = vadd.f32 %v5491, 1.0
        %v6039 = vadd.f32 %v5493, 1.0
        %v6040 = vadd.f32 %v5495, 1.0
        %v6041 = vadd.f32 %v5497, 1.0
        %v6042 = vadd.f32 %v5499, 1.0
        %v6043 = vadd.f32 %v5501, 1.0
        %v6044 = vadd.f32 %v5503, 1.0
        %v6045 = vadd.f32 %v5505, 1.0
        %v6046 = vadd.f32 %v5507, 1.0
        %v6047 = vadd.f32 %v5509, 1.0
        %v6048 = vadd.f32 %v5511, 1.0
        %v6049 = vadd.f32 %v5513, 1.0
        %v6050 = vadd.f32 %v5515, 1.0
        %v6051 = vadd.f32 %v5517, 1.0
        %v6052 = vadd.f32 %v5519, 1.0
        %v6053 = vadd.f32 %v5521, 1.0
        %v6054 = vadd.f32 %v5523, 1.0
        %v6055 = vadd.f32 %v5525, 1.0
        %v6056 = vadd.f32 %v5527, 1.0
        %v6057 = vadd.f32 %v5529, 1.0
        %v6058 = vadd.f32 %v5531, 1.0
        %v6059 = vadd.f32 %v5533, 1.0
        %v6060 = vadd.f32 %v5535, 1.0
        %v6061 = vadd.f32 %v5537, 1.0
        %v6062 = vadd.f32 %v5539, 1.0
        %v6063 = vadd.f32 %v5541, 1.0
        %v6064 = vadd.f32 %v5543, 1.0
        %v6065 = vadd.f32 %v5545, 1.0
        %v6066 = vadd.f32 %v5547, 1.0
        %v6067 = vadd.f32 %v5549, 1.0
        %v6068 = vadd.f32 %v5551, 1.0
        %v6069 = vadd.f32 %v5553, 1.0
        %v6070 = vadd.f32 %v5555, 1.0
        %v6071 = vadd.f32 %v5557, 1.0
        %v6072 = vadd.f32 %v5559, 1.0
        %v6073 = vadd.f32 %v5561, 1.0
        %v6074 = vadd.f32 %v5563, 1.0
        %v6075 = vadd.f32 %v5565, 1.0
        %v6076 = vadd.f32 %v5567, 1.0
        %v6077 = vadd.f32 %v5569, 1.0
        %v6078 = vadd.f32 %v5571, 1.0
        %v6079 = vadd.f32 %v5573, 1.0
        %v6080 = vadd.f32 %v5575, 1.0
        %v6081 = vadd.f32 %v5577, 1.0
        %v6082 = vadd.f32 %v5579, 1.0
        %v6083 = vadd.f32 %v5581, 1.0
        %v6084 = vadd.f32 %v5583, 1.0
        %v6085 = vadd.f32 %v5585, 1.0
        %v6086 = vadd.f32 %v5587, 1.0
        %v6087 = vadd.f32 %v5589, 1.0
        %v6088 = vadd.f32 %v5591, 1.0
        %v6089 = vadd.f32 %v5593, 1.0
        %v6090 = vadd.f32 %v5595, 1.0
        %v6091 = vadd.f32 %v5597, 1.0
        %v6092 = vadd.f32 %v5599, 1.0
        %v6093 = vadd.f32 %v5601, 1.0
        %v6094 = vadd.f32 %v5603, 1.0
        %v6095 = vadd.f32 %v5605, 1.0
        %v6096 = vadd.f32 %v5607, 1.0
        %v6097 = vadd.f32 %v5609, 1.0
        %v6098 = vadd.f32 %v5611, 1.0
        %v6099 = vadd.f32 %v5613, 1.0
        %v6100 = vadd.f32 %v5615, 1.0
        %v6101 = vadd.f32 %v5617, 1.0
        %v6102 = vadd.f32 %v5619, 1.0
        %v6103 = vadd.f32 %v5621, 1.0
        %v6104 = vadd.f32 %v5623, 1.0
        %v6105 = vadd.f32 %v5625, 1.0
        %v6106 = vadd.f32 %v5627, 1.0
        %v6107 = vadd.f32 %v5629, 1.0
        %v6108 = vadd.f32 %v5631, 1.0
        %v6109 = vadd.f32 %v5633, 1.0
        %v6110 = vadd.f32 %v5635, 1.0
        %v6111 = vadd.f32 %v5637, 1.0
        %v6112 = vadd.f32 %v5639, 1.0
        %v6113 = vadd.f32 %v5641, 1.0
        %v6114 = vadd.f32 %v5643, 1.0
        %v6115 = vadd.f32 %v5645, 1.0
        %v6116 = vadd.f32 %v5647, 1.0
        %v6117 = vadd.f32 %v5649, 1.0
        %v6118 = vadd.f32 %v5651, 1.0
        %v6119 = vadd.f32 %v5653, 1.0
        %v6120 = vadd.f32 %v5655, 1.0
        %v6121 = vadd.f32 %v5657, 1.0
        %v6122 = vadd.f32 %v5659, 1.0
        %v6123 = vadd.f32 %v5661, 1.0
        %v6124 = vadd.f32 %v5663, 1.0
        %v6125 = vadd.f32 %v5665, 1.0
        %v6126 = vadd.f32 %v5667, 1.0
        %v6127 = vadd.f32 %v5669, 1.0
        %v6128 = vadd.f32 %v5671, 1.0
        %v6129 = vadd.f32 %v5673, 1.0
        %v6130 = vadd.f32 %v5675, 1.0
        %v6131 = vadd.f32 %v5677, 1.0
        %v6132 = vadd.f32 %v5679, 1.0
        %v6133 = vadd.f32 %v5681, 1.0
        %v6134 = vadd.f32 %v5683, 1.0
        %v6135 = vadd.f32 %v5685, 1.0
        %v6136 = vadd.f32 %v5687, 1.0
        %v6137 = vadd.f32 %v5689, 1.0
        %v6138 = vadd.f32 %v5691, 1.0
        %v6139 = vadd.f32 %v5693, 1.0
        %v6140 = vadd.f32 %v5695, 1.0
        %v6141 = vadd.f32 %v5697, 1.0
        %v6142 = vadd.f32 %v5699, 1.0
        %v6143 = vadd.f32 %v5701, 1.0
        %v6144 = vadd.f32 %v5703, 1.0
        %v6145 = vadd.f32 %v5705, 1.0
        %v6146 = vadd.f32 %v5707, 1.0
        %v6147 = vadd.f32 %v5709, 1.0
        %v6148 = vadd.f32 %v5711, 1.0
        %v6149 = vadd.f32 %v5713, 1.0
        %v6150 = vadd.f32 %v5715, 1.0
        %v6151 = vadd.f32 %v5717, 1.0
        %v6152 = vadd.f32 %v5719, 1.0
        %v6153 = vadd.f32 %v5721, 1.0
        %v6154 = vadd.f32 %v5723, 1.0
        %v6155 = vadd.f32 %v5725, 1.0
        %v6156 = vadd.f32 %v5727, 1.0
        %v6157 = vadd.f32 %v5729, 1.0
        %v6158 = vadd.f32 %v5731, 1.0
        %v6159 = vadd.f32 %v5733, 1.0
        %v6160 = vadd.f32 %v5735, 1.0
        %v6161 = vadd.f32 %v5737, 1.0
        %v6162 = vadd.f32 %v5739, 1.0
        %v6163 = vadd.f32 %v5741, 1.0
        %v6164 = vadd.f32 %v5743, 1.0
        %v6165 = vadd.f32 %v5745, 1.0
        %v6166 = vadd.f32 %v5747, 1.0
        %v6167 = vadd.f32 %v5749, 1.0
        %v6168 = vadd.f32 %v5751, 1.0
        %v6169 = vadd.f32 %v5753, 1.0
        %v6170 = vadd.f32 %v5755, 1.0
        %v6171 = vadd.f32 %v5757, 1.0
        %v6172 = vadd.f32 %v5759, 1.0
        %v6173 = vadd.f32 %v5761, 1.0
        %v6174 = vadd.f32 %v5763, 1.0
        %v6175 = vadd.f32 %v5765, 1.0
        %v6176 = vadd.f32 %v5767, 1.0
        %v6177 = vadd.f32 %v5769, 1.0
        %v6178 = vadd.f32 %v5771, 1.0
        %v6179 = vadd.f32 %v5773, 1.0
        %v6180 = vadd.f32 %v5775, 1.0
        %v6181 = vadd.f32 %v5777, 1.0
        %v6182 = vadd.f32 %v5779, 1.0
        %v6183 = vadd.f32 %v5781, 1.0
        %v6184 = vadd.f32 %v5783, 1.0
        %v6185 = vadd.f32 %v5785, 1.0
        %v6186 = vrcp.pop %v5786
        %v6187 = vmul.f32 1.0, %v6186
        %v6188 = vrcp.pop %v5787
        %v6189 = vmul.f32 1.0, %v6188
        %v6190 = vrcp.pop %v5788
        %v6191 = vmul.f32 1.0, %v6190
        %v6192 = vrcp.pop %v5789
        %v6193 = vmul.f32 1.0, %v6192
        %v6194 = vrcp.pop %v5790
        %v6195 = vmul.f32 1.0, %v6194
        %v6196 = vrcp.pop %v5791
        %v6197 = vmul.f32 1.0, %v6196
        %v6198 = vrcp.pop %v5792
        %v6199 = vmul.f32 1.0, %v6198
        %v6200 = vrcp.pop %v5793
        %v6201 = vmul.f32 1.0, %v6200
        %v6202 = vrcp.pop %v5794
        %v6203 = vmul.f32 1.0, %v6202
        %v6204 = vrcp.pop %v5795
        %v6205 = vmul.f32 1.0, %v6204
        %v6206 = vrcp.pop %v5796
        %v6207 = vmul.f32 1.0, %v6206
        %v6208 = vrcp.pop %v5797
        %v6209 = vmul.f32 1.0, %v6208
        %v6210 = vrcp.pop %v5798
        %v6211 = vmul.f32 1.0, %v6210
        %v6212 = vrcp.pop %v5799
        %v6213 = vmul.f32 1.0, %v6212
        %v6214 = vrcp.pop %v5800
        %v6215 = vmul.f32 1.0, %v6214
        %v6216 = vrcp.pop %v5801
        %v6217 = vmul.f32 1.0, %v6216
        %v6218 = vrcp.pop %v5802
        %v6219 = vmul.f32 1.0, %v6218
        %v6220 = vrcp.pop %v5803
        %v6221 = vmul.f32 1.0, %v6220
        %v6222 = vrcp.pop %v5804
        %v6223 = vmul.f32 1.0, %v6222
        %v6224 = vrcp.pop %v5805
        %v6225 = vmul.f32 1.0, %v6224
        %v6226 = vrcp.pop %v5806
        %v6227 = vmul.f32 1.0, %v6226
        %v6228 = vrcp.pop %v5807
        %v6229 = vmul.f32 1.0, %v6228
        %v6230 = vrcp.pop %v5808
        %v6231 = vmul.f32 1.0, %v6230
        %v6232 = vrcp.pop %v5809
        %v6233 = vmul.f32 1.0, %v6232
        %v6234 = vrcp.pop %v5810
        %v6235 = vmul.f32 1.0, %v6234
        %v6236 = vrcp.pop %v5811
        %v6237 = vmul.f32 1.0, %v6236
        %v6238 = vrcp.pop %v5812
        %v6239 = vmul.f32 1.0, %v6238
        %v6240 = vrcp.pop %v5813
        %v6241 = vmul.f32 1.0, %v6240
        %v6242 = vrcp.pop %v5814
        %v6243 = vmul.f32 1.0, %v6242
        %v6244 = vrcp.pop %v5815
        %v6245 = vmul.f32 1.0, %v6244
        %v6246 = vrcp.pop %v5816
        %v6247 = vmul.f32 1.0, %v6246
        %v6248 = vrcp.pop %v5817
        %v6249 = vmul.f32 1.0, %v6248
        %v6250 = vrcp.pop %v5818
        %v6251 = vmul.f32 1.0, %v6250
        %v6252 = vrcp.pop %v5819
        %v6253 = vmul.f32 1.0, %v6252
        %v6254 = vrcp.pop %v5820
        %v6255 = vmul.f32 1.0, %v6254
        %v6256 = vrcp.pop %v5821
        %v6257 = vmul.f32 1.0, %v6256
        %v6258 = vrcp.pop %v5822
        %v6259 = vmul.f32 1.0, %v6258
        %v6260 = vrcp.pop %v5823
        %v6261 = vmul.f32 1.0, %v6260
        %v6262 = vrcp.pop %v5824
        %v6263 = vmul.f32 1.0, %v6262
        %v6264 = vrcp.pop %v5825
        %v6265 = vmul.f32 1.0, %v6264
        %v6266 = vrcp.pop %v5826
        %v6267 = vmul.f32 1.0, %v6266
        %v6268 = vrcp.pop %v5827
        %v6269 = vmul.f32 1.0, %v6268
        %v6270 = vrcp.pop %v5828
        %v6271 = vmul.f32 1.0, %v6270
        %v6272 = vrcp.pop %v5829
        %v6273 = vmul.f32 1.0, %v6272
        %v6274 = vrcp.pop %v5830
        %v6275 = vmul.f32 1.0, %v6274
        %v6276 = vrcp.pop %v5831
        %v6277 = vmul.f32 1.0, %v6276
        %v6278 = vrcp.pop %v5832
        %v6279 = vmul.f32 1.0, %v6278
        %v6280 = vrcp.pop %v5833
        %v6281 = vmul.f32 1.0, %v6280
        %v6282 = vrcp.pop %v5834
        %v6283 = vmul.f32 1.0, %v6282
        %v6284 = vrcp.pop %v5835
        %v6285 = vmul.f32 1.0, %v6284
        %v6286 = vrcp.pop %v5836
        %v6287 = vmul.f32 1.0, %v6286
        %v6288 = vrcp.pop %v5837
        %v6289 = vmul.f32 1.0, %v6288
        %v6290 = vrcp.pop %v5838
        %v6291 = vmul.f32 1.0, %v6290
        %v6292 = vrcp.pop %v5839
        %v6293 = vmul.f32 1.0, %v6292
        %v6294 = vrcp.pop %v5840
        %v6295 = vmul.f32 1.0, %v6294
        %v6296 = vrcp.pop %v5841
        %v6297 = vmul.f32 1.0, %v6296
        %v6298 = vrcp.pop %v5842
        %v6299 = vmul.f32 1.0, %v6298
        %v6300 = vrcp.pop %v5843
        %v6301 = vmul.f32 1.0, %v6300
        %v6302 = vrcp.pop %v5844
        %v6303 = vmul.f32 1.0, %v6302
        %v6304 = vrcp.pop %v5845
        %v6305 = vmul.f32 1.0, %v6304
        %v6306 = vrcp.pop %v5846
        %v6307 = vmul.f32 1.0, %v6306
        %v6308 = vrcp.pop %v5847
        %v6309 = vmul.f32 1.0, %v6308
        %v6310 = vrcp.pop %v5848
        %v6311 = vmul.f32 1.0, %v6310
        %v6312 = vrcp.pop %v5849
        %v6313 = vmul.f32 1.0, %v6312
        %v6314 = vrcp.pop %v5850
        %v6315 = vmul.f32 1.0, %v6314
        %v6316 = vrcp.pop %v5851
        %v6317 = vmul.f32 1.0, %v6316
        %v6318 = vrcp.pop %v5852
        %v6319 = vmul.f32 1.0, %v6318
        %v6320 = vrcp.pop %v5853
        %v6321 = vmul.f32 1.0, %v6320
        %v6322 = vrcp.pop %v5854
        %v6323 = vmul.f32 1.0, %v6322
        %v6324 = vrcp.pop %v5855
        %v6325 = vmul.f32 1.0, %v6324
        %v6326 = vrcp.pop %v5856
        %v6327 = vmul.f32 1.0, %v6326
        %v6328 = vrcp.pop %v5857
        %v6329 = vmul.f32 1.0, %v6328
        %v6330 = vrcp.pop %v5858
        %v6331 = vmul.f32 1.0, %v6330
        %v6332 = vrcp.pop %v5859
        %v6333 = vmul.f32 1.0, %v6332
        %v6334 = vrcp.pop %v5860
        %v6335 = vmul.f32 1.0, %v6334
        %v6336 = vrcp.pop %v5861
        %v6337 = vmul.f32 1.0, %v6336
        %v6338 = vrcp.pop %v5862
        %v6339 = vmul.f32 1.0, %v6338
        %v6340 = vrcp.pop %v5863
        %v6341 = vmul.f32 1.0, %v6340
        %v6342 = vrcp.pop %v5864
        %v6343 = vmul.f32 1.0, %v6342
        %v6344 = vrcp.pop %v5865
        %v6345 = vmul.f32 1.0, %v6344
        %v6346 = vrcp.pop %v5866
        %v6347 = vmul.f32 1.0, %v6346
        %v6348 = vrcp.pop %v5867
        %v6349 = vmul.f32 1.0, %v6348
        %v6350 = vrcp.pop %v5868
        %v6351 = vmul.f32 1.0, %v6350
        %v6352 = vrcp.pop %v5869
        %v6353 = vmul.f32 1.0, %v6352
        %v6354 = vrcp.pop %v5870
        %v6355 = vmul.f32 1.0, %v6354
        %v6356 = vrcp.pop %v5871
        %v6357 = vmul.f32 1.0, %v6356
        %v6358 = vrcp.pop %v5872
        %v6359 = vmul.f32 1.0, %v6358
        %v6360 = vrcp.pop %v5873
        %v6361 = vmul.f32 1.0, %v6360
        %v6362 = vrcp.pop %v5874
        %v6363 = vmul.f32 1.0, %v6362
        %v6364 = vrcp.pop %v5875
        %v6365 = vmul.f32 1.0, %v6364
        %v6366 = vrcp.pop %v5876
        %v6367 = vmul.f32 1.0, %v6366
        %v6368 = vrcp.pop %v5877
        %v6369 = vmul.f32 1.0, %v6368
        %v6370 = vrcp.pop %v5878
        %v6371 = vmul.f32 1.0, %v6370
        %v6372 = vrcp.pop %v5879
        %v6373 = vmul.f32 1.0, %v6372
        %v6374 = vrcp.pop %v5880
        %v6375 = vmul.f32 1.0, %v6374
        %v6376 = vrcp.pop %v5881
        %v6377 = vmul.f32 1.0, %v6376
        %v6378 = vrcp.pop %v5882
        %v6379 = vmul.f32 1.0, %v6378
        %v6380 = vrcp.pop %v5883
        %v6381 = vmul.f32 1.0, %v6380
        %v6382 = vrcp.pop %v5884
        %v6383 = vmul.f32 1.0, %v6382
        %v6384 = vrcp.pop %v5885
        %v6385 = vmul.f32 1.0, %v6384
        %v6386 = vrcp.pop %v5886
        %v6387 = vmul.f32 1.0, %v6386
        %v6388 = vrcp.pop %v5887
        %v6389 = vmul.f32 1.0, %v6388
        %v6390 = vrcp.pop %v5888
        %v6391 = vmul.f32 1.0, %v6390
        %v6392 = vrcp.pop %v5889
        %v6393 = vmul.f32 1.0, %v6392
        %v6394 = vrcp.pop %v5890
        %v6395 = vmul.f32 1.0, %v6394
        %v6396 = vrcp.pop %v5891
        %v6397 = vmul.f32 1.0, %v6396
        %v6398 = vrcp.pop %v5892
        %v6399 = vmul.f32 1.0, %v6398
        %v6400 = vrcp.pop %v5893
        %v6401 = vmul.f32 1.0, %v6400
        %v6402 = vrcp.pop %v5894
        %v6403 = vmul.f32 1.0, %v6402
        %v6404 = vrcp.pop %v5895
        %v6405 = vmul.f32 1.0, %v6404
        %v6406 = vrcp.pop %v5896
        %v6407 = vmul.f32 1.0, %v6406
        %v6408 = vrcp.pop %v5897
        %v6409 = vmul.f32 1.0, %v6408
        %v6410 = vrcp.pop %v5898
        %v6411 = vmul.f32 1.0, %v6410
        %v6412 = vrcp.pop %v5899
        %v6413 = vmul.f32 1.0, %v6412
        %v6414 = vrcp.pop %v5900
        %v6415 = vmul.f32 1.0, %v6414
        %v6416 = vrcp.pop %v5901
        %v6417 = vmul.f32 1.0, %v6416
        %v6418 = vrcp.pop %v5902
        %v6419 = vmul.f32 1.0, %v6418
        %v6420 = vrcp.pop %v5903
        %v6421 = vmul.f32 1.0, %v6420
        %v6422 = vrcp.pop %v5904
        %v6423 = vmul.f32 1.0, %v6422
        %v6424 = vrcp.pop %v5905
        %v6425 = vmul.f32 1.0, %v6424
        %v6426 = vrcp.pop %v5906
        %v6427 = vmul.f32 1.0, %v6426
        %v6428 = vrcp.pop %v5907
        %v6429 = vmul.f32 1.0, %v6428
        %v6430 = vrcp.pop %v5908
        %v6431 = vmul.f32 1.0, %v6430
        %v6432 = vrcp.pop %v5909
        %v6433 = vmul.f32 1.0, %v6432
        %v6434 = vrcp.pop %v5910
        %v6435 = vmul.f32 1.0, %v6434
        %v6436 = vrcp.pop %v5911
        %v6437 = vmul.f32 1.0, %v6436
        %v6438 = vrcp.pop %v5912
        %v6439 = vmul.f32 1.0, %v6438
        %v6440 = vrcp.pop %v5913
        %v6441 = vmul.f32 1.0, %v6440
        %v6442 = vrcp.pop %v5914
        %v6443 = vmul.f32 1.0, %v6442
        %v6444 = vrcp.pop %v5915
        %v6445 = vmul.f32 1.0, %v6444
        %v6446 = vrcp.pop %v5916
        %v6447 = vmul.f32 1.0, %v6446
        %v6448 = vrcp.pop %v5917
        %v6449 = vmul.f32 1.0, %v6448
        %v6450 = vrcp.pop %v5918
        %v6451 = vmul.f32 1.0, %v6450
        %v6452 = vrcp.pop %v5919
        %v6453 = vmul.f32 1.0, %v6452
        %v6454 = vrcp.pop %v5920
        %v6455 = vmul.f32 1.0, %v6454
        %v6456 = vrcp.pop %v5921
        %v6457 = vmul.f32 1.0, %v6456
        %v6458 = vrcp.pop %v5922
        %v6459 = vmul.f32 1.0, %v6458
        %v6460 = vrcp.pop %v5923
        %v6461 = vmul.f32 1.0, %v6460
        %v6462 = vrcp.pop %v5924
        %v6463 = vmul.f32 1.0, %v6462
        %v6464 = vrcp.pop %v5925
        %v6465 = vmul.f32 1.0, %v6464
        %v6466 = vrcp.pop %v5926
        %v6467 = vmul.f32 1.0, %v6466
        %v6468 = vrcp.pop %v5927
        %v6469 = vmul.f32 1.0, %v6468
        %v6470 = vrcp.pop %v5928
        %v6471 = vmul.f32 1.0, %v6470
        %v6472 = vrcp.pop %v5929
        %v6473 = vmul.f32 1.0, %v6472
        %v6474 = vrcp.pop %v5930
        %v6475 = vmul.f32 1.0, %v6474
        %v6476 = vrcp.pop %v5931
        %v6477 = vmul.f32 1.0, %v6476
        %v6478 = vrcp.pop %v5932
        %v6479 = vmul.f32 1.0, %v6478
        %v6480 = vrcp.pop %v5933
        %v6481 = vmul.f32 1.0, %v6480
        %v6482 = vrcp.pop %v5934
        %v6483 = vmul.f32 1.0, %v6482
        %v6484 = vrcp.pop %v5935
        %v6485 = vmul.f32 1.0, %v6484
        %v6486 = vrcp.pop %v5936
        %v6487 = vmul.f32 1.0, %v6486
        %v6488 = vrcp.pop %v5937
        %v6489 = vmul.f32 1.0, %v6488
        %v6490 = vrcp.pop %v5938
        %v6491 = vmul.f32 1.0, %v6490
        %v6492 = vrcp.pop %v5939
        %v6493 = vmul.f32 1.0, %v6492
        %v6494 = vrcp.pop %v5940
        %v6495 = vmul.f32 1.0, %v6494
        %v6496 = vrcp.pop %v5941
        %v6497 = vmul.f32 1.0, %v6496
        %v6498 = vrcp.pop %v5942
        %v6499 = vmul.f32 1.0, %v6498
        %v6500 = vrcp.pop %v5943
        %v6501 = vmul.f32 1.0, %v6500
        %v6502 = vrcp.pop %v5944
        %v6503 = vmul.f32 1.0, %v6502
        %v6504 = vrcp.pop %v5945
        %v6505 = vmul.f32 1.0, %v6504
        %v6506 = vrcp.pop %v5946
        %v6507 = vmul.f32 1.0, %v6506
        %v6508 = vrcp.pop %v5947
        %v6509 = vmul.f32 1.0, %v6508
        %v6510 = vrcp.pop %v5948
        %v6511 = vmul.f32 1.0, %v6510
        %v6512 = vrcp.pop %v5949
        %v6513 = vmul.f32 1.0, %v6512
        %v6514 = vrcp.pop %v5950
        %v6515 = vmul.f32 1.0, %v6514
        %v6516 = vrcp.pop %v5951
        %v6517 = vmul.f32 1.0, %v6516
        %v6518 = vrcp.pop %v5952
        %v6519 = vmul.f32 1.0, %v6518
        %v6520 = vrcp.pop %v5953
        %v6521 = vmul.f32 1.0, %v6520
        %v6522 = vrcp.pop %v5954
        %v6523 = vmul.f32 1.0, %v6522
        %v6524 = vrcp.pop %v5955
        %v6525 = vmul.f32 1.0, %v6524
        %v6526 = vrcp.pop %v5956
        %v6527 = vmul.f32 1.0, %v6526
        %v6528 = vrcp.pop %v5957
        %v6529 = vmul.f32 1.0, %v6528
        %v6530 = vrcp.pop %v5958
        %v6531 = vmul.f32 1.0, %v6530
        %v6532 = vrcp.pop %v5959
        %v6533 = vmul.f32 1.0, %v6532
        %v6534 = vrcp.pop %v5960
        %v6535 = vmul.f32 1.0, %v6534
        %v6536 = vrcp.pop %v5961
        %v6537 = vmul.f32 1.0, %v6536
        %v6538 = vrcp.pop %v5962
        %v6539 = vmul.f32 1.0, %v6538
        %v6540 = vrcp.pop %v5963
        %v6541 = vmul.f32 1.0, %v6540
        %v6542 = vrcp.pop %v5964
        %v6543 = vmul.f32 1.0, %v6542
        %v6544 = vrcp.pop %v5965
        %v6545 = vmul.f32 1.0, %v6544
        %v6546 = vrcp.pop %v5966
        %v6547 = vmul.f32 1.0, %v6546
        %v6548 = vrcp.pop %v5967
        %v6549 = vmul.f32 1.0, %v6548
        %v6550 = vrcp.pop %v5968
        %v6551 = vmul.f32 1.0, %v6550
        %v6552 = vrcp.pop %v5969
        %v6553 = vmul.f32 1.0, %v6552
        %v6554 = vrcp.pop %v5970
        %v6555 = vmul.f32 1.0, %v6554
        %v6556 = vrcp.pop %v5971
        %v6557 = vmul.f32 1.0, %v6556
        %v6558 = vrcp.pop %v5972
        %v6559 = vmul.f32 1.0, %v6558
        %v6560 = vrcp.pop %v5973
        %v6561 = vmul.f32 1.0, %v6560
        %v6562 = vrcp.pop %v5974
        %v6563 = vmul.f32 1.0, %v6562
        %v6564 = vrcp.pop %v5975
        %v6565 = vmul.f32 1.0, %v6564
        %v6566 = vrcp.pop %v5976
        %v6567 = vmul.f32 1.0, %v6566
        %v6568 = vrcp.pop %v5977
        %v6569 = vmul.f32 1.0, %v6568
        %v6570 = vrcp.pop %v5978
        %v6571 = vmul.f32 1.0, %v6570
        %v6572 = vrcp.pop %v5979
        %v6573 = vmul.f32 1.0, %v6572
        %v6574 = vrcp.pop %v5980
        %v6575 = vmul.f32 1.0, %v6574
        %v6576 = vrcp.pop %v5981
        %v6577 = vmul.f32 1.0, %v6576
        %v6578 = vrcp.pop %v5982
        %v6579 = vmul.f32 1.0, %v6578
        %v6580 = vrcp.pop %v5983
        %v6581 = vmul.f32 1.0, %v6580
        %v6582 = vrcp.pop %v5984
        %v6583 = vmul.f32 1.0, %v6582
        %v6584 = vrcp.pop %v5985
        %v6585 = vmul.f32 1.0, %v6584
        %v6586 = vrcp.pop %v5986
        %v6587 = vmul.f32 1.0, %v6586
        %v6588 = vrcp.pop %v5987
        %v6589 = vmul.f32 1.0, %v6588
        %v6590 = vrcp.pop %v5988
        %v6591 = vmul.f32 1.0, %v6590
        %v6592 = vrcp.pop %v5989
        %v6593 = vmul.f32 1.0, %v6592
        %v6594 = vrcp.pop %v5990
        %v6595 = vmul.f32 1.0, %v6594
        %v6596 = vrcp.pop %v5991
        %v6597 = vmul.f32 1.0, %v6596
        %v6598 = vrcp.pop %v5992
        %v6599 = vmul.f32 1.0, %v6598
        %v6600 = vrcp.pop %v5993
        %v6601 = vmul.f32 1.0, %v6600
        %v6602 = vrcp.pop %v5994
        %v6603 = vmul.f32 1.0, %v6602
        %v6604 = vrcp.pop %v5995
        %v6605 = vmul.f32 1.0, %v6604
        %v6606 = vrcp.pop %v5996
        %v6607 = vmul.f32 1.0, %v6606
        %v6608 = vrcp.pop %v5997
        %v6609 = vmul.f32 1.0, %v6608
        %v6610 = vrcp.pop %v5998
        %v6611 = vmul.f32 1.0, %v6610
        %v6612 = vrcp.pop %v5999
        %v6613 = vmul.f32 1.0, %v6612
        %v6614 = vrcp.pop %v6000
        %v6615 = vmul.f32 1.0, %v6614
        %v6616 = vrcp.pop %v6001
        %v6617 = vmul.f32 1.0, %v6616
        %v6618 = vrcp.pop %v6002
        %v6619 = vmul.f32 1.0, %v6618
        %v6620 = vrcp.pop %v6003
        %v6621 = vmul.f32 1.0, %v6620
        %v6622 = vrcp.pop %v6004
        %v6623 = vmul.f32 1.0, %v6622
        %v6624 = vrcp.pop %v6005
        %v6625 = vmul.f32 1.0, %v6624
        %v6626 = vrcp.pop %v6006
        %v6627 = vmul.f32 1.0, %v6626
        %v6628 = vrcp.pop %v6007
        %v6629 = vmul.f32 1.0, %v6628
        %v6630 = vrcp.pop %v6008
        %v6631 = vmul.f32 1.0, %v6630
        %v6632 = vrcp.pop %v6009
        %v6633 = vmul.f32 1.0, %v6632
        %v6634 = vrcp.pop %v6010
        %v6635 = vmul.f32 1.0, %v6634
        %v6636 = vrcp.pop %v6011
        %v6637 = vmul.f32 1.0, %v6636
        %v6638 = vrcp.pop %v6012
        %v6639 = vmul.f32 1.0, %v6638
        %v6640 = vrcp.pop %v6013
        %v6641 = vmul.f32 1.0, %v6640
        %v6642 = vrcp.pop %v6014
        %v6643 = vmul.f32 1.0, %v6642
        %v6644 = vrcp.pop %v6015
        %v6645 = vmul.f32 1.0, %v6644
        %v6646 = vrcp.pop %v6016
        %v6647 = vmul.f32 1.0, %v6646
        %v6648 = vrcp.pop %v6017
        %v6649 = vmul.f32 1.0, %v6648
        %v6650 = vrcp.pop %v6018
        %v6651 = vmul.f32 1.0, %v6650
        %v6652 = vrcp.pop %v6019
        %v6653 = vmul.f32 1.0, %v6652
        %v6654 = vrcp.pop %v6020
        %v6655 = vmul.f32 1.0, %v6654
        %v6656 = vrcp.pop %v6021
        %v6657 = vmul.f32 1.0, %v6656
        %v6658 = vrcp.pop %v6022
        %v6659 = vmul.f32 1.0, %v6658
        %v6660 = vrcp.pop %v6023
        %v6661 = vmul.f32 1.0, %v6660
        %v6662 = vrcp.pop %v6024
        %v6663 = vmul.f32 1.0, %v6662
        %v6664 = vrcp.pop %v6025
        %v6665 = vmul.f32 1.0, %v6664
        %v6666 = vrcp.pop %v6026
        %v6667 = vmul.f32 1.0, %v6666
        %v6668 = vrcp.pop %v6027
        %v6669 = vmul.f32 1.0, %v6668
        %v6670 = vrcp.pop %v6028
        %v6671 = vmul.f32 1.0, %v6670
        %v6672 = vrcp.pop %v6029
        %v6673 = vmul.f32 1.0, %v6672
        %v6674 = vrcp.pop %v6030
        %v6675 = vmul.f32 1.0, %v6674
        %v6676 = vrcp.pop %v6031
        %v6677 = vmul.f32 1.0, %v6676
        %v6678 = vrcp.pop %v6032
        %v6679 = vmul.f32 1.0, %v6678
        %v6680 = vrcp.pop %v6033
        %v6681 = vmul.f32 1.0, %v6680
        %v6682 = vrcp.pop %v6034
        %v6683 = vmul.f32 1.0, %v6682
        %v6684 = vrcp.pop %v6035
        %v6685 = vmul.f32 1.0, %v6684
        %v6686 = vrcp.pop %v6036
        %v6687 = vmul.f32 1.0, %v6686
        %v6688 = vrcp.pop %v6037
        %v6689 = vmul.f32 1.0, %v6688
        %v6690 = vrcp.pop %v6038
        %v6691 = vmul.f32 1.0, %v6690
        %v6692 = vrcp.pop %v6039
        %v6693 = vmul.f32 1.0, %v6692
        %v6694 = vrcp.pop %v6040
        %v6695 = vmul.f32 1.0, %v6694
        %v6696 = vrcp.pop %v6041
        %v6697 = vmul.f32 1.0, %v6696
        %v6698 = vrcp.pop %v6042
        %v6699 = vmul.f32 1.0, %v6698
        %v6700 = vrcp.pop %v6043
        %v6701 = vmul.f32 1.0, %v6700
        %v6702 = vrcp.pop %v6044
        %v6703 = vmul.f32 1.0, %v6702
        %v6704 = vrcp.pop %v6045
        %v6705 = vmul.f32 1.0, %v6704
        %v6706 = vrcp.pop %v6046
        %v6707 = vmul.f32 1.0, %v6706
        %v6708 = vrcp.pop %v6047
        %v6709 = vmul.f32 1.0, %v6708
        %v6710 = vrcp.pop %v6048
        %v6711 = vmul.f32 1.0, %v6710
        %v6712 = vrcp.pop %v6049
        %v6713 = vmul.f32 1.0, %v6712
        %v6714 = vrcp.pop %v6050
        %v6715 = vmul.f32 1.0, %v6714
        %v6716 = vrcp.pop %v6051
        %v6717 = vmul.f32 1.0, %v6716
        %v6718 = vrcp.pop %v6052
        %v6719 = vmul.f32 1.0, %v6718
        %v6720 = vrcp.pop %v6053
        %v6721 = vmul.f32 1.0, %v6720
        %v6722 = vrcp.pop %v6054
        %v6723 = vmul.f32 1.0, %v6722
        %v6724 = vrcp.pop %v6055
        %v6725 = vmul.f32 1.0, %v6724
        %v6726 = vrcp.pop %v6056
        %v6727 = vmul.f32 1.0, %v6726
        %v6728 = vrcp.pop %v6057
        %v6729 = vmul.f32 1.0, %v6728
        %v6730 = vrcp.pop %v6058
        %v6731 = vmul.f32 1.0, %v6730
        %v6732 = vrcp.pop %v6059
        %v6733 = vmul.f32 1.0, %v6732
        %v6734 = vrcp.pop %v6060
        %v6735 = vmul.f32 1.0, %v6734
        %v6736 = vrcp.pop %v6061
        %v6737 = vmul.f32 1.0, %v6736
        %v6738 = vrcp.pop %v6062
        %v6739 = vmul.f32 1.0, %v6738
        %v6740 = vrcp.pop %v6063
        %v6741 = vmul.f32 1.0, %v6740
        %v6742 = vrcp.pop %v6064
        %v6743 = vmul.f32 1.0, %v6742
        %v6744 = vrcp.pop %v6065
        %v6745 = vmul.f32 1.0, %v6744
        %v6746 = vrcp.pop %v6066
        %v6747 = vmul.f32 1.0, %v6746
        %v6748 = vrcp.pop %v6067
        %v6749 = vmul.f32 1.0, %v6748
        %v6750 = vrcp.pop %v6068
        %v6751 = vmul.f32 1.0, %v6750
        %v6752 = vrcp.pop %v6069
        %v6753 = vmul.f32 1.0, %v6752
        %v6754 = vrcp.pop %v6070
        %v6755 = vmul.f32 1.0, %v6754
        %v6756 = vrcp.pop %v6071
        %v6757 = vmul.f32 1.0, %v6756
        %v6758 = vrcp.pop %v6072
        %v6759 = vmul.f32 1.0, %v6758
        %v6760 = vrcp.pop %v6073
        %v6761 = vmul.f32 1.0, %v6760
        %v6762 = vrcp.pop %v6074
        %v6763 = vmul.f32 1.0, %v6762
        %v6764 = vrcp.pop %v6075
        %v6765 = vmul.f32 1.0, %v6764
        %v6766 = vrcp.pop %v6076
        %v6767 = vmul.f32 1.0, %v6766
        %v6768 = vrcp.pop %v6077
        %v6769 = vmul.f32 1.0, %v6768
        %v6770 = vrcp.pop %v6078
        %v6771 = vmul.f32 1.0, %v6770
        %v6772 = vrcp.pop %v6079
        %v6773 = vmul.f32 1.0, %v6772
        %v6774 = vrcp.pop %v6080
        %v6775 = vmul.f32 1.0, %v6774
        %v6776 = vrcp.pop %v6081
        %v6777 = vmul.f32 1.0, %v6776
        %v6778 = vrcp.pop %v6082
        %v6779 = vmul.f32 1.0, %v6778
        %v6780 = vrcp.pop %v6083
        %v6781 = vmul.f32 1.0, %v6780
        %v6782 = vrcp.pop %v6084
        %v6783 = vmul.f32 1.0, %v6782
        %v6784 = vrcp.pop %v6085
        %v6785 = vmul.f32 1.0, %v6784
        %v6786 = vrcp.pop %v6086
        %v6787 = vmul.f32 1.0, %v6786
        %v6788 = vrcp.pop %v6087
        %v6789 = vmul.f32 1.0, %v6788
        %v6790 = vrcp.pop %v6088
        %v6791 = vmul.f32 1.0, %v6790
        %v6792 = vrcp.pop %v6089
        %v6793 = vmul.f32 1.0, %v6792
        %v6794 = vrcp.pop %v6090
        %v6795 = vmul.f32 1.0, %v6794
        %v6796 = vrcp.pop %v6091
        %v6797 = vmul.f32 1.0, %v6796
        %v6798 = vrcp.pop %v6092
        %v6799 = vmul.f32 1.0, %v6798
        %v6800 = vrcp.pop %v6093
        %v6801 = vmul.f32 1.0, %v6800
        %v6802 = vrcp.pop %v6094
        %v6803 = vmul.f32 1.0, %v6802
        %v6804 = vrcp.pop %v6095
        %v6805 = vmul.f32 1.0, %v6804
        %v6806 = vrcp.pop %v6096
        %v6807 = vmul.f32 1.0, %v6806
        %v6808 = vrcp.pop %v6097
        %v6809 = vmul.f32 1.0, %v6808
        %v6810 = vrcp.pop %v6098
        %v6811 = vmul.f32 1.0, %v6810
        %v6812 = vrcp.pop %v6099
        %v6813 = vmul.f32 1.0, %v6812
        %v6814 = vrcp.pop %v6100
        %v6815 = vmul.f32 1.0, %v6814
        %v6816 = vrcp.pop %v6101
        %v6817 = vmul.f32 1.0, %v6816
        %v6818 = vrcp.pop %v6102
        %v6819 = vmul.f32 1.0, %v6818
        %v6820 = vrcp.pop %v6103
        %v6821 = vmul.f32 1.0, %v6820
        %v6822 = vrcp.pop %v6104
        %v6823 = vmul.f32 1.0, %v6822
        %v6824 = vrcp.pop %v6105
        %v6825 = vmul.f32 1.0, %v6824
        %v6826 = vrcp.pop %v6106
        %v6827 = vmul.f32 1.0, %v6826
        %v6828 = vrcp.pop %v6107
        %v6829 = vmul.f32 1.0, %v6828
        %v6830 = vrcp.pop %v6108
        %v6831 = vmul.f32 1.0, %v6830
        %v6832 = vrcp.pop %v6109
        %v6833 = vmul.f32 1.0, %v6832
        %v6834 = vrcp.pop %v6110
        %v6835 = vmul.f32 1.0, %v6834
        %v6836 = vrcp.pop %v6111
        %v6837 = vmul.f32 1.0, %v6836
        %v6838 = vrcp.pop %v6112
        %v6839 = vmul.f32 1.0, %v6838
        %v6840 = vrcp.pop %v6113
        %v6841 = vmul.f32 1.0, %v6840
        %v6842 = vrcp.pop %v6114
        %v6843 = vmul.f32 1.0, %v6842
        %v6844 = vrcp.pop %v6115
        %v6845 = vmul.f32 1.0, %v6844
        %v6846 = vrcp.pop %v6116
        %v6847 = vmul.f32 1.0, %v6846
        %v6848 = vrcp.pop %v6117
        %v6849 = vmul.f32 1.0, %v6848
        %v6850 = vrcp.pop %v6118
        %v6851 = vmul.f32 1.0, %v6850
        %v6852 = vrcp.pop %v6119
        %v6853 = vmul.f32 1.0, %v6852
        %v6854 = vrcp.pop %v6120
        %v6855 = vmul.f32 1.0, %v6854
        %v6856 = vrcp.pop %v6121
        %v6857 = vmul.f32 1.0, %v6856
        %v6858 = vrcp.pop %v6122
        %v6859 = vmul.f32 1.0, %v6858
        %v6860 = vrcp.pop %v6123
        %v6861 = vmul.f32 1.0, %v6860
        %v6862 = vrcp.pop %v6124
        %v6863 = vmul.f32 1.0, %v6862
        %v6864 = vrcp.pop %v6125
        %v6865 = vmul.f32 1.0, %v6864
        %v6866 = vrcp.pop %v6126
        %v6867 = vmul.f32 1.0, %v6866
        %v6868 = vrcp.pop %v6127
        %v6869 = vmul.f32 1.0, %v6868
        %v6870 = vrcp.pop %v6128
        %v6871 = vmul.f32 1.0, %v6870
        %v6872 = vrcp.pop %v6129
        %v6873 = vmul.f32 1.0, %v6872
        %v6874 = vrcp.pop %v6130
        %v6875 = vmul.f32 1.0, %v6874
        %v6876 = vrcp.pop %v6131
        %v6877 = vmul.f32 1.0, %v6876
        %v6878 = vrcp.pop %v6132
        %v6879 = vmul.f32 1.0, %v6878
        %v6880 = vrcp.pop %v6133
        %v6881 = vmul.f32 1.0, %v6880
        %v6882 = vrcp.pop %v6134
        %v6883 = vmul.f32 1.0, %v6882
        %v6884 = vrcp.pop %v6135
        %v6885 = vmul.f32 1.0, %v6884
        %v6886 = vrcp.pop %v6136
        %v6887 = vmul.f32 1.0, %v6886
        %v6888 = vrcp.pop %v6137
        %v6889 = vmul.f32 1.0, %v6888
        %v6890 = vrcp.pop %v6138
        %v6891 = vmul.f32 1.0, %v6890
        %v6892 = vrcp.pop %v6139
        %v6893 = vmul.f32 1.0, %v6892
        %v6894 = vrcp.pop %v6140
        %v6895 = vmul.f32 1.0, %v6894
        %v6896 = vrcp.pop %v6141
        %v6897 = vmul.f32 1.0, %v6896
        %v6898 = vrcp.pop %v6142
        %v6899 = vmul.f32 1.0, %v6898
        %v6900 = vrcp.pop %v6143
        %v6901 = vmul.f32 1.0, %v6900
        %v6902 = vrcp.pop %v6144
        %v6903 = vmul.f32 1.0, %v6902
        %v6904 = vrcp.pop %v6145
        %v6905 = vmul.f32 1.0, %v6904
        %v6906 = vrcp.pop %v6146
        %v6907 = vmul.f32 1.0, %v6906
        %v6908 = vrcp.pop %v6147
        %v6909 = vmul.f32 1.0, %v6908
        %v6910 = vrcp.pop %v6148
        %v6911 = vmul.f32 1.0, %v6910
        %v6912 = vrcp.pop %v6149
        %v6913 = vmul.f32 1.0, %v6912
        %v6914 = vrcp.pop %v6150
        %v6915 = vmul.f32 1.0, %v6914
        %v6916 = vrcp.pop %v6151
        %v6917 = vmul.f32 1.0, %v6916
        %v6918 = vrcp.pop %v6152
        %v6919 = vmul.f32 1.0, %v6918
        %v6920 = vrcp.pop %v6153
        %v6921 = vmul.f32 1.0, %v6920
        %v6922 = vrcp.pop %v6154
        %v6923 = vmul.f32 1.0, %v6922
        %v6924 = vrcp.pop %v6155
        %v6925 = vmul.f32 1.0, %v6924
        %v6926 = vrcp.pop %v6156
        %v6927 = vmul.f32 1.0, %v6926
        %v6928 = vrcp.pop %v6157
        %v6929 = vmul.f32 1.0, %v6928
        %v6930 = vrcp.pop %v6158
        %v6931 = vmul.f32 1.0, %v6930
        %v6932 = vrcp.pop %v6159
        %v6933 = vmul.f32 1.0, %v6932
        %v6934 = vrcp.pop %v6160
        %v6935 = vmul.f32 1.0, %v6934
        %v6936 = vrcp.pop %v6161
        %v6937 = vmul.f32 1.0, %v6936
        %v6938 = vrcp.pop %v6162
        %v6939 = vmul.f32 1.0, %v6938
        %v6940 = vrcp.pop %v6163
        %v6941 = vmul.f32 1.0, %v6940
        %v6942 = vrcp.pop %v6164
        %v6943 = vmul.f32 1.0, %v6942
        %v6944 = vrcp.pop %v6165
        %v6945 = vmul.f32 1.0, %v6944
        %v6946 = vrcp.pop %v6166
        %v6947 = vmul.f32 1.0, %v6946
        %v6948 = vrcp.pop %v6167
        %v6949 = vmul.f32 1.0, %v6948
        %v6950 = vrcp.pop %v6168
        %v6951 = vmul.f32 1.0, %v6950
        %v6952 = vrcp.pop %v6169
        %v6953 = vmul.f32 1.0, %v6952
        %v6954 = vrcp.pop %v6170
        %v6955 = vmul.f32 1.0, %v6954
        %v6956 = vrcp.pop %v6171
        %v6957 = vmul.f32 1.0, %v6956
        %v6958 = vrcp.pop %v6172
        %v6959 = vmul.f32 1.0, %v6958
        %v6960 = vrcp.pop %v6173
        %v6961 = vmul.f32 1.0, %v6960
        %v6962 = vrcp.pop %v6174
        %v6963 = vmul.f32 1.0, %v6962
        %v6964 = vrcp.pop %v6175
        %v6965 = vmul.f32 1.0, %v6964
        %v6966 = vrcp.pop %v6176
        %v6967 = vmul.f32 1.0, %v6966
        %v6968 = vrcp.pop %v6177
        %v6969 = vmul.f32 1.0, %v6968
        %v6970 = vrcp.pop %v6178
        %v6971 = vmul.f32 1.0, %v6970
        %v6972 = vrcp.pop %v6179
        %v6973 = vmul.f32 1.0, %v6972
        %v6974 = vrcp.pop %v6180
        %v6975 = vmul.f32 1.0, %v6974
        %v6976 = vrcp.pop %v6181
        %v6977 = vmul.f32 1.0, %v6976
        %v6978 = vrcp.pop %v6182
        %v6979 = vmul.f32 1.0, %v6978
        %v6980 = vrcp.pop %v6183
        %v6981 = vmul.f32 1.0, %v6980
        %v6982 = vrcp.pop %v6184
        %v6983 = vmul.f32 1.0, %v6982
        %v6984 = vrcp.pop %v6185
        %v6985 = vmul.f32 1.0, %v6984
        %v6986 = vmul.f32 %v3022, %v6187
        %v6987 = vmul.f32 %v3024, %v6189
        %v6988 = vmul.f32 %v4088, %v6191
        %v6989 = vmul.f32 %v4090, %v6193
        %v6990 = vmul.f32 %v3026, %v6195
        %v6991 = vmul.f32 %v3028, %v6197
        %v6992 = vmul.f32 %v4092, %v6199
        %v6993 = vmul.f32 %v4094, %v6201
        %v6994 = vmul.f32 %v3032, %v6203
        %v6995 = vmul.f32 %v3034, %v6205
        %v6996 = vmul.f32 %v4098, %v6207
        %v6997 = vmul.f32 %v4100, %v6209
        %v6998 = vmul.f32 %v3036, %v6211
        %v6999 = vmul.f32 %v3038, %v6213
        %v7000 = vmul.f32 %v4102, %v6215
        %v7001 = vmul.f32 %v4104, %v6217
        %v7002 = vmul.f32 %v3042, %v6219
        %v7003 = vmul.f32 %v3044, %v6221
        %v7004 = vmul.f32 %v4108, %v6223
        %v7005 = vmul.f32 %v4110, %v6225
        %v7006 = vmul.f32 %v3046, %v6227
        %v7007 = vmul.f32 %v3048, %v6229
        %v7008 = vmul.f32 %v4112, %v6231
        %v7009 = vmul.f32 %v4114, %v6233
        %v7010 = vmul.f32 %v3052, %v6235
        %v7011 = vmul.f32 %v3054, %v6237
        %v7012 = vmul.f32 %v4118, %v6239
        %v7013 = vmul.f32 %v4120, %v6241
        %v7014 = vmul.f32 %v3056, %v6243
        %v7015 = vmul.f32 %v3058, %v6245
        %v7016 = vmul.f32 %v4122, %v6247
        %v7017 = vmul.f32 %v4124, %v6249
        %v7018 = vmul.f32 %v3062, %v6251
        %v7019 = vmul.f32 %v3064, %v6253
        %v7020 = vmul.f32 %v4128, %v6255
        %v7021 = vmul.f32 %v4130, %v6257
        %v7022 = vmul.f32 %v3066, %v6259
        %v7023 = vmul.f32 %v3068, %v6261
        %v7024 = vmul.f32 %v4132, %v6263
        %v7025 = vmul.f32 %v4134, %v6265
        %v7026 = vmul.f32 %v3072, %v6267
        %v7027 = vmul.f32 %v3074, %v6269
        %v7028 = vmul.f32 %v4138, %v6271
        %v7029 = vmul.f32 %v4140, %v6273
        %v7030 = vmul.f32 %v3076, %v6275
        %v7031 = vmul.f32 %v3078, %v6277
        %v7032 = vmul.f32 %v4142, %v6279
        %v7033 = vmul.f32 %v4144, %v6281
        %v7034 = vmul.f32 %v3082, %v6283
        %v7035 = vmul.f32 %v3084, %v6285
        %v7036 = vmul.f32 %v4148, %v6287
        %v7037 = vmul.f32 %v4150, %v6289
        %v7038 = vmul.f32 %v3086, %v6291
        %v7039 = vmul.f32 %v3088, %v6293
        %v7040 = vmul.f32 %v4152, %v6295
        %v7041 = vmul.f32 %v4154, %v6297
        %v7042 = vmul.f32 %v3092, %v6299
        %v7043 = vmul.f32 %v3094, %v6301
        %v7044 = vmul.f32 %v4158, %v6303
        %v7045 = vmul.f32 %v4160, %v6305
        %v7046 = vmul.f32 %v3096, %v6307
        %v7047 = vmul.f32 %v3098, %v6309
        %v7048 = vmul.f32 %v4162, %v6311
        %v7049 = vmul.f32 %v4164, %v6313
        %v7050 = vmul.f32 %v3102, %v6315
        %v7051 = vmul.f32 %v3104, %v6317
        %v7052 = vmul.f32 %v4168, %v6319
        %v7053 = vmul.f32 %v4170, %v6321
        %v7054 = vmul.f32 %v3106, %v6323
        %v7055 = vmul.f32 %v3108, %v6325
        %v7056 = vmul.f32 %v4172, %v6327
        %v7057 = vmul.f32 %v4174, %v6329
        %v7058 = vmul.f32 %v3112, %v6331
        %v7059 = vmul.f32 %v3114, %v6333
        %v7060 = vmul.f32 %v4178, %v6335
        %v7061 = vmul.f32 %v4180, %v6337
        %v7062 = vmul.f32 %v3116, %v6339
        %v7063 = vmul.f32 %v3118, %v6341
        %v7064 = vmul.f32 %v4182, %v6343
        %v7065 = vmul.f32 %v4184, %v6345
        %v7066 = vmul.f32 %v3122, %v6347
        %v7067 = vmul.f32 %v3124, %v6349
        %v7068 = vmul.f32 %v4188, %v6351
        %v7069 = vmul.f32 %v4190, %v6353
        %v7070 = vmul.f32 %v3126, %v6355
        %v7071 = vmul.f32 %v3128, %v6357
        %v7072 = vmul.f32 %v4192, %v6359
        %v7073 = vmul.f32 %v4194, %v6361
        %v7074 = vmul.f32 %v3132, %v6363
        %v7075 = vmul.f32 %v3134, %v6365
        %v7076 = vmul.f32 %v4198, %v6367
        %v7077 = vmul.f32 %v4200, %v6369
        %v7078 = vmul.f32 %v3136, %v6371
        %v7079 = vmul.f32 %v3138, %v6373
        %v7080 = vmul.f32 %v4202, %v6375
        %v7081 = vmul.f32 %v4204, %v6377
        %v7082 = vmul.f32 %v3142, %v6379
        %v7083 = vmul.f32 %v3144, %v6381
        %v7084 = vmul.f32 %v4208, %v6383
        %v7085 = vmul.f32 %v4210, %v6385
        %v7086 = vmul.f32 %v3146, %v6387
        %v7087 = vmul.f32 %v3148, %v6389
        %v7088 = vmul.f32 %v4212, %v6391
        %v7089 = vmul.f32 %v4214, %v6393
        %v7090 = vmul.f32 %v3152, %v6395
        %v7091 = vmul.f32 %v3154, %v6397
        %v7092 = vmul.f32 %v4218, %v6399
        %v7093 = vmul.f32 %v4220, %v6401
        %v7094 = vmul.f32 %v3156, %v6403
        %v7095 = vmul.f32 %v3158, %v6405
        %v7096 = vmul.f32 %v4222, %v6407
        %v7097 = vmul.f32 %v4224, %v6409
        %v7098 = vmul.f32 %v3162, %v6411
        %v7099 = vmul.f32 %v3164, %v6413
        %v7100 = vmul.f32 %v4228, %v6415
        %v7101 = vmul.f32 %v4230, %v6417
        %v7102 = vmul.f32 %v3166, %v6419
        %v7103 = vmul.f32 %v3168, %v6421
        %v7104 = vmul.f32 %v4232, %v6423
        %v7105 = vmul.f32 %v4234, %v6425
        %v7106 = vmul.f32 %v3172, %v6427
        %v7107 = vmul.f32 %v3174, %v6429
        %v7108 = vmul.f32 %v4238, %v6431
        %v7109 = vmul.f32 %v4240, %v6433
        %v7110 = vmul.f32 %v3176, %v6435
        %v7111 = vmul.f32 %v3178, %v6437
        %v7112 = vmul.f32 %v4242, %v6439
        %v7113 = vmul.f32 %v4244, %v6441
        %v7114 = vmul.f32 %v3182, %v6443
        %v7115 = vmul.f32 %v3184, %v6445
        %v7116 = vmul.f32 %v4248, %v6447
        %v7117 = vmul.f32 %v4250, %v6449
        %v7118 = vmul.f32 %v3186, %v6451
        %v7119 = vmul.f32 %v3188, %v6453
        %v7120 = vmul.f32 %v4252, %v6455
        %v7121 = vmul.f32 %v4254, %v6457
        %v7122 = vmul.f32 %v3192, %v6459
        %v7123 = vmul.f32 %v3194, %v6461
        %v7124 = vmul.f32 %v4258, %v6463
        %v7125 = vmul.f32 %v4260, %v6465
        %v7126 = vmul.f32 %v3196, %v6467
        %v7127 = vmul.f32 %v3198, %v6469
        %v7128 = vmul.f32 %v4262, %v6471
        %v7129 = vmul.f32 %v4264, %v6473
        %v7130 = vmul.f32 %v3202, %v6475
        %v7131 = vmul.f32 %v3204, %v6477
        %v7132 = vmul.f32 %v4268, %v6479
        %v7133 = vmul.f32 %v4270, %v6481
        %v7134 = vmul.f32 %v3206, %v6483
        %v7135 = vmul.f32 %v3208, %v6485
        %v7136 = vmul.f32 %v4272, %v6487
        %v7137 = vmul.f32 %v4274, %v6489
        %v7138 = vmul.f32 %v3212, %v6491
        %v7139 = vmul.f32 %v3214, %v6493
        %v7140 = vmul.f32 %v4278, %v6495
        %v7141 = vmul.f32 %v4280, %v6497
        %v7142 = vmul.f32 %v3216, %v6499
        %v7143 = vmul.f32 %v3218, %v6501
        %v7144 = vmul.f32 %v4282, %v6503
        %v7145 = vmul.f32 %v4284, %v6505
        %v7146 = vmul.f32 %v3222, %v6507
        %v7147 = vmul.f32 %v3224, %v6509
        %v7148 = vmul.f32 %v4288, %v6511
        %v7149 = vmul.f32 %v4290, %v6513
        %v7150 = vmul.f32 %v3226, %v6515
        %v7151 = vmul.f32 %v3228, %v6517
        %v7152 = vmul.f32 %v4292, %v6519
        %v7153 = vmul.f32 %v4294, %v6521
        %v7154 = vmul.f32 %v3232, %v6523
        %v7155 = vmul.f32 %v3234, %v6525
        %v7156 = vmul.f32 %v4298, %v6527
        %v7157 = vmul.f32 %v4300, %v6529
        %v7158 = vmul.f32 %v3236, %v6531
        %v7159 = vmul.f32 %v3238, %v6533
        %v7160 = vmul.f32 %v4302, %v6535
        %v7161 = vmul.f32 %v4304, %v6537
        %v7162 = vmul.f32 %v3242, %v6539
        %v7163 = vmul.f32 %v3244, %v6541
        %v7164 = vmul.f32 %v4308, %v6543
        %v7165 = vmul.f32 %v4310, %v6545
        %v7166 = vmul.f32 %v3246, %v6547
        %v7167 = vmul.f32 %v3248, %v6549
        %v7168 = vmul.f32 %v4312, %v6551
        %v7169 = vmul.f32 %v4314, %v6553
        %v7170 = vmul.f32 %v3252, %v6555
        %v7171 = vmul.f32 %v3254, %v6557
        %v7172 = vmul.f32 %v4318, %v6559
        %v7173 = vmul.f32 %v4320, %v6561
        %v7174 = vmul.f32 %v3256, %v6563
        %v7175 = vmul.f32 %v3258, %v6565
        %v7176 = vmul.f32 %v4322, %v6567
        %v7177 = vmul.f32 %v4324, %v6569
        %v7178 = vmul.f32 %v3262, %v6571
        %v7179 = vmul.f32 %v3264, %v6573
        %v7180 = vmul.f32 %v4328, %v6575
        %v7181 = vmul.f32 %v4330, %v6577
        %v7182 = vmul.f32 %v3266, %v6579
        %v7183 = vmul.f32 %v3268, %v6581
        %v7184 = vmul.f32 %v4332, %v6583
        %v7185 = vmul.f32 %v4334, %v6585
        %v7186 = vmul.f32 %v3272, %v6587
        %v7187 = vmul.f32 %v3274, %v6589
        %v7188 = vmul.f32 %v4338, %v6591
        %v7189 = vmul.f32 %v4340, %v6593
        %v7190 = vmul.f32 %v3276, %v6595
        %v7191 = vmul.f32 %v3278, %v6597
        %v7192 = vmul.f32 %v4342, %v6599
        %v7193 = vmul.f32 %v4344, %v6601
        %v7194 = vmul.f32 %v3282, %v6603
        %v7195 = vmul.f32 %v3284, %v6605
        %v7196 = vmul.f32 %v4348, %v6607
        %v7197 = vmul.f32 %v4350, %v6609
        %v7198 = vmul.f32 %v3286, %v6611
        %v7199 = vmul.f32 %v3288, %v6613
        %v7200 = vmul.f32 %v4352, %v6615
        %v7201 = vmul.f32 %v4354, %v6617
        %v7202 = vmul.f32 %v3292, %v6619
        %v7203 = vmul.f32 %v3294, %v6621
        %v7204 = vmul.f32 %v4358, %v6623
        %v7205 = vmul.f32 %v4360, %v6625
        %v7206 = vmul.f32 %v3296, %v6627
        %v7207 = vmul.f32 %v3298, %v6629
        %v7208 = vmul.f32 %v4362, %v6631
        %v7209 = vmul.f32 %v4364, %v6633
        %v7210 = vmul.f32 %v3302, %v6635
        %v7211 = vmul.f32 %v3304, %v6637
        %v7212 = vmul.f32 %v4368, %v6639
        %v7213 = vmul.f32 %v4370, %v6641
        %v7214 = vmul.f32 %v3306, %v6643
        %v7215 = vmul.f32 %v3308, %v6645
        %v7216 = vmul.f32 %v4372, %v6647
        %v7217 = vmul.f32 %v4374, %v6649
        %v7218 = vmul.f32 %v3312, %v6651
        %v7219 = vmul.f32 %v3314, %v6653
        %v7220 = vmul.f32 %v4378, %v6655
        %v7221 = vmul.f32 %v4380, %v6657
        %v7222 = vmul.f32 %v3316, %v6659
        %v7223 = vmul.f32 %v3318, %v6661
        %v7224 = vmul.f32 %v4382, %v6663
        %v7225 = vmul.f32 %v4384, %v6665
        %v7226 = vmul.f32 %v3322, %v6667
        %v7227 = vmul.f32 %v3324, %v6669
        %v7228 = vmul.f32 %v4388, %v6671
        %v7229 = vmul.f32 %v4390, %v6673
        %v7230 = vmul.f32 %v3326, %v6675
        %v7231 = vmul.f32 %v3328, %v6677
        %v7232 = vmul.f32 %v4392, %v6679
        %v7233 = vmul.f32 %v4394, %v6681
        %v7234 = vmul.f32 %v3332, %v6683
        %v7235 = vmul.f32 %v3334, %v6685
        %v7236 = vmul.f32 %v4398, %v6687
        %v7237 = vmul.f32 %v4400, %v6689
        %v7238 = vmul.f32 %v3336, %v6691
        %v7239 = vmul.f32 %v3338, %v6693
        %v7240 = vmul.f32 %v4402, %v6695
        %v7241 = vmul.f32 %v4404, %v6697
        %v7242 = vmul.f32 %v3342, %v6699
        %v7243 = vmul.f32 %v3344, %v6701
        %v7244 = vmul.f32 %v4408, %v6703
        %v7245 = vmul.f32 %v4410, %v6705
        %v7246 = vmul.f32 %v3346, %v6707
        %v7247 = vmul.f32 %v3348, %v6709
        %v7248 = vmul.f32 %v4412, %v6711
        %v7249 = vmul.f32 %v4414, %v6713
        %v7250 = vmul.f32 %v3352, %v6715
        %v7251 = vmul.f32 %v3354, %v6717
        %v7252 = vmul.f32 %v4418, %v6719
        %v7253 = vmul.f32 %v4420, %v6721
        %v7254 = vmul.f32 %v3356, %v6723
        %v7255 = vmul.f32 %v3358, %v6725
        %v7256 = vmul.f32 %v4422, %v6727
        %v7257 = vmul.f32 %v4424, %v6729
        %v7258 = vmul.f32 %v3362, %v6731
        %v7259 = vmul.f32 %v3364, %v6733
        %v7260 = vmul.f32 %v4428, %v6735
        %v7261 = vmul.f32 %v4430, %v6737
        %v7262 = vmul.f32 %v3366, %v6739
        %v7263 = vmul.f32 %v3368, %v6741
        %v7264 = vmul.f32 %v4432, %v6743
        %v7265 = vmul.f32 %v4434, %v6745
        %v7266 = vmul.f32 %v3372, %v6747
        %v7267 = vmul.f32 %v3374, %v6749
        %v7268 = vmul.f32 %v4438, %v6751
        %v7269 = vmul.f32 %v4440, %v6753
        %v7270 = vmul.f32 %v3376, %v6755
        %v7271 = vmul.f32 %v3378, %v6757
        %v7272 = vmul.f32 %v4442, %v6759
        %v7273 = vmul.f32 %v4444, %v6761
        %v7274 = vmul.f32 %v3382, %v6763
        %v7275 = vmul.f32 %v3384, %v6765
        %v7276 = vmul.f32 %v4448, %v6767
        %v7277 = vmul.f32 %v4450, %v6769
        %v7278 = vmul.f32 %v3386, %v6771
        %v7279 = vmul.f32 %v3388, %v6773
        %v7280 = vmul.f32 %v4452, %v6775
        %v7281 = vmul.f32 %v4454, %v6777
        %v7282 = vmul.f32 %v3392, %v6779
        %v7283 = vmul.f32 %v3394, %v6781
        %v7284 = vmul.f32 %v4458, %v6783
        %v7285 = vmul.f32 %v4460, %v6785
        %v7286 = vmul.f32 %v3396, %v6787
        %v7287 = vmul.f32 %v3398, %v6789
        %v7288 = vmul.f32 %v4462, %v6791
        %v7289 = vmul.f32 %v4464, %v6793
        %v7290 = vmul.f32 %v3402, %v6795
        %v7291 = vmul.f32 %v3404, %v6797
        %v7292 = vmul.f32 %v4468, %v6799
        %v7293 = vmul.f32 %v4470, %v6801
        %v7294 = vmul.f32 %v3406, %v6803
        %v7295 = vmul.f32 %v3408, %v6805
        %v7296 = vmul.f32 %v4472, %v6807
        %v7297 = vmul.f32 %v4474, %v6809
        %v7298 = vmul.f32 %v3412, %v6811
        %v7299 = vmul.f32 %v3414, %v6813
        %v7300 = vmul.f32 %v4478, %v6815
        %v7301 = vmul.f32 %v4480, %v6817
        %v7302 = vmul.f32 %v3416, %v6819
        %v7303 = vmul.f32 %v3418, %v6821
        %v7304 = vmul.f32 %v4482, %v6823
        %v7305 = vmul.f32 %v4484, %v6825
        %v7306 = vmul.f32 %v3422, %v6827
        %v7307 = vmul.f32 %v3424, %v6829
        %v7308 = vmul.f32 %v4488, %v6831
        %v7309 = vmul.f32 %v4490, %v6833
        %v7310 = vmul.f32 %v3426, %v6835
        %v7311 = vmul.f32 %v3428, %v6837
        %v7312 = vmul.f32 %v4492, %v6839
        %v7313 = vmul.f32 %v4494, %v6841
        %v7314 = vmul.f32 %v3432, %v6843
        %v7315 = vmul.f32 %v3434, %v6845
        %v7316 = vmul.f32 %v4498, %v6847
        %v7317 = vmul.f32 %v4500, %v6849
        %v7318 = vmul.f32 %v3436, %v6851
        %v7319 = vmul.f32 %v3438, %v6853
        %v7320 = vmul.f32 %v4502, %v6855
        %v7321 = vmul.f32 %v4504, %v6857
        %v7322 = vmul.f32 %v3442, %v6859
        %v7323 = vmul.f32 %v3444, %v6861
        %v7324 = vmul.f32 %v4508, %v6863
        %v7325 = vmul.f32 %v4510, %v6865
        %v7326 = vmul.f32 %v3446, %v6867
        %v7327 = vmul.f32 %v3448, %v6869
        %v7328 = vmul.f32 %v4512, %v6871
        %v7329 = vmul.f32 %v4514, %v6873
        %v7330 = vmul.f32 %v3452, %v6875
        %v7331 = vmul.f32 %v3454, %v6877
        %v7332 = vmul.f32 %v4518, %v6879
        %v7333 = vmul.f32 %v4520, %v6881
        %v7334 = vmul.f32 %v3456, %v6883
        %v7335 = vmul.f32 %v3458, %v6885
        %v7336 = vmul.f32 %v4522, %v6887
        %v7337 = vmul.f32 %v4524, %v6889
        %v7338 = vmul.f32 %v3462, %v6891
        %v7339 = vmul.f32 %v3464, %v6893
        %v7340 = vmul.f32 %v4528, %v6895
        %v7341 = vmul.f32 %v4530, %v6897
        %v7342 = vmul.f32 %v3466, %v6899
        %v7343 = vmul.f32 %v3468, %v6901
        %v7344 = vmul.f32 %v4532, %v6903
        %v7345 = vmul.f32 %v4534, %v6905
        %v7346 = vmul.f32 %v3472, %v6907
        %v7347 = vmul.f32 %v3474, %v6909
        %v7348 = vmul.f32 %v4538, %v6911
        %v7349 = vmul.f32 %v4540, %v6913
        %v7350 = vmul.f32 %v3476, %v6915
        %v7351 = vmul.f32 %v3478, %v6917
        %v7352 = vmul.f32 %v4542, %v6919
        %v7353 = vmul.f32 %v4544, %v6921
        %v7354 = vmul.f32 %v3482, %v6923
        %v7355 = vmul.f32 %v3484, %v6925
        %v7356 = vmul.f32 %v4548, %v6927
        %v7357 = vmul.f32 %v4550, %v6929
        %v7358 = vmul.f32 %v3486, %v6931
        %v7359 = vmul.f32 %v3488, %v6933
        %v7360 = vmul.f32 %v4552, %v6935
        %v7361 = vmul.f32 %v4554, %v6937
        %v7362 = vmul.f32 %v3492, %v6939
        %v7363 = vmul.f32 %v3494, %v6941
        %v7364 = vmul.f32 %v4558, %v6943
        %v7365 = vmul.f32 %v4560, %v6945
        %v7366 = vmul.f32 %v3496, %v6947
        %v7367 = vmul.f32 %v3498, %v6949
        %v7368 = vmul.f32 %v4562, %v6951
        %v7369 = vmul.f32 %v4564, %v6953
        %v7370 = vmul.f32 %v3502, %v6955
        %v7371 = vmul.f32 %v3504, %v6957
        %v7372 = vmul.f32 %v4568, %v6959
        %v7373 = vmul.f32 %v4570, %v6961
        %v7374 = vmul.f32 %v3506, %v6963
        %v7375 = vmul.f32 %v3508, %v6965
        %v7376 = vmul.f32 %v4572, %v6967
        %v7377 = vmul.f32 %v4574, %v6969
        %v7378 = vmul.f32 %v3512, %v6971
        %v7379 = vmul.f32 %v3514, %v6973
        %v7380 = vmul.f32 %v4578, %v6975
        %v7381 = vmul.f32 %v4580, %v6977
        %v7382 = vmul.f32 %v3516, %v6979
        %v7383 = vmul.f32 %v3518, %v6981
        %v7384 = vmul.f32 %v4582, %v6983
        %v7385 = vmul.f32 %v4584, %v6985
        %v7386 = vadd.f32 %v6986, %v6990
        %v7387 = vadd.f32 %v7386, %v6994
        %v7388 = vadd.f32 %v7387, %v6998
        %v7389 = vadd.f32 %v7388, %v7002
        %v7390 = vadd.f32 %v7389, %v7006
        %v7391 = vadd.f32 %v7390, %v7010
        %v7392 = vadd.f32 %v7391, %v7014
        %v7393 = vadd.f32 %v7392, %v7018
        %v7394 = vadd.f32 %v7393, %v7022
        %v7395 = vadd.f32 %v7394, %v7026
        %v7396 = vadd.f32 %v7395, %v7030
        %v7397 = vadd.f32 %v7396, %v7034
        %v7398 = vadd.f32 %v7397, %v7038
        %v7399 = vadd.f32 %v7398, %v7042
        %v7400 = vadd.f32 %v7399, %v7046
        %v7401 = vadd.f32 %v7400, %v7050
        %v7402 = vadd.f32 %v7401, %v7054
        %v7403 = vadd.f32 %v7402, %v7058
        %v7404 = vadd.f32 %v7403, %v7062
        %v7405 = vadd.f32 %v7404, %v7066
        %v7406 = vadd.f32 %v7405, %v7070
        %v7407 = vadd.f32 %v7406, %v7074
        %v7408 = vadd.f32 %v7407, %v7078
        %v7409 = vadd.f32 %v7408, %v7082
        %v7410 = vadd.f32 %v7409, %v7086
        %v7411 = vadd.f32 %v7410, %v7090
        %v7412 = vadd.f32 %v7411, %v7094
        %v7413 = vadd.f32 %v7412, %v7098
        %v7414 = vadd.f32 %v7413, %v7102
        %v7415 = vadd.f32 %v7414, %v7106
        %v7416 = vadd.f32 %v7415, %v7110
        %v7417 = vadd.f32 %v7416, %v7114
        %v7418 = vadd.f32 %v7417, %v7118
        %v7419 = vadd.f32 %v7418, %v7122
        %v7420 = vadd.f32 %v7419, %v7126
        %v7421 = vadd.f32 %v7420, %v7130
        %v7422 = vadd.f32 %v7421, %v7134
        %v7423 = vadd.f32 %v7422, %v7138
        %v7424 = vadd.f32 %v7423, %v7142
        %v7425 = vadd.f32 %v7424, %v7146
        %v7426 = vadd.f32 %v7425, %v7150
        %v7427 = vadd.f32 %v7426, %v7154
        %v7428 = vadd.f32 %v7427, %v7158
        %v7429 = vadd.f32 %v7428, %v7162
        %v7430 = vadd.f32 %v7429, %v7166
        %v7431 = vadd.f32 %v7430, %v7170
        %v7432 = vadd.f32 %v7431, %v7174
        %v7433 = vadd.f32 %v7432, %v7178
        %v7434 = vadd.f32 %v7433, %v7182
        %v7435 = vrot.slane %v7434, 4
        %v7436 = vadd.f32 %v7434, %v7435
        %v7437 = vrot.slane %v7436, 2
        %v7438 = vadd.f32 %v7436, %v7437
        %v7439 = vrot.slane %v7438, 1
        %v7440 = vadd.f32 %v7438, %v7439
        %v7441 = vadd.f32 %v6987, %v6991
        %v7442 = vadd.f32 %v7441, %v6995
        %v7443 = vadd.f32 %v7442, %v6999
        %v7444 = vadd.f32 %v7443, %v7003
        %v7445 = vadd.f32 %v7444, %v7007
        %v7446 = vadd.f32 %v7445, %v7011
        %v7447 = vadd.f32 %v7446, %v7015
        %v7448 = vadd.f32 %v7447, %v7019
        %v7449 = vadd.f32 %v7448, %v7023
        %v7450 = vadd.f32 %v7449, %v7027
        %v7451 = vadd.f32 %v7450, %v7031
        %v7452 = vadd.f32 %v7451, %v7035
        %v7453 = vadd.f32 %v7452, %v7039
        %v7454 = vadd.f32 %v7453, %v7043
        %v7455 = vadd.f32 %v7454, %v7047
        %v7456 = vadd.f32 %v7455, %v7051
        %v7457 = vadd.f32 %v7456, %v7055
        %v7458 = vadd.f32 %v7457, %v7059
        %v7459 = vadd.f32 %v7458, %v7063
        %v7460 = vadd.f32 %v7459, %v7067
        %v7461 = vadd.f32 %v7460, %v7071
        %v7462 = vadd.f32 %v7461, %v7075
        %v7463 = vadd.f32 %v7462, %v7079
        %v7464 = vadd.f32 %v7463, %v7083
        %v7465 = vadd.f32 %v7464, %v7087
        %v7466 = vadd.f32 %v7465, %v7091
        %v7467 = vadd.f32 %v7466, %v7095
        %v7468 = vadd.f32 %v7467, %v7099
        %v7469 = vadd.f32 %v7468, %v7103
        %v7470 = vadd.f32 %v7469, %v7107
        %v7471 = vadd.f32 %v7470, %v7111
        %v7472 = vadd.f32 %v7471, %v7115
        %v7473 = vadd.f32 %v7472, %v7119
        %v7474 = vadd.f32 %v7473, %v7123
        %v7475 = vadd.f32 %v7474, %v7127
        %v7476 = vadd.f32 %v7475, %v7131
        %v7477 = vadd.f32 %v7476, %v7135
        %v7478 = vadd.f32 %v7477, %v7139
        %v7479 = vadd.f32 %v7478, %v7143
        %v7480 = vadd.f32 %v7479, %v7147
        %v7481 = vadd.f32 %v7480, %v7151
        %v7482 = vadd.f32 %v7481, %v7155
        %v7483 = vadd.f32 %v7482, %v7159
        %v7484 = vadd.f32 %v7483, %v7163
        %v7485 = vadd.f32 %v7484, %v7167
        %v7486 = vadd.f32 %v7485, %v7171
        %v7487 = vadd.f32 %v7486, %v7175
        %v7488 = vadd.f32 %v7487, %v7179
        %v7489 = vadd.f32 %v7488, %v7183
        %v7490 = vrot.slane %v7489, 4
        %v7491 = vadd.f32 %v7489, %v7490
        %v7492 = vrot.slane %v7491, 2
        %v7493 = vadd.f32 %v7491, %v7492
        %v7494 = vrot.slane %v7493, 1
        %v7495 = vadd.f32 %v7493, %v7494
        %v7496 = vadd.f32 %v6988, %v6992
        %v7497 = vadd.f32 %v7496, %v6996
        %v7498 = vadd.f32 %v7497, %v7000
        %v7499 = vadd.f32 %v7498, %v7004
        %v7500 = vadd.f32 %v7499, %v7008
        %v7501 = vadd.f32 %v7500, %v7012
        %v7502 = vadd.f32 %v7501, %v7016
        %v7503 = vadd.f32 %v7502, %v7020
        %v7504 = vadd.f32 %v7503, %v7024
        %v7505 = vadd.f32 %v7504, %v7028
        %v7506 = vadd.f32 %v7505, %v7032
        %v7507 = vadd.f32 %v7506, %v7036
        %v7508 = vadd.f32 %v7507, %v7040
        %v7509 = vadd.f32 %v7508, %v7044
        %v7510 = vadd.f32 %v7509, %v7048
        %v7511 = vadd.f32 %v7510, %v7052
        %v7512 = vadd.f32 %v7511, %v7056
        %v7513 = vadd.f32 %v7512, %v7060
        %v7514 = vadd.f32 %v7513, %v7064
        %v7515 = vadd.f32 %v7514, %v7068
        %v7516 = vadd.f32 %v7515, %v7072
        %v7517 = vadd.f32 %v7516, %v7076
        %v7518 = vadd.f32 %v7517, %v7080
        %v7519 = vadd.f32 %v7518, %v7084
        %v7520 = vadd.f32 %v7519, %v7088
        %v7521 = vadd.f32 %v7520, %v7092
        %v7522 = vadd.f32 %v7521, %v7096
        %v7523 = vadd.f32 %v7522, %v7100
        %v7524 = vadd.f32 %v7523, %v7104
        %v7525 = vadd.f32 %v7524, %v7108
        %v7526 = vadd.f32 %v7525, %v7112
        %v7527 = vadd.f32 %v7526, %v7116
        %v7528 = vadd.f32 %v7527, %v7120
        %v7529 = vadd.f32 %v7528, %v7124
        %v7530 = vadd.f32 %v7529, %v7128
        %v7531 = vadd.f32 %v7530, %v7132
        %v7532 = vadd.f32 %v7531, %v7136
        %v7533 = vadd.f32 %v7532, %v7140
        %v7534 = vadd.f32 %v7533, %v7144
        %v7535 = vadd.f32 %v7534, %v7148
        %v7536 = vadd.f32 %v7535, %v7152
        %v7537 = vadd.f32 %v7536, %v7156
        %v7538 = vadd.f32 %v7537, %v7160
        %v7539 = vadd.f32 %v7538, %v7164
        %v7540 = vadd.f32 %v7539, %v7168
        %v7541 = vadd.f32 %v7540, %v7172
        %v7542 = vadd.f32 %v7541, %v7176
        %v7543 = vadd.f32 %v7542, %v7180
        %v7544 = vadd.f32 %v7543, %v7184
        %v7545 = vrot.slane %v7544, 4
        %v7546 = vadd.f32 %v7544, %v7545
        %v7547 = vrot.slane %v7546, 2
        %v7548 = vadd.f32 %v7546, %v7547
        %v7549 = vrot.slane %v7548, 1
        %v7550 = vadd.f32 %v7548, %v7549
        %v7551 = vadd.f32 %v6989, %v6993
        %v7552 = vadd.f32 %v7551, %v6997
        %v7553 = vadd.f32 %v7552, %v7001
        %v7554 = vadd.f32 %v7553, %v7005
        %v7555 = vadd.f32 %v7554, %v7009
        %v7556 = vadd.f32 %v7555, %v7013
        %v7557 = vadd.f32 %v7556, %v7017
        %v7558 = vadd.f32 %v7557, %v7021
        %v7559 = vadd.f32 %v7558, %v7025
        %v7560 = vadd.f32 %v7559, %v7029
        %v7561 = vadd.f32 %v7560, %v7033
        %v7562 = vadd.f32 %v7561, %v7037
        %v7563 = vadd.f32 %v7562, %v7041
        %v7564 = vadd.f32 %v7563, %v7045
        %v7565 = vadd.f32 %v7564, %v7049
        %v7566 = vadd.f32 %v7565, %v7053
        %v7567 = vadd.f32 %v7566, %v7057
        %v7568 = vadd.f32 %v7567, %v7061
        %v7569 = vadd.f32 %v7568, %v7065
        %v7570 = vadd.f32 %v7569, %v7069
        %v7571 = vadd.f32 %v7570, %v7073
        %v7572 = vadd.f32 %v7571, %v7077
        %v7573 = vadd.f32 %v7572, %v7081
        %v7574 = vadd.f32 %v7573, %v7085
        %v7575 = vadd.f32 %v7574, %v7089
        %v7576 = vadd.f32 %v7575, %v7093
        %v7577 = vadd.f32 %v7576, %v7097
        %v7578 = vadd.f32 %v7577, %v7101
        %v7579 = vadd.f32 %v7578, %v7105
        %v7580 = vadd.f32 %v7579, %v7109
        %v7581 = vadd.f32 %v7580, %v7113
        %v7582 = vadd.f32 %v7581, %v7117
        %v7583 = vadd.f32 %v7582, %v7121
        %v7584 = vadd.f32 %v7583, %v7125
        %v7585 = vadd.f32 %v7584, %v7129
        %v7586 = vadd.f32 %v7585, %v7133
        %v7587 = vadd.f32 %v7586, %v7137
        %v7588 = vadd.f32 %v7587, %v7141
        %v7589 = vadd.f32 %v7588, %v7145
        %v7590 = vadd.f32 %v7589, %v7149
        %v7591 = vadd.f32 %v7590, %v7153
        %v7592 = vadd.f32 %v7591, %v7157
        %v7593 = vadd.f32 %v7592, %v7161
        %v7594 = vadd.f32 %v7593, %v7165
        %v7595 = vadd.f32 %v7594, %v7169
        %v7596 = vadd.f32 %v7595, %v7173
        %v7597 = vadd.f32 %v7596, %v7177
        %v7598 = vadd.f32 %v7597, %v7181
        %v7599 = vadd.f32 %v7598, %v7185
        %v7600 = vrot.slane %v7599, 4
        %v7601 = vadd.f32 %v7599, %v7600
        %v7602 = vrot.slane %v7601, 2
        %v7603 = vadd.f32 %v7601, %v7602
        %v7604 = vrot.slane %v7603, 1
        %v7605 = vadd.f32 %v7603, %v7604
        %v7606 = vadd.f32 %v7186, %v7190
        %v7607 = vadd.f32 %v7606, %v7194
        %v7608 = vadd.f32 %v7607, %v7198
        %v7609 = vadd.f32 %v7608, %v7202
        %v7610 = vadd.f32 %v7609, %v7206
        %v7611 = vadd.f32 %v7610, %v7210
        %v7612 = vadd.f32 %v7611, %v7214
        %v7613 = vadd.f32 %v7612, %v7218
        %v7614 = vadd.f32 %v7613, %v7222
        %v7615 = vadd.f32 %v7614, %v7226
        %v7616 = vadd.f32 %v7615, %v7230
        %v7617 = vadd.f32 %v7616, %v7234
        %v7618 = vadd.f32 %v7617, %v7238
        %v7619 = vadd.f32 %v7618, %v7242
        %v7620 = vadd.f32 %v7619, %v7246
        %v7621 = vadd.f32 %v7620, %v7250
        %v7622 = vadd.f32 %v7621, %v7254
        %v7623 = vadd.f32 %v7622, %v7258
        %v7624 = vadd.f32 %v7623, %v7262
        %v7625 = vadd.f32 %v7624, %v7266
        %v7626 = vadd.f32 %v7625, %v7270
        %v7627 = vadd.f32 %v7626, %v7274
        %v7628 = vadd.f32 %v7627, %v7278
        %v7629 = vadd.f32 %v7628, %v7282
        %v7630 = vadd.f32 %v7629, %v7286
        %v7631 = vadd.f32 %v7630, %v7290
        %v7632 = vadd.f32 %v7631, %v7294
        %v7633 = vadd.f32 %v7632, %v7298
        %v7634 = vadd.f32 %v7633, %v7302
        %v7635 = vadd.f32 %v7634, %v7306
        %v7636 = vadd.f32 %v7635, %v7310
        %v7637 = vadd.f32 %v7636, %v7314
        %v7638 = vadd.f32 %v7637, %v7318
        %v7639 = vadd.f32 %v7638, %v7322
        %v7640 = vadd.f32 %v7639, %v7326
        %v7641 = vadd.f32 %v7640, %v7330
        %v7642 = vadd.f32 %v7641, %v7334
        %v7643 = vadd.f32 %v7642, %v7338
        %v7644 = vadd.f32 %v7643, %v7342
        %v7645 = vadd.f32 %v7644, %v7346
        %v7646 = vadd.f32 %v7645, %v7350
        %v7647 = vadd.f32 %v7646, %v7354
        %v7648 = vadd.f32 %v7647, %v7358
        %v7649 = vadd.f32 %v7648, %v7362
        %v7650 = vadd.f32 %v7649, %v7366
        %v7651 = vadd.f32 %v7650, %v7370
        %v7652 = vadd.f32 %v7651, %v7374
        %v7653 = vadd.f32 %v7652, %v7378
        %v7654 = vadd.f32 %v7653, %v7382
        %v7655 = vrot.slane %v7654, 4
        %v7656 = vadd.f32 %v7654, %v7655
        %v7657 = vrot.slane %v7656, 2
        %v7658 = vadd.f32 %v7656, %v7657
        %v7659 = vrot.slane %v7658, 1
        %v7660 = vadd.f32 %v7658, %v7659
        %v7661 = vadd.f32 %v7187, %v7191
        %v7662 = vadd.f32 %v7661, %v7195
        %v7663 = vadd.f32 %v7662, %v7199
        %v7664 = vadd.f32 %v7663, %v7203
        %v7665 = vadd.f32 %v7664, %v7207
        %v7666 = vadd.f32 %v7665, %v7211
        %v7667 = vadd.f32 %v7666, %v7215
        %v7668 = vadd.f32 %v7667, %v7219
        %v7669 = vadd.f32 %v7668, %v7223
        %v7670 = vadd.f32 %v7669, %v7227
        %v7671 = vadd.f32 %v7670, %v7231
        %v7672 = vadd.f32 %v7671, %v7235
        %v7673 = vadd.f32 %v7672, %v7239
        %v7674 = vadd.f32 %v7673, %v7243
        %v7675 = vadd.f32 %v7674, %v7247
        %v7676 = vadd.f32 %v7675, %v7251
        %v7677 = vadd.f32 %v7676, %v7255
        %v7678 = vadd.f32 %v7677, %v7259
        %v7679 = vadd.f32 %v7678, %v7263
        %v7680 = vadd.f32 %v7679, %v7267
        %v7681 = vadd.f32 %v7680, %v7271
        %v7682 = vadd.f32 %v7681, %v7275
        %v7683 = vadd.f32 %v7682, %v7279
        %v7684 = vadd.f32 %v7683, %v7283
        %v7685 = vadd.f32 %v7684, %v7287
        %v7686 = vadd.f32 %v7685, %v7291
        %v7687 = vadd.f32 %v7686, %v7295
        %v7688 = vadd.f32 %v7687, %v7299
        %v7689 = vadd.f32 %v7688, %v7303
        %v7690 = vadd.f32 %v7689, %v7307
        %v7691 = vadd.f32 %v7690, %v7311
        %v7692 = vadd.f32 %v7691, %v7315
        %v7693 = vadd.f32 %v7692, %v7319
        %v7694 = vadd.f32 %v7693, %v7323
        %v7695 = vadd.f32 %v7694, %v7327
        %v7696 = vadd.f32 %v7695, %v7331
        %v7697 = vadd.f32 %v7696, %v7335
        %v7698 = vadd.f32 %v7697, %v7339
        %v7699 = vadd.f32 %v7698, %v7343
        %v7700 = vadd.f32 %v7699, %v7347
        %v7701 = vadd.f32 %v7700, %v7351
        %v7702 = vadd.f32 %v7701, %v7355
        %v7703 = vadd.f32 %v7702, %v7359
        %v7704 = vadd.f32 %v7703, %v7363
        %v7705 = vadd.f32 %v7704, %v7367
        %v7706 = vadd.f32 %v7705, %v7371
        %v7707 = vadd.f32 %v7706, %v7375
        %v7708 = vadd.f32 %v7707, %v7379
        %v7709 = vadd.f32 %v7708, %v7383
        %v7710 = vrot.slane %v7709, 4
        %v7711 = vadd.f32 %v7709, %v7710
        %v7712 = vrot.slane %v7711, 2
        %v7713 = vadd.f32 %v7711, %v7712
        %v7714 = vrot.slane %v7713, 1
        %v7715 = vadd.f32 %v7713, %v7714
        %v7716 = vadd.f32 %v7188, %v7192
        %v7717 = vadd.f32 %v7716, %v7196
        %v7718 = vadd.f32 %v7717, %v7200
        %v7719 = vadd.f32 %v7718, %v7204
        %v7720 = vadd.f32 %v7719, %v7208
        %v7721 = vadd.f32 %v7720, %v7212
        %v7722 = vadd.f32 %v7721, %v7216
        %v7723 = vadd.f32 %v7722, %v7220
        %v7724 = vadd.f32 %v7723, %v7224
        %v7725 = vadd.f32 %v7724, %v7228
        %v7726 = vadd.f32 %v7725, %v7232
        %v7727 = vadd.f32 %v7726, %v7236
        %v7728 = vadd.f32 %v7727, %v7240
        %v7729 = vadd.f32 %v7728, %v7244
        %v7730 = vadd.f32 %v7729, %v7248
        %v7731 = vadd.f32 %v7730, %v7252
        %v7732 = vadd.f32 %v7731, %v7256
        %v7733 = vadd.f32 %v7732, %v7260
        %v7734 = vadd.f32 %v7733, %v7264
        %v7735 = vadd.f32 %v7734, %v7268
        %v7736 = vadd.f32 %v7735, %v7272
        %v7737 = vadd.f32 %v7736, %v7276
        %v7738 = vadd.f32 %v7737, %v7280
        %v7739 = vadd.f32 %v7738, %v7284
        %v7740 = vadd.f32 %v7739, %v7288
        %v7741 = vadd.f32 %v7740, %v7292
        %v7742 = vadd.f32 %v7741, %v7296
        %v7743 = vadd.f32 %v7742, %v7300
        %v7744 = vadd.f32 %v7743, %v7304
        %v7745 = vadd.f32 %v7744, %v7308
        %v7746 = vadd.f32 %v7745, %v7312
        %v7747 = vadd.f32 %v7746, %v7316
        %v7748 = vadd.f32 %v7747, %v7320
        %v7749 = vadd.f32 %v7748, %v7324
        %v7750 = vadd.f32 %v7749, %v7328
        %v7751 = vadd.f32 %v7750, %v7332
        %v7752 = vadd.f32 %v7751, %v7336
        %v7753 = vadd.f32 %v7752, %v7340
        %v7754 = vadd.f32 %v7753, %v7344
        %v7755 = vadd.f32 %v7754, %v7348
        %v7756 = vadd.f32 %v7755, %v7352
        %v7757 = vadd.f32 %v7756, %v7356
        %v7758 = vadd.f32 %v7757, %v7360
        %v7759 = vadd.f32 %v7758, %v7364
        %v7760 = vadd.f32 %v7759, %v7368
        %v7761 = vadd.f32 %v7760, %v7372
        %v7762 = vadd.f32 %v7761, %v7376
        %v7763 = vadd.f32 %v7762, %v7380
        %v7764 = vadd.f32 %v7763, %v7384
        %v7765 = vrot.slane %v7764, 4
        %v7766 = vadd.f32 %v7764, %v7765
        %v7767 = vrot.slane %v7766, 2
        %v7768 = vadd.f32 %v7766, %v7767
        %v7769 = vrot.slane %v7768, 1
        %v7770 = vadd.f32 %v7768, %v7769
        %v7771 = vadd.f32 %v7189, %v7193
        %v7772 = vadd.f32 %v7771, %v7197
        %v7773 = vadd.f32 %v7772, %v7201
        %v7774 = vadd.f32 %v7773, %v7205
        %v7775 = vadd.f32 %v7774, %v7209
        %v7776 = vadd.f32 %v7775, %v7213
        %v7777 = vadd.f32 %v7776, %v7217
        %v7778 = vadd.f32 %v7777, %v7221
        %v7779 = vadd.f32 %v7778, %v7225
        %v7780 = vadd.f32 %v7779, %v7229
        %v7781 = vadd.f32 %v7780, %v7233
        %v7782 = vadd.f32 %v7781, %v7237
        %v7783 = vadd.f32 %v7782, %v7241
        %v7784 = vadd.f32 %v7783, %v7245
        %v7785 = vadd.f32 %v7784, %v7249
        %v7786 = vadd.f32 %v7785, %v7253
        %v7787 = vadd.f32 %v7786, %v7257
        %v7788 = vadd.f32 %v7787, %v7261
        %v7789 = vadd.f32 %v7788, %v7265
        %v7790 = vadd.f32 %v7789, %v7269
        %v7791 = vadd.f32 %v7790, %v7273
        %v7792 = vadd.f32 %v7791, %v7277
        %v7793 = vadd.f32 %v7792, %v7281
        %v7794 = vadd.f32 %v7793, %v7285
        %v7795 = vadd.f32 %v7794, %v7289
        %v7796 = vadd.f32 %v7795, %v7293
        %v7797 = vadd.f32 %v7796, %v7297
        %v7798 = vadd.f32 %v7797, %v7301
        %v7799 = vadd.f32 %v7798, %v7305
        %v7800 = vadd.f32 %v7799, %v7309
        %v7801 = vadd.f32 %v7800, %v7313
        %v7802 = vadd.f32 %v7801, %v7317
        %v7803 = vadd.f32 %v7802, %v7321
        %v7804 = vadd.f32 %v7803, %v7325
        %v7805 = vadd.f32 %v7804, %v7329
        %v7806 = vadd.f32 %v7805, %v7333
        %v7807 = vadd.f32 %v7806, %v7337
        %v7808 = vadd.f32 %v7807, %v7341
        %v7809 = vadd.f32 %v7808, %v7345
        %v7810 = vadd.f32 %v7809, %v7349
        %v7811 = vadd.f32 %v7810, %v7353
        %v7812 = vadd.f32 %v7811, %v7357
        %v7813 = vadd.f32 %v7812, %v7361
        %v7814 = vadd.f32 %v7813, %v7365
        %v7815 = vadd.f32 %v7814, %v7369
        %v7816 = vadd.f32 %v7815, %v7373
        %v7817 = vadd.f32 %v7816, %v7377
        %v7818 = vadd.f32 %v7817, %v7381
        %v7819 = vadd.f32 %v7818, %v7385
        %v7820 = vrot.slane %v7819, 4
        %v7821 = vadd.f32 %v7819, %v7820
        %v7822 = vrot.slane %v7821, 2
        %v7823 = vadd.f32 %v7821, %v7822
        %v7824 = vrot.slane %v7823, 1
        %v7825 = vadd.f32 %v7823, %v7824
        %v7826 = vrcp.pop 400.0
        %v7827 = vmul.f32 %v7440, %v7826
        %v7828 = vmul.f32 %v7495, %v7826
        %v7829 = vmul.f32 %v7550, %v7826
        %v7830 = vmul.f32 %v7605, %v7826
        %v7831 = vmul.f32 %v7660, %v7826
        %v7832 = vmul.f32 %v7715, %v7826
        %v7833 = vmul.f32 %v7770, %v7826
        %v7834 = vmul.f32 %v7825, %v7826
        %v7843 = vcombine.low %v7827, %v7828
        %v7844 = vcombine.low %v7829, %v7830
        %v7846 = vunpack.c.l.s4 1983009808
        %v7847 = vunpack.c.0.s8 %v7846
        %v7848 = vlaneseq
        %v7849 = vshrl.u32 %v7848, 7
        %v7850 = vsub.s32 %v7847, %v7849
        %v7851 = vrot.slane %v7843, %v7850
        %v7853 = vunpack.c.l.s4 1983009808
        %v7854 = vunpack.c.0.s8 %v7853
        %v7855 = vlaneseq
        %v7856 = vshrl.u32 %v7855, 7
        %v7857 = vsub.s32 %v7854, %v7856
        %v7858 = vrot.slane %v7844, %v7857
        %v7859 = vcombine.low %v7851, %v7858
        %v7860 = vcombine.low %v7831, %v7832
        %v7861 = vcombine.low %v7833, %v7834
        %v7863 = vunpack.c.l.s4 1983009808
        %v7864 = vunpack.c.0.s8 %v7863
        %v7865 = vlaneseq
        %v7866 = vshrl.u32 %v7865, 7
        %v7867 = vsub.s32 %v7864, %v7866
        %v7868 = vrot.slane %v7860, %v7867
        %v7870 = vunpack.c.l.s4 1983009808
        %v7871 = vunpack.c.0.s8 %v7870
        %v7872 = vlaneseq
        %v7873 = vshrl.u32 %v7872, 7
        %v7874 = vsub.s32 %v7871, %v7873
        %v7875 = vrot.slane %v7861, %v7874
        %v7876 = vcombine.low %v7868, %v7875
        %vm7877 = vcmask 1044484
        %v7878 = vsel %vm7877, %v7859, %v7859
        %vm7879 = vcmask 1046534
        %v7880 = vsel %vm7879, %v7859, %v7878
        %v7881 = vrot.slane %v7876, 7
        %vm7882 = vcmask 1041409
        %v7883 = vsel %vm7882, %v7881, %v7880
        %vm7884 = vcmask 1043459
        %v7885 = vsel %vm7884, %v7881, %v7883
        %vm7886 = vcmask 1045509
        %v7887 = vsel %vm7886, %v7881, %v7885
        %vm7888 = vcmask 1047559
        %v7889 = vsel %vm7888, %v7881, %v7887
        %7891 = vst [vmem:[%s456] sm:$0xff] %v7889
        %s7892 = sand.u32 %s98, 1
        %s7893 = scalar_lea.sflag [#allocation4], %s7892
        %s7894 = sand.u32 %s98, 1
        %s7895 = smul.addr %s7894, 8
        %s7896 = scalar_lea.vmem [#allocation3], %s7895
        // Predicated region
        $region56: #{modeleeg_forward.1} parent=50 // pred_check
          %p7897 = pneg %p108
        $region57: #{modeleeg_forward.1} parent=50 // pred_check_branch
          %7899 = sbr.rel (%p7897) target = $region59
        $region58: #{modeleeg_forward.1} parent=50 // pred_region
          %s7900 = smul.u32 4, %s17
          %s7902 = ssub.s32 128, 128
          %7903 = vsyncadd %s7893, %s7902
          %s7904 = smul.addr %s7900, 32
          %s7905 = scalar_lea.hbm %s3, %s7904
          %s7907 = sshll.u32 %s7896, 4
          %s7908 = int_to_ptr.vmem [resolvable:$true] %s7907
          %7910 = dma.vmem_to_hbm [thread:$0]  %s7908, 128, %s7905, %s7893
        $region59: #{modeleeg_forward.1} parent=50 // pred_fallthru
          _
      $region51: #{modeleeg_forward.1} parent=5 // pred_fallthru
        _
      %p7911 = scmp.le.s32.totalorder 2, %s12
      // Predicated region
      $region60: #{modeleeg_forward.1} parent=5 // pred_check
        %p7912 = pneg %p7911
      $region61: #{modeleeg_forward.1} parent=5 // pred_check_branch
        %7914 = sbr.rel (%p7912) target = $region63
      $region62: #{modeleeg_forward.1} parent=5 // pred_region
        %s7915 = ssub.s32 %s12, 2
        // Predicated region
        $region64: #{modeleeg_forward.1} parent=62 // pred_check
          %p7916 = pneg %p114
        $region65: #{modeleeg_forward.1} parent=62 // pred_check_branch
          %7918 = sbr.rel (%p7916) target = $region67
        $region66: #{modeleeg_forward.1} parent=62 // pred_region
          %s7919 = sand.u32 %s99, 1
          %s7920 = scalar_lea.sflag [#allocation4], %s7919
          %s7921 = sand.u32 %s99, 1
          %s7922 = smul.addr %s7921, 8
          %s7923 = scalar_lea.vmem [#allocation3], %s7922
          %7924 = dma.done %s7920, 128
        $region67: #{modeleeg_forward.1} parent=62 // pred_fallthru
          _
      $region63: #{modeleeg_forward.1} parent=5 // pred_fallthru
        _
    $region6: #{modeleeg_forward.1} parent=1 // loop_footer
      %s16 = sadd.s32 1, %s12
    $region7: #{modeleeg_forward.1} parent=1 // loop_footer_branch
      %11 = sbr.rel target = $region3
    $region8: #{modeleeg_forward.1} parent=1 // loop_exit
      _
    %7925 = vsyncpa [#allocation4], 1
    %s7926 = scalar_lea.sflag [#allocation4], 1
    %7927 = vsyncpa %s7926, 1

</llo_original>
